<compile_context>
chip_gen: v7x
topology: tpu7x:2x2x1
jax: 0.10.0
libtpu: 0.0.40
codegen_flags: <defaults>
</compile_context>

<pallas_src>
import jax
import jax.numpy as jnp
from jax.experimental import pallas as pl
from jax.experimental.pallas import tpu as pltpu

EPS = 1e-5  # PyTorch InstanceNorm3d default (affine=False, track_running_stats=False)


# ----------------------------- fused Pallas kernel --------------------------------------

def _make_fused_kernel(Cin, Cout, Cm, D2, H2, W2, P):
    S2 = D2 * H2 * W2

    def _inorm(v):  # per-channel InstanceNorm over the lane (spatial) axis, biased variance
        mean = jnp.mean(v, axis=1, keepdims=True)
        var = jnp.mean(jnp.square(v - mean), axis=1, keepdims=True)
        return (v - mean) * jax.lax.rsqrt(var + EPS)

    def kernel(xr_ref, idx_ref, wu_ref, bu_ref, w1_ref, w2_ref, w3_ref, o_ref, hpad_ref):
        xr = xr_ref[0]                      # [Cin, S2]  (x replicated to the fine grid)
        par = idx_ref[0:1, :]               # parity code kd*4+kh*2+kw of each fine voxel
        d_i = idx_ref[1:2, :]               # fine-grid d / h / w coordinates
        h_i = idx_ref[2:3, :]
        w_i = idx_ref[3:4, :]

        # ---- self.up : ConvTranspose3d(k=2, s=2), evaluated directly on the fine grid ----
        # out[co, s2] = sum_ci W[ci, co, parity(s2)] * x[ci, coarse(s2)] + b[co]
        up = jnp.zeros((Cout, S2), jnp.float32)
        for k in range(8):                  # 8 parity-masked matmuls (masks are disjoint)
            a = jnp.dot(wu_ref[k], xr, preferred_element_type=jnp.float32)   # [Cout, S2]
            up = jnp.where(par == k, a, up)
        up = up + bu_ref[...]               # keep up-bias: it feeds the residual add

        # ---- res_conv[0..2] : 1x1 conv + InstanceNorm + ReLU (bias cancelled by IN) ----
        h = jnp.dot(w1_ref[...], up, preferred_element_type=jnp.float32)     # [Cm, S2]
        h = jnp.maximum(_inorm(h), 0.0)

        # ---- res_conv[3..5] : 3x3x3 conv (pad=1) + InstanceNorm + ReLU -----------------
        # Haloed flat copy of h in VMEM; every tap is a shifted slice + boundary mask.
        zpad = jnp.zeros((Cm, P), jnp.float32)
        hpad_ref[:, 0:P] = zpad
        hpad_ref[:, P + S2:P + S2 + P] = zpad
        hpad_ref[:, P:P + S2] = h
        tru = d_i >= 0                      # all-true mask
        d_ok = [d_i >= 1, tru, d_i <= D2 - 2]
        h_ok = [h_i >= 1, tru, h_i <= H2 - 2]
        w_ok = [w_i >= 1, tru, w_i <= W2 - 2]
        acc = jnp.zeros((Cm, S2), jnp.float32)
        for kd in range(3):
            for kh in range(3):
                for kw in range(3):
                    t = (kd * 3 + kh) * 3 + kw
                    off = (kd - 1) * H2 * W2 + (kh - 1) * W2 + (kw - 1)
                    tap = hpad_ref[:, P + off:P + off + S2]        # h shifted by `off`
                    tap = jnp.where(d_ok[kd] & h_ok[kh] & w_ok[kw], tap, 0.0)
                    acc = acc + jnp.dot(w2_ref[t], tap,
                                        preferred_element_type=jnp.float32)
        h2 = jnp.maximum(_inorm(acc), 0.0)

        # ---- res_conv[6..7] : 1x1 conv + InstanceNorm, then +residual, ReLU ------------
        y = _inorm(jnp.dot(w3_ref[...], h2, preferred_element_type=jnp.float32))
        o_ref[0] = jnp.maximum(y + up, 0.0)

    return kernel


# ----------------------------- forward pass ---------------------------------------------

def residual_block_up_forward(x_ncdhw, params):
    N, Cin, D, H, W = x_ncdhw.shape
    Cout = params["up_w"].shape[1]
    Cm = Cout // 2
    D2, H2, W2 = 2 * D, 2 * H, 2 * W
    S2 = D2 * H2 * W2
    P = pl.cdiv(H2 * W2 + W2 + 1, 128) * 128      # lane-aligned halo >= max |tap offset|

    # Nearest-neighbour x2 replication of the input onto the fine grid (cheap XLA broadcast);
    # lets the transposed conv run lane-dense with no de-interleave afterwards.
    xr = jnp.broadcast_to(x_ncdhw[:, :, :, None, :, None, :, None],
                          (N, Cin, D, 2, H, 2, W, 2)).reshape(N, Cin, S2)

    # Parity / coordinate tables for the fine grid (batch-independent, tiny, fetched once).
    s = jnp.arange(S2, dtype=jnp.int32)
    w_i = s % W2
    h_i = (s // W2) % H2
    d_i = s // (W2 * H2)
    par = (d_i % 2) * 4 + (h_i % 2) * 2 + (w_i % 2)
    idx = jnp.stack([par, d_i, h_i, w_i], axis=0)                          # [4, S2] int32

    # Weight repacking (tiny, done once under jit).
    wu = jnp.transpose(params["up_w"].reshape(Cin, Cout, 8), (2, 1, 0))    # [8, Cout, Cin]
    bu = params["up_b"].reshape(Cout, 1)
    w1 = params["c1_w"][:, :, 0, 0, 0]                                     # [Cm, Cout]
    w2 = jnp.transpose(params["c2_w"].reshape(Cm, Cm, 27), (2, 0, 1))      # [27, Cm, Cm]
    w3 = params["c3_w"][:, :, 0, 0, 0]                                     # [Cout, Cm]
    # c1_b / c2_b / c3_b intentionally unused: a per-channel bias added right before an
    # InstanceNorm is exactly cancelled by the mean subtraction.

    kernel = _make_fused_kernel(Cin, Cout, Cm, D2, H2, W2, P)

    def _full_spec(arr):
        nd = arr.ndim
        return pl.BlockSpec(arr.shape, lambda n, _nd=nd: (0,) * _nd)

    out = pl.pallas_call(
        kernel,
        out_shape=jax.ShapeDtypeStruct((N, Cout, S2), jnp.float32),
        grid_spec=pltpu.PrefetchScalarGridSpec(
            num_scalar_prefetch=0,
            grid=(N,),
            in_specs=[pl.BlockSpec((1, Cin, S2), lambda n: (n, 0, 0)),
                      _full_spec(idx), _full_spec(wu), _full_spec(bu),
                      _full_spec(w1), _full_spec(w2), _full_spec(w3)],
            out_specs=pl.BlockSpec((1, Cout, S2), lambda n: (n, 0, 0)),
            scratch_shapes=[pltpu.VMEM((Cm, S2 + 2 * P), jnp.float32)]),
        compiler_params=pltpu.CompilerParams(
            dimension_semantics=("parallel",),            # batch elems independent (2 TCs on v7x)
            vmem_limit_bytes=32 * 1024 * 1024),
    )(xr, idx, wu, bu, w1, w2, w3)

    # Kernel already writes the de-interleaved fine-grid layout: a free reshape gives NCDHW.
    return out.reshape(N, Cout, D2, H2, W2)


# ----------------------------- pure-JAX reference ----------------------------------------

def _reference_forward(x, params):
    N, Cin, D, H, W = x.shape
    Cout = params["up_w"].shape[1]
    hi = jax.lax.Precision.HIGHEST

    def inorm(v):  # [N, C, D, H, W]
        mean = jnp.mean(v, axis=(2, 3, 4), keepdims=True)
        var = jnp.mean(jnp.square(v - mean), axis=(2, 3, 4), keepdims=True)
        return (v - mean) * jax.lax.rsqrt(var + EPS)

    up = jnp.einsum("nidhw,ioabc->nodahbwc", x, params["up_w"], precision=hi)
    up = up.reshape(N, Cout, 2 * D, 2 * H, 2 * W) + params["up_b"][None, :, None, None, None]

    h = jnp.einsum("mo,nodhw->nmdhw", params["c1_w"][:, :, 0, 0, 0], up, precision=hi)
    h = h + params["c1_b"][None, :, None, None, None]
    h = jnp.maximum(inorm(h), 0.0)

    h2 = jax.lax.conv_general_dilated(
        h, params["c2_w"], window_strides=(1, 1, 1),
        padding=((1, 1), (1, 1), (1, 1)),
        dimension_numbers=("NCDHW", "OIDHW", "NCDHW"), precision=hi)
    h2 = h2 + params["c2_b"][None, :, None, None, None]
    h2 = jnp.maximum(inorm(h2), 0.0)

    y = jnp.einsum("om,nmdhw->nodhw", params["c3_w"][:, :, 0, 0, 0], h2, precision=hi)
    y = y + params["c3_b"][None, :, None, None, None]
    y = inorm(y)
    return jnp.maximum(y + up, 0.0)


# ----------------------------- main -------------------------------------------------------

if __name__ == "__main__":
    key = jax.random.PRNGKey(0)
    ks = jax.random.split(key, 10)

    N, Cin, Cout = 2, 8, 8
    D = H = W = 4
    Cm = Cout // 2

    x = jax.random.normal(ks[0], (N, Cin, D, H, W), jnp.float32)

    # Deterministic synthetic parameters (PyTorch-shaped; no checkpoint loading).
    params = {
        # ConvTranspose3d weight: [Cin, Cout, 2, 2, 2]
        "up_w": jax.random.normal(ks[1], (Cin, Cout, 2, 2, 2), jnp.float32) * 0.2,
        "up_b": jax.random.normal(ks[2], (Cout,), jnp.float32) * 0.1,
        # Conv3d(Cout, Cm, 1): weight [Cm, Cout, 1, 1, 1]
        "c1_w": jax.random.normal(ks[3], (Cm, Cout, 1, 1, 1), jnp.float32) * 0.2,
        "c1_b": jax.random.normal(ks[4], (Cm,), jnp.float32) * 0.1,
        # Conv3d(Cm, Cm, 3, pad=1): weight [Cm, Cm, 3, 3, 3]
        "c2_w": jax.random.normal(ks[5], (Cm, Cm, 3, 3, 3), jnp.float32) * 0.1,
        "c2_b": jax.random.normal(ks[6], (Cm,), jnp.float32) * 0.1,
        # Conv3d(Cm, Cout, 1): weight [Cout, Cm, 1, 1, 1]
        "c3_w": jax.random.normal(ks[7], (Cout, Cm, 1, 1, 1), jnp.float32) * 0.2,
        "c3_b": jax.random.normal(ks[8], (Cout,), jnp.float32) * 0.1,
    }

    out = jax.jit(residual_block_up_forward)(x, params)
    out = jax.block_until_ready(out)
    assert out.shape == (N, Cout, 2 * D, 2 * H, 2 * W), out.shape
    assert bool(jnp.all(out >= 0.0))  # final ReLU

    ref = _reference_forward(x, params)
    max_err = float(jnp.max(jnp.abs(out - ref)))
    assert max_err < 3e-2, f"max abs err vs pure-JAX reference: {max_err}"
    print("KERNEL_OK")
</pallas_src>

<mosaic_0001>
module attributes {stable_mosaic.version = 11 : i64} {
  func.func @kernel(%arg0: i32, %arg1: memref<1x8x512xf32, #tpu.memory_space<vmem>>, %arg2: memref<4x512xi32, #tpu.memory_space<vmem>>, %arg3: memref<8x8x8xf32, #tpu.memory_space<vmem>>, %arg4: memref<8x1xf32, #tpu.memory_space<vmem>>, %arg5: memref<4x8xf32, #tpu.memory_space<vmem>>, %arg6: memref<27x4x4xf32, #tpu.memory_space<vmem>>, %arg7: memref<8x4xf32, #tpu.memory_space<vmem>>, %arg8: memref<1x8x512xf32, #tpu.memory_space<vmem>>, %arg9: memref<4x768xf32, #tpu.memory_space<vmem>>) attributes {dimension_semantics = [#tpu.dimension_semantics<parallel>], iteration_bounds = array<i64: 2>, scalar_prefetch = 0 : i64, scratch_operands = 1 : i64, tpu.core_type = #tpu.core_type<tc>, window_params = [{transform_indices = @transform_0, window_bounds = array<i64: 1, 8, 512>}, {pipeline_mode = #tpu.pipeline_mode<synchronous>, transform_indices = @transform_1, window_bounds = array<i64: 4, 512>}, {pipeline_mode = #tpu.pipeline_mode<synchronous>, transform_indices = @transform_2, window_bounds = array<i64: 8, 8, 8>}, {pipeline_mode = #tpu.pipeline_mode<synchronous>, transform_indices = @transform_3, window_bounds = array<i64: 8, 1>}, {pipeline_mode = #tpu.pipeline_mode<synchronous>, transform_indices = @transform_4, window_bounds = array<i64: 4, 8>}, {pipeline_mode = #tpu.pipeline_mode<synchronous>, transform_indices = @transform_5, window_bounds = array<i64: 27, 4, 4>}, {pipeline_mode = #tpu.pipeline_mode<synchronous>, transform_indices = @transform_6, window_bounds = array<i64: 8, 4>}, {transform_indices = @transform_7, window_bounds = array<i64: 1, 8, 512>}]} {
    %c0 = arith.constant 0 : index
    %c0_0 = arith.constant 0 : index
    %c0_1 = arith.constant 0 : index
    %0 = vector.load %arg1[%c0, %c0_0, %c0_1] : memref<1x8x512xf32, #tpu.memory_space<vmem>>, vector<1x8x512xf32>
    %1 = vector.shape_cast %0 : vector<1x8x512xf32> to vector<8x512xf32>
    %c0_2 = arith.constant 0 : index
    %c0_3 = arith.constant 0 : index
    %2 = vector.load %arg2[%c0_2, %c0_3] : memref<4x512xi32, #tpu.memory_space<vmem>>, vector<1x512xi32>
    %c1 = arith.constant 1 : index
    %c0_4 = arith.constant 0 : index
    %3 = vector.load %arg2[%c1, %c0_4] : memref<4x512xi32, #tpu.memory_space<vmem>>, vector<1x512xi32>
    %c2 = arith.constant 2 : index
    %c0_5 = arith.constant 0 : index
    %4 = vector.load %arg2[%c2, %c0_5] : memref<4x512xi32, #tpu.memory_space<vmem>>, vector<1x512xi32>
    %c3 = arith.constant 3 : index
    %c0_6 = arith.constant 0 : index
    %5 = vector.load %arg2[%c3, %c0_6] : memref<4x512xi32, #tpu.memory_space<vmem>>, vector<1x512xi32>
    %cst = arith.constant 0.000000e+00 : f32
    %6 = vector.broadcast %cst : f32 to vector<8x512xf32>
    %c0_7 = arith.constant 0 : index
    %c0_8 = arith.constant 0 : index
    %c0_9 = arith.constant 0 : index
    %7 = vector.load %arg3[%c0_7, %c0_8, %c0_9] : memref<8x8x8xf32, #tpu.memory_space<vmem>>, vector<1x8x8xf32>
    %8 = vector.shape_cast %7 : vector<1x8x8xf32> to vector<8x8xf32>
    %cst_10 = arith.constant dense<0.000000e+00> : vector<8x512xf32>
    %9 = tpu.matmul %8, %1, %cst_10 {dimension_numbers = #tpu.dot_dimension_numbers<[1], [0], [0], [1], [0, 0, 1, 1], [], []>} : vector<8x8xf32>, vector<8x512xf32>, vector<8x512xf32> -> vector<8x512xf32>
    %c0_i32 = arith.constant 0 : i32
    %10 = vector.broadcast %c0_i32 : i32 to vector<1x512xi32>
    %11 = arith.cmpi eq, %2, %10 : vector<1x512xi32>
    %12 = vector.shape_cast %11 : vector<1x512xi1> to vector<1x512xi1>
    %13 = vector.broadcast %12 : vector<1x512xi1> to vector<8x512xi1>
    %14 = arith.select %13, %9, %6 : vector<8x512xi1>, vector<8x512xf32>
    %c1_11 = arith.constant 1 : index
    %c0_12 = arith.constant 0 : index
    %c0_13 = arith.constant 0 : index
    %15 = vector.load %arg3[%c1_11, %c0_12, %c0_13] : memref<8x8x8xf32, #tpu.memory_space<vmem>>, vector<1x8x8xf32>
    %16 = vector.shape_cast %15 : vector<1x8x8xf32> to vector<8x8xf32>
    %cst_14 = arith.constant dense<0.000000e+00> : vector<8x512xf32>
    %17 = tpu.matmul %16, %1, %cst_14 {dimension_numbers = #tpu.dot_dimension_numbers<[1], [0], [0], [1], [0, 0, 1, 1], [], []>} : vector<8x8xf32>, vector<8x512xf32>, vector<8x512xf32> -> vector<8x512xf32>
    %c1_i32 = arith.constant 1 : i32
    %18 = vector.broadcast %c1_i32 : i32 to vector<1x512xi32>
    %19 = arith.cmpi eq, %2, %18 : vector<1x512xi32>
    %20 = vector.shape_cast %19 : vector<1x512xi1> to vector<1x512xi1>
    %21 = vector.broadcast %20 : vector<1x512xi1> to vector<8x512xi1>
    %22 = arith.select %21, %17, %14 : vector<8x512xi1>, vector<8x512xf32>
    %c2_15 = arith.constant 2 : index
    %c0_16 = arith.constant 0 : index
    %c0_17 = arith.constant 0 : index
    %23 = vector.load %arg3[%c2_15, %c0_16, %c0_17] : memref<8x8x8xf32, #tpu.memory_space<vmem>>, vector<1x8x8xf32>
    %24 = vector.shape_cast %23 : vector<1x8x8xf32> to vector<8x8xf32>
    %cst_18 = arith.constant dense<0.000000e+00> : vector<8x512xf32>
    %25 = tpu.matmul %24, %1, %cst_18 {dimension_numbers = #tpu.dot_dimension_numbers<[1], [0], [0], [1], [0, 0, 1, 1], [], []>} : vector<8x8xf32>, vector<8x512xf32>, vector<8x512xf32> -> vector<8x512xf32>
    %c2_i32 = arith.constant 2 : i32
    %26 = vector.broadcast %c2_i32 : i32 to vector<1x512xi32>
    %27 = arith.cmpi eq, %2, %26 : vector<1x512xi32>
    %28 = vector.shape_cast %27 : vector<1x512xi1> to vector<1x512xi1>
    %29 = vector.broadcast %28 : vector<1x512xi1> to vector<8x512xi1>
    %30 = arith.select %29, %25, %22 : vector<8x512xi1>, vector<8x512xf32>
    %c3_19 = arith.constant 3 : index
    %c0_20 = arith.constant 0 : index
    %c0_21 = arith.constant 0 : index
    %31 = vector.load %arg3[%c3_19, %c0_20, %c0_21] : memref<8x8x8xf32, #tpu.memory_space<vmem>>, vector<1x8x8xf32>
    %32 = vector.shape_cast %31 : vector<1x8x8xf32> to vector<8x8xf32>
    %cst_22 = arith.constant dense<0.000000e+00> : vector<8x512xf32>
    %33 = tpu.matmul %32, %1, %cst_22 {dimension_numbers = #tpu.dot_dimension_numbers<[1], [0], [0], [1], [0, 0, 1, 1], [], []>} : vector<8x8xf32>, vector<8x512xf32>, vector<8x512xf32> -> vector<8x512xf32>
    %c3_i32 = arith.constant 3 : i32
    %34 = vector.broadcast %c3_i32 : i32 to vector<1x512xi32>
    %35 = arith.cmpi eq, %2, %34 : vector<1x512xi32>
    %36 = vector.shape_cast %35 : vector<1x512xi1> to vector<1x512xi1>
    %37 = vector.broadcast %36 : vector<1x512xi1> to vector<8x512xi1>
    %38 = arith.select %37, %33, %30 : vector<8x512xi1>, vector<8x512xf32>
    %c4 = arith.constant 4 : index
    %c0_23 = arith.constant 0 : index
    %c0_24 = arith.constant 0 : index
    %39 = vector.load %arg3[%c4, %c0_23, %c0_24] : memref<8x8x8xf32, #tpu.memory_space<vmem>>, vector<1x8x8xf32>
    %40 = vector.shape_cast %39 : vector<1x8x8xf32> to vector<8x8xf32>
    %cst_25 = arith.constant dense<0.000000e+00> : vector<8x512xf32>
    %41 = tpu.matmul %40, %1, %cst_25 {dimension_numbers = #tpu.dot_dimension_numbers<[1], [0], [0], [1], [0, 0, 1, 1], [], []>} : vector<8x8xf32>, vector<8x512xf32>, vector<8x512xf32> -> vector<8x512xf32>
    %c4_i32 = arith.constant 4 : i32
    %42 = vector.broadcast %c4_i32 : i32 to vector<1x512xi32>
    %43 = arith.cmpi eq, %2, %42 : vector<1x512xi32>
    %44 = vector.shape_cast %43 : vector<1x512xi1> to vector<1x512xi1>
    %45 = vector.broadcast %44 : vector<1x512xi1> to vector<8x512xi1>
    %46 = arith.select %45, %41, %38 : vector<8x512xi1>, vector<8x512xf32>
    %c5 = arith.constant 5 : index
    %c0_26 = arith.constant 0 : index
    %c0_27 = arith.constant 0 : index
    %47 = vector.load %arg3[%c5, %c0_26, %c0_27] : memref<8x8x8xf32, #tpu.memory_space<vmem>>, vector<1x8x8xf32>
    %48 = vector.shape_cast %47 : vector<1x8x8xf32> to vector<8x8xf32>
    %cst_28 = arith.constant dense<0.000000e+00> : vector<8x512xf32>
    %49 = tpu.matmul %48, %1, %cst_28 {dimension_numbers = #tpu.dot_dimension_numbers<[1], [0], [0], [1], [0, 0, 1, 1], [], []>} : vector<8x8xf32>, vector<8x512xf32>, vector<8x512xf32> -> vector<8x512xf32>
    %c5_i32 = arith.constant 5 : i32
    %50 = vector.broadcast %c5_i32 : i32 to vector<1x512xi32>
    %51 = arith.cmpi eq, %2, %50 : vector<1x512xi32>
    %52 = vector.shape_cast %51 : vector<1x512xi1> to vector<1x512xi1>
    %53 = vector.broadcast %52 : vector<1x512xi1> to vector<8x512xi1>
    %54 = arith.select %53, %49, %46 : vector<8x512xi1>, vector<8x512xf32>
    %c6 = arith.constant 6 : index
    %c0_29 = arith.constant 0 : index
    %c0_30 = arith.constant 0 : index
    %55 = vector.load %arg3[%c6, %c0_29, %c0_30] : memref<8x8x8xf32, #tpu.memory_space<vmem>>, vector<1x8x8xf32>
    %56 = vector.shape_cast %55 : vector<1x8x8xf32> to vector<8x8xf32>
    %cst_31 = arith.constant dense<0.000000e+00> : vector<8x512xf32>
    %57 = tpu.matmul %56, %1, %cst_31 {dimension_numbers = #tpu.dot_dimension_numbers<[1], [0], [0], [1], [0, 0, 1, 1], [], []>} : vector<8x8xf32>, vector<8x512xf32>, vector<8x512xf32> -> vector<8x512xf32>
    %c6_i32 = arith.constant 6 : i32
    %58 = vector.broadcast %c6_i32 : i32 to vector<1x512xi32>
    %59 = arith.cmpi eq, %2, %58 : vector<1x512xi32>
    %60 = vector.shape_cast %59 : vector<1x512xi1> to vector<1x512xi1>
    %61 = vector.broadcast %60 : vector<1x512xi1> to vector<8x512xi1>
    %62 = arith.select %61, %57, %54 : vector<8x512xi1>, vector<8x512xf32>
    %c7 = arith.constant 7 : index
    %c0_32 = arith.constant 0 : index
    %c0_33 = arith.constant 0 : index
    %63 = vector.load %arg3[%c7, %c0_32, %c0_33] : memref<8x8x8xf32, #tpu.memory_space<vmem>>, vector<1x8x8xf32>
    %64 = vector.shape_cast %63 : vector<1x8x8xf32> to vector<8x8xf32>
    %cst_34 = arith.constant dense<0.000000e+00> : vector<8x512xf32>
    %65 = tpu.matmul %64, %1, %cst_34 {dimension_numbers = #tpu.dot_dimension_numbers<[1], [0], [0], [1], [0, 0, 1, 1], [], []>} : vector<8x8xf32>, vector<8x512xf32>, vector<8x512xf32> -> vector<8x512xf32>
    %c7_i32 = arith.constant 7 : i32
    %66 = vector.broadcast %c7_i32 : i32 to vector<1x512xi32>
    %67 = arith.cmpi eq, %2, %66 : vector<1x512xi32>
    %68 = vector.shape_cast %67 : vector<1x512xi1> to vector<1x512xi1>
    %69 = vector.broadcast %68 : vector<1x512xi1> to vector<8x512xi1>
    %70 = arith.select %69, %65, %62 : vector<8x512xi1>, vector<8x512xf32>
    %c0_35 = arith.constant 0 : index
    %c0_36 = arith.constant 0 : index
    %71 = vector.load %arg4[%c0_35, %c0_36] : memref<8x1xf32, #tpu.memory_space<vmem>>, vector<8x1xf32>
    %72 = vector.broadcast %71 : vector<8x1xf32> to vector<8x512xf32>
    %73 = arith.addf %70, %72 : vector<8x512xf32>
    %c0_37 = arith.constant 0 : index
    %c0_38 = arith.constant 0 : index
    %74 = vector.load %arg5[%c0_37, %c0_38] : memref<4x8xf32, #tpu.memory_space<vmem>>, vector<4x8xf32>
    %cst_39 = arith.constant dense<0.000000e+00> : vector<4x512xf32>
    %75 = tpu.matmul %74, %73, %cst_39 {dimension_numbers = #tpu.dot_dimension_numbers<[1], [0], [0], [1], [0, 0, 1, 1], [], []>} : vector<4x8xf32>, vector<8x512xf32>, vector<4x512xf32> -> vector<4x512xf32>
    %cst_40 = arith.constant dense<0.000000e+00> : vector<4xf32>
    %76 = vector.multi_reduction <add>, %75, %cst_40 [1] : vector<4x512xf32> to vector<4xf32>
    %77 = vector.shape_cast %76 : vector<4xf32> to vector<4x1xf32>
    %cst_41 = arith.constant 5.120000e+02 : f32
    %78 = vector.broadcast %cst_41 : f32 to vector<4x1xf32>
    %79 = arith.divf %77, %78 : vector<4x1xf32>
    %80 = vector.broadcast %79 : vector<4x1xf32> to vector<4x512xf32>
    %81 = arith.subf %75, %80 : vector<4x512xf32>
    %82 = arith.mulf %81, %81 : vector<4x512xf32>
    %cst_42 = arith.constant dense<0.000000e+00> : vector<4xf32>
    %83 = vector.multi_reduction <add>, %82, %cst_42 [1] : vector<4x512xf32> to vector<4xf32>
    %84 = vector.shape_cast %83 : vector<4xf32> to vector<4x1xf32>
    %cst_43 = arith.constant 5.120000e+02 : f32
    %85 = vector.broadcast %cst_43 : f32 to vector<4x1xf32>
    %86 = arith.divf %84, %85 : vector<4x1xf32>
    %87 = vector.broadcast %79 : vector<4x1xf32> to vector<4x512xf32>
    %88 = arith.subf %75, %87 : vector<4x512xf32>
    %cst_44 = arith.constant 9.99999974E-6 : f32
    %89 = vector.broadcast %cst_44 : f32 to vector<4x1xf32>
    %90 = arith.addf %86, %89 : vector<4x1xf32>
    %91 = math.rsqrt %90 : vector<4x1xf32>
    %92 = vector.broadcast %91 : vector<4x1xf32> to vector<4x512xf32>
    %93 = arith.mulf %88, %92 : vector<4x512xf32>
    %cst_45 = arith.constant 0.000000e+00 : f32
    %94 = vector.broadcast %cst_45 : f32 to vector<4x512xf32>
    %95 = arith.maximumf %93, %94 : vector<4x512xf32>
    %cst_46 = arith.constant 0.000000e+00 : f32
    %96 = vector.broadcast %cst_46 : f32 to vector<4x128xf32>
    %c0_47 = arith.constant 0 : index
    %c0_48 = arith.constant 0 : index
    %97 = vector.load %arg9[%c0_47, %c0_48] : memref<4x768xf32, #tpu.memory_space<vmem>>, vector<4x128xf32>
    tpu.vector_store %arg9[%c0_47, %c0_48], %96 {strides = array<i32>} : memref<4x768xf32, #tpu.memory_space<vmem>>, vector<4x128xf32>,
    %c0_49 = arith.constant 0 : index
    %c640 = arith.constant 640 : index
    %98 = vector.load %arg9[%c0_49, %c640] : memref<4x768xf32, #tpu.memory_space<vmem>>, vector<4x128xf32>
    tpu.vector_store %arg9[%c0_49, %c640], %96 {strides = array<i32>} : memref<4x768xf32, #tpu.memory_space<vmem>>, vector<4x128xf32>,
    %c0_50 = arith.constant 0 : index
    %c128 = arith.constant 128 : index
    %99 = vector.load %arg9[%c0_50, %c128] : memref<4x768xf32, #tpu.memory_space<vmem>>, vector<4x512xf32>
    tpu.vector_store %arg9[%c0_50, %c128], %95 {strides = array<i32>} : memref<4x768xf32, #tpu.memory_space<vmem>>, vector<4x512xf32>,
    %c0_i32_51 = arith.constant 0 : i32
    %100 = vector.broadcast %c0_i32_51 : i32 to vector<1x512xi32>
    %101 = arith.cmpi sge, %3, %100 : vector<1x512xi32>
    %c1_i32_52 = arith.constant 1 : i32
    %102 = vector.broadcast %c1_i32_52 : i32 to vector<1x512xi32>
    %103 = arith.cmpi sge, %3, %102 : vector<1x512xi32>
    %c6_i32_53 = arith.constant 6 : i32
    %104 = vector.broadcast %c6_i32_53 : i32 to vector<1x512xi32>
    %105 = arith.cmpi sle, %3, %104 : vector<1x512xi32>
    %c1_i32_54 = arith.constant 1 : i32
    %106 = vector.broadcast %c1_i32_54 : i32 to vector<1x512xi32>
    %107 = arith.cmpi sge, %4, %106 : vector<1x512xi32>
    %c6_i32_55 = arith.constant 6 : i32
    %108 = vector.broadcast %c6_i32_55 : i32 to vector<1x512xi32>
    %109 = arith.cmpi sle, %4, %108 : vector<1x512xi32>
    %c1_i32_56 = arith.constant 1 : i32
    %110 = vector.broadcast %c1_i32_56 : i32 to vector<1x512xi32>
    %111 = arith.cmpi sge, %5, %110 : vector<1x512xi32>
    %c6_i32_57 = arith.constant 6 : i32
    %112 = vector.broadcast %c6_i32_57 : i32 to vector<1x512xi32>
    %113 = arith.cmpi sle, %5, %112 : vector<1x512xi32>
    %cst_58 = arith.constant 0.000000e+00 : f32
    %114 = vector.broadcast %cst_58 : f32 to vector<4x512xf32>
    %c0_59 = arith.constant 0 : index
    %c55 = arith.constant 55 : index
    %115 = vector.load %arg9[%c0_59, %c55] : memref<4x768xf32, #tpu.memory_space<vmem>>, vector<4x512xf32>
    %116 = arith.andi %103, %107 : vector<1x512xi1>
    %117 = arith.andi %116, %111 : vector<1x512xi1>
    %cst_60 = arith.constant 0.000000e+00 : f32
    %118 = vector.shape_cast %117 : vector<1x512xi1> to vector<1x512xi1>
    %119 = vector.broadcast %118 : vector<1x512xi1> to vector<4x512xi1>
    %120 = vector.broadcast %cst_60 : f32 to vector<4x512xf32>
    %121 = arith.select %119, %115, %120 : vector<4x512xi1>, vector<4x512xf32>
    %c0_61 = arith.constant 0 : index
    %c0_62 = arith.constant 0 : index
    %c0_63 = arith.constant 0 : index
    %122 = vector.load %arg6[%c0_61, %c0_62, %c0_63] : memref<27x4x4xf32, #tpu.memory_space<vmem>>, vector<1x4x4xf32>
    %123 = vector.shape_cast %122 : vector<1x4x4xf32> to vector<4x4xf32>
    %cst_64 = arith.constant dense<0.000000e+00> : vector<4x512xf32>
    %124 = tpu.matmul %123, %121, %cst_64 {dimension_numbers = #tpu.dot_dimension_numbers<[1], [0], [0], [1], [0, 0, 1, 1], [], []>} : vector<4x4xf32>, vector<4x512xf32>, vector<4x512xf32> -> vector<4x512xf32>
    %125 = arith.addf %114, %124 : vector<4x512xf32>
    %c0_65 = arith.constant 0 : index
    %c56 = arith.constant 56 : index
    %126 = vector.load %arg9[%c0_65, %c56] : memref<4x768xf32, #tpu.memory_space<vmem>>, vector<4x512xf32>
    %127 = arith.andi %103, %107 : vector<1x512xi1>
    %128 = arith.andi %127, %101 : vector<1x512xi1>
    %cst_66 = arith.constant 0.000000e+00 : f32
    %129 = vector.shape_cast %128 : vector<1x512xi1> to vector<1x512xi1>
    %130 = vector.broadcast %129 : vector<1x512xi1> to vector<4x512xi1>
    %131 = vector.broadcast %cst_66 : f32 to vector<4x512xf32>
    %132 = arith.select %130, %126, %131 : vector<4x512xi1>, vector<4x512xf32>
    %c1_67 = arith.constant 1 : index
    %c0_68 = arith.constant 0 : index
    %c0_69 = arith.constant 0 : index
    %133 = vector.load %arg6[%c1_67, %c0_68, %c0_69] : memref<27x4x4xf32, #tpu.memory_space<vmem>>, vector<1x4x4xf32>
    %134 = vector.shape_cast %133 : vector<1x4x4xf32> to vector<4x4xf32>
    %cst_70 = arith.constant dense<0.000000e+00> : vector<4x512xf32>
    %135 = tpu.matmul %134, %132, %cst_70 {dimension_numbers = #tpu.dot_dimension_numbers<[1], [0], [0], [1], [0, 0, 1, 1], [], []>} : vector<4x4xf32>, vector<4x512xf32>, vector<4x512xf32> -> vector<4x512xf32>
    %136 = arith.addf %125, %135 : vector<4x512xf32>
    %c0_71 = arith.constant 0 : index
    %c57 = arith.constant 57 : index
    %137 = vector.load %arg9[%c0_71, %c57] : memref<4x768xf32, #tpu.memory_space<vmem>>, vector<4x512xf32>
    %138 = arith.andi %103, %107 : vector<1x512xi1>
    %139 = arith.andi %138, %113 : vector<1x512xi1>
    %cst_72 = arith.constant 0.000000e+00 : f32
    %140 = vector.shape_cast %139 : vector<1x512xi1> to vector<1x512xi1>
    %141 = vector.broadcast %140 : vector<1x512xi1> to vector<4x512xi1>
    %142 = vector.broadcast %cst_72 : f32 to vector<4x512xf32>
    %143 = arith.select %141, %137, %142 : vector<4x512xi1>, vector<4x512xf32>
    %c2_73 = arith.constant 2 : index
    %c0_74 = arith.constant 0 : index
    %c0_75 = arith.constant 0 : index
    %144 = vector.load %arg6[%c2_73, %c0_74, %c0_75] : memref<27x4x4xf32, #tpu.memory_space<vmem>>, vector<1x4x4xf32>
    %145 = vector.shape_cast %144 : vector<1x4x4xf32> to vector<4x4xf32>
    %cst_76 = arith.constant dense<0.000000e+00> : vector<4x512xf32>
    %146 = tpu.matmul %145, %143, %cst_76 {dimension_numbers = #tpu.dot_dimension_numbers<[1], [0], [0], [1], [0, 0, 1, 1], [], []>} : vector<4x4xf32>, vector<4x512xf32>, vector<4x512xf32> -> vector<4x512xf32>
    %147 = arith.addf %136, %146 : vector<4x512xf32>
    %c0_77 = arith.constant 0 : index
    %c63 = arith.constant 63 : index
    %148 = vector.load %arg9[%c0_77, %c63] : memref<4x768xf32, #tpu.memory_space<vmem>>, vector<4x512xf32>
    %149 = arith.andi %103, %101 : vector<1x512xi1>
    %150 = arith.andi %149, %111 : vector<1x512xi1>
    %cst_78 = arith.constant 0.000000e+00 : f32
    %151 = vector.shape_cast %150 : vector<1x512xi1> to vector<1x512xi1>
    %152 = vector.broadcast %151 : vector<1x512xi1> to vector<4x512xi1>
    %153 = vector.broadcast %cst_78 : f32 to vector<4x512xf32>
    %154 = arith.select %152, %148, %153 : vector<4x512xi1>, vector<4x512xf32>
    %c3_79 = arith.constant 3 : index
    %c0_80 = arith.constant 0 : index
    %c0_81 = arith.constant 0 : index
    %155 = vector.load %arg6[%c3_79, %c0_80, %c0_81] : memref<27x4x4xf32, #tpu.memory_space<vmem>>, vector<1x4x4xf32>
    %156 = vector.shape_cast %155 : vector<1x4x4xf32> to vector<4x4xf32>
    %cst_82 = arith.constant dense<0.000000e+00> : vector<4x512xf32>
    %157 = tpu.matmul %156, %154, %cst_82 {dimension_numbers = #tpu.dot_dimension_numbers<[1], [0], [0], [1], [0, 0, 1, 1], [], []>} : vector<4x4xf32>, vector<4x512xf32>, vector<4x512xf32> -> vector<4x512xf32>
    %158 = arith.addf %147, %157 : vector<4x512xf32>
    %c0_83 = arith.constant 0 : index
    %c64 = arith.constant 64 : index
    %159 = vector.load %arg9[%c0_83, %c64] : memref<4x768xf32, #tpu.memory_space<vmem>>, vector<4x512xf32>
    %160 = arith.andi %103, %101 : vector<1x512xi1>
    %161 = arith.andi %160, %101 : vector<1x512xi1>
    %cst_84 = arith.constant 0.000000e+00 : f32
    %162 = vector.shape_cast %161 : vector<1x512xi1> to vector<1x512xi1>
    %163 = vector.broadcast %162 : vector<1x512xi1> to vector<4x512xi1>
    %164 = vector.broadcast %cst_84 : f32 to vector<4x512xf32>
    %165 = arith.select %163, %159, %164 : vector<4x512xi1>, vector<4x512xf32>
    %c4_85 = arith.constant 4 : index
    %c0_86 = arith.constant 0 : index
    %c0_87 = arith.constant 0 : index
    %166 = vector.load %arg6[%c4_85, %c0_86, %c0_87] : memref<27x4x4xf32, #tpu.memory_space<vmem>>, vector<1x4x4xf32>
    %167 = vector.shape_cast %166 : vector<1x4x4xf32> to vector<4x4xf32>
    %cst_88 = arith.constant dense<0.000000e+00> : vector<4x512xf32>
    %168 = tpu.matmul %167, %165, %cst_88 {dimension_numbers = #tpu.dot_dimension_numbers<[1], [0], [0], [1], [0, 0, 1, 1], [], []>} : vector<4x4xf32>, vector<4x512xf32>, vector<4x512xf32> -> vector<4x512xf32>
    %169 = arith.addf %158, %168 : vector<4x512xf32>
    %c0_89 = arith.constant 0 : index
    %c65 = arith.constant 65 : index
    %170 = vector.load %arg9[%c0_89, %c65] : memref<4x768xf32, #tpu.memory_space<vmem>>, vector<4x512xf32>
    %171 = arith.andi %103, %101 : vector<1x512xi1>
    %172 = arith.andi %171, %113 : vector<1x512xi1>
    %cst_90 = arith.constant 0.000000e+00 : f32
    %173 = vector.shape_cast %172 : vector<1x512xi1> to vector<1x512xi1>
    %174 = vector.broadcast %173 : vector<1x512xi1> to vector<4x512xi1>
    %175 = vector.broadcast %cst_90 : f32 to vector<4x512xf32>
    %176 = arith.select %174, %170, %175 : vector<4x512xi1>, vector<4x512xf32>
    %c5_91 = arith.constant 5 : index
    %c0_92 = arith.constant 0 : index
    %c0_93 = arith.constant 0 : index
    %177 = vector.load %arg6[%c5_91, %c0_92, %c0_93] : memref<27x4x4xf32, #tpu.memory_space<vmem>>, vector<1x4x4xf32>
    %178 = vector.shape_cast %177 : vector<1x4x4xf32> to vector<4x4xf32>
    %cst_94 = arith.constant dense<0.000000e+00> : vector<4x512xf32>
    %179 = tpu.matmul %178, %176, %cst_94 {dimension_numbers = #tpu.dot_dimension_numbers<[1], [0], [0], [1], [0, 0, 1, 1], [], []>} : vector<4x4xf32>, vector<4x512xf32>, vector<4x512xf32> -> vector<4x512xf32>
    %180 = arith.addf %169, %179 : vector<4x512xf32>
    %c0_95 = arith.constant 0 : index
    %c71 = arith.constant 71 : index
    %181 = vector.load %arg9[%c0_95, %c71] : memref<4x768xf32, #tpu.memory_space<vmem>>, vector<4x512xf32>
    %182 = arith.andi %103, %109 : vector<1x512xi1>
    %183 = arith.andi %182, %111 : vector<1x512xi1>
    %cst_96 = arith.constant 0.000000e+00 : f32
    %184 = vector.shape_cast %183 : vector<1x512xi1> to vector<1x512xi1>
    %185 = vector.broadcast %184 : vector<1x512xi1> to vector<4x512xi1>
    %186 = vector.broadcast %cst_96 : f32 to vector<4x512xf32>
    %187 = arith.select %185, %181, %186 : vector<4x512xi1>, vector<4x512xf32>
    %c6_97 = arith.constant 6 : index
    %c0_98 = arith.constant 0 : index
    %c0_99 = arith.constant 0 : index
    %188 = vector.load %arg6[%c6_97, %c0_98, %c0_99] : memref<27x4x4xf32, #tpu.memory_space<vmem>>, vector<1x4x4xf32>
    %189 = vector.shape_cast %188 : vector<1x4x4xf32> to vector<4x4xf32>
    %cst_100 = arith.constant dense<0.000000e+00> : vector<4x512xf32>
    %190 = tpu.matmul %189, %187, %cst_100 {dimension_numbers = #tpu.dot_dimension_numbers<[1], [0], [0], [1], [0, 0, 1, 1], [], []>} : vector<4x4xf32>, vector<4x512xf32>, vector<4x512xf32> -> vector<4x512xf32>
    %191 = arith.addf %180, %190 : vector<4x512xf32>
    %c0_101 = arith.constant 0 : index
    %c72 = arith.constant 72 : index
    %192 = vector.load %arg9[%c0_101, %c72] : memref<4x768xf32, #tpu.memory_space<vmem>>, vector<4x512xf32>
    %193 = arith.andi %103, %109 : vector<1x512xi1>
    %194 = arith.andi %193, %101 : vector<1x512xi1>
    %cst_102 = arith.constant 0.000000e+00 : f32
    %195 = vector.shape_cast %194 : vector<1x512xi1> to vector<1x512xi1>
    %196 = vector.broadcast %195 : vector<1x512xi1> to vector<4x512xi1>
    %197 = vector.broadcast %cst_102 : f32 to vector<4x512xf32>
    %198 = arith.select %196, %192, %197 : vector<4x512xi1>, vector<4x512xf32>
    %c7_103 = arith.constant 7 : index
    %c0_104 = arith.constant 0 : index
    %c0_105 = arith.constant 0 : index
    %199 = vector.load %arg6[%c7_103, %c0_104, %c0_105] : memref<27x4x4xf32, #tpu.memory_space<vmem>>, vector<1x4x4xf32>
    %200 = vector.shape_cast %199 : vector<1x4x4xf32> to vector<4x4xf32>
    %cst_106 = arith.constant dense<0.000000e+00> : vector<4x512xf32>
    %201 = tpu.matmul %200, %198, %cst_106 {dimension_numbers = #tpu.dot_dimension_numbers<[1], [0], [0], [1], [0, 0, 1, 1], [], []>} : vector<4x4xf32>, vector<4x512xf32>, vector<4x512xf32> -> vector<4x512xf32>
    %202 = arith.addf %191, %201 : vector<4x512xf32>
    %c0_107 = arith.constant 0 : index
    %c73 = arith.constant 73 : index
    %203 = vector.load %arg9[%c0_107, %c73] : memref<4x768xf32, #tpu.memory_space<vmem>>, vector<4x512xf32>
    %204 = arith.andi %103, %109 : vector<1x512xi1>
    %205 = arith.andi %204, %113 : vector<1x512xi1>
    %cst_108 = arith.constant 0.000000e+00 : f32
    %206 = vector.shape_cast %205 : vector<1x512xi1> to vector<1x512xi1>
    %207 = vector.broadcast %206 : vector<1x512xi1> to vector<4x512xi1>
    %208 = vector.broadcast %cst_108 : f32 to vector<4x512xf32>
    %209 = arith.select %207, %203, %208 : vector<4x512xi1>, vector<4x512xf32>
    %c8 = arith.constant 8 : index
    %c0_109 = arith.constant 0 : index
    %c0_110 = arith.constant 0 : index
    %210 = vector.load %arg6[%c8, %c0_109, %c0_110] : memref<27x4x4xf32, #tpu.memory_space<vmem>>, vector<1x4x4xf32>
    %211 = vector.shape_cast %210 : vector<1x4x4xf32> to vector<4x4xf32>
    %cst_111 = arith.constant dense<0.000000e+00> : vector<4x512xf32>
    %212 = tpu.matmul %211, %209, %cst_111 {dimension_numbers = #tpu.dot_dimension_numbers<[1], [0], [0], [1], [0, 0, 1, 1], [], []>} : vector<4x4xf32>, vector<4x512xf32>, vector<4x512xf32> -> vector<4x512xf32>
    %213 = arith.addf %202, %212 : vector<4x512xf32>
    %c0_112 = arith.constant 0 : index
    %c119 = arith.constant 119 : index
    %214 = vector.load %arg9[%c0_112, %c119] : memref<4x768xf32, #tpu.memory_space<vmem>>, vector<4x512xf32>
    %215 = arith.andi %101, %107 : vector<1x512xi1>
    %216 = arith.andi %215, %111 : vector<1x512xi1>
    %cst_113 = arith.constant 0.000000e+00 : f32
    %217 = vector.shape_cast %216 : vector<1x512xi1> to vector<1x512xi1>
    %218 = vector.broadcast %217 : vector<1x512xi1> to vector<4x512xi1>
    %219 = vector.broadcast %cst_113 : f32 to vector<4x512xf32>
    %220 = arith.select %218, %214, %219 : vector<4x512xi1>, vector<4x512xf32>
    %c9 = arith.constant 9 : index
    %c0_114 = arith.constant 0 : index
    %c0_115 = arith.constant 0 : index
    %221 = vector.load %arg6[%c9, %c0_114, %c0_115] : memref<27x4x4xf32, #tpu.memory_space<vmem>>, vector<1x4x4xf32>
    %222 = vector.shape_cast %221 : vector<1x4x4xf32> to vector<4x4xf32>
    %cst_116 = arith.constant dense<0.000000e+00> : vector<4x512xf32>
    %223 = tpu.matmul %222, %220, %cst_116 {dimension_numbers = #tpu.dot_dimension_numbers<[1], [0], [0], [1], [0, 0, 1, 1], [], []>} : vector<4x4xf32>, vector<4x512xf32>, vector<4x512xf32> -> vector<4x512xf32>
    %224 = arith.addf %213, %223 : vector<4x512xf32>
    %c0_117 = arith.constant 0 : index
    %c120 = arith.constant 120 : index
    %225 = vector.load %arg9[%c0_117, %c120] : memref<4x768xf32, #tpu.memory_space<vmem>>, vector<4x512xf32>
    %226 = arith.andi %101, %107 : vector<1x512xi1>
    %227 = arith.andi %226, %101 : vector<1x512xi1>
    %cst_118 = arith.constant 0.000000e+00 : f32
    %228 = vector.shape_cast %227 : vector<1x512xi1> to vector<1x512xi1>
    %229 = vector.broadcast %228 : vector<1x512xi1> to vector<4x512xi1>
    %230 = vector.broadcast %cst_118 : f32 to vector<4x512xf32>
    %231 = arith.select %229, %225, %230 : vector<4x512xi1>, vector<4x512xf32>
    %c10 = arith.constant 10 : index
    %c0_119 = arith.constant 0 : index
    %c0_120 = arith.constant 0 : index
    %232 = vector.load %arg6[%c10, %c0_119, %c0_120] : memref<27x4x4xf32, #tpu.memory_space<vmem>>, vector<1x4x4xf32>
    %233 = vector.shape_cast %232 : vector<1x4x4xf32> to vector<4x4xf32>
    %cst_121 = arith.constant dense<0.000000e+00> : vector<4x512xf32>
    %234 = tpu.matmul %233, %231, %cst_121 {dimension_numbers = #tpu.dot_dimension_numbers<[1], [0], [0], [1], [0, 0, 1, 1], [], []>} : vector<4x4xf32>, vector<4x512xf32>, vector<4x512xf32> -> vector<4x512xf32>
    %235 = arith.addf %224, %234 : vector<4x512xf32>
    %c0_122 = arith.constant 0 : index
    %c121 = arith.constant 121 : index
    %236 = vector.load %arg9[%c0_122, %c121] : memref<4x768xf32, #tpu.memory_space<vmem>>, vector<4x512xf32>
    %237 = arith.andi %101, %107 : vector<1x512xi1>
    %238 = arith.andi %237, %113 : vector<1x512xi1>
    %cst_123 = arith.constant 0.000000e+00 : f32
    %239 = vector.shape_cast %238 : vector<1x512xi1> to vector<1x512xi1>
    %240 = vector.broadcast %239 : vector<1x512xi1> to vector<4x512xi1>
    %241 = vector.broadcast %cst_123 : f32 to vector<4x512xf32>
    %242 = arith.select %240, %236, %241 : vector<4x512xi1>, vector<4x512xf32>
    %c11 = arith.constant 11 : index
    %c0_124 = arith.constant 0 : index
    %c0_125 = arith.constant 0 : index
    %243 = vector.load %arg6[%c11, %c0_124, %c0_125] : memref<27x4x4xf32, #tpu.memory_space<vmem>>, vector<1x4x4xf32>
    %244 = vector.shape_cast %243 : vector<1x4x4xf32> to vector<4x4xf32>
    %cst_126 = arith.constant dense<0.000000e+00> : vector<4x512xf32>
    %245 = tpu.matmul %244, %242, %cst_126 {dimension_numbers = #tpu.dot_dimension_numbers<[1], [0], [0], [1], [0, 0, 1, 1], [], []>} : vector<4x4xf32>, vector<4x512xf32>, vector<4x512xf32> -> vector<4x512xf32>
    %246 = arith.addf %235, %245 : vector<4x512xf32>
    %c0_127 = arith.constant 0 : index
    %c127 = arith.constant 127 : index
    %247 = vector.load %arg9[%c0_127, %c127] : memref<4x768xf32, #tpu.memory_space<vmem>>, vector<4x512xf32>
    %248 = arith.andi %101, %101 : vector<1x512xi1>
    %249 = arith.andi %248, %111 : vector<1x512xi1>
    %cst_128 = arith.constant 0.000000e+00 : f32
    %250 = vector.shape_cast %249 : vector<1x512xi1> to vector<1x512xi1>
    %251 = vector.broadcast %250 : vector<1x512xi1> to vector<4x512xi1>
    %252 = vector.broadcast %cst_128 : f32 to vector<4x512xf32>
    %253 = arith.select %251, %247, %252 : vector<4x512xi1>, vector<4x512xf32>
    %c12 = arith.constant 12 : index
    %c0_129 = arith.constant 0 : index
    %c0_130 = arith.constant 0 : index
    %254 = vector.load %arg6[%c12, %c0_129, %c0_130] : memref<27x4x4xf32, #tpu.memory_space<vmem>>, vector<1x4x4xf32>
    %255 = vector.shape_cast %254 : vector<1x4x4xf32> to vector<4x4xf32>
    %cst_131 = arith.constant dense<0.000000e+00> : vector<4x512xf32>
    %256 = tpu.matmul %255, %253, %cst_131 {dimension_numbers = #tpu.dot_dimension_numbers<[1], [0], [0], [1], [0, 0, 1, 1], [], []>} : vector<4x4xf32>, vector<4x512xf32>, vector<4x512xf32> -> vector<4x512xf32>
    %257 = arith.addf %246, %256 : vector<4x512xf32>
    %c0_132 = arith.constant 0 : index
    %c128_133 = arith.constant 128 : index
    %258 = vector.load %arg9[%c0_132, %c128_133] : memref<4x768xf32, #tpu.memory_space<vmem>>, vector<4x512xf32>
    %259 = arith.andi %101, %101 : vector<1x512xi1>
    %260 = arith.andi %259, %101 : vector<1x512xi1>
    %cst_134 = arith.constant 0.000000e+00 : f32
    %261 = vector.shape_cast %260 : vector<1x512xi1> to vector<1x512xi1>
    %262 = vector.broadcast %261 : vector<1x512xi1> to vector<4x512xi1>
    %263 = vector.broadcast %cst_134 : f32 to vector<4x512xf32>
    %264 = arith.select %262, %258, %263 : vector<4x512xi1>, vector<4x512xf32>
    %c13 = arith.constant 13 : index
    %c0_135 = arith.constant 0 : index
    %c0_136 = arith.constant 0 : index
    %265 = vector.load %arg6[%c13, %c0_135, %c0_136] : memref<27x4x4xf32, #tpu.memory_space<vmem>>, vector<1x4x4xf32>
    %266 = vector.shape_cast %265 : vector<1x4x4xf32> to vector<4x4xf32>
    %cst_137 = arith.constant dense<0.000000e+00> : vector<4x512xf32>
    %267 = tpu.matmul %266, %264, %cst_137 {dimension_numbers = #tpu.dot_dimension_numbers<[1], [0], [0], [1], [0, 0, 1, 1], [], []>} : vector<4x4xf32>, vector<4x512xf32>, vector<4x512xf32> -> vector<4x512xf32>
    %268 = arith.addf %257, %267 : vector<4x512xf32>
    %c0_138 = arith.constant 0 : index
    %c129 = arith.constant 129 : index
    %269 = vector.load %arg9[%c0_138, %c129] : memref<4x768xf32, #tpu.memory_space<vmem>>, vector<4x512xf32>
    %270 = arith.andi %101, %101 : vector<1x512xi1>
    %271 = arith.andi %270, %113 : vector<1x512xi1>
    %cst_139 = arith.constant 0.000000e+00 : f32
    %272 = vector.shape_cast %271 : vector<1x512xi1> to vector<1x512xi1>
    %273 = vector.broadcast %272 : vector<1x512xi1> to vector<4x512xi1>
    %274 = vector.broadcast %cst_139 : f32 to vector<4x512xf32>
    %275 = arith.select %273, %269, %274 : vector<4x512xi1>, vector<4x512xf32>
    %c14 = arith.constant 14 : index
    %c0_140 = arith.constant 0 : index
    %c0_141 = arith.constant 0 : index
    %276 = vector.load %arg6[%c14, %c0_140, %c0_141] : memref<27x4x4xf32, #tpu.memory_space<vmem>>, vector<1x4x4xf32>
    %277 = vector.shape_cast %276 : vector<1x4x4xf32> to vector<4x4xf32>
    %cst_142 = arith.constant dense<0.000000e+00> : vector<4x512xf32>
    %278 = tpu.matmul %277, %275, %cst_142 {dimension_numbers = #tpu.dot_dimension_numbers<[1], [0], [0], [1], [0, 0, 1, 1], [], []>} : vector<4x4xf32>, vector<4x512xf32>, vector<4x512xf32> -> vector<4x512xf32>
    %279 = arith.addf %268, %278 : vector<4x512xf32>
    %c0_143 = arith.constant 0 : index
    %c135 = arith.constant 135 : index
    %280 = vector.load %arg9[%c0_143, %c135] : memref<4x768xf32, #tpu.memory_space<vmem>>, vector<4x512xf32>
    %281 = arith.andi %101, %109 : vector<1x512xi1>
    %282 = arith.andi %281, %111 : vector<1x512xi1>
    %cst_144 = arith.constant 0.000000e+00 : f32
    %283 = vector.shape_cast %282 : vector<1x512xi1> to vector<1x512xi1>
    %284 = vector.broadcast %283 : vector<1x512xi1> to vector<4x512xi1>
    %285 = vector.broadcast %cst_144 : f32 to vector<4x512xf32>
    %286 = arith.select %284, %280, %285 : vector<4x512xi1>, vector<4x512xf32>
    %c15 = arith.constant 15 : index
    %c0_145 = arith.constant 0 : index
    %c0_146 = arith.constant 0 : index
    %287 = vector.load %arg6[%c15, %c0_145, %c0_146] : memref<27x4x4xf32, #tpu.memory_space<vmem>>, vector<1x4x4xf32>
    %288 = vector.shape_cast %287 : vector<1x4x4xf32> to vector<4x4xf32>
    %cst_147 = arith.constant dense<0.000000e+00> : vector<4x512xf32>
    %289 = tpu.matmul %288, %286, %cst_147 {dimension_numbers = #tpu.dot_dimension_numbers<[1], [0], [0], [1], [0, 0, 1, 1], [], []>} : vector<4x4xf32>, vector<4x512xf32>, vector<4x512xf32> -> vector<4x512xf32>
    %290 = arith.addf %279, %289 : vector<4x512xf32>
    %c0_148 = arith.constant 0 : index
    %c136 = arith.constant 136 : index
    %291 = vector.load %arg9[%c0_148, %c136] : memref<4x768xf32, #tpu.memory_space<vmem>>, vector<4x512xf32>
    %292 = arith.andi %101, %109 : vector<1x512xi1>
    %293 = arith.andi %292, %101 : vector<1x512xi1>
    %cst_149 = arith.constant 0.000000e+00 : f32
    %294 = vector.shape_cast %293 : vector<1x512xi1> to vector<1x512xi1>
    %295 = vector.broadcast %294 : vector<1x512xi1> to vector<4x512xi1>
    %296 = vector.broadcast %cst_149 : f32 to vector<4x512xf32>
    %297 = arith.select %295, %291, %296 : vector<4x512xi1>, vector<4x512xf32>
    %c16 = arith.constant 16 : index
    %c0_150 = arith.constant 0 : index
    %c0_151 = arith.constant 0 : index
    %298 = vector.load %arg6[%c16, %c0_150, %c0_151] : memref<27x4x4xf32, #tpu.memory_space<vmem>>, vector<1x4x4xf32>
    %299 = vector.shape_cast %298 : vector<1x4x4xf32> to vector<4x4xf32>
    %cst_152 = arith.constant dense<0.000000e+00> : vector<4x512xf32>
    %300 = tpu.matmul %299, %297, %cst_152 {dimension_numbers = #tpu.dot_dimension_numbers<[1], [0], [0], [1], [0, 0, 1, 1], [], []>} : vector<4x4xf32>, vector<4x512xf32>, vector<4x512xf32> -> vector<4x512xf32>
    %301 = arith.addf %290, %300 : vector<4x512xf32>
    %c0_153 = arith.constant 0 : index
    %c137 = arith.constant 137 : index
    %302 = vector.load %arg9[%c0_153, %c137] : memref<4x768xf32, #tpu.memory_space<vmem>>, vector<4x512xf32>
    %303 = arith.andi %101, %109 : vector<1x512xi1>
    %304 = arith.andi %303, %113 : vector<1x512xi1>
    %cst_154 = arith.constant 0.000000e+00 : f32
    %305 = vector.shape_cast %304 : vector<1x512xi1> to vector<1x512xi1>
    %306 = vector.broadcast %305 : vector<1x512xi1> to vector<4x512xi1>
    %307 = vector.broadcast %cst_154 : f32 to vector<4x512xf32>
    %308 = arith.select %306, %302, %307 : vector<4x512xi1>, vector<4x512xf32>
    %c17 = arith.constant 17 : index
    %c0_155 = arith.constant 0 : index
    %c0_156 = arith.constant 0 : index
    %309 = vector.load %arg6[%c17, %c0_155, %c0_156] : memref<27x4x4xf32, #tpu.memory_space<vmem>>, vector<1x4x4xf32>
    %310 = vector.shape_cast %309 : vector<1x4x4xf32> to vector<4x4xf32>
    %cst_157 = arith.constant dense<0.000000e+00> : vector<4x512xf32>
    %311 = tpu.matmul %310, %308, %cst_157 {dimension_numbers = #tpu.dot_dimension_numbers<[1], [0], [0], [1], [0, 0, 1, 1], [], []>} : vector<4x4xf32>, vector<4x512xf32>, vector<4x512xf32> -> vector<4x512xf32>
    %312 = arith.addf %301, %311 : vector<4x512xf32>
    %c0_158 = arith.constant 0 : index
    %c183 = arith.constant 183 : index
    %313 = vector.load %arg9[%c0_158, %c183] : memref<4x768xf32, #tpu.memory_space<vmem>>, vector<4x512xf32>
    %314 = arith.andi %105, %107 : vector<1x512xi1>
    %315 = arith.andi %314, %111 : vector<1x512xi1>
    %cst_159 = arith.constant 0.000000e+00 : f32
    %316 = vector.shape_cast %315 : vector<1x512xi1> to vector<1x512xi1>
    %317 = vector.broadcast %316 : vector<1x512xi1> to vector<4x512xi1>
    %318 = vector.broadcast %cst_159 : f32 to vector<4x512xf32>
    %319 = arith.select %317, %313, %318 : vector<4x512xi1>, vector<4x512xf32>
    %c18 = arith.constant 18 : index
    %c0_160 = arith.constant 0 : index
    %c0_161 = arith.constant 0 : index
    %320 = vector.load %arg6[%c18, %c0_160, %c0_161] : memref<27x4x4xf32, #tpu.memory_space<vmem>>, vector<1x4x4xf32>
    %321 = vector.shape_cast %320 : vector<1x4x4xf32> to vector<4x4xf32>
    %cst_162 = arith.constant dense<0.000000e+00> : vector<4x512xf32>
    %322 = tpu.matmul %321, %319, %cst_162 {dimension_numbers = #tpu.dot_dimension_numbers<[1], [0], [0], [1], [0, 0, 1, 1], [], []>} : vector<4x4xf32>, vector<4x512xf32>, vector<4x512xf32> -> vector<4x512xf32>
    %323 = arith.addf %312, %322 : vector<4x512xf32>
    %c0_163 = arith.constant 0 : index
    %c184 = arith.constant 184 : index
    %324 = vector.load %arg9[%c0_163, %c184] : memref<4x768xf32, #tpu.memory_space<vmem>>, vector<4x512xf32>
    %325 = arith.andi %105, %107 : vector<1x512xi1>
    %326 = arith.andi %325, %101 : vector<1x512xi1>
    %cst_164 = arith.constant 0.000000e+00 : f32
    %327 = vector.shape_cast %326 : vector<1x512xi1> to vector<1x512xi1>
    %328 = vector.broadcast %327 : vector<1x512xi1> to vector<4x512xi1>
    %329 = vector.broadcast %cst_164 : f32 to vector<4x512xf32>
    %330 = arith.select %328, %324, %329 : vector<4x512xi1>, vector<4x512xf32>
    %c19 = arith.constant 19 : index
    %c0_165 = arith.constant 0 : index
    %c0_166 = arith.constant 0 : index
    %331 = vector.load %arg6[%c19, %c0_165, %c0_166] : memref<27x4x4xf32, #tpu.memory_space<vmem>>, vector<1x4x4xf32>
    %332 = vector.shape_cast %331 : vector<1x4x4xf32> to vector<4x4xf32>
    %cst_167 = arith.constant dense<0.000000e+00> : vector<4x512xf32>
    %333 = tpu.matmul %332, %330, %cst_167 {dimension_numbers = #tpu.dot_dimension_numbers<[1], [0], [0], [1], [0, 0, 1, 1], [], []>} : vector<4x4xf32>, vector<4x512xf32>, vector<4x512xf32> -> vector<4x512xf32>
    %334 = arith.addf %323, %333 : vector<4x512xf32>
    %c0_168 = arith.constant 0 : index
    %c185 = arith.constant 185 : index
    %335 = vector.load %arg9[%c0_168, %c185] : memref<4x768xf32, #tpu.memory_space<vmem>>, vector<4x512xf32>
    %336 = arith.andi %105, %107 : vector<1x512xi1>
    %337 = arith.andi %336, %113 : vector<1x512xi1>
    %cst_169 = arith.constant 0.000000e+00 : f32
    %338 = vector.shape_cast %337 : vector<1x512xi1> to vector<1x512xi1>
    %339 = vector.broadcast %338 : vector<1x512xi1> to vector<4x512xi1>
    %340 = vector.broadcast %cst_169 : f32 to vector<4x512xf32>
    %341 = arith.select %339, %335, %340 : vector<4x512xi1>, vector<4x512xf32>
    %c20 = arith.constant 20 : index
    %c0_170 = arith.constant 0 : index
    %c0_171 = arith.constant 0 : index
    %342 = vector.load %arg6[%c20, %c0_170, %c0_171] : memref<27x4x4xf32, #tpu.memory_space<vmem>>, vector<1x4x4xf32>
    %343 = vector.shape_cast %342 : vector<1x4x4xf32> to vector<4x4xf32>
    %cst_172 = arith.constant dense<0.000000e+00> : vector<4x512xf32>
    %344 = tpu.matmul %343, %341, %cst_172 {dimension_numbers = #tpu.dot_dimension_numbers<[1], [0], [0], [1], [0, 0, 1, 1], [], []>} : vector<4x4xf32>, vector<4x512xf32>, vector<4x512xf32> -> vector<4x512xf32>
    %345 = arith.addf %334, %344 : vector<4x512xf32>
    %c0_173 = arith.constant 0 : index
    %c191 = arith.constant 191 : index
    %346 = vector.load %arg9[%c0_173, %c191] : memref<4x768xf32, #tpu.memory_space<vmem>>, vector<4x512xf32>
    %347 = arith.andi %105, %101 : vector<1x512xi1>
    %348 = arith.andi %347, %111 : vector<1x512xi1>
    %cst_174 = arith.constant 0.000000e+00 : f32
    %349 = vector.shape_cast %348 : vector<1x512xi1> to vector<1x512xi1>
    %350 = vector.broadcast %349 : vector<1x512xi1> to vector<4x512xi1>
    %351 = vector.broadcast %cst_174 : f32 to vector<4x512xf32>
    %352 = arith.select %350, %346, %351 : vector<4x512xi1>, vector<4x512xf32>
    %c21 = arith.constant 21 : index
    %c0_175 = arith.constant 0 : index
    %c0_176 = arith.constant 0 : index
    %353 = vector.load %arg6[%c21, %c0_175, %c0_176] : memref<27x4x4xf32, #tpu.memory_space<vmem>>, vector<1x4x4xf32>
    %354 = vector.shape_cast %353 : vector<1x4x4xf32> to vector<4x4xf32>
    %cst_177 = arith.constant dense<0.000000e+00> : vector<4x512xf32>
    %355 = tpu.matmul %354, %352, %cst_177 {dimension_numbers = #tpu.dot_dimension_numbers<[1], [0], [0], [1], [0, 0, 1, 1], [], []>} : vector<4x4xf32>, vector<4x512xf32>, vector<4x512xf32> -> vector<4x512xf32>
    %356 = arith.addf %345, %355 : vector<4x512xf32>
    %c0_178 = arith.constant 0 : index
    %c192 = arith.constant 192 : index
    %357 = vector.load %arg9[%c0_178, %c192] : memref<4x768xf32, #tpu.memory_space<vmem>>, vector<4x512xf32>
    %358 = arith.andi %105, %101 : vector<1x512xi1>
    %359 = arith.andi %358, %101 : vector<1x512xi1>
    %cst_179 = arith.constant 0.000000e+00 : f32
    %360 = vector.shape_cast %359 : vector<1x512xi1> to vector<1x512xi1>
    %361 = vector.broadcast %360 : vector<1x512xi1> to vector<4x512xi1>
    %362 = vector.broadcast %cst_179 : f32 to vector<4x512xf32>
    %363 = arith.select %361, %357, %362 : vector<4x512xi1>, vector<4x512xf32>
    %c22 = arith.constant 22 : index
    %c0_180 = arith.constant 0 : index
    %c0_181 = arith.constant 0 : index
    %364 = vector.load %arg6[%c22, %c0_180, %c0_181] : memref<27x4x4xf32, #tpu.memory_space<vmem>>, vector<1x4x4xf32>
    %365 = vector.shape_cast %364 : vector<1x4x4xf32> to vector<4x4xf32>
    %cst_182 = arith.constant dense<0.000000e+00> : vector<4x512xf32>
    %366 = tpu.matmul %365, %363, %cst_182 {dimension_numbers = #tpu.dot_dimension_numbers<[1], [0], [0], [1], [0, 0, 1, 1], [], []>} : vector<4x4xf32>, vector<4x512xf32>, vector<4x512xf32> -> vector<4x512xf32>
    %367 = arith.addf %356, %366 : vector<4x512xf32>
    %c0_183 = arith.constant 0 : index
    %c193 = arith.constant 193 : index
    %368 = vector.load %arg9[%c0_183, %c193] : memref<4x768xf32, #tpu.memory_space<vmem>>, vector<4x512xf32>
    %369 = arith.andi %105, %101 : vector<1x512xi1>
    %370 = arith.andi %369, %113 : vector<1x512xi1>
    %cst_184 = arith.constant 0.000000e+00 : f32
    %371 = vector.shape_cast %370 : vector<1x512xi1> to vector<1x512xi1>
    %372 = vector.broadcast %371 : vector<1x512xi1> to vector<4x512xi1>
    %373 = vector.broadcast %cst_184 : f32 to vector<4x512xf32>
    %374 = arith.select %372, %368, %373 : vector<4x512xi1>, vector<4x512xf32>
    %c23 = arith.constant 23 : index
    %c0_185 = arith.constant 0 : index
    %c0_186 = arith.constant 0 : index
    %375 = vector.load %arg6[%c23, %c0_185, %c0_186] : memref<27x4x4xf32, #tpu.memory_space<vmem>>, vector<1x4x4xf32>
    %376 = vector.shape_cast %375 : vector<1x4x4xf32> to vector<4x4xf32>
    %cst_187 = arith.constant dense<0.000000e+00> : vector<4x512xf32>
    %377 = tpu.matmul %376, %374, %cst_187 {dimension_numbers = #tpu.dot_dimension_numbers<[1], [0], [0], [1], [0, 0, 1, 1], [], []>} : vector<4x4xf32>, vector<4x512xf32>, vector<4x512xf32> -> vector<4x512xf32>
    %378 = arith.addf %367, %377 : vector<4x512xf32>
    %c0_188 = arith.constant 0 : index
    %c199 = arith.constant 199 : index
    %379 = vector.load %arg9[%c0_188, %c199] : memref<4x768xf32, #tpu.memory_space<vmem>>, vector<4x512xf32>
    %380 = arith.andi %105, %109 : vector<1x512xi1>
    %381 = arith.andi %380, %111 : vector<1x512xi1>
    %cst_189 = arith.constant 0.000000e+00 : f32
    %382 = vector.shape_cast %381 : vector<1x512xi1> to vector<1x512xi1>
    %383 = vector.broadcast %382 : vector<1x512xi1> to vector<4x512xi1>
    %384 = vector.broadcast %cst_189 : f32 to vector<4x512xf32>
    %385 = arith.select %383, %379, %384 : vector<4x512xi1>, vector<4x512xf32>
    %c24 = arith.constant 24 : index
    %c0_190 = arith.constant 0 : index
    %c0_191 = arith.constant 0 : index
    %386 = vector.load %arg6[%c24, %c0_190, %c0_191] : memref<27x4x4xf32, #tpu.memory_space<vmem>>, vector<1x4x4xf32>
    %387 = vector.shape_cast %386 : vector<1x4x4xf32> to vector<4x4xf32>
    %cst_192 = arith.constant dense<0.000000e+00> : vector<4x512xf32>
    %388 = tpu.matmul %387, %385, %cst_192 {dimension_numbers = #tpu.dot_dimension_numbers<[1], [0], [0], [1], [0, 0, 1, 1], [], []>} : vector<4x4xf32>, vector<4x512xf32>, vector<4x512xf32> -> vector<4x512xf32>
    %389 = arith.addf %378, %388 : vector<4x512xf32>
    %c0_193 = arith.constant 0 : index
    %c200 = arith.constant 200 : index
    %390 = vector.load %arg9[%c0_193, %c200] : memref<4x768xf32, #tpu.memory_space<vmem>>, vector<4x512xf32>
    %391 = arith.andi %105, %109 : vector<1x512xi1>
    %392 = arith.andi %391, %101 : vector<1x512xi1>
    %cst_194 = arith.constant 0.000000e+00 : f32
    %393 = vector.shape_cast %392 : vector<1x512xi1> to vector<1x512xi1>
    %394 = vector.broadcast %393 : vector<1x512xi1> to vector<4x512xi1>
    %395 = vector.broadcast %cst_194 : f32 to vector<4x512xf32>
    %396 = arith.select %394, %390, %395 : vector<4x512xi1>, vector<4x512xf32>
    %c25 = arith.constant 25 : index
    %c0_195 = arith.constant 0 : index
    %c0_196 = arith.constant 0 : index
    %397 = vector.load %arg6[%c25, %c0_195, %c0_196] : memref<27x4x4xf32, #tpu.memory_space<vmem>>, vector<1x4x4xf32>
    %398 = vector.shape_cast %397 : vector<1x4x4xf32> to vector<4x4xf32>
    %cst_197 = arith.constant dense<0.000000e+00> : vector<4x512xf32>
    %399 = tpu.matmul %398, %396, %cst_197 {dimension_numbers = #tpu.dot_dimension_numbers<[1], [0], [0], [1], [0, 0, 1, 1], [], []>} : vector<4x4xf32>, vector<4x512xf32>, vector<4x512xf32> -> vector<4x512xf32>
    %400 = arith.addf %389, %399 : vector<4x512xf32>
    %c0_198 = arith.constant 0 : index
    %c201 = arith.constant 201 : index
    %401 = vector.load %arg9[%c0_198, %c201] : memref<4x768xf32, #tpu.memory_space<vmem>>, vector<4x512xf32>
    %402 = arith.andi %105, %109 : vector<1x512xi1>
    %403 = arith.andi %402, %113 : vector<1x512xi1>
    %cst_199 = arith.constant 0.000000e+00 : f32
    %404 = vector.shape_cast %403 : vector<1x512xi1> to vector<1x512xi1>
    %405 = vector.broadcast %404 : vector<1x512xi1> to vector<4x512xi1>
    %406 = vector.broadcast %cst_199 : f32 to vector<4x512xf32>
    %407 = arith.select %405, %401, %406 : vector<4x512xi1>, vector<4x512xf32>
    %c26 = arith.constant 26 : index
    %c0_200 = arith.constant 0 : index
    %c0_201 = arith.constant 0 : index
    %408 = vector.load %arg6[%c26, %c0_200, %c0_201] : memref<27x4x4xf32, #tpu.memory_space<vmem>>, vector<1x4x4xf32>
    %409 = vector.shape_cast %408 : vector<1x4x4xf32> to vector<4x4xf32>
    %cst_202 = arith.constant dense<0.000000e+00> : vector<4x512xf32>
    %410 = tpu.matmul %409, %407, %cst_202 {dimension_numbers = #tpu.dot_dimension_numbers<[1], [0], [0], [1], [0, 0, 1, 1], [], []>} : vector<4x4xf32>, vector<4x512xf32>, vector<4x512xf32> -> vector<4x512xf32>
    %411 = arith.addf %400, %410 : vector<4x512xf32>
    %cst_203 = arith.constant dense<0.000000e+00> : vector<4xf32>
    %412 = vector.multi_reduction <add>, %411, %cst_203 [1] : vector<4x512xf32> to vector<4xf32>
    %413 = vector.shape_cast %412 : vector<4xf32> to vector<4x1xf32>
    %cst_204 = arith.constant 5.120000e+02 : f32
    %414 = vector.broadcast %cst_204 : f32 to vector<4x1xf32>
    %415 = arith.divf %413, %414 : vector<4x1xf32>
    %416 = vector.broadcast %415 : vector<4x1xf32> to vector<4x512xf32>
    %417 = arith.subf %411, %416 : vector<4x512xf32>
    %418 = arith.mulf %417, %417 : vector<4x512xf32>
    %cst_205 = arith.constant dense<0.000000e+00> : vector<4xf32>
    %419 = vector.multi_reduction <add>, %418, %cst_205 [1] : vector<4x512xf32> to vector<4xf32>
    %420 = vector.shape_cast %419 : vector<4xf32> to vector<4x1xf32>
    %cst_206 = arith.constant 5.120000e+02 : f32
    %421 = vector.broadcast %cst_206 : f32 to vector<4x1xf32>
    %422 = arith.divf %420, %421 : vector<4x1xf32>
    %423 = vector.broadcast %415 : vector<4x1xf32> to vector<4x512xf32>
    %424 = arith.subf %411, %423 : vector<4x512xf32>
    %cst_207 = arith.constant 9.99999974E-6 : f32
    %425 = vector.broadcast %cst_207 : f32 to vector<4x1xf32>
    %426 = arith.addf %422, %425 : vector<4x1xf32>
    %427 = math.rsqrt %426 : vector<4x1xf32>
    %428 = vector.broadcast %427 : vector<4x1xf32> to vector<4x512xf32>
    %429 = arith.mulf %424, %428 : vector<4x512xf32>
    %cst_208 = arith.constant 0.000000e+00 : f32
    %430 = vector.broadcast %cst_208 : f32 to vector<4x512xf32>
    %431 = arith.maximumf %429, %430 : vector<4x512xf32>
    %c0_209 = arith.constant 0 : index
    %c0_210 = arith.constant 0 : index
    %432 = vector.load %arg7[%c0_209, %c0_210] : memref<8x4xf32, #tpu.memory_space<vmem>>, vector<8x4xf32>
    %cst_211 = arith.constant dense<0.000000e+00> : vector<8x512xf32>
    %433 = tpu.matmul %432, %431, %cst_211 {dimension_numbers = #tpu.dot_dimension_numbers<[1], [0], [0], [1], [0, 0, 1, 1], [], []>} : vector<8x4xf32>, vector<4x512xf32>, vector<8x512xf32> -> vector<8x512xf32>
    %cst_212 = arith.constant dense<0.000000e+00> : vector<8xf32>
    %434 = vector.multi_reduction <add>, %433, %cst_212 [1] : vector<8x512xf32> to vector<8xf32>
    %435 = vector.shape_cast %434 : vector<8xf32> to vector<8x1xf32>
    %cst_213 = arith.constant 5.120000e+02 : f32
    %436 = vector.broadcast %cst_213 : f32 to vector<8x1xf32>
    %437 = arith.divf %435, %436 : vector<8x1xf32>
    %438 = vector.broadcast %437 : vector<8x1xf32> to vector<8x512xf32>
    %439 = arith.subf %433, %438 : vector<8x512xf32>
    %440 = arith.mulf %439, %439 : vector<8x512xf32>
    %cst_214 = arith.constant dense<0.000000e+00> : vector<8xf32>
    %441 = vector.multi_reduction <add>, %440, %cst_214 [1] : vector<8x512xf32> to vector<8xf32>
    %442 = vector.shape_cast %441 : vector<8xf32> to vector<8x1xf32>
    %cst_215 = arith.constant 5.120000e+02 : f32
    %443 = vector.broadcast %cst_215 : f32 to vector<8x1xf32>
    %444 = arith.divf %442, %443 : vector<8x1xf32>
    %445 = vector.broadcast %437 : vector<8x1xf32> to vector<8x512xf32>
    %446 = arith.subf %433, %445 : vector<8x512xf32>
    %cst_216 = arith.constant 9.99999974E-6 : f32
    %447 = vector.broadcast %cst_216 : f32 to vector<8x1xf32>
    %448 = arith.addf %444, %447 : vector<8x1xf32>
    %449 = math.rsqrt %448 : vector<8x1xf32>
    %450 = vector.broadcast %449 : vector<8x1xf32> to vector<8x512xf32>
    %451 = arith.mulf %446, %450 : vector<8x512xf32>
    %452 = arith.addf %451, %73 : vector<8x512xf32>
    %cst_217 = arith.constant 0.000000e+00 : f32
    %453 = vector.broadcast %cst_217 : f32 to vector<8x512xf32>
    %454 = arith.maximumf %452, %453 : vector<8x512xf32>
    %c0_218 = arith.constant 0 : index
    %c0_219 = arith.constant 0 : index
    %c0_220 = arith.constant 0 : index
    %455 = vector.load %arg8[%c0_218, %c0_219, %c0_220] : memref<1x8x512xf32, #tpu.memory_space<vmem>>, vector<1x8x512xf32>
    %456 = vector.shape_cast %455 : vector<1x8x512xf32> to vector<8x512xf32>
    %457 = vector.shape_cast %454 : vector<8x512xf32> to vector<1x8x512xf32>
    tpu.vector_store %arg8[%c0_218, %c0_219, %c0_220], %457 {strides = array<i32>} : memref<1x8x512xf32, #tpu.memory_space<vmem>>, vector<1x8x512xf32>,
    return
  }
  func.func @transform_0(%arg0: i32) -> (i32, i32, i32) {
    %c0_i32 = arith.constant 0 : i32
    %c0_i32_0 = arith.constant 0 : i32
    %c0_i32_1 = arith.constant 0 : i32
    return %arg0, %c0_i32, %c0_i32_0 : i32, i32, i32
  }
  func.func @transform_1(%arg0: i32) -> (i32, i32) {
    %c0_i32 = arith.constant 0 : i32
    %c0_i32_0 = arith.constant 0 : i32
    %c0_i32_1 = arith.constant 0 : i32
    return %c0_i32, %c0_i32_0 : i32, i32
  }
  func.func @transform_2(%arg0: i32) -> (i32, i32, i32) {
    %c0_i32 = arith.constant 0 : i32
    %c0_i32_0 = arith.constant 0 : i32
    %c0_i32_1 = arith.constant 0 : i32
    %c0_i32_2 = arith.constant 0 : i32
    return %c0_i32, %c0_i32_0, %c0_i32_1 : i32, i32, i32
  }
  func.func @transform_3(%arg0: i32) -> (i32, i32) {
    %c0_i32 = arith.constant 0 : i32
    %c0_i32_0 = arith.constant 0 : i32
    %c0_i32_1 = arith.constant 0 : i32
    return %c0_i32, %c0_i32_0 : i32, i32
  }
  func.func @transform_4(%arg0: i32) -> (i32, i32) {
    %c0_i32 = arith.constant 0 : i32
    %c0_i32_0 = arith.constant 0 : i32
    %c0_i32_1 = arith.constant 0 : i32
    return %c0_i32, %c0_i32_0 : i32, i32
  }
  func.func @transform_5(%arg0: i32) -> (i32, i32, i32) {
    %c0_i32 = arith.constant 0 : i32
    %c0_i32_0 = arith.constant 0 : i32
    %c0_i32_1 = arith.constant 0 : i32
    %c0_i32_2 = arith.constant 0 : i32
    return %c0_i32, %c0_i32_0, %c0_i32_1 : i32, i32, i32
  }
  func.func @transform_6(%arg0: i32) -> (i32, i32) {
    %c0_i32 = arith.constant 0 : i32
    %c0_i32_0 = arith.constant 0 : i32
    %c0_i32_1 = arith.constant 0 : i32
    return %c0_i32, %c0_i32_0 : i32, i32
  }
  func.func @transform_7(%arg0: i32) -> (i32, i32, i32) {
    %c0_i32 = arith.constant 0 : i32
    %c0_i32_0 = arith.constant 0 : i32
    %c0_i32_1 = arith.constant 0 : i32
    return %arg0, %c0_i32, %c0_i32_0 : i32, i32, i32
  }
}

</mosaic_0001>

<llo_original>
// kernel: residual_block_up_forward.1
$region0: #{residual_block_up_forward.1}
  #allocation0 [shape = 'u32[]', space=smem, size = 0x4, offset = 0x4, fixed_abs, tag = 'smem constant byte address 0x4 - core index']
  #allocation1 [shape = 'u32[144,128]{1,0:T(1,128)}', space=vmem, size = 0x12000, scoped, tag = 'internal scratch']
  #allocation2 [shape = 'f32[4,768]{1,0:T(4,128)}', space=vmem, size = 0x3000, scoped, tag = 'scratch operand']
  %s0 = inlined_call_operand.vmem [shape: f32[2,8,512], index: 0, kind: input, shape index: {}]
  %s1 = inlined_call_operand.vmem [shape: s32[4,512], index: 1, kind: input, shape index: {}]
  %s2 = inlined_call_operand.vmem [shape: f32[8,8,8], index: 2, kind: input, shape index: {}]
  %s3 = inlined_call_operand.vmem [shape: f32[8,1], index: 3, kind: input, shape index: {}]
  %s4 = inlined_call_operand.vmem [shape: f32[4,8], index: 4, kind: input, shape index: {}]
  %s5 = inlined_call_operand.vmem [shape: f32[27,4,4], index: 5, kind: input, shape index: {}]
  %s6 = inlined_call_operand.vmem [shape: f32[8,4], index: 6, kind: input, shape index: {}]
  %s7 = inlined_call_operand.vmem [shape: f32[2,8,512], index: 7, kind: output, shape index: {}]
  %s8 = sld [smem:[#allocation0]]
  $region61: #{residual_block_up_forward.1} parent=0
    _
  %s10 = ssub.s32 1, %s8
  %s11 = scalar_select 0, %s10, %s8
  loop: start=0, step=1, limit=4
  $region2: #{residual_block_up_forward.1} parent=0 // loop_pre_header
    _
  $region3: #{residual_block_up_forward.1} parent=0 // loop_header
    %s13 = sphi 0, %s17
    %p14 = scmp.ge.s32.totalorder %s13, 4
    %s23 = sphi 0, %s25
    %s26 = sphi 0, %s23
    %s27 = sphi 0, %s26
    %s43 = sphi 0, %s27
    %s47 = sphi 0, %s47
    %s49 = sphi 0, %s47
    %s50 = sphi 0, %s49
    %s64 = sphi 0, %s50
    %s68 = sphi 0, %s68
    %s70 = sphi 0, %s68
    %s71 = sphi 0, %s70
    %s85 = sphi 0, %s71
    %s89 = sphi 0, %s89
    %s91 = sphi 0, %s89
    %s92 = sphi 0, %s91
    %s106 = sphi 0, %s92
    %s110 = sphi 0, %s110
    %s112 = sphi 0, %s110
    %s113 = sphi 0, %s112
    %s127 = sphi 0, %s113
    %s131 = sphi 0, %s131
    %s133 = sphi 0, %s131
    %s134 = sphi 0, %s133
    %s148 = sphi 0, %s134
    %s152 = sphi 0, %s152
    %s154 = sphi 0, %s152
    %s155 = sphi 0, %s154
    %s169 = sphi 0, %s155
    %s175 = sphi 0, %s177
    %s178 = sphi 0, %s175
    %s179 = sphi 0, %s178
    %s195 = sphi 0, %s179
  $region4: #{residual_block_up_forward.1} parent=0 // loop_header_branch
    %16 = sbr.rel (%p14) target = $region8
  $region5: #{residual_block_up_forward.1} parent=0 // loop_body
    %s18 = ssub.s32 %s13, 1
    %s19 = ssub.s32 %s13, 2
    %s20 = sadd.s32 %s13, 1
    %s21 = ssub.s32 %s13, %s20
    %p22 = scmp.eq.s32.totalorder %s21, 0
    %s24 = sadd.s32 %s23, 1
    %s25 = scalar_select %p22, %s23, %s24
    %p28 = pneg %p22
    %p29 = scmp.eq.s32.totalorder %s13, 1
    %p30 = por %p28, %p29
    %p31 = scmp.ne.s32.totalorder %s23, %s26
    %p32 = scmp.eq.s32.totalorder %s13, 0
    %p33 = por %p31, %p32
    %p34 = scmp.ne.s32.totalorder %s23, %s26
    %p35 = scmp.eq.s32.totalorder %s18, 1
    %p36 = por %p34, %p35
    %p37 = scmp.ne.s32.totalorder %s26, %s27
    %p38 = scmp.eq.s32.totalorder %s18, 0
    %p39 = por %p37, %p38
    %p40 = scmp.ne.s32.totalorder %s26, %s27
    %p41 = scmp.eq.s32.totalorder %s19, 1
    %p42 = por %p40, %p41
    %p44 = scmp.ne.s32.totalorder %s27, %s43
    %p45 = scmp.eq.s32.totalorder %s19, 0
    %p46 = por %p44, %p45
    %s48 = sadd.s32 %s47, 1
    %p51 = scmp.eq.s32.totalorder %s13, 1
    %p52 = scmp.ne.s32.totalorder %s47, %s49
    %p53 = scmp.eq.s32.totalorder %s13, 0
    %p54 = por %p52, %p53
    %p55 = scmp.ne.s32.totalorder %s47, %s49
    %p56 = scmp.eq.s32.totalorder %s18, 1
    %p57 = por %p55, %p56
    %p58 = scmp.ne.s32.totalorder %s49, %s50
    %p59 = scmp.eq.s32.totalorder %s18, 0
    %p60 = por %p58, %p59
    %p61 = scmp.ne.s32.totalorder %s49, %s50
    %p62 = scmp.eq.s32.totalorder %s19, 1
    %p63 = por %p61, %p62
    %p65 = scmp.ne.s32.totalorder %s50, %s64
    %p66 = scmp.eq.s32.totalorder %s19, 0
    %p67 = por %p65, %p66
    %s69 = sadd.s32 %s68, 1
    %p72 = scmp.eq.s32.totalorder %s13, 1
    %p73 = scmp.ne.s32.totalorder %s68, %s70
    %p74 = scmp.eq.s32.totalorder %s13, 0
    %p75 = por %p73, %p74
    %p76 = scmp.ne.s32.totalorder %s68, %s70
    %p77 = scmp.eq.s32.totalorder %s18, 1
    %p78 = por %p76, %p77
    %p79 = scmp.ne.s32.totalorder %s70, %s71
    %p80 = scmp.eq.s32.totalorder %s18, 0
    %p81 = por %p79, %p80
    %p82 = scmp.ne.s32.totalorder %s70, %s71
    %p83 = scmp.eq.s32.totalorder %s19, 1
    %p84 = por %p82, %p83
    %p86 = scmp.ne.s32.totalorder %s71, %s85
    %p87 = scmp.eq.s32.totalorder %s19, 0
    %p88 = por %p86, %p87
    %s90 = sadd.s32 %s89, 1
    %p93 = scmp.eq.s32.totalorder %s13, 1
    %p94 = scmp.ne.s32.totalorder %s89, %s91
    %p95 = scmp.eq.s32.totalorder %s13, 0
    %p96 = por %p94, %p95
    %p97 = scmp.ne.s32.totalorder %s89, %s91
    %p98 = scmp.eq.s32.totalorder %s18, 1
    %p99 = por %p97, %p98
    %p100 = scmp.ne.s32.totalorder %s91, %s92
    %p101 = scmp.eq.s32.totalorder %s18, 0
    %p102 = por %p100, %p101
    %p103 = scmp.ne.s32.totalorder %s91, %s92
    %p104 = scmp.eq.s32.totalorder %s19, 1
    %p105 = por %p103, %p104
    %p107 = scmp.ne.s32.totalorder %s92, %s106
    %p108 = scmp.eq.s32.totalorder %s19, 0
    %p109 = por %p107, %p108
    %s111 = sadd.s32 %s110, 1
    %p114 = scmp.eq.s32.totalorder %s13, 1
    %p115 = scmp.ne.s32.totalorder %s110, %s112
    %p116 = scmp.eq.s32.totalorder %s13, 0
    %p117 = por %p115, %p116
    %p118 = scmp.ne.s32.totalorder %s110, %s112
    %p119 = scmp.eq.s32.totalorder %s18, 1
    %p120 = por %p118, %p119
    %p121 = scmp.ne.s32.totalorder %s112, %s113
    %p122 = scmp.eq.s32.totalorder %s18, 0
    %p123 = por %p121, %p122
    %p124 = scmp.ne.s32.totalorder %s112, %s113
    %p125 = scmp.eq.s32.totalorder %s19, 1
    %p126 = por %p124, %p125
    %p128 = scmp.ne.s32.totalorder %s113, %s127
    %p129 = scmp.eq.s32.totalorder %s19, 0
    %p130 = por %p128, %p129
    %s132 = sadd.s32 %s131, 1
    %p135 = scmp.eq.s32.totalorder %s13, 1
    %p136 = scmp.ne.s32.totalorder %s131, %s133
    %p137 = scmp.eq.s32.totalorder %s13, 0
    %p138 = por %p136, %p137
    %p139 = scmp.ne.s32.totalorder %s131, %s133
    %p140 = scmp.eq.s32.totalorder %s18, 1
    %p141 = por %p139, %p140
    %p142 = scmp.ne.s32.totalorder %s133, %s134
    %p143 = scmp.eq.s32.totalorder %s18, 0
    %p144 = por %p142, %p143
    %p145 = scmp.ne.s32.totalorder %s133, %s134
    %p146 = scmp.eq.s32.totalorder %s19, 1
    %p147 = por %p145, %p146
    %p149 = scmp.ne.s32.totalorder %s134, %s148
    %p150 = scmp.eq.s32.totalorder %s19, 0
    %p151 = por %p149, %p150
    %s153 = sadd.s32 %s152, 1
    %p156 = scmp.eq.s32.totalorder %s13, 1
    %p157 = scmp.ne.s32.totalorder %s152, %s154
    %p158 = scmp.eq.s32.totalorder %s13, 0
    %p159 = por %p157, %p158
    %p160 = scmp.ne.s32.totalorder %s152, %s154
    %p161 = scmp.eq.s32.totalorder %s18, 1
    %p162 = por %p160, %p161
    %p163 = scmp.ne.s32.totalorder %s154, %s155
    %p164 = scmp.eq.s32.totalorder %s18, 0
    %p165 = por %p163, %p164
    %p166 = scmp.ne.s32.totalorder %s154, %s155
    %p167 = scmp.eq.s32.totalorder %s19, 1
    %p168 = por %p166, %p167
    %p170 = scmp.ne.s32.totalorder %s155, %s169
    %p171 = scmp.eq.s32.totalorder %s19, 0
    %p172 = por %p170, %p171
    %s173 = ssub.s32 %s13, %s20
    %p174 = scmp.eq.s32.totalorder %s173, 0
    %s176 = sadd.s32 %s175, 1
    %s177 = scalar_select %p174, %s175, %s176
    %p180 = pneg %p174
    %p181 = scmp.eq.s32.totalorder %s13, 1
    %p182 = por %p180, %p181
    %p183 = scmp.ne.s32.totalorder %s175, %s178
    %p184 = scmp.eq.s32.totalorder %s13, 0
    %p185 = por %p183, %p184
    %p186 = scmp.ne.s32.totalorder %s175, %s178
    %p187 = scmp.eq.s32.totalorder %s18, 1
    %p188 = por %p186, %p187
    %p189 = scmp.ne.s32.totalorder %s178, %s179
    %p190 = scmp.eq.s32.totalorder %s18, 0
    %p191 = por %p189, %p190
    %p192 = scmp.ne.s32.totalorder %s178, %s179
    %p193 = scmp.eq.s32.totalorder %s19, 1
    %p194 = por %p192, %p193
    %p196 = scmp.ne.s32.totalorder %s179, %s195
    %p197 = scmp.eq.s32.totalorder %s19, 0
    %p198 = por %p196, %p197
    %p199 = scmp.le.s32.totalorder 1, %s13
    %p200 = scmp.lt.s32.totalorder %s13, 3
    %p201 = pnand %p199, %p200
    %p202 = pneg %p201
    // Predicated region
    $region9: #{residual_block_up_forward.1} parent=5 // pred_check
      _
    $region10: #{residual_block_up_forward.1} parent=5 // pred_check_branch
      %204 = sbr.rel (%p201) target = $region12
    $region11: #{residual_block_up_forward.1} parent=5 // pred_region
      %s205 = ssub.s32 %s13, 1
      // Predicated region
      $region13: #{residual_block_up_forward.1} parent=11 // pred_check
        %p206 = pneg %p60
      $region14: #{residual_block_up_forward.1} parent=11 // pred_check_branch
        %208 = sbr.rel (%p206) target = $region16
      $region15: #{residual_block_up_forward.1} parent=11 // pred_region
        _
      $region16: #{residual_block_up_forward.1} parent=11 // pred_fallthru
        _
      // Predicated region
      $region17: #{residual_block_up_forward.1} parent=11 // pred_check
        %p209 = pneg %p81
      $region18: #{residual_block_up_forward.1} parent=11 // pred_check_branch
        %211 = sbr.rel (%p209) target = $region20
      $region19: #{residual_block_up_forward.1} parent=11 // pred_region
        _
      $region20: #{residual_block_up_forward.1} parent=11 // pred_fallthru
        _
      // Predicated region
      $region21: #{residual_block_up_forward.1} parent=11 // pred_check
        %p212 = pneg %p102
      $region22: #{residual_block_up_forward.1} parent=11 // pred_check_branch
        %214 = sbr.rel (%p212) target = $region24
      $region23: #{residual_block_up_forward.1} parent=11 // pred_region
        _
      $region24: #{residual_block_up_forward.1} parent=11 // pred_fallthru
        _
      // Predicated region
      $region25: #{residual_block_up_forward.1} parent=11 // pred_check
        %p215 = pneg %p123
      $region26: #{residual_block_up_forward.1} parent=11 // pred_check_branch
        %217 = sbr.rel (%p215) target = $region28
      $region27: #{residual_block_up_forward.1} parent=11 // pred_region
        _
      $region28: #{residual_block_up_forward.1} parent=11 // pred_fallthru
        _
      // Predicated region
      $region29: #{residual_block_up_forward.1} parent=11 // pred_check
        %p218 = pneg %p144
      $region30: #{residual_block_up_forward.1} parent=11 // pred_check_branch
        %220 = sbr.rel (%p218) target = $region32
      $region31: #{residual_block_up_forward.1} parent=11 // pred_region
        _
      $region32: #{residual_block_up_forward.1} parent=11 // pred_fallthru
        _
      // Predicated region
      $region33: #{residual_block_up_forward.1} parent=11 // pred_check
        %p221 = pneg %p165
      $region34: #{residual_block_up_forward.1} parent=11 // pred_check_branch
        %223 = sbr.rel (%p221) target = $region36
      $region35: #{residual_block_up_forward.1} parent=11 // pred_region
        _
      $region36: #{residual_block_up_forward.1} parent=11 // pred_fallthru
        _
    $region12: #{residual_block_up_forward.1} parent=5 // pred_fallthru
      _
    %p224 = scmp.lt.s32.totalorder %s13, 2
    // Predicated region
    $region37: #{residual_block_up_forward.1} parent=5 // pred_check
      %p225 = pneg %p224
    $region38: #{residual_block_up_forward.1} parent=5 // pred_check_branch
      %227 = sbr.rel (%p225) target = $region40
    $region39: #{residual_block_up_forward.1} parent=5 // pred_region
      // Predicated region
      $region41: #{residual_block_up_forward.1} parent=39 // pred_check
        %p228 = pneg %p33
      $region42: #{residual_block_up_forward.1} parent=39 // pred_check_branch
        %230 = sbr.rel (%p228) target = $region44
      $region43: #{residual_block_up_forward.1} parent=39 // pred_region
        %p231 = scmp.lt.s32.totalorder %s13, 1
        %s232 = scalar_select %p231, %s13, 1
        %s233 = smul.addr %s232, 4
        %s234 = smul.addr %s233, 8
        %s235 = scalar_lea.vmem %s0, %s234
      $region44: #{residual_block_up_forward.1} parent=39 // pred_fallthru
        _
    $region40: #{residual_block_up_forward.1} parent=5 // pred_fallthru
      _
    %p236 = scmp.le.s32.totalorder 1, %s13
    %p237 = scmp.lt.s32.totalorder %s13, 3
    %p238 = pnand %p236, %p237
    %p239 = pneg %p238
    // Predicated region
    $region45: #{residual_block_up_forward.1} parent=5 // pred_check
      _
    $region46: #{residual_block_up_forward.1} parent=5 // pred_check_branch
      %241 = sbr.rel (%p238) target = $region48
    $region47: #{residual_block_up_forward.1} parent=5 // pred_region
      %s242 = ssub.s32 %s13, 1
      %p243 = scmp.lt.s32.totalorder %s18, 1
      %s244 = scalar_select %p243, %s18, 1
      %s245 = smul.addr %s244, 4
      %s246 = smul.addr %s245, 8
      %s247 = scalar_lea.vmem %s0, %s246
      %p248 = pneg %p39
      %p249 = pneg %p36
      %p250 = pneg %p60
      %p251 = pneg %p57
      %p252 = pneg %p81
      %p253 = pneg %p78
      %p254 = pneg %p102
      %p255 = pneg %p99
      %p256 = pneg %p123
      %p257 = pneg %p120
      %p258 = pneg %p144
      %p259 = pneg %p141
      %p260 = pneg %p165
      %p261 = pneg %p162
      %p262 = pneg %p191
      %p263 = pneg %p188
      %p264 = scmp.lt.s32.totalorder %s18, 1
      %s265 = scalar_select %p264, %s18, 1
      %s266 = smul.addr %s265, 4
      %s267 = smul.addr %s266, 8
      %s268 = scalar_lea.vmem %s7, %s267
      %p269 = scmp.lt.s32.totalorder %s18, 1
      %s270 = scalar_select %p269, %s18, 1
      %s271 = smul.addr %s270, 4
      %s272 = smul.addr %s271, 8
      %s273 = scalar_lea.vmem %s0, %s272
      %p274 = scmp.lt.s32.totalorder %s18, 1
      %s275 = scalar_select %p274, %s18, 1
      %s276 = smul.addr %s275, 4
      %s277 = smul.addr %s276, 8
      %s278 = scalar_lea.vmem %s7, %s277
      %v279 = vld [vmem:[%s273] sm:$0xff]
      %v280 = vld [vmem:[%s273 + $0x8] sm:$0xff]
      %v281 = vld [vmem:[%s273 + $0x10] sm:$0xff]
      %v282 = vld [vmem:[%s273 + $0x18] sm:$0xff]
      %v283 = vld [vmem:[%s1] ss:$4 sm:$0xf]
      %s284 = scalar_lea.vmem %s1, 1
      %v285 = vld [vmem:[%s284] ss:$4 sm:$0xf]
      %s286 = scalar_lea.vmem %s1, 2
      %v287 = vld [vmem:[%s286] ss:$4 sm:$0xf]
      %s288 = scalar_lea.vmem %s1, 3
      %v289 = vld [vmem:[%s288] ss:$4 sm:$0xf]
      %v290 = vld [vmem:[%s2] sm:$0xff]
      %vm291 = vcmask 64512
      %v293 = vsel %vm291, %v290, 0
      %295 = vmatprep.subr.mxu0 %v280
      %296 = vmatpush1.msra.mxu0 %v279
      %297 = vmatprep.subr.mxu0 0.0
      %298 = vmatpush1.msra.mxu0 0.0
      %299 = vmatprep.subr.mxu0 0.0
      %300 = vmatpush1.msra.mxu0 0.0
      %301 = vmatprep.subr.mxu0 0.0
      %302 = vmatpush1.msra.mxu0 0.0
      %303 = vmatprep.subr.mxu0 0.0
      %304 = vmatpush1.msra.mxu0 0.0
      %305 = vmatprep.subr.mxu0 0.0
      %306 = vmatpush1.msra.mxu0 0.0
      %307 = vmatprep.subr.mxu0 0.0
      %308 = vmatpush1.msra.mxu0 0.0
      %309 = vmatprep.subr.mxu0 0.0
      %310 = vmatpush1.msra.mxu0 0.0
      %311 = vmatprep.subr.mxu0 0.0
      %312 = vmatpush1.msra.mxu0 0.0
      %313 = vmatprep.subr.mxu0 0.0
      %314 = vmatpush1.msra.mxu0 0.0
      %315 = vmatprep.subr.mxu0 0.0
      %316 = vmatpush1.msra.mxu0 0.0
      %317 = vmatprep.subr.mxu0 0.0
      %318 = vmatpush1.msra.mxu0 0.0
      %319 = vmatprep.subr.mxu0 0.0
      %320 = vmatpush1.msra.mxu0 0.0
      %321 = vmatprep.subr.mxu0 0.0
      %322 = vmatpush1.msra.mxu0 0.0
      %323 = vmatprep.subr.mxu0 0.0
      %324 = vmatpush1.msra.mxu0 0.0
      %325 = vmatprep.subr.mxu0 0.0
      %326 = vmatpush1.msra.mxu0 0.0
      %327 = vmatprep.subr.mxu0 0.0
      %328 = vmatpush1.msra.mxu0 0.0
      %329 = vmatprep.subr.mxu0 0.0
      %330 = vmatpush1.msra.mxu0 0.0
      %331 = vmatprep.subr.mxu0 0.0
      %332 = vmatpush1.msra.mxu0 0.0
      %333 = vmatprep.subr.mxu0 0.0
      %334 = vmatpush1.msra.mxu0 0.0
      %335 = vmatprep.subr.mxu0 0.0
      %336 = vmatpush1.msra.mxu0 0.0
      %337 = vmatprep.subr.mxu0 0.0
      %338 = vmatpush1.msra.mxu0 0.0
      %339 = vmatprep.subr.mxu0 0.0
      %340 = vmatpush1.msra.mxu0 0.0
      %341 = vmatprep.subr.mxu0 0.0
      %342 = vmatpush1.msra.mxu0 0.0
      %343 = vmatprep.subr.mxu0 0.0
      %344 = vmatpush1.msra.mxu0 0.0
      %345 = vmatprep.subr.mxu0 0.0
      %346 = vmatpush1.msra.mxu0 0.0
      %347 = vmatprep.subr.mxu0 0.0
      %348 = vmatpush1.msra.mxu0 0.0
      %349 = vmatprep.subr.mxu0 0.0
      %350 = vmatpush1.msra.mxu0 0.0
      %351 = vmatprep.subr.mxu0 0.0
      %352 = vmatpush1.msra.mxu0 0.0
      %353 = vmatprep.subr.mxu0 0.0
      %354 = vmatpush1.msra.mxu0 0.0
      %355 = vmatprep.subr.mxu0 0.0
      %356 = vmatpush1.msra.mxu0 0.0
      %357 = vmatprep.subr.mxu0 0.0
      %358 = vmatpush1.msra.mxu0 0.0
      %359 = vmatprep.mubr.f32.mxu0 0.0
      %360 = vmatmul.mubr.f32.gmra.mrb[0].mxu0 %v293
      %v361 = vpop.f32.mrb[0].mxu0
      %v362 = vadd.f32 0.0, %v361
      %v363 = vpop.f32.mrb[0].mxu0
      %v364 = vadd.f32 0.0, %v363
      %365 = vdwg.mxu0
      %366 = vmatprep.subr.mxu0 %v282
      %367 = vmatpush1.msra.mxu0 %v281
      %368 = vmatprep.subr.mxu0 0.0
      %369 = vmatpush1.msra.mxu0 0.0
      %370 = vmatprep.subr.mxu0 0.0
      %371 = vmatpush1.msra.mxu0 0.0
      %372 = vmatprep.subr.mxu0 0.0
      %373 = vmatpush1.msra.mxu0 0.0
      %374 = vmatprep.subr.mxu0 0.0
      %375 = vmatpush1.msra.mxu0 0.0
      %376 = vmatprep.subr.mxu0 0.0
      %377 = vmatpush1.msra.mxu0 0.0
      %378 = vmatprep.subr.mxu0 0.0
      %379 = vmatpush1.msra.mxu0 0.0
      %380 = vmatprep.subr.mxu0 0.0
      %381 = vmatpush1.msra.mxu0 0.0
      %382 = vmatprep.subr.mxu0 0.0
      %383 = vmatpush1.msra.mxu0 0.0
      %384 = vmatprep.subr.mxu0 0.0
      %385 = vmatpush1.msra.mxu0 0.0
      %386 = vmatprep.subr.mxu0 0.0
      %387 = vmatpush1.msra.mxu0 0.0
      %388 = vmatprep.subr.mxu0 0.0
      %389 = vmatpush1.msra.mxu0 0.0
      %390 = vmatprep.subr.mxu0 0.0
      %391 = vmatpush1.msra.mxu0 0.0
      %392 = vmatprep.subr.mxu0 0.0
      %393 = vmatpush1.msra.mxu0 0.0
      %394 = vmatprep.subr.mxu0 0.0
      %395 = vmatpush1.msra.mxu0 0.0
      %396 = vmatprep.subr.mxu0 0.0
      %397 = vmatpush1.msra.mxu0 0.0
      %398 = vmatprep.subr.mxu0 0.0
      %399 = vmatpush1.msra.mxu0 0.0
      %400 = vmatprep.subr.mxu0 0.0
      %401 = vmatpush1.msra.mxu0 0.0
      %402 = vmatprep.subr.mxu0 0.0
      %403 = vmatpush1.msra.mxu0 0.0
      %404 = vmatprep.subr.mxu0 0.0
      %405 = vmatpush1.msra.mxu0 0.0
      %406 = vmatprep.subr.mxu0 0.0
      %407 = vmatpush1.msra.mxu0 0.0
      %408 = vmatprep.subr.mxu0 0.0
      %409 = vmatpush1.msra.mxu0 0.0
      %410 = vmatprep.subr.mxu0 0.0
      %411 = vmatpush1.msra.mxu0 0.0
      %412 = vmatprep.subr.mxu0 0.0
      %413 = vmatpush1.msra.mxu0 0.0
      %414 = vmatprep.subr.mxu0 0.0
      %415 = vmatpush1.msra.mxu0 0.0
      %416 = vmatprep.subr.mxu0 0.0
      %417 = vmatpush1.msra.mxu0 0.0
      %418 = vmatprep.subr.mxu0 0.0
      %419 = vmatpush1.msra.mxu0 0.0
      %420 = vmatprep.subr.mxu0 0.0
      %421 = vmatpush1.msra.mxu0 0.0
      %422 = vmatprep.subr.mxu0 0.0
      %423 = vmatpush1.msra.mxu0 0.0
      %424 = vmatprep.subr.mxu0 0.0
      %425 = vmatpush1.msra.mxu0 0.0
      %426 = vmatprep.subr.mxu0 0.0
      %427 = vmatpush1.msra.mxu0 0.0
      %428 = vmatprep.subr.mxu0 0.0
      %429 = vmatpush1.msra.mxu0 0.0
      %430 = vmatprep.mubr.f32.mxu0 0.0
      %431 = vmatmul.mubr.f32.gmra.mrb[0].mxu0 %v293
      %v432 = vpop.f32.mrb[0].mxu0
      %v433 = vadd.f32 0.0, %v432
      %v434 = vpop.f32.mrb[0].mxu0
      %v435 = vadd.f32 0.0, %v434
      %436 = vdwg.mxu0
      %vm437 = vcmp.eq.s32.totalorder %v283, 0
      %v438 = vsel %vm437, 1, 0
      %v439 = vlaneseq
      %v440 = vshrl.u32 %v439, 7
      %v441 = vsub.s32 0, %v440
      %v442 = vrot.slane %v438, %v441
      %v443 = vlaneseq
      %v444 = vshrl.u32 %v443, 7
      %v445 = vsub.s32 1, %v444
      %v446 = vrot.slane %v438, %v445
      %v447 = vlaneseq
      %v448 = vshrl.u32 %v447, 7
      %v449 = vsub.s32 2, %v448
      %v450 = vrot.slane %v438, %v449
      %v451 = vlaneseq
      %v452 = vshrl.u32 %v451, 7
      %v453 = vsub.s32 3, %v452
      %v454 = vrot.slane %v438, %v453
      %vm455 = vcmp.eq.s32.totalorder %v442, 1
      %vm456 = vcmp.eq.s32.totalorder %v446, 1
      %vm457 = vcmp.eq.s32.totalorder %v450, 1
      %vm458 = vcmp.eq.s32.totalorder %v454, 1
      %v459 = vsel %vm455, %v362, 0.0
      %v460 = vsel %vm456, %v364, 0.0
      %v461 = vsel %vm457, %v433, 0.0
      %v462 = vsel %vm458, %v435, 0.0
      %s463 = scalar_lea.vmem %s2, 8
      %v464 = vld [vmem:[%s463] sm:$0xff]
      %v466 = vsel %vm291, %v464, 0
      %468 = vmatprep.subr.mxu0 %v280
      %469 = vmatpush1.msra.mxu0 %v279
      %470 = vmatprep.subr.mxu0 0.0
      %471 = vmatpush1.msra.mxu0 0.0
      %472 = vmatprep.subr.mxu0 0.0
      %473 = vmatpush1.msra.mxu0 0.0
      %474 = vmatprep.subr.mxu0 0.0
      %475 = vmatpush1.msra.mxu0 0.0
      %476 = vmatprep.subr.mxu0 0.0
      %477 = vmatpush1.msra.mxu0 0.0
      %478 = vmatprep.subr.mxu0 0.0
      %479 = vmatpush1.msra.mxu0 0.0
      %480 = vmatprep.subr.mxu0 0.0
      %481 = vmatpush1.msra.mxu0 0.0
      %482 = vmatprep.subr.mxu0 0.0
      %483 = vmatpush1.msra.mxu0 0.0
      %484 = vmatprep.subr.mxu0 0.0
      %485 = vmatpush1.msra.mxu0 0.0
      %486 = vmatprep.subr.mxu0 0.0
      %487 = vmatpush1.msra.mxu0 0.0
      %488 = vmatprep.subr.mxu0 0.0
      %489 = vmatpush1.msra.mxu0 0.0
      %490 = vmatprep.subr.mxu0 0.0
      %491 = vmatpush1.msra.mxu0 0.0
      %492 = vmatprep.subr.mxu0 0.0
      %493 = vmatpush1.msra.mxu0 0.0
      %494 = vmatprep.subr.mxu0 0.0
      %495 = vmatpush1.msra.mxu0 0.0
      %496 = vmatprep.subr.mxu0 0.0
      %497 = vmatpush1.msra.mxu0 0.0
      %498 = vmatprep.subr.mxu0 0.0
      %499 = vmatpush1.msra.mxu0 0.0
      %500 = vmatprep.subr.mxu0 0.0
      %501 = vmatpush1.msra.mxu0 0.0
      %502 = vmatprep.subr.mxu0 0.0
      %503 = vmatpush1.msra.mxu0 0.0
      %504 = vmatprep.subr.mxu0 0.0
      %505 = vmatpush1.msra.mxu0 0.0
      %506 = vmatprep.subr.mxu0 0.0
      %507 = vmatpush1.msra.mxu0 0.0
      %508 = vmatprep.subr.mxu0 0.0
      %509 = vmatpush1.msra.mxu0 0.0
      %510 = vmatprep.subr.mxu0 0.0
      %511 = vmatpush1.msra.mxu0 0.0
      %512 = vmatprep.subr.mxu0 0.0
      %513 = vmatpush1.msra.mxu0 0.0
      %514 = vmatprep.subr.mxu0 0.0
      %515 = vmatpush1.msra.mxu0 0.0
      %516 = vmatprep.subr.mxu0 0.0
      %517 = vmatpush1.msra.mxu0 0.0
      %518 = vmatprep.subr.mxu0 0.0
      %519 = vmatpush1.msra.mxu0 0.0
      %520 = vmatprep.subr.mxu0 0.0
      %521 = vmatpush1.msra.mxu0 0.0
      %522 = vmatprep.subr.mxu0 0.0
      %523 = vmatpush1.msra.mxu0 0.0
      %524 = vmatprep.subr.mxu0 0.0
      %525 = vmatpush1.msra.mxu0 0.0
      %526 = vmatprep.subr.mxu0 0.0
      %527 = vmatpush1.msra.mxu0 0.0
      %528 = vmatprep.subr.mxu0 0.0
      %529 = vmatpush1.msra.mxu0 0.0
      %530 = vmatprep.subr.mxu0 0.0
      %531 = vmatpush1.msra.mxu0 0.0
      %532 = vmatprep.mubr.f32.mxu0 0.0
      %533 = vmatmul.mubr.f32.gmra.mrb[0].mxu0 %v466
      %v534 = vpop.f32.mrb[0].mxu0
      %v535 = vadd.f32 0.0, %v534
      %v536 = vpop.f32.mrb[0].mxu0
      %v537 = vadd.f32 0.0, %v536
      %538 = vdwg.mxu0
      %539 = vmatprep.subr.mxu0 %v282
      %540 = vmatpush1.msra.mxu0 %v281
      %541 = vmatprep.subr.mxu0 0.0
      %542 = vmatpush1.msra.mxu0 0.0
      %543 = vmatprep.subr.mxu0 0.0
      %544 = vmatpush1.msra.mxu0 0.0
      %545 = vmatprep.subr.mxu0 0.0
      %546 = vmatpush1.msra.mxu0 0.0
      %547 = vmatprep.subr.mxu0 0.0
      %548 = vmatpush1.msra.mxu0 0.0
      %549 = vmatprep.subr.mxu0 0.0
      %550 = vmatpush1.msra.mxu0 0.0
      %551 = vmatprep.subr.mxu0 0.0
      %552 = vmatpush1.msra.mxu0 0.0
      %553 = vmatprep.subr.mxu0 0.0
      %554 = vmatpush1.msra.mxu0 0.0
      %555 = vmatprep.subr.mxu0 0.0
      %556 = vmatpush1.msra.mxu0 0.0
      %557 = vmatprep.subr.mxu0 0.0
      %558 = vmatpush1.msra.mxu0 0.0
      %559 = vmatprep.subr.mxu0 0.0
      %560 = vmatpush1.msra.mxu0 0.0
      %561 = vmatprep.subr.mxu0 0.0
      %562 = vmatpush1.msra.mxu0 0.0
      %563 = vmatprep.subr.mxu0 0.0
      %564 = vmatpush1.msra.mxu0 0.0
      %565 = vmatprep.subr.mxu0 0.0
      %566 = vmatpush1.msra.mxu0 0.0
      %567 = vmatprep.subr.mxu0 0.0
      %568 = vmatpush1.msra.mxu0 0.0
      %569 = vmatprep.subr.mxu0 0.0
      %570 = vmatpush1.msra.mxu0 0.0
      %571 = vmatprep.subr.mxu0 0.0
      %572 = vmatpush1.msra.mxu0 0.0
      %573 = vmatprep.subr.mxu0 0.0
      %574 = vmatpush1.msra.mxu0 0.0
      %575 = vmatprep.subr.mxu0 0.0
      %576 = vmatpush1.msra.mxu0 0.0
      %577 = vmatprep.subr.mxu0 0.0
      %578 = vmatpush1.msra.mxu0 0.0
      %579 = vmatprep.subr.mxu0 0.0
      %580 = vmatpush1.msra.mxu0 0.0
      %581 = vmatprep.subr.mxu0 0.0
      %582 = vmatpush1.msra.mxu0 0.0
      %583 = vmatprep.subr.mxu0 0.0
      %584 = vmatpush1.msra.mxu0 0.0
      %585 = vmatprep.subr.mxu0 0.0
      %586 = vmatpush1.msra.mxu0 0.0
      %587 = vmatprep.subr.mxu0 0.0
      %588 = vmatpush1.msra.mxu0 0.0
      %589 = vmatprep.subr.mxu0 0.0
      %590 = vmatpush1.msra.mxu0 0.0
      %591 = vmatprep.subr.mxu0 0.0
      %592 = vmatpush1.msra.mxu0 0.0
      %593 = vmatprep.subr.mxu0 0.0
      %594 = vmatpush1.msra.mxu0 0.0
      %595 = vmatprep.subr.mxu0 0.0
      %596 = vmatpush1.msra.mxu0 0.0
      %597 = vmatprep.subr.mxu0 0.0
      %598 = vmatpush1.msra.mxu0 0.0
      %599 = vmatprep.subr.mxu0 0.0
      %600 = vmatpush1.msra.mxu0 0.0
      %601 = vmatprep.subr.mxu0 0.0
      %602 = vmatpush1.msra.mxu0 0.0
      %603 = vmatprep.mubr.f32.mxu0 0.0
      %604 = vmatmul.mubr.f32.gmra.mrb[0].mxu0 %v466
      %v605 = vpop.f32.mrb[0].mxu0
      %v606 = vadd.f32 0.0, %v605
      %v607 = vpop.f32.mrb[0].mxu0
      %v608 = vadd.f32 0.0, %v607
      %609 = vdwg.mxu0
      %vm610 = vcmp.eq.s32.totalorder %v283, 1
      %v611 = vsel %vm610, 1, 0
      %v612 = vlaneseq
      %v613 = vshrl.u32 %v612, 7
      %v614 = vsub.s32 0, %v613
      %v615 = vrot.slane %v611, %v614
      %v616 = vlaneseq
      %v617 = vshrl.u32 %v616, 7
      %v618 = vsub.s32 1, %v617
      %v619 = vrot.slane %v611, %v618
      %v620 = vlaneseq
      %v621 = vshrl.u32 %v620, 7
      %v622 = vsub.s32 2, %v621
      %v623 = vrot.slane %v611, %v622
      %v624 = vlaneseq
      %v625 = vshrl.u32 %v624, 7
      %v626 = vsub.s32 3, %v625
      %v627 = vrot.slane %v611, %v626
      %vm628 = vcmp.eq.s32.totalorder %v615, 1
      %vm629 = vcmp.eq.s32.totalorder %v619, 1
      %vm630 = vcmp.eq.s32.totalorder %v623, 1
      %vm631 = vcmp.eq.s32.totalorder %v627, 1
      %v632 = vsel %vm628, %v535, %v459
      %v633 = vsel %vm629, %v537, %v460
      %v634 = vsel %vm630, %v606, %v461
      %v635 = vsel %vm631, %v608, %v462
      %s636 = scalar_lea.vmem %s2, 16
      %v637 = vld [vmem:[%s636] sm:$0xff]
      %v639 = vsel %vm291, %v637, 0
      %641 = vmatprep.subr.mxu0 %v280
      %642 = vmatpush1.msra.mxu0 %v279
      %643 = vmatprep.subr.mxu0 0.0
      %644 = vmatpush1.msra.mxu0 0.0
      %645 = vmatprep.subr.mxu0 0.0
      %646 = vmatpush1.msra.mxu0 0.0
      %647 = vmatprep.subr.mxu0 0.0
      %648 = vmatpush1.msra.mxu0 0.0
      %649 = vmatprep.subr.mxu0 0.0
      %650 = vmatpush1.msra.mxu0 0.0
      %651 = vmatprep.subr.mxu0 0.0
      %652 = vmatpush1.msra.mxu0 0.0
      %653 = vmatprep.subr.mxu0 0.0
      %654 = vmatpush1.msra.mxu0 0.0
      %655 = vmatprep.subr.mxu0 0.0
      %656 = vmatpush1.msra.mxu0 0.0
      %657 = vmatprep.subr.mxu0 0.0
      %658 = vmatpush1.msra.mxu0 0.0
      %659 = vmatprep.subr.mxu0 0.0
      %660 = vmatpush1.msra.mxu0 0.0
      %661 = vmatprep.subr.mxu0 0.0
      %662 = vmatpush1.msra.mxu0 0.0
      %663 = vmatprep.subr.mxu0 0.0
      %664 = vmatpush1.msra.mxu0 0.0
      %665 = vmatprep.subr.mxu0 0.0
      %666 = vmatpush1.msra.mxu0 0.0
      %667 = vmatprep.subr.mxu0 0.0
      %668 = vmatpush1.msra.mxu0 0.0
      %669 = vmatprep.subr.mxu0 0.0
      %670 = vmatpush1.msra.mxu0 0.0
      %671 = vmatprep.subr.mxu0 0.0
      %672 = vmatpush1.msra.mxu0 0.0
      %673 = vmatprep.subr.mxu0 0.0
      %674 = vmatpush1.msra.mxu0 0.0
      %675 = vmatprep.subr.mxu0 0.0
      %676 = vmatpush1.msra.mxu0 0.0
      %677 = vmatprep.subr.mxu0 0.0
      %678 = vmatpush1.msra.mxu0 0.0
      %679 = vmatprep.subr.mxu0 0.0
      %680 = vmatpush1.msra.mxu0 0.0
      %681 = vmatprep.subr.mxu0 0.0
      %682 = vmatpush1.msra.mxu0 0.0
      %683 = vmatprep.subr.mxu0 0.0
      %684 = vmatpush1.msra.mxu0 0.0
      %685 = vmatprep.subr.mxu0 0.0
      %686 = vmatpush1.msra.mxu0 0.0
      %687 = vmatprep.subr.mxu0 0.0
      %688 = vmatpush1.msra.mxu0 0.0
      %689 = vmatprep.subr.mxu0 0.0
      %690 = vmatpush1.msra.mxu0 0.0
      %691 = vmatprep.subr.mxu0 0.0
      %692 = vmatpush1.msra.mxu0 0.0
      %693 = vmatprep.subr.mxu0 0.0
      %694 = vmatpush1.msra.mxu0 0.0
      %695 = vmatprep.subr.mxu0 0.0
      %696 = vmatpush1.msra.mxu0 0.0
      %697 = vmatprep.subr.mxu0 0.0
      %698 = vmatpush1.msra.mxu0 0.0
      %699 = vmatprep.subr.mxu0 0.0
      %700 = vmatpush1.msra.mxu0 0.0
      %701 = vmatprep.subr.mxu0 0.0
      %702 = vmatpush1.msra.mxu0 0.0
      %703 = vmatprep.subr.mxu0 0.0
      %704 = vmatpush1.msra.mxu0 0.0
      %705 = vmatprep.mubr.f32.mxu0 0.0
      %706 = vmatmul.mubr.f32.gmra.mrb[0].mxu0 %v639
      %v707 = vpop.f32.mrb[0].mxu0
      %v708 = vadd.f32 0.0, %v707
      %v709 = vpop.f32.mrb[0].mxu0
      %v710 = vadd.f32 0.0, %v709
      %711 = vdwg.mxu0
      %712 = vmatprep.subr.mxu0 %v282
      %713 = vmatpush1.msra.mxu0 %v281
      %714 = vmatprep.subr.mxu0 0.0
      %715 = vmatpush1.msra.mxu0 0.0
      %716 = vmatprep.subr.mxu0 0.0
      %717 = vmatpush1.msra.mxu0 0.0
      %718 = vmatprep.subr.mxu0 0.0
      %719 = vmatpush1.msra.mxu0 0.0
      %720 = vmatprep.subr.mxu0 0.0
      %721 = vmatpush1.msra.mxu0 0.0
      %722 = vmatprep.subr.mxu0 0.0
      %723 = vmatpush1.msra.mxu0 0.0
      %724 = vmatprep.subr.mxu0 0.0
      %725 = vmatpush1.msra.mxu0 0.0
      %726 = vmatprep.subr.mxu0 0.0
      %727 = vmatpush1.msra.mxu0 0.0
      %728 = vmatprep.subr.mxu0 0.0
      %729 = vmatpush1.msra.mxu0 0.0
      %730 = vmatprep.subr.mxu0 0.0
      %731 = vmatpush1.msra.mxu0 0.0
      %732 = vmatprep.subr.mxu0 0.0
      %733 = vmatpush1.msra.mxu0 0.0
      %734 = vmatprep.subr.mxu0 0.0
      %735 = vmatpush1.msra.mxu0 0.0
      %736 = vmatprep.subr.mxu0 0.0
      %737 = vmatpush1.msra.mxu0 0.0
      %738 = vmatprep.subr.mxu0 0.0
      %739 = vmatpush1.msra.mxu0 0.0
      %740 = vmatprep.subr.mxu0 0.0
      %741 = vmatpush1.msra.mxu0 0.0
      %742 = vmatprep.subr.mxu0 0.0
      %743 = vmatpush1.msra.mxu0 0.0
      %744 = vmatprep.subr.mxu0 0.0
      %745 = vmatpush1.msra.mxu0 0.0
      %746 = vmatprep.subr.mxu0 0.0
      %747 = vmatpush1.msra.mxu0 0.0
      %748 = vmatprep.subr.mxu0 0.0
      %749 = vmatpush1.msra.mxu0 0.0
      %750 = vmatprep.subr.mxu0 0.0
      %751 = vmatpush1.msra.mxu0 0.0
      %752 = vmatprep.subr.mxu0 0.0
      %753 = vmatpush1.msra.mxu0 0.0
      %754 = vmatprep.subr.mxu0 0.0
      %755 = vmatpush1.msra.mxu0 0.0
      %756 = vmatprep.subr.mxu0 0.0
      %757 = vmatpush1.msra.mxu0 0.0
      %758 = vmatprep.subr.mxu0 0.0
      %759 = vmatpush1.msra.mxu0 0.0
      %760 = vmatprep.subr.mxu0 0.0
      %761 = vmatpush1.msra.mxu0 0.0
      %762 = vmatprep.subr.mxu0 0.0
      %763 = vmatpush1.msra.mxu0 0.0
      %764 = vmatprep.subr.mxu0 0.0
      %765 = vmatpush1.msra.mxu0 0.0
      %766 = vmatprep.subr.mxu0 0.0
      %767 = vmatpush1.msra.mxu0 0.0
      %768 = vmatprep.subr.mxu0 0.0
      %769 = vmatpush1.msra.mxu0 0.0
      %770 = vmatprep.subr.mxu0 0.0
      %771 = vmatpush1.msra.mxu0 0.0
      %772 = vmatprep.subr.mxu0 0.0
      %773 = vmatpush1.msra.mxu0 0.0
      %774 = vmatprep.subr.mxu0 0.0
      %775 = vmatpush1.msra.mxu0 0.0
      %776 = vmatprep.mubr.f32.mxu0 0.0
      %777 = vmatmul.mubr.f32.gmra.mrb[0].mxu0 %v639
      %v778 = vpop.f32.mrb[0].mxu0
      %v779 = vadd.f32 0.0, %v778
      %v780 = vpop.f32.mrb[0].mxu0
      %v781 = vadd.f32 0.0, %v780
      %782 = vdwg.mxu0
      %vm783 = vcmp.eq.s32.totalorder %v283, 2
      %v784 = vsel %vm783, 1, 0
      %v785 = vlaneseq
      %v786 = vshrl.u32 %v785, 7
      %v787 = vsub.s32 0, %v786
      %v788 = vrot.slane %v784, %v787
      %v789 = vlaneseq
      %v790 = vshrl.u32 %v789, 7
      %v791 = vsub.s32 1, %v790
      %v792 = vrot.slane %v784, %v791
      %v793 = vlaneseq
      %v794 = vshrl.u32 %v793, 7
      %v795 = vsub.s32 2, %v794
      %v796 = vrot.slane %v784, %v795
      %v797 = vlaneseq
      %v798 = vshrl.u32 %v797, 7
      %v799 = vsub.s32 3, %v798
      %v800 = vrot.slane %v784, %v799
      %vm801 = vcmp.eq.s32.totalorder %v788, 1
      %vm802 = vcmp.eq.s32.totalorder %v792, 1
      %vm803 = vcmp.eq.s32.totalorder %v796, 1
      %vm804 = vcmp.eq.s32.totalorder %v800, 1
      %v805 = vsel %vm801, %v708, %v632
      %v806 = vsel %vm802, %v710, %v633
      %v807 = vsel %vm803, %v779, %v634
      %v808 = vsel %vm804, %v781, %v635
      %s809 = scalar_lea.vmem %s2, 24
      %v810 = vld [vmem:[%s809] sm:$0xff]
      %v812 = vsel %vm291, %v810, 0
      %814 = vmatprep.subr.mxu0 %v280
      %815 = vmatpush1.msra.mxu0 %v279
      %816 = vmatprep.subr.mxu0 0.0
      %817 = vmatpush1.msra.mxu0 0.0
      %818 = vmatprep.subr.mxu0 0.0
      %819 = vmatpush1.msra.mxu0 0.0
      %820 = vmatprep.subr.mxu0 0.0
      %821 = vmatpush1.msra.mxu0 0.0
      %822 = vmatprep.subr.mxu0 0.0
      %823 = vmatpush1.msra.mxu0 0.0
      %824 = vmatprep.subr.mxu0 0.0
      %825 = vmatpush1.msra.mxu0 0.0
      %826 = vmatprep.subr.mxu0 0.0
      %827 = vmatpush1.msra.mxu0 0.0
      %828 = vmatprep.subr.mxu0 0.0
      %829 = vmatpush1.msra.mxu0 0.0
      %830 = vmatprep.subr.mxu0 0.0
      %831 = vmatpush1.msra.mxu0 0.0
      %832 = vmatprep.subr.mxu0 0.0
      %833 = vmatpush1.msra.mxu0 0.0
      %834 = vmatprep.subr.mxu0 0.0
      %835 = vmatpush1.msra.mxu0 0.0
      %836 = vmatprep.subr.mxu0 0.0
      %837 = vmatpush1.msra.mxu0 0.0
      %838 = vmatprep.subr.mxu0 0.0
      %839 = vmatpush1.msra.mxu0 0.0
      %840 = vmatprep.subr.mxu0 0.0
      %841 = vmatpush1.msra.mxu0 0.0
      %842 = vmatprep.subr.mxu0 0.0
      %843 = vmatpush1.msra.mxu0 0.0
      %844 = vmatprep.subr.mxu0 0.0
      %845 = vmatpush1.msra.mxu0 0.0
      %846 = vmatprep.subr.mxu0 0.0
      %847 = vmatpush1.msra.mxu0 0.0
      %848 = vmatprep.subr.mxu0 0.0
      %849 = vmatpush1.msra.mxu0 0.0
      %850 = vmatprep.subr.mxu0 0.0
      %851 = vmatpush1.msra.mxu0 0.0
      %852 = vmatprep.subr.mxu0 0.0
      %853 = vmatpush1.msra.mxu0 0.0
      %854 = vmatprep.subr.mxu0 0.0
      %855 = vmatpush1.msra.mxu0 0.0
      %856 = vmatprep.subr.mxu0 0.0
      %857 = vmatpush1.msra.mxu0 0.0
      %858 = vmatprep.subr.mxu0 0.0
      %859 = vmatpush1.msra.mxu0 0.0
      %860 = vmatprep.subr.mxu0 0.0
      %861 = vmatpush1.msra.mxu0 0.0
      %862 = vmatprep.subr.mxu0 0.0
      %863 = vmatpush1.msra.mxu0 0.0
      %864 = vmatprep.subr.mxu0 0.0
      %865 = vmatpush1.msra.mxu0 0.0
      %866 = vmatprep.subr.mxu0 0.0
      %867 = vmatpush1.msra.mxu0 0.0
      %868 = vmatprep.subr.mxu0 0.0
      %869 = vmatpush1.msra.mxu0 0.0
      %870 = vmatprep.subr.mxu0 0.0
      %871 = vmatpush1.msra.mxu0 0.0
      %872 = vmatprep.subr.mxu0 0.0
      %873 = vmatpush1.msra.mxu0 0.0
      %874 = vmatprep.subr.mxu0 0.0
      %875 = vmatpush1.msra.mxu0 0.0
      %876 = vmatprep.subr.mxu0 0.0
      %877 = vmatpush1.msra.mxu0 0.0
      %878 = vmatprep.mubr.f32.mxu0 0.0
      %879 = vmatmul.mubr.f32.gmra.mrb[0].mxu0 %v812
      %v880 = vpop.f32.mrb[0].mxu0
      %v881 = vadd.f32 0.0, %v880
      %v882 = vpop.f32.mrb[0].mxu0
      %v883 = vadd.f32 0.0, %v882
      %884 = vdwg.mxu0
      %885 = vmatprep.subr.mxu0 %v282
      %886 = vmatpush1.msra.mxu0 %v281
      %887 = vmatprep.subr.mxu0 0.0
      %888 = vmatpush1.msra.mxu0 0.0
      %889 = vmatprep.subr.mxu0 0.0
      %890 = vmatpush1.msra.mxu0 0.0
      %891 = vmatprep.subr.mxu0 0.0
      %892 = vmatpush1.msra.mxu0 0.0
      %893 = vmatprep.subr.mxu0 0.0
      %894 = vmatpush1.msra.mxu0 0.0
      %895 = vmatprep.subr.mxu0 0.0
      %896 = vmatpush1.msra.mxu0 0.0
      %897 = vmatprep.subr.mxu0 0.0
      %898 = vmatpush1.msra.mxu0 0.0
      %899 = vmatprep.subr.mxu0 0.0
      %900 = vmatpush1.msra.mxu0 0.0
      %901 = vmatprep.subr.mxu0 0.0
      %902 = vmatpush1.msra.mxu0 0.0
      %903 = vmatprep.subr.mxu0 0.0
      %904 = vmatpush1.msra.mxu0 0.0
      %905 = vmatprep.subr.mxu0 0.0
      %906 = vmatpush1.msra.mxu0 0.0
      %907 = vmatprep.subr.mxu0 0.0
      %908 = vmatpush1.msra.mxu0 0.0
      %909 = vmatprep.subr.mxu0 0.0
      %910 = vmatpush1.msra.mxu0 0.0
      %911 = vmatprep.subr.mxu0 0.0
      %912 = vmatpush1.msra.mxu0 0.0
      %913 = vmatprep.subr.mxu0 0.0
      %914 = vmatpush1.msra.mxu0 0.0
      %915 = vmatprep.subr.mxu0 0.0
      %916 = vmatpush1.msra.mxu0 0.0
      %917 = vmatprep.subr.mxu0 0.0
      %918 = vmatpush1.msra.mxu0 0.0
      %919 = vmatprep.subr.mxu0 0.0
      %920 = vmatpush1.msra.mxu0 0.0
      %921 = vmatprep.subr.mxu0 0.0
      %922 = vmatpush1.msra.mxu0 0.0
      %923 = vmatprep.subr.mxu0 0.0
      %924 = vmatpush1.msra.mxu0 0.0
      %925 = vmatprep.subr.mxu0 0.0
      %926 = vmatpush1.msra.mxu0 0.0
      %927 = vmatprep.subr.mxu0 0.0
      %928 = vmatpush1.msra.mxu0 0.0
      %929 = vmatprep.subr.mxu0 0.0
      %930 = vmatpush1.msra.mxu0 0.0
      %931 = vmatprep.subr.mxu0 0.0
      %932 = vmatpush1.msra.mxu0 0.0
      %933 = vmatprep.subr.mxu0 0.0
      %934 = vmatpush1.msra.mxu0 0.0
      %935 = vmatprep.subr.mxu0 0.0
      %936 = vmatpush1.msra.mxu0 0.0
      %937 = vmatprep.subr.mxu0 0.0
      %938 = vmatpush1.msra.mxu0 0.0
      %939 = vmatprep.subr.mxu0 0.0
      %940 = vmatpush1.msra.mxu0 0.0
      %941 = vmatprep.subr.mxu0 0.0
      %942 = vmatpush1.msra.mxu0 0.0
      %943 = vmatprep.subr.mxu0 0.0
      %944 = vmatpush1.msra.mxu0 0.0
      %945 = vmatprep.subr.mxu0 0.0
      %946 = vmatpush1.msra.mxu0 0.0
      %947 = vmatprep.subr.mxu0 0.0
      %948 = vmatpush1.msra.mxu0 0.0
      %949 = vmatprep.mubr.f32.mxu0 0.0
      %950 = vmatmul.mubr.f32.gmra.mrb[0].mxu0 %v812
      %v951 = vpop.f32.mrb[0].mxu0
      %v952 = vadd.f32 0.0, %v951
      %v953 = vpop.f32.mrb[0].mxu0
      %v954 = vadd.f32 0.0, %v953
      %955 = vdwg.mxu0
      %vm956 = vcmp.eq.s32.totalorder %v283, 3
      %v957 = vsel %vm956, 1, 0
      %v958 = vlaneseq
      %v959 = vshrl.u32 %v958, 7
      %v960 = vsub.s32 0, %v959
      %v961 = vrot.slane %v957, %v960
      %v962 = vlaneseq
      %v963 = vshrl.u32 %v962, 7
      %v964 = vsub.s32 1, %v963
      %v965 = vrot.slane %v957, %v964
      %v966 = vlaneseq
      %v967 = vshrl.u32 %v966, 7
      %v968 = vsub.s32 2, %v967
      %v969 = vrot.slane %v957, %v968
      %v970 = vlaneseq
      %v971 = vshrl.u32 %v970, 7
      %v972 = vsub.s32 3, %v971
      %v973 = vrot.slane %v957, %v972
      %vm974 = vcmp.eq.s32.totalorder %v961, 1
      %vm975 = vcmp.eq.s32.totalorder %v965, 1
      %vm976 = vcmp.eq.s32.totalorder %v969, 1
      %vm977 = vcmp.eq.s32.totalorder %v973, 1
      %v978 = vsel %vm974, %v881, %v805
      %v979 = vsel %vm975, %v883, %v806
      %v980 = vsel %vm976, %v952, %v807
      %v981 = vsel %vm977, %v954, %v808
      %s982 = scalar_lea.vmem %s2, 32
      %v983 = vld [vmem:[%s982] sm:$0xff]
      %v985 = vsel %vm291, %v983, 0
      %987 = vmatprep.subr.mxu0 %v280
      %988 = vmatpush1.msra.mxu0 %v279
      %989 = vmatprep.subr.mxu0 0.0
      %990 = vmatpush1.msra.mxu0 0.0
      %991 = vmatprep.subr.mxu0 0.0
      %992 = vmatpush1.msra.mxu0 0.0
      %993 = vmatprep.subr.mxu0 0.0
      %994 = vmatpush1.msra.mxu0 0.0
      %995 = vmatprep.subr.mxu0 0.0
      %996 = vmatpush1.msra.mxu0 0.0
      %997 = vmatprep.subr.mxu0 0.0
      %998 = vmatpush1.msra.mxu0 0.0
      %999 = vmatprep.subr.mxu0 0.0
      %1000 = vmatpush1.msra.mxu0 0.0
      %1001 = vmatprep.subr.mxu0 0.0
      %1002 = vmatpush1.msra.mxu0 0.0
      %1003 = vmatprep.subr.mxu0 0.0
      %1004 = vmatpush1.msra.mxu0 0.0
      %1005 = vmatprep.subr.mxu0 0.0
      %1006 = vmatpush1.msra.mxu0 0.0
      %1007 = vmatprep.subr.mxu0 0.0
      %1008 = vmatpush1.msra.mxu0 0.0
      %1009 = vmatprep.subr.mxu0 0.0
      %1010 = vmatpush1.msra.mxu0 0.0
      %1011 = vmatprep.subr.mxu0 0.0
      %1012 = vmatpush1.msra.mxu0 0.0
      %1013 = vmatprep.subr.mxu0 0.0
      %1014 = vmatpush1.msra.mxu0 0.0
      %1015 = vmatprep.subr.mxu0 0.0
      %1016 = vmatpush1.msra.mxu0 0.0
      %1017 = vmatprep.subr.mxu0 0.0
      %1018 = vmatpush1.msra.mxu0 0.0
      %1019 = vmatprep.subr.mxu0 0.0
      %1020 = vmatpush1.msra.mxu0 0.0
      %1021 = vmatprep.subr.mxu0 0.0
      %1022 = vmatpush1.msra.mxu0 0.0
      %1023 = vmatprep.subr.mxu0 0.0
      %1024 = vmatpush1.msra.mxu0 0.0
      %1025 = vmatprep.subr.mxu0 0.0
      %1026 = vmatpush1.msra.mxu0 0.0
      %1027 = vmatprep.subr.mxu0 0.0
      %1028 = vmatpush1.msra.mxu0 0.0
      %1029 = vmatprep.subr.mxu0 0.0
      %1030 = vmatpush1.msra.mxu0 0.0
      %1031 = vmatprep.subr.mxu0 0.0
      %1032 = vmatpush1.msra.mxu0 0.0
      %1033 = vmatprep.subr.mxu0 0.0
      %1034 = vmatpush1.msra.mxu0 0.0
      %1035 = vmatprep.subr.mxu0 0.0
      %1036 = vmatpush1.msra.mxu0 0.0
      %1037 = vmatprep.subr.mxu0 0.0
      %1038 = vmatpush1.msra.mxu0 0.0
      %1039 = vmatprep.subr.mxu0 0.0
      %1040 = vmatpush1.msra.mxu0 0.0
      %1041 = vmatprep.subr.mxu0 0.0
      %1042 = vmatpush1.msra.mxu0 0.0
      %1043 = vmatprep.subr.mxu0 0.0
      %1044 = vmatpush1.msra.mxu0 0.0
      %1045 = vmatprep.subr.mxu0 0.0
      %1046 = vmatpush1.msra.mxu0 0.0
      %1047 = vmatprep.subr.mxu0 0.0
      %1048 = vmatpush1.msra.mxu0 0.0
      %1049 = vmatprep.subr.mxu0 0.0
      %1050 = vmatpush1.msra.mxu0 0.0
      %1051 = vmatprep.mubr.f32.mxu0 0.0
      %1052 = vmatmul.mubr.f32.gmra.mrb[0].mxu0 %v985
      %v1053 = vpop.f32.mrb[0].mxu0
      %v1054 = vadd.f32 0.0, %v1053
      %v1055 = vpop.f32.mrb[0].mxu0
      %v1056 = vadd.f32 0.0, %v1055
      %1057 = vdwg.mxu0
      %1058 = vmatprep.subr.mxu0 %v282
      %1059 = vmatpush1.msra.mxu0 %v281
      %1060 = vmatprep.subr.mxu0 0.0
      %1061 = vmatpush1.msra.mxu0 0.0
      %1062 = vmatprep.subr.mxu0 0.0
      %1063 = vmatpush1.msra.mxu0 0.0
      %1064 = vmatprep.subr.mxu0 0.0
      %1065 = vmatpush1.msra.mxu0 0.0
      %1066 = vmatprep.subr.mxu0 0.0
      %1067 = vmatpush1.msra.mxu0 0.0
      %1068 = vmatprep.subr.mxu0 0.0
      %1069 = vmatpush1.msra.mxu0 0.0
      %1070 = vmatprep.subr.mxu0 0.0
      %1071 = vmatpush1.msra.mxu0 0.0
      %1072 = vmatprep.subr.mxu0 0.0
      %1073 = vmatpush1.msra.mxu0 0.0
      %1074 = vmatprep.subr.mxu0 0.0
      %1075 = vmatpush1.msra.mxu0 0.0
      %1076 = vmatprep.subr.mxu0 0.0
      %1077 = vmatpush1.msra.mxu0 0.0
      %1078 = vmatprep.subr.mxu0 0.0
      %1079 = vmatpush1.msra.mxu0 0.0
      %1080 = vmatprep.subr.mxu0 0.0
      %1081 = vmatpush1.msra.mxu0 0.0
      %1082 = vmatprep.subr.mxu0 0.0
      %1083 = vmatpush1.msra.mxu0 0.0
      %1084 = vmatprep.subr.mxu0 0.0
      %1085 = vmatpush1.msra.mxu0 0.0
      %1086 = vmatprep.subr.mxu0 0.0
      %1087 = vmatpush1.msra.mxu0 0.0
      %1088 = vmatprep.subr.mxu0 0.0
      %1089 = vmatpush1.msra.mxu0 0.0
      %1090 = vmatprep.subr.mxu0 0.0
      %1091 = vmatpush1.msra.mxu0 0.0
      %1092 = vmatprep.subr.mxu0 0.0
      %1093 = vmatpush1.msra.mxu0 0.0
      %1094 = vmatprep.subr.mxu0 0.0
      %1095 = vmatpush1.msra.mxu0 0.0
      %1096 = vmatprep.subr.mxu0 0.0
      %1097 = vmatpush1.msra.mxu0 0.0
      %1098 = vmatprep.subr.mxu0 0.0
      %1099 = vmatpush1.msra.mxu0 0.0
      %1100 = vmatprep.subr.mxu0 0.0
      %1101 = vmatpush1.msra.mxu0 0.0
      %1102 = vmatprep.subr.mxu0 0.0
      %1103 = vmatpush1.msra.mxu0 0.0
      %1104 = vmatprep.subr.mxu0 0.0
      %1105 = vmatpush1.msra.mxu0 0.0
      %1106 = vmatprep.subr.mxu0 0.0
      %1107 = vmatpush1.msra.mxu0 0.0
      %1108 = vmatprep.subr.mxu0 0.0
      %1109 = vmatpush1.msra.mxu0 0.0
      %1110 = vmatprep.subr.mxu0 0.0
      %1111 = vmatpush1.msra.mxu0 0.0
      %1112 = vmatprep.subr.mxu0 0.0
      %1113 = vmatpush1.msra.mxu0 0.0
      %1114 = vmatprep.subr.mxu0 0.0
      %1115 = vmatpush1.msra.mxu0 0.0
      %1116 = vmatprep.subr.mxu0 0.0
      %1117 = vmatpush1.msra.mxu0 0.0
      %1118 = vmatprep.subr.mxu0 0.0
      %1119 = vmatpush1.msra.mxu0 0.0
      %1120 = vmatprep.subr.mxu0 0.0
      %1121 = vmatpush1.msra.mxu0 0.0
      %1122 = vmatprep.mubr.f32.mxu0 0.0
      %1123 = vmatmul.mubr.f32.gmra.mrb[0].mxu0 %v985
      %v1124 = vpop.f32.mrb[0].mxu0
      %v1125 = vadd.f32 0.0, %v1124
      %v1126 = vpop.f32.mrb[0].mxu0
      %v1127 = vadd.f32 0.0, %v1126
      %1128 = vdwg.mxu0
      %vm1129 = vcmp.eq.s32.totalorder %v283, 4
      %v1130 = vsel %vm1129, 1, 0
      %v1131 = vlaneseq
      %v1132 = vshrl.u32 %v1131, 7
      %v1133 = vsub.s32 0, %v1132
      %v1134 = vrot.slane %v1130, %v1133
      %v1135 = vlaneseq
      %v1136 = vshrl.u32 %v1135, 7
      %v1137 = vsub.s32 1, %v1136
      %v1138 = vrot.slane %v1130, %v1137
      %v1139 = vlaneseq
      %v1140 = vshrl.u32 %v1139, 7
      %v1141 = vsub.s32 2, %v1140
      %v1142 = vrot.slane %v1130, %v1141
      %v1143 = vlaneseq
      %v1144 = vshrl.u32 %v1143, 7
      %v1145 = vsub.s32 3, %v1144
      %v1146 = vrot.slane %v1130, %v1145
      %vm1147 = vcmp.eq.s32.totalorder %v1134, 1
      %vm1148 = vcmp.eq.s32.totalorder %v1138, 1
      %vm1149 = vcmp.eq.s32.totalorder %v1142, 1
      %vm1150 = vcmp.eq.s32.totalorder %v1146, 1
      %v1151 = vsel %vm1147, %v1054, %v978
      %v1152 = vsel %vm1148, %v1056, %v979
      %v1153 = vsel %vm1149, %v1125, %v980
      %v1154 = vsel %vm1150, %v1127, %v981
      %s1155 = scalar_lea.vmem %s2, 40
      %v1156 = vld [vmem:[%s1155] sm:$0xff]
      %v1158 = vsel %vm291, %v1156, 0
      %1160 = vmatprep.subr.mxu0 %v280
      %1161 = vmatpush1.msra.mxu0 %v279
      %1162 = vmatprep.subr.mxu0 0.0
      %1163 = vmatpush1.msra.mxu0 0.0
      %1164 = vmatprep.subr.mxu0 0.0
      %1165 = vmatpush1.msra.mxu0 0.0
      %1166 = vmatprep.subr.mxu0 0.0
      %1167 = vmatpush1.msra.mxu0 0.0
      %1168 = vmatprep.subr.mxu0 0.0
      %1169 = vmatpush1.msra.mxu0 0.0
      %1170 = vmatprep.subr.mxu0 0.0
      %1171 = vmatpush1.msra.mxu0 0.0
      %1172 = vmatprep.subr.mxu0 0.0
      %1173 = vmatpush1.msra.mxu0 0.0
      %1174 = vmatprep.subr.mxu0 0.0
      %1175 = vmatpush1.msra.mxu0 0.0
      %1176 = vmatprep.subr.mxu0 0.0
      %1177 = vmatpush1.msra.mxu0 0.0
      %1178 = vmatprep.subr.mxu0 0.0
      %1179 = vmatpush1.msra.mxu0 0.0
      %1180 = vmatprep.subr.mxu0 0.0
      %1181 = vmatpush1.msra.mxu0 0.0
      %1182 = vmatprep.subr.mxu0 0.0
      %1183 = vmatpush1.msra.mxu0 0.0
      %1184 = vmatprep.subr.mxu0 0.0
      %1185 = vmatpush1.msra.mxu0 0.0
      %1186 = vmatprep.subr.mxu0 0.0
      %1187 = vmatpush1.msra.mxu0 0.0
      %1188 = vmatprep.subr.mxu0 0.0
      %1189 = vmatpush1.msra.mxu0 0.0
      %1190 = vmatprep.subr.mxu0 0.0
      %1191 = vmatpush1.msra.mxu0 0.0
      %1192 = vmatprep.subr.mxu0 0.0
      %1193 = vmatpush1.msra.mxu0 0.0
      %1194 = vmatprep.subr.mxu0 0.0
      %1195 = vmatpush1.msra.mxu0 0.0
      %1196 = vmatprep.subr.mxu0 0.0
      %1197 = vmatpush1.msra.mxu0 0.0
      %1198 = vmatprep.subr.mxu0 0.0
      %1199 = vmatpush1.msra.mxu0 0.0
      %1200 = vmatprep.subr.mxu0 0.0
      %1201 = vmatpush1.msra.mxu0 0.0
      %1202 = vmatprep.subr.mxu0 0.0
      %1203 = vmatpush1.msra.mxu0 0.0
      %1204 = vmatprep.subr.mxu0 0.0
      %1205 = vmatpush1.msra.mxu0 0.0
      %1206 = vmatprep.subr.mxu0 0.0
      %1207 = vmatpush1.msra.mxu0 0.0
      %1208 = vmatprep.subr.mxu0 0.0
      %1209 = vmatpush1.msra.mxu0 0.0
      %1210 = vmatprep.subr.mxu0 0.0
      %1211 = vmatpush1.msra.mxu0 0.0
      %1212 = vmatprep.subr.mxu0 0.0
      %1213 = vmatpush1.msra.mxu0 0.0
      %1214 = vmatprep.subr.mxu0 0.0
      %1215 = vmatpush1.msra.mxu0 0.0
      %1216 = vmatprep.subr.mxu0 0.0
      %1217 = vmatpush1.msra.mxu0 0.0
      %1218 = vmatprep.subr.mxu0 0.0
      %1219 = vmatpush1.msra.mxu0 0.0
      %1220 = vmatprep.subr.mxu0 0.0
      %1221 = vmatpush1.msra.mxu0 0.0
      %1222 = vmatprep.subr.mxu0 0.0
      %1223 = vmatpush1.msra.mxu0 0.0
      %1224 = vmatprep.mubr.f32.mxu0 0.0
      %1225 = vmatmul.mubr.f32.gmra.mrb[0].mxu0 %v1158
      %v1226 = vpop.f32.mrb[0].mxu0
      %v1227 = vadd.f32 0.0, %v1226
      %v1228 = vpop.f32.mrb[0].mxu0
      %v1229 = vadd.f32 0.0, %v1228
      %1230 = vdwg.mxu0
      %1231 = vmatprep.subr.mxu0 %v282
      %1232 = vmatpush1.msra.mxu0 %v281
      %1233 = vmatprep.subr.mxu0 0.0
      %1234 = vmatpush1.msra.mxu0 0.0
      %1235 = vmatprep.subr.mxu0 0.0
      %1236 = vmatpush1.msra.mxu0 0.0
      %1237 = vmatprep.subr.mxu0 0.0
      %1238 = vmatpush1.msra.mxu0 0.0
      %1239 = vmatprep.subr.mxu0 0.0
      %1240 = vmatpush1.msra.mxu0 0.0
      %1241 = vmatprep.subr.mxu0 0.0
      %1242 = vmatpush1.msra.mxu0 0.0
      %1243 = vmatprep.subr.mxu0 0.0
      %1244 = vmatpush1.msra.mxu0 0.0
      %1245 = vmatprep.subr.mxu0 0.0
      %1246 = vmatpush1.msra.mxu0 0.0
      %1247 = vmatprep.subr.mxu0 0.0
      %1248 = vmatpush1.msra.mxu0 0.0
      %1249 = vmatprep.subr.mxu0 0.0
      %1250 = vmatpush1.msra.mxu0 0.0
      %1251 = vmatprep.subr.mxu0 0.0
      %1252 = vmatpush1.msra.mxu0 0.0
      %1253 = vmatprep.subr.mxu0 0.0
      %1254 = vmatpush1.msra.mxu0 0.0
      %1255 = vmatprep.subr.mxu0 0.0
      %1256 = vmatpush1.msra.mxu0 0.0
      %1257 = vmatprep.subr.mxu0 0.0
      %1258 = vmatpush1.msra.mxu0 0.0
      %1259 = vmatprep.subr.mxu0 0.0
      %1260 = vmatpush1.msra.mxu0 0.0
      %1261 = vmatprep.subr.mxu0 0.0
      %1262 = vmatpush1.msra.mxu0 0.0
      %1263 = vmatprep.subr.mxu0 0.0
      %1264 = vmatpush1.msra.mxu0 0.0
      %1265 = vmatprep.subr.mxu0 0.0
      %1266 = vmatpush1.msra.mxu0 0.0
      %1267 = vmatprep.subr.mxu0 0.0
      %1268 = vmatpush1.msra.mxu0 0.0
      %1269 = vmatprep.subr.mxu0 0.0
      %1270 = vmatpush1.msra.mxu0 0.0
      %1271 = vmatprep.subr.mxu0 0.0
      %1272 = vmatpush1.msra.mxu0 0.0
      %1273 = vmatprep.subr.mxu0 0.0
      %1274 = vmatpush1.msra.mxu0 0.0
      %1275 = vmatprep.subr.mxu0 0.0
      %1276 = vmatpush1.msra.mxu0 0.0
      %1277 = vmatprep.subr.mxu0 0.0
      %1278 = vmatpush1.msra.mxu0 0.0
      %1279 = vmatprep.subr.mxu0 0.0
      %1280 = vmatpush1.msra.mxu0 0.0
      %1281 = vmatprep.subr.mxu0 0.0
      %1282 = vmatpush1.msra.mxu0 0.0
      %1283 = vmatprep.subr.mxu0 0.0
      %1284 = vmatpush1.msra.mxu0 0.0
      %1285 = vmatprep.subr.mxu0 0.0
      %1286 = vmatpush1.msra.mxu0 0.0
      %1287 = vmatprep.subr.mxu0 0.0
      %1288 = vmatpush1.msra.mxu0 0.0
      %1289 = vmatprep.subr.mxu0 0.0
      %1290 = vmatpush1.msra.mxu0 0.0
      %1291 = vmatprep.subr.mxu0 0.0
      %1292 = vmatpush1.msra.mxu0 0.0
      %1293 = vmatprep.subr.mxu0 0.0
      %1294 = vmatpush1.msra.mxu0 0.0
      %1295 = vmatprep.mubr.f32.mxu0 0.0
      %1296 = vmatmul.mubr.f32.gmra.mrb[0].mxu0 %v1158
      %v1297 = vpop.f32.mrb[0].mxu0
      %v1298 = vadd.f32 0.0, %v1297
      %v1299 = vpop.f32.mrb[0].mxu0
      %v1300 = vadd.f32 0.0, %v1299
      %1301 = vdwg.mxu0
      %vm1302 = vcmp.eq.s32.totalorder %v283, 5
      %v1303 = vsel %vm1302, 1, 0
      %v1304 = vlaneseq
      %v1305 = vshrl.u32 %v1304, 7
      %v1306 = vsub.s32 0, %v1305
      %v1307 = vrot.slane %v1303, %v1306
      %v1308 = vlaneseq
      %v1309 = vshrl.u32 %v1308, 7
      %v1310 = vsub.s32 1, %v1309
      %v1311 = vrot.slane %v1303, %v1310
      %v1312 = vlaneseq
      %v1313 = vshrl.u32 %v1312, 7
      %v1314 = vsub.s32 2, %v1313
      %v1315 = vrot.slane %v1303, %v1314
      %v1316 = vlaneseq
      %v1317 = vshrl.u32 %v1316, 7
      %v1318 = vsub.s32 3, %v1317
      %v1319 = vrot.slane %v1303, %v1318
      %vm1320 = vcmp.eq.s32.totalorder %v1307, 1
      %vm1321 = vcmp.eq.s32.totalorder %v1311, 1
      %vm1322 = vcmp.eq.s32.totalorder %v1315, 1
      %vm1323 = vcmp.eq.s32.totalorder %v1319, 1
      %v1324 = vsel %vm1320, %v1227, %v1151
      %v1325 = vsel %vm1321, %v1229, %v1152
      %v1326 = vsel %vm1322, %v1298, %v1153
      %v1327 = vsel %vm1323, %v1300, %v1154
      %s1328 = scalar_lea.vmem %s2, 48
      %v1329 = vld [vmem:[%s1328] sm:$0xff]
      %v1331 = vsel %vm291, %v1329, 0
      %1333 = vmatprep.subr.mxu0 %v280
      %1334 = vmatpush1.msra.mxu0 %v279
      %1335 = vmatprep.subr.mxu0 0.0
      %1336 = vmatpush1.msra.mxu0 0.0
      %1337 = vmatprep.subr.mxu0 0.0
      %1338 = vmatpush1.msra.mxu0 0.0
      %1339 = vmatprep.subr.mxu0 0.0
      %1340 = vmatpush1.msra.mxu0 0.0
      %1341 = vmatprep.subr.mxu0 0.0
      %1342 = vmatpush1.msra.mxu0 0.0
      %1343 = vmatprep.subr.mxu0 0.0
      %1344 = vmatpush1.msra.mxu0 0.0
      %1345 = vmatprep.subr.mxu0 0.0
      %1346 = vmatpush1.msra.mxu0 0.0
      %1347 = vmatprep.subr.mxu0 0.0
      %1348 = vmatpush1.msra.mxu0 0.0
      %1349 = vmatprep.subr.mxu0 0.0
      %1350 = vmatpush1.msra.mxu0 0.0
      %1351 = vmatprep.subr.mxu0 0.0
      %1352 = vmatpush1.msra.mxu0 0.0
      %1353 = vmatprep.subr.mxu0 0.0
      %1354 = vmatpush1.msra.mxu0 0.0
      %1355 = vmatprep.subr.mxu0 0.0
      %1356 = vmatpush1.msra.mxu0 0.0
      %1357 = vmatprep.subr.mxu0 0.0
      %1358 = vmatpush1.msra.mxu0 0.0
      %1359 = vmatprep.subr.mxu0 0.0
      %1360 = vmatpush1.msra.mxu0 0.0
      %1361 = vmatprep.subr.mxu0 0.0
      %1362 = vmatpush1.msra.mxu0 0.0
      %1363 = vmatprep.subr.mxu0 0.0
      %1364 = vmatpush1.msra.mxu0 0.0
      %1365 = vmatprep.subr.mxu0 0.0
      %1366 = vmatpush1.msra.mxu0 0.0
      %1367 = vmatprep.subr.mxu0 0.0
      %1368 = vmatpush1.msra.mxu0 0.0
      %1369 = vmatprep.subr.mxu0 0.0
      %1370 = vmatpush1.msra.mxu0 0.0
      %1371 = vmatprep.subr.mxu0 0.0
      %1372 = vmatpush1.msra.mxu0 0.0
      %1373 = vmatprep.subr.mxu0 0.0
      %1374 = vmatpush1.msra.mxu0 0.0
      %1375 = vmatprep.subr.mxu0 0.0
      %1376 = vmatpush1.msra.mxu0 0.0
      %1377 = vmatprep.subr.mxu0 0.0
      %1378 = vmatpush1.msra.mxu0 0.0
      %1379 = vmatprep.subr.mxu0 0.0
      %1380 = vmatpush1.msra.mxu0 0.0
      %1381 = vmatprep.subr.mxu0 0.0
      %1382 = vmatpush1.msra.mxu0 0.0
      %1383 = vmatprep.subr.mxu0 0.0
      %1384 = vmatpush1.msra.mxu0 0.0
      %1385 = vmatprep.subr.mxu0 0.0
      %1386 = vmatpush1.msra.mxu0 0.0
      %1387 = vmatprep.subr.mxu0 0.0
      %1388 = vmatpush1.msra.mxu0 0.0
      %1389 = vmatprep.subr.mxu0 0.0
      %1390 = vmatpush1.msra.mxu0 0.0
      %1391 = vmatprep.subr.mxu0 0.0
      %1392 = vmatpush1.msra.mxu0 0.0
      %1393 = vmatprep.subr.mxu0 0.0
      %1394 = vmatpush1.msra.mxu0 0.0
      %1395 = vmatprep.subr.mxu0 0.0
      %1396 = vmatpush1.msra.mxu0 0.0
      %1397 = vmatprep.mubr.f32.mxu0 0.0
      %1398 = vmatmul.mubr.f32.gmra.mrb[0].mxu0 %v1331
      %v1399 = vpop.f32.mrb[0].mxu0
      %v1400 = vadd.f32 0.0, %v1399
      %v1401 = vpop.f32.mrb[0].mxu0
      %v1402 = vadd.f32 0.0, %v1401
      %1403 = vdwg.mxu0
      %1404 = vmatprep.subr.mxu0 %v282
      %1405 = vmatpush1.msra.mxu0 %v281
      %1406 = vmatprep.subr.mxu0 0.0
      %1407 = vmatpush1.msra.mxu0 0.0
      %1408 = vmatprep.subr.mxu0 0.0
      %1409 = vmatpush1.msra.mxu0 0.0
      %1410 = vmatprep.subr.mxu0 0.0
      %1411 = vmatpush1.msra.mxu0 0.0
      %1412 = vmatprep.subr.mxu0 0.0
      %1413 = vmatpush1.msra.mxu0 0.0
      %1414 = vmatprep.subr.mxu0 0.0
      %1415 = vmatpush1.msra.mxu0 0.0
      %1416 = vmatprep.subr.mxu0 0.0
      %1417 = vmatpush1.msra.mxu0 0.0
      %1418 = vmatprep.subr.mxu0 0.0
      %1419 = vmatpush1.msra.mxu0 0.0
      %1420 = vmatprep.subr.mxu0 0.0
      %1421 = vmatpush1.msra.mxu0 0.0
      %1422 = vmatprep.subr.mxu0 0.0
      %1423 = vmatpush1.msra.mxu0 0.0
      %1424 = vmatprep.subr.mxu0 0.0
      %1425 = vmatpush1.msra.mxu0 0.0
      %1426 = vmatprep.subr.mxu0 0.0
      %1427 = vmatpush1.msra.mxu0 0.0
      %1428 = vmatprep.subr.mxu0 0.0
      %1429 = vmatpush1.msra.mxu0 0.0
      %1430 = vmatprep.subr.mxu0 0.0
      %1431 = vmatpush1.msra.mxu0 0.0
      %1432 = vmatprep.subr.mxu0 0.0
      %1433 = vmatpush1.msra.mxu0 0.0
      %1434 = vmatprep.subr.mxu0 0.0
      %1435 = vmatpush1.msra.mxu0 0.0
      %1436 = vmatprep.subr.mxu0 0.0
      %1437 = vmatpush1.msra.mxu0 0.0
      %1438 = vmatprep.subr.mxu0 0.0
      %1439 = vmatpush1.msra.mxu0 0.0
      %1440 = vmatprep.subr.mxu0 0.0
      %1441 = vmatpush1.msra.mxu0 0.0
      %1442 = vmatprep.subr.mxu0 0.0
      %1443 = vmatpush1.msra.mxu0 0.0
      %1444 = vmatprep.subr.mxu0 0.0
      %1445 = vmatpush1.msra.mxu0 0.0
      %1446 = vmatprep.subr.mxu0 0.0
      %1447 = vmatpush1.msra.mxu0 0.0
      %1448 = vmatprep.subr.mxu0 0.0
      %1449 = vmatpush1.msra.mxu0 0.0
      %1450 = vmatprep.subr.mxu0 0.0
      %1451 = vmatpush1.msra.mxu0 0.0
      %1452 = vmatprep.subr.mxu0 0.0
      %1453 = vmatpush1.msra.mxu0 0.0
      %1454 = vmatprep.subr.mxu0 0.0
      %1455 = vmatpush1.msra.mxu0 0.0
      %1456 = vmatprep.subr.mxu0 0.0
      %1457 = vmatpush1.msra.mxu0 0.0
      %1458 = vmatprep.subr.mxu0 0.0
      %1459 = vmatpush1.msra.mxu0 0.0
      %1460 = vmatprep.subr.mxu0 0.0
      %1461 = vmatpush1.msra.mxu0 0.0
      %1462 = vmatprep.subr.mxu0 0.0
      %1463 = vmatpush1.msra.mxu0 0.0
      %1464 = vmatprep.subr.mxu0 0.0
      %1465 = vmatpush1.msra.mxu0 0.0
      %1466 = vmatprep.subr.mxu0 0.0
      %1467 = vmatpush1.msra.mxu0 0.0
      %1468 = vmatprep.mubr.f32.mxu0 0.0
      %1469 = vmatmul.mubr.f32.gmra.mrb[0].mxu0 %v1331
      %v1470 = vpop.f32.mrb[0].mxu0
      %v1471 = vadd.f32 0.0, %v1470
      %v1472 = vpop.f32.mrb[0].mxu0
      %v1473 = vadd.f32 0.0, %v1472
      %1474 = vdwg.mxu0
      %vm1475 = vcmp.eq.s32.totalorder %v283, 6
      %v1476 = vsel %vm1475, 1, 0
      %v1477 = vlaneseq
      %v1478 = vshrl.u32 %v1477, 7
      %v1479 = vsub.s32 0, %v1478
      %v1480 = vrot.slane %v1476, %v1479
      %v1481 = vlaneseq
      %v1482 = vshrl.u32 %v1481, 7
      %v1483 = vsub.s32 1, %v1482
      %v1484 = vrot.slane %v1476, %v1483
      %v1485 = vlaneseq
      %v1486 = vshrl.u32 %v1485, 7
      %v1487 = vsub.s32 2, %v1486
      %v1488 = vrot.slane %v1476, %v1487
      %v1489 = vlaneseq
      %v1490 = vshrl.u32 %v1489, 7
      %v1491 = vsub.s32 3, %v1490
      %v1492 = vrot.slane %v1476, %v1491
      %vm1493 = vcmp.eq.s32.totalorder %v1480, 1
      %vm1494 = vcmp.eq.s32.totalorder %v1484, 1
      %vm1495 = vcmp.eq.s32.totalorder %v1488, 1
      %vm1496 = vcmp.eq.s32.totalorder %v1492, 1
      %v1497 = vsel %vm1493, %v1400, %v1324
      %v1498 = vsel %vm1494, %v1402, %v1325
      %v1499 = vsel %vm1495, %v1471, %v1326
      %v1500 = vsel %vm1496, %v1473, %v1327
      %s1501 = scalar_lea.vmem %s2, 56
      %v1502 = vld [vmem:[%s1501] sm:$0xff]
      %v1504 = vsel %vm291, %v1502, 0
      %1506 = vmatprep.subr.mxu0 %v280
      %1507 = vmatpush1.msra.mxu0 %v279
      %1508 = vmatprep.subr.mxu0 0.0
      %1509 = vmatpush1.msra.mxu0 0.0
      %1510 = vmatprep.subr.mxu0 0.0
      %1511 = vmatpush1.msra.mxu0 0.0
      %1512 = vmatprep.subr.mxu0 0.0
      %1513 = vmatpush1.msra.mxu0 0.0
      %1514 = vmatprep.subr.mxu0 0.0
      %1515 = vmatpush1.msra.mxu0 0.0
      %1516 = vmatprep.subr.mxu0 0.0
      %1517 = vmatpush1.msra.mxu0 0.0
      %1518 = vmatprep.subr.mxu0 0.0
      %1519 = vmatpush1.msra.mxu0 0.0
      %1520 = vmatprep.subr.mxu0 0.0
      %1521 = vmatpush1.msra.mxu0 0.0
      %1522 = vmatprep.subr.mxu0 0.0
      %1523 = vmatpush1.msra.mxu0 0.0
      %1524 = vmatprep.subr.mxu0 0.0
      %1525 = vmatpush1.msra.mxu0 0.0
      %1526 = vmatprep.subr.mxu0 0.0
      %1527 = vmatpush1.msra.mxu0 0.0
      %1528 = vmatprep.subr.mxu0 0.0
      %1529 = vmatpush1.msra.mxu0 0.0
      %1530 = vmatprep.subr.mxu0 0.0
      %1531 = vmatpush1.msra.mxu0 0.0
      %1532 = vmatprep.subr.mxu0 0.0
      %1533 = vmatpush1.msra.mxu0 0.0
      %1534 = vmatprep.subr.mxu0 0.0
      %1535 = vmatpush1.msra.mxu0 0.0
      %1536 = vmatprep.subr.mxu0 0.0
      %1537 = vmatpush1.msra.mxu0 0.0
      %1538 = vmatprep.subr.mxu0 0.0
      %1539 = vmatpush1.msra.mxu0 0.0
      %1540 = vmatprep.subr.mxu0 0.0
      %1541 = vmatpush1.msra.mxu0 0.0
      %1542 = vmatprep.subr.mxu0 0.0
      %1543 = vmatpush1.msra.mxu0 0.0
      %1544 = vmatprep.subr.mxu0 0.0
      %1545 = vmatpush1.msra.mxu0 0.0
      %1546 = vmatprep.subr.mxu0 0.0
      %1547 = vmatpush1.msra.mxu0 0.0
      %1548 = vmatprep.subr.mxu0 0.0
      %1549 = vmatpush1.msra.mxu0 0.0
      %1550 = vmatprep.subr.mxu0 0.0
      %1551 = vmatpush1.msra.mxu0 0.0
      %1552 = vmatprep.subr.mxu0 0.0
      %1553 = vmatpush1.msra.mxu0 0.0
      %1554 = vmatprep.subr.mxu0 0.0
      %1555 = vmatpush1.msra.mxu0 0.0
      %1556 = vmatprep.subr.mxu0 0.0
      %1557 = vmatpush1.msra.mxu0 0.0
      %1558 = vmatprep.subr.mxu0 0.0
      %1559 = vmatpush1.msra.mxu0 0.0
      %1560 = vmatprep.subr.mxu0 0.0
      %1561 = vmatpush1.msra.mxu0 0.0
      %1562 = vmatprep.subr.mxu0 0.0
      %1563 = vmatpush1.msra.mxu0 0.0
      %1564 = vmatprep.subr.mxu0 0.0
      %1565 = vmatpush1.msra.mxu0 0.0
      %1566 = vmatprep.subr.mxu0 0.0
      %1567 = vmatpush1.msra.mxu0 0.0
      %1568 = vmatprep.subr.mxu0 0.0
      %1569 = vmatpush1.msra.mxu0 0.0
      %1570 = vmatprep.mubr.f32.mxu0 0.0
      %1571 = vmatmul.mubr.f32.gmra.mrb[0].mxu0 %v1504
      %v1572 = vpop.f32.mrb[0].mxu0
      %v1573 = vadd.f32 0.0, %v1572
      %v1574 = vpop.f32.mrb[0].mxu0
      %v1575 = vadd.f32 0.0, %v1574
      %1576 = vdwg.mxu0
      %1577 = vmatprep.subr.mxu0 %v282
      %1578 = vmatpush1.msra.mxu0 %v281
      %1579 = vmatprep.subr.mxu0 0.0
      %1580 = vmatpush1.msra.mxu0 0.0
      %1581 = vmatprep.subr.mxu0 0.0
      %1582 = vmatpush1.msra.mxu0 0.0
      %1583 = vmatprep.subr.mxu0 0.0
      %1584 = vmatpush1.msra.mxu0 0.0
      %1585 = vmatprep.subr.mxu0 0.0
      %1586 = vmatpush1.msra.mxu0 0.0
      %1587 = vmatprep.subr.mxu0 0.0
      %1588 = vmatpush1.msra.mxu0 0.0
      %1589 = vmatprep.subr.mxu0 0.0
      %1590 = vmatpush1.msra.mxu0 0.0
      %1591 = vmatprep.subr.mxu0 0.0
      %1592 = vmatpush1.msra.mxu0 0.0
      %1593 = vmatprep.subr.mxu0 0.0
      %1594 = vmatpush1.msra.mxu0 0.0
      %1595 = vmatprep.subr.mxu0 0.0
      %1596 = vmatpush1.msra.mxu0 0.0
      %1597 = vmatprep.subr.mxu0 0.0
      %1598 = vmatpush1.msra.mxu0 0.0
      %1599 = vmatprep.subr.mxu0 0.0
      %1600 = vmatpush1.msra.mxu0 0.0
      %1601 = vmatprep.subr.mxu0 0.0
      %1602 = vmatpush1.msra.mxu0 0.0
      %1603 = vmatprep.subr.mxu0 0.0
      %1604 = vmatpush1.msra.mxu0 0.0
      %1605 = vmatprep.subr.mxu0 0.0
      %1606 = vmatpush1.msra.mxu0 0.0
      %1607 = vmatprep.subr.mxu0 0.0
      %1608 = vmatpush1.msra.mxu0 0.0
      %1609 = vmatprep.subr.mxu0 0.0
      %1610 = vmatpush1.msra.mxu0 0.0
      %1611 = vmatprep.subr.mxu0 0.0
      %1612 = vmatpush1.msra.mxu0 0.0
      %1613 = vmatprep.subr.mxu0 0.0
      %1614 = vmatpush1.msra.mxu0 0.0
      %1615 = vmatprep.subr.mxu0 0.0
      %1616 = vmatpush1.msra.mxu0 0.0
      %1617 = vmatprep.subr.mxu0 0.0
      %1618 = vmatpush1.msra.mxu0 0.0
      %1619 = vmatprep.subr.mxu0 0.0
      %1620 = vmatpush1.msra.mxu0 0.0
      %1621 = vmatprep.subr.mxu0 0.0
      %1622 = vmatpush1.msra.mxu0 0.0
      %1623 = vmatprep.subr.mxu0 0.0
      %1624 = vmatpush1.msra.mxu0 0.0
      %1625 = vmatprep.subr.mxu0 0.0
      %1626 = vmatpush1.msra.mxu0 0.0
      %1627 = vmatprep.subr.mxu0 0.0
      %1628 = vmatpush1.msra.mxu0 0.0
      %1629 = vmatprep.subr.mxu0 0.0
      %1630 = vmatpush1.msra.mxu0 0.0
      %1631 = vmatprep.subr.mxu0 0.0
      %1632 = vmatpush1.msra.mxu0 0.0
      %1633 = vmatprep.subr.mxu0 0.0
      %1634 = vmatpush1.msra.mxu0 0.0
      %1635 = vmatprep.subr.mxu0 0.0
      %1636 = vmatpush1.msra.mxu0 0.0
      %1637 = vmatprep.subr.mxu0 0.0
      %1638 = vmatpush1.msra.mxu0 0.0
      %1639 = vmatprep.subr.mxu0 0.0
      %1640 = vmatpush1.msra.mxu0 0.0
      %1641 = vmatprep.mubr.f32.mxu0 0.0
      %1642 = vmatmul.mubr.f32.gmra.mrb[0].mxu0 %v1504
      %v1643 = vpop.f32.mrb[0].mxu0
      %v1644 = vadd.f32 0.0, %v1643
      %v1645 = vpop.f32.mrb[0].mxu0
      %v1646 = vadd.f32 0.0, %v1645
      %1647 = vdwg.mxu0
      %vm1648 = vcmp.eq.s32.totalorder %v283, 7
      %v1649 = vsel %vm1648, 1, 0
      %v1650 = vlaneseq
      %v1651 = vshrl.u32 %v1650, 7
      %v1652 = vsub.s32 0, %v1651
      %v1653 = vrot.slane %v1649, %v1652
      %v1654 = vlaneseq
      %v1655 = vshrl.u32 %v1654, 7
      %v1656 = vsub.s32 1, %v1655
      %v1657 = vrot.slane %v1649, %v1656
      %v1658 = vlaneseq
      %v1659 = vshrl.u32 %v1658, 7
      %v1660 = vsub.s32 2, %v1659
      %v1661 = vrot.slane %v1649, %v1660
      %v1662 = vlaneseq
      %v1663 = vshrl.u32 %v1662, 7
      %v1664 = vsub.s32 3, %v1663
      %v1665 = vrot.slane %v1649, %v1664
      %vm1666 = vcmp.eq.s32.totalorder %v1653, 1
      %vm1667 = vcmp.eq.s32.totalorder %v1657, 1
      %vm1668 = vcmp.eq.s32.totalorder %v1661, 1
      %vm1669 = vcmp.eq.s32.totalorder %v1665, 1
      %v1670 = vsel %vm1666, %v1573, %v1497
      %v1671 = vsel %vm1667, %v1575, %v1498
      %v1672 = vsel %vm1668, %v1644, %v1499
      %v1673 = vsel %vm1669, %v1646, %v1500
      %v1674 = vld [vmem:[%s3] sm:$0xff]
      %1676 = vset.pattern.permute.xlu0 0
      %1677 = vperm.xlu0 %1676, %v1674
      %v1678 = vpop.permute.xlu0 %1677
      %v1680 = vadd.f32 %v1670, %v1678
      %v1681 = vadd.f32 %v1671, %v1678
      %v1682 = vadd.f32 %v1672, %v1678
      %v1683 = vadd.f32 %v1673, %v1678
      %v1684 = vld [vmem:[%s4] sm:$0xf]
      %v1686 = vsel %vm291, %v1684, 0
      %1688 = vmatprep.subr.mxu0 %v1681
      %1689 = vmatpush1.msra.mxu0 %v1680
      %1690 = vmatprep.subr.mxu0 0.0
      %1691 = vmatpush1.msra.mxu0 0.0
      %1692 = vmatprep.subr.mxu0 0.0
      %1693 = vmatpush1.msra.mxu0 0.0
      %1694 = vmatprep.subr.mxu0 0.0
      %1695 = vmatpush1.msra.mxu0 0.0
      %1696 = vmatprep.subr.mxu0 0.0
      %1697 = vmatpush1.msra.mxu0 0.0
      %1698 = vmatprep.subr.mxu0 0.0
      %1699 = vmatpush1.msra.mxu0 0.0
      %1700 = vmatprep.subr.mxu0 0.0
      %1701 = vmatpush1.msra.mxu0 0.0
      %1702 = vmatprep.subr.mxu0 0.0
      %1703 = vmatpush1.msra.mxu0 0.0
      %1704 = vmatprep.subr.mxu0 0.0
      %1705 = vmatpush1.msra.mxu0 0.0
      %1706 = vmatprep.subr.mxu0 0.0
      %1707 = vmatpush1.msra.mxu0 0.0
      %1708 = vmatprep.subr.mxu0 0.0
      %1709 = vmatpush1.msra.mxu0 0.0
      %1710 = vmatprep.subr.mxu0 0.0
      %1711 = vmatpush1.msra.mxu0 0.0
      %1712 = vmatprep.subr.mxu0 0.0
      %1713 = vmatpush1.msra.mxu0 0.0
      %1714 = vmatprep.subr.mxu0 0.0
      %1715 = vmatpush1.msra.mxu0 0.0
      %1716 = vmatprep.subr.mxu0 0.0
      %1717 = vmatpush1.msra.mxu0 0.0
      %1718 = vmatprep.subr.mxu0 0.0
      %1719 = vmatpush1.msra.mxu0 0.0
      %1720 = vmatprep.subr.mxu0 0.0
      %1721 = vmatpush1.msra.mxu0 0.0
      %1722 = vmatprep.subr.mxu0 0.0
      %1723 = vmatpush1.msra.mxu0 0.0
      %1724 = vmatprep.subr.mxu0 0.0
      %1725 = vmatpush1.msra.mxu0 0.0
      %1726 = vmatprep.subr.mxu0 0.0
      %1727 = vmatpush1.msra.mxu0 0.0
      %1728 = vmatprep.subr.mxu0 0.0
      %1729 = vmatpush1.msra.mxu0 0.0
      %1730 = vmatprep.subr.mxu0 0.0
      %1731 = vmatpush1.msra.mxu0 0.0
      %1732 = vmatprep.subr.mxu0 0.0
      %1733 = vmatpush1.msra.mxu0 0.0
      %1734 = vmatprep.subr.mxu0 0.0
      %1735 = vmatpush1.msra.mxu0 0.0
      %1736 = vmatprep.subr.mxu0 0.0
      %1737 = vmatpush1.msra.mxu0 0.0
      %1738 = vmatprep.subr.mxu0 0.0
      %1739 = vmatpush1.msra.mxu0 0.0
      %1740 = vmatprep.subr.mxu0 0.0
      %1741 = vmatpush1.msra.mxu0 0.0
      %1742 = vmatprep.subr.mxu0 0.0
      %1743 = vmatpush1.msra.mxu0 0.0
      %1744 = vmatprep.subr.mxu0 0.0
      %1745 = vmatpush1.msra.mxu0 0.0
      %1746 = vmatprep.subr.mxu0 0.0
      %1747 = vmatpush1.msra.mxu0 0.0
      %1748 = vmatprep.subr.mxu0 0.0
      %1749 = vmatpush1.msra.mxu0 0.0
      %1750 = vmatprep.subr.mxu0 0.0
      %1751 = vmatpush1.msra.mxu0 0.0
      %1752 = vmatprep.mubr.f32.mxu0 0.0
      %1753 = vmatmul.mubr.f32.gmra.mrb[0].mxu0 %v1686
      %v1754 = vpop.f32.mrb[0].mxu0
      %v1755 = vadd.f32 0.0, %v1754
      %v1756 = vpop.f32.mrb[0].mxu0
      %v1757 = vadd.f32 0.0, %v1756
      %1758 = vdwg.mxu0
      %1759 = vmatprep.subr.mxu0 %v1683
      %1760 = vmatpush1.msra.mxu0 %v1682
      %1761 = vmatprep.subr.mxu0 0.0
      %1762 = vmatpush1.msra.mxu0 0.0
      %1763 = vmatprep.subr.mxu0 0.0
      %1764 = vmatpush1.msra.mxu0 0.0
      %1765 = vmatprep.subr.mxu0 0.0
      %1766 = vmatpush1.msra.mxu0 0.0
      %1767 = vmatprep.subr.mxu0 0.0
      %1768 = vmatpush1.msra.mxu0 0.0
      %1769 = vmatprep.subr.mxu0 0.0
      %1770 = vmatpush1.msra.mxu0 0.0
      %1771 = vmatprep.subr.mxu0 0.0
      %1772 = vmatpush1.msra.mxu0 0.0
      %1773 = vmatprep.subr.mxu0 0.0
      %1774 = vmatpush1.msra.mxu0 0.0
      %1775 = vmatprep.subr.mxu0 0.0
      %1776 = vmatpush1.msra.mxu0 0.0
      %1777 = vmatprep.subr.mxu0 0.0
      %1778 = vmatpush1.msra.mxu0 0.0
      %1779 = vmatprep.subr.mxu0 0.0
      %1780 = vmatpush1.msra.mxu0 0.0
      %1781 = vmatprep.subr.mxu0 0.0
      %1782 = vmatpush1.msra.mxu0 0.0
      %1783 = vmatprep.subr.mxu0 0.0
      %1784 = vmatpush1.msra.mxu0 0.0
      %1785 = vmatprep.subr.mxu0 0.0
      %1786 = vmatpush1.msra.mxu0 0.0
      %1787 = vmatprep.subr.mxu0 0.0
      %1788 = vmatpush1.msra.mxu0 0.0
      %1789 = vmatprep.subr.mxu0 0.0
      %1790 = vmatpush1.msra.mxu0 0.0
      %1791 = vmatprep.subr.mxu0 0.0
      %1792 = vmatpush1.msra.mxu0 0.0
      %1793 = vmatprep.subr.mxu0 0.0
      %1794 = vmatpush1.msra.mxu0 0.0
      %1795 = vmatprep.subr.mxu0 0.0
      %1796 = vmatpush1.msra.mxu0 0.0
      %1797 = vmatprep.subr.mxu0 0.0
      %1798 = vmatpush1.msra.mxu0 0.0
      %1799 = vmatprep.subr.mxu0 0.0
      %1800 = vmatpush1.msra.mxu0 0.0
      %1801 = vmatprep.subr.mxu0 0.0
      %1802 = vmatpush1.msra.mxu0 0.0
      %1803 = vmatprep.subr.mxu0 0.0
      %1804 = vmatpush1.msra.mxu0 0.0
      %1805 = vmatprep.subr.mxu0 0.0
      %1806 = vmatpush1.msra.mxu0 0.0
      %1807 = vmatprep.subr.mxu0 0.0
      %1808 = vmatpush1.msra.mxu0 0.0
      %1809 = vmatprep.subr.mxu0 0.0
      %1810 = vmatpush1.msra.mxu0 0.0
      %1811 = vmatprep.subr.mxu0 0.0
      %1812 = vmatpush1.msra.mxu0 0.0
      %1813 = vmatprep.subr.mxu0 0.0
      %1814 = vmatpush1.msra.mxu0 0.0
      %1815 = vmatprep.subr.mxu0 0.0
      %1816 = vmatpush1.msra.mxu0 0.0
      %1817 = vmatprep.subr.mxu0 0.0
      %1818 = vmatpush1.msra.mxu0 0.0
      %1819 = vmatprep.subr.mxu0 0.0
      %1820 = vmatpush1.msra.mxu0 0.0
      %1821 = vmatprep.subr.mxu0 0.0
      %1822 = vmatpush1.msra.mxu0 0.0
      %1823 = vmatprep.mubr.f32.mxu0 0.0
      %1824 = vmatmul.mubr.f32.gmra.mrb[0].mxu0 %v1686
      %v1825 = vpop.f32.mrb[0].mxu0
      %v1826 = vadd.f32 0.0, %v1825
      %v1827 = vpop.f32.mrb[0].mxu0
      %v1828 = vadd.f32 0.0, %v1827
      %1829 = vdwg.mxu0
      %vm1830 = vcmask 1043456
      %v1831 = vsel %vm1830, %v1755, 0.0
      %v1832 = vsel %vm1830, %v1757, 0.0
      %v1833 = vadd.f32 %v1831, %v1832
      %v1834 = vsel %vm1830, %v1826, 0.0
      %v1835 = vadd.f32 %v1833, %v1834
      %v1836 = vsel %vm1830, %v1828, 0.0
      %v1837 = vadd.f32 %v1835, %v1836
      %1838 = vadd.xlane.f32.xlu0 %v1837
      %v1839 = vpop.xlane.xlu0 %1838
      %v1840 = vrcp.pop 512.0
      %v1841 = vmul.f32 %v1839, %v1840
      %v1842 = vsub.f32 %v1755, %v1841
      %v1843 = vsub.f32 %v1757, %v1841
      %v1844 = vsub.f32 %v1826, %v1841
      %v1845 = vsub.f32 %v1828, %v1841
      %v1846 = vmul.f32 %v1842, %v1842
      %v1847 = vmul.f32 %v1843, %v1843
      %v1848 = vmul.f32 %v1844, %v1844
      %v1849 = vmul.f32 %v1845, %v1845
      %v1850 = vsel %vm1830, %v1846, 0.0
      %v1851 = vsel %vm1830, %v1847, 0.0
      %v1852 = vadd.f32 %v1850, %v1851
      %v1853 = vsel %vm1830, %v1848, 0.0
      %v1854 = vadd.f32 %v1852, %v1853
      %v1855 = vsel %vm1830, %v1849, 0.0
      %v1856 = vadd.f32 %v1854, %v1855
      %1857 = vadd.xlane.f32.xlu0 %v1856
      %v1858 = vpop.xlane.xlu0 %1857
      %v1859 = vmul.f32 %v1858, %v1840
      %v1860 = vadd.f32 %v1859, 1e-05
      %v1861 = vrsqrt.pop %v1860
      %v1862 = vmul.f32 %v1842, %v1861
      %v1863 = vmul.f32 %v1843, %v1861
      %v1864 = vmul.f32 %v1844, %v1861
      %v1865 = vmul.f32 %v1845, %v1861
      %v1866 = vmax.f32 %v1862, 0.0
      %v1867 = vmax.f32 %v1863, 0.0
      %v1868 = vmax.f32 %v1864, 0.0
      %v1869 = vmax.f32 %v1865, 0.0
      %1870 = vst [vmem:[#allocation2] sm:$0xf] 0.0
      %1871 = vst [vmem:[#allocation2 + $0x14] sm:$0xf] 0.0
      %v1876 = vcombine.low %v1866, %v1867
      %v1877 = vcombine.low %v1868, %v1869
      %1880 = vst [vmem:[#allocation2 + $0x4] sm:$0xff] %v1876
      %1881 = vst [vmem:[#allocation2 + $0xc] sm:$0xff] %v1877
      %vm1882 = vcmp.ge.s32.totalorder %v285, 0
      %vm1883 = vcmp.ge.s32.totalorder %v285, 1
      %vm1884 = vcmp.le.s32.totalorder %v285, 6
      %vm1885 = vcmp.ge.s32.totalorder %v287, 1
      %vm1886 = vcmp.le.s32.totalorder %v287, 6
      %vm1887 = vcmp.ge.s32.totalorder %v289, 1
      %vm1888 = vcmp.le.s32.totalorder %v289, 6
      %v1889 = vld [vmem:[#allocation2] sm:$0xff]
      %v1890 = vld [vmem:[#allocation2 + $0x8] sm:$0xff]
      %v1891 = vld [vmem:[#allocation2 + $0x10] sm:$0xf]
      %vm1892 = vmand %vm1883, %vm1885
      %vm1893 = vmand %vm1892, %vm1887
      %v1894 = vsel %vm1893, 1, 0
      %v1895 = vlaneseq
      %v1896 = vshrl.u32 %v1895, 7
      %v1897 = vsub.s32 0, %v1896
      %v1898 = vrot.slane %v1894, %v1897
      %v1899 = vlaneseq
      %v1900 = vshrl.u32 %v1899, 7
      %v1901 = vsub.s32 1, %v1900
      %v1902 = vrot.slane %v1894, %v1901
      %v1903 = vlaneseq
      %v1904 = vshrl.u32 %v1903, 7
      %v1905 = vsub.s32 2, %v1904
      %v1906 = vrot.slane %v1894, %v1905
      %v1907 = vlaneseq
      %v1908 = vshrl.u32 %v1907, 7
      %v1909 = vsub.s32 3, %v1908
      %v1910 = vrot.slane %v1894, %v1909
      %vm1911 = vcmp.eq.s32.totalorder %v1898, 1
      %vm1912 = vcmp.eq.s32.totalorder %v1902, 1
      %vm1913 = vcmp.eq.s32.totalorder %v1906, 1
      %vm1914 = vcmp.eq.s32.totalorder %v1910, 1
      %v1918 = vcombine.high %v1889, %v1889
      %v1919 = vcombine.high %v1890, %v1890
      %1920 = vrot.lane.b32.xlu0 %v1889, 73
      %v1921 = vpop.permute.xlu0 %1920
      %1922 = vrot.lane.b32.xlu0 %v1918, 73
      %v1923 = vpop.permute.xlu0 %1922
      %1924 = vrot.lane.b32.xlu0 %v1890, 73
      %v1925 = vpop.permute.xlu0 %1924
      %1926 = vrot.lane.b32.xlu0 %v1919, 73
      %v1927 = vpop.permute.xlu0 %1926
      %1928 = vrot.lane.b32.xlu0 %v1891, 73
      %v1929 = vpop.permute.xlu0 %1928
      %vm1930 = vcmask 596992
      %v1931 = vsel %vm1930, %v1921, %v1923
      %v1932 = vsel %vm1930, %v1923, %v1925
      %v1933 = vsel %vm1930, %v1925, %v1927
      %v1934 = vsel %vm1930, %v1927, %v1929
      %v1939 = vsel %vm1911, %v1931, 0.0
      %v1940 = vsel %vm1912, %v1932, 0.0
      %v1941 = vsel %vm1913, %v1933, 0.0
      %v1942 = vsel %vm1914, %v1934, 0.0
      %v1943 = vld [vmem:[%s5] sm:$0xf]
      %vm1944 = vmand %vm1892, %vm1882
      %v1945 = vsel %vm1944, 1, 0
      %v1946 = vlaneseq
      %v1947 = vshrl.u32 %v1946, 7
      %v1948 = vsub.s32 0, %v1947
      %v1949 = vrot.slane %v1945, %v1948
      %v1950 = vlaneseq
      %v1951 = vshrl.u32 %v1950, 7
      %v1952 = vsub.s32 1, %v1951
      %v1953 = vrot.slane %v1945, %v1952
      %v1954 = vlaneseq
      %v1955 = vshrl.u32 %v1954, 7
      %v1956 = vsub.s32 2, %v1955
      %v1957 = vrot.slane %v1945, %v1956
      %v1958 = vlaneseq
      %v1959 = vshrl.u32 %v1958, 7
      %v1960 = vsub.s32 3, %v1959
      %v1961 = vrot.slane %v1945, %v1960
      %vm1962 = vcmp.eq.s32.totalorder %v1949, 1
      %vm1963 = vcmp.eq.s32.totalorder %v1953, 1
      %vm1964 = vcmp.eq.s32.totalorder %v1957, 1
      %vm1965 = vcmp.eq.s32.totalorder %v1961, 1
      %1966 = vrot.lane.b32.xlu0 %v1889, 72
      %v1967 = vpop.permute.xlu0 %1966
      %1968 = vrot.lane.b32.xlu0 %v1918, 72
      %v1969 = vpop.permute.xlu0 %1968
      %1970 = vrot.lane.b32.xlu0 %v1890, 72
      %v1971 = vpop.permute.xlu0 %1970
      %1972 = vrot.lane.b32.xlu0 %v1919, 72
      %v1973 = vpop.permute.xlu0 %1972
      %1974 = vrot.lane.b32.xlu0 %v1891, 72
      %v1975 = vpop.permute.xlu0 %1974
      %vm1976 = vcmask 588800
      %v1977 = vsel %vm1976, %v1967, %v1969
      %v1978 = vsel %vm1976, %v1969, %v1971
      %v1979 = vsel %vm1976, %v1971, %v1973
      %v1980 = vsel %vm1976, %v1973, %v1975
      %v1985 = vsel %vm1962, %v1977, 0.0
      %v1986 = vsel %vm1963, %v1978, 0.0
      %v1987 = vsel %vm1964, %v1979, 0.0
      %v1988 = vsel %vm1965, %v1980, 0.0
      %s1989 = scalar_lea.vmem %s5, 4
      %v1990 = vld [vmem:[%s1989] sm:$0xf]
      %vm1991 = vcmask 31744
      %v1993 = vsel %vm1991, %v1990, 0
      %v1996 = vsel %vm1830, %v1985, 0
      %v1999 = vsel %vm1830, %v1986, 0
      %v2002 = vsel %vm1830, %v1987, 0
      %v2005 = vsel %vm1830, %v1988, 0
      %2007 = vmatprep.subr.mxu0 %v1999
      %2008 = vmatpush1.msra.mxu0 %v1996
      %2009 = vmatprep.subr.mxu0 0.0
      %2010 = vmatpush1.msra.mxu0 0.0
      %2011 = vmatprep.subr.mxu0 0.0
      %2012 = vmatpush1.msra.mxu0 0.0
      %2013 = vmatprep.subr.mxu0 0.0
      %2014 = vmatpush1.msra.mxu0 0.0
      %2015 = vmatprep.subr.mxu0 0.0
      %2016 = vmatpush1.msra.mxu0 0.0
      %2017 = vmatprep.subr.mxu0 0.0
      %2018 = vmatpush1.msra.mxu0 0.0
      %2019 = vmatprep.subr.mxu0 0.0
      %2020 = vmatpush1.msra.mxu0 0.0
      %2021 = vmatprep.subr.mxu0 0.0
      %2022 = vmatpush1.msra.mxu0 0.0
      %2023 = vmatprep.subr.mxu0 0.0
      %2024 = vmatpush1.msra.mxu0 0.0
      %2025 = vmatprep.subr.mxu0 0.0
      %2026 = vmatpush1.msra.mxu0 0.0
      %2027 = vmatprep.subr.mxu0 0.0
      %2028 = vmatpush1.msra.mxu0 0.0
      %2029 = vmatprep.subr.mxu0 0.0
      %2030 = vmatpush1.msra.mxu0 0.0
      %2031 = vmatprep.subr.mxu0 0.0
      %2032 = vmatpush1.msra.mxu0 0.0
      %2033 = vmatprep.subr.mxu0 0.0
      %2034 = vmatpush1.msra.mxu0 0.0
      %2035 = vmatprep.subr.mxu0 0.0
      %2036 = vmatpush1.msra.mxu0 0.0
      %2037 = vmatprep.subr.mxu0 0.0
      %2038 = vmatpush1.msra.mxu0 0.0
      %2039 = vmatprep.subr.mxu0 0.0
      %2040 = vmatpush1.msra.mxu0 0.0
      %2041 = vmatprep.subr.mxu0 0.0
      %2042 = vmatpush1.msra.mxu0 0.0
      %2043 = vmatprep.subr.mxu0 0.0
      %2044 = vmatpush1.msra.mxu0 0.0
      %2045 = vmatprep.subr.mxu0 0.0
      %2046 = vmatpush1.msra.mxu0 0.0
      %2047 = vmatprep.subr.mxu0 0.0
      %2048 = vmatpush1.msra.mxu0 0.0
      %2049 = vmatprep.subr.mxu0 0.0
      %2050 = vmatpush1.msra.mxu0 0.0
      %2051 = vmatprep.subr.mxu0 0.0
      %2052 = vmatpush1.msra.mxu0 0.0
      %2053 = vmatprep.subr.mxu0 0.0
      %2054 = vmatpush1.msra.mxu0 0.0
      %2055 = vmatprep.subr.mxu0 0.0
      %2056 = vmatpush1.msra.mxu0 0.0
      %2057 = vmatprep.subr.mxu0 0.0
      %2058 = vmatpush1.msra.mxu0 0.0
      %2059 = vmatprep.subr.mxu0 0.0
      %2060 = vmatpush1.msra.mxu0 0.0
      %2061 = vmatprep.subr.mxu0 0.0
      %2062 = vmatpush1.msra.mxu0 0.0
      %2063 = vmatprep.subr.mxu0 0.0
      %2064 = vmatpush1.msra.mxu0 0.0
      %2065 = vmatprep.subr.mxu0 0.0
      %2066 = vmatpush1.msra.mxu0 0.0
      %2067 = vmatprep.subr.mxu0 0.0
      %2068 = vmatpush1.msra.mxu0 0.0
      %2069 = vmatprep.subr.mxu0 0.0
      %2070 = vmatpush1.msra.mxu0 0.0
      %2071 = vmatprep.mubr.f32.mxu0 0.0
      %2072 = vmatmul.mubr.f32.gmra.mrb[0].mxu0 %v1993
      %v2073 = vpop.f32.mrb[0].mxu0
      %v2074 = vadd.f32 0.0, %v2073
      %v2075 = vpop.f32.mrb[0].mxu0
      %v2076 = vadd.f32 0.0, %v2075
      %2077 = vdwg.mxu0
      %2078 = vmatprep.subr.mxu0 %v2005
      %2079 = vmatpush1.msra.mxu0 %v2002
      %2080 = vmatprep.subr.mxu0 0.0
      %2081 = vmatpush1.msra.mxu0 0.0
      %2082 = vmatprep.subr.mxu0 0.0
      %2083 = vmatpush1.msra.mxu0 0.0
      %2084 = vmatprep.subr.mxu0 0.0
      %2085 = vmatpush1.msra.mxu0 0.0
      %2086 = vmatprep.subr.mxu0 0.0
      %2087 = vmatpush1.msra.mxu0 0.0
      %2088 = vmatprep.subr.mxu0 0.0
      %2089 = vmatpush1.msra.mxu0 0.0
      %2090 = vmatprep.subr.mxu0 0.0
      %2091 = vmatpush1.msra.mxu0 0.0
      %2092 = vmatprep.subr.mxu0 0.0
      %2093 = vmatpush1.msra.mxu0 0.0
      %2094 = vmatprep.subr.mxu0 0.0
      %2095 = vmatpush1.msra.mxu0 0.0
      %2096 = vmatprep.subr.mxu0 0.0
      %2097 = vmatpush1.msra.mxu0 0.0
      %2098 = vmatprep.subr.mxu0 0.0
      %2099 = vmatpush1.msra.mxu0 0.0
      %2100 = vmatprep.subr.mxu0 0.0
      %2101 = vmatpush1.msra.mxu0 0.0
      %2102 = vmatprep.subr.mxu0 0.0
      %2103 = vmatpush1.msra.mxu0 0.0
      %2104 = vmatprep.subr.mxu0 0.0
      %2105 = vmatpush1.msra.mxu0 0.0
      %2106 = vmatprep.subr.mxu0 0.0
      %2107 = vmatpush1.msra.mxu0 0.0
      %2108 = vmatprep.subr.mxu0 0.0
      %2109 = vmatpush1.msra.mxu0 0.0
      %2110 = vmatprep.subr.mxu0 0.0
      %2111 = vmatpush1.msra.mxu0 0.0
      %2112 = vmatprep.subr.mxu0 0.0
      %2113 = vmatpush1.msra.mxu0 0.0
      %2114 = vmatprep.subr.mxu0 0.0
      %2115 = vmatpush1.msra.mxu0 0.0
      %2116 = vmatprep.subr.mxu0 0.0
      %2117 = vmatpush1.msra.mxu0 0.0
      %2118 = vmatprep.subr.mxu0 0.0
      %2119 = vmatpush1.msra.mxu0 0.0
      %2120 = vmatprep.subr.mxu0 0.0
      %2121 = vmatpush1.msra.mxu0 0.0
      %2122 = vmatprep.subr.mxu0 0.0
      %2123 = vmatpush1.msra.mxu0 0.0
      %2124 = vmatprep.subr.mxu0 0.0
      %2125 = vmatpush1.msra.mxu0 0.0
      %2126 = vmatprep.subr.mxu0 0.0
      %2127 = vmatpush1.msra.mxu0 0.0
      %2128 = vmatprep.subr.mxu0 0.0
      %2129 = vmatpush1.msra.mxu0 0.0
      %2130 = vmatprep.subr.mxu0 0.0
      %2131 = vmatpush1.msra.mxu0 0.0
      %2132 = vmatprep.subr.mxu0 0.0
      %2133 = vmatpush1.msra.mxu0 0.0
      %2134 = vmatprep.subr.mxu0 0.0
      %2135 = vmatpush1.msra.mxu0 0.0
      %2136 = vmatprep.subr.mxu0 0.0
      %2137 = vmatpush1.msra.mxu0 0.0
      %2138 = vmatprep.subr.mxu0 0.0
      %2139 = vmatpush1.msra.mxu0 0.0
      %2140 = vmatprep.subr.mxu0 0.0
      %2141 = vmatpush1.msra.mxu0 0.0
      %2142 = vmatprep.mubr.f32.mxu0 0.0
      %2143 = vmatmul.mubr.f32.gmra.mrb[0].mxu0 %v1993
      %v2144 = vpop.f32.mrb[0].mxu0
      %v2145 = vadd.f32 0.0, %v2144
      %v2146 = vpop.f32.mrb[0].mxu0
      %v2147 = vadd.f32 0.0, %v2146
      %2148 = vdwg.mxu0
      %v2150 = vsel %vm1991, %v1943, 0
      %v2153 = vsel %vm1830, %v1939, 0
      %v2156 = vsel %vm1830, %v1940, 0
      %v2159 = vsel %vm1830, %v1941, 0
      %v2162 = vsel %vm1830, %v1942, 0
      %2164 = vmatprep.subr.mxu0 %v2156
      %2165 = vmatpush1.msra.mxu0 %v2153
      %2166 = vmatprep.subr.mxu0 0.0
      %2167 = vmatpush1.msra.mxu0 0.0
      %2168 = vmatprep.subr.mxu0 0.0
      %2169 = vmatpush1.msra.mxu0 0.0
      %2170 = vmatprep.subr.mxu0 0.0
      %2171 = vmatpush1.msra.mxu0 0.0
      %2172 = vmatprep.subr.mxu0 0.0
      %2173 = vmatpush1.msra.mxu0 0.0
      %2174 = vmatprep.subr.mxu0 0.0
      %2175 = vmatpush1.msra.mxu0 0.0
      %2176 = vmatprep.subr.mxu0 0.0
      %2177 = vmatpush1.msra.mxu0 0.0
      %2178 = vmatprep.subr.mxu0 0.0
      %2179 = vmatpush1.msra.mxu0 0.0
      %2180 = vmatprep.subr.mxu0 0.0
      %2181 = vmatpush1.msra.mxu0 0.0
      %2182 = vmatprep.subr.mxu0 0.0
      %2183 = vmatpush1.msra.mxu0 0.0
      %2184 = vmatprep.subr.mxu0 0.0
      %2185 = vmatpush1.msra.mxu0 0.0
      %2186 = vmatprep.subr.mxu0 0.0
      %2187 = vmatpush1.msra.mxu0 0.0
      %2188 = vmatprep.subr.mxu0 0.0
      %2189 = vmatpush1.msra.mxu0 0.0
      %2190 = vmatprep.subr.mxu0 0.0
      %2191 = vmatpush1.msra.mxu0 0.0
      %2192 = vmatprep.subr.mxu0 0.0
      %2193 = vmatpush1.msra.mxu0 0.0
      %2194 = vmatprep.subr.mxu0 0.0
      %2195 = vmatpush1.msra.mxu0 0.0
      %2196 = vmatprep.subr.mxu0 0.0
      %2197 = vmatpush1.msra.mxu0 0.0
      %2198 = vmatprep.subr.mxu0 0.0
      %2199 = vmatpush1.msra.mxu0 0.0
      %2200 = vmatprep.subr.mxu0 0.0
      %2201 = vmatpush1.msra.mxu0 0.0
      %2202 = vmatprep.subr.mxu0 0.0
      %2203 = vmatpush1.msra.mxu0 0.0
      %2204 = vmatprep.subr.mxu0 0.0
      %2205 = vmatpush1.msra.mxu0 0.0
      %2206 = vmatprep.subr.mxu0 0.0
      %2207 = vmatpush1.msra.mxu0 0.0
      %2208 = vmatprep.subr.mxu0 0.0
      %2209 = vmatpush1.msra.mxu0 0.0
      %2210 = vmatprep.subr.mxu0 0.0
      %2211 = vmatpush1.msra.mxu0 0.0
      %2212 = vmatprep.subr.mxu0 0.0
      %2213 = vmatpush1.msra.mxu0 0.0
      %2214 = vmatprep.subr.mxu0 0.0
      %2215 = vmatpush1.msra.mxu0 0.0
      %2216 = vmatprep.subr.mxu0 0.0
      %2217 = vmatpush1.msra.mxu0 0.0
      %2218 = vmatprep.subr.mxu0 0.0
      %2219 = vmatpush1.msra.mxu0 0.0
      %2220 = vmatprep.subr.mxu0 0.0
      %2221 = vmatpush1.msra.mxu0 0.0
      %2222 = vmatprep.subr.mxu0 0.0
      %2223 = vmatpush1.msra.mxu0 0.0
      %2224 = vmatprep.subr.mxu0 0.0
      %2225 = vmatpush1.msra.mxu0 0.0
      %2226 = vmatprep.subr.mxu0 0.0
      %2227 = vmatpush1.msra.mxu0 0.0
      %2228 = vmatprep.mubr.f32.mxu0 0.0
      %2229 = vmatmul.mubr.f32.gmra.mrb[0].mxu0 %v2150
      %v2230 = vpop.f32.mrb[0].mxu0
      %v2231 = vadd.f32 %v2074, %v2230
      %v2232 = vpop.f32.mrb[0].mxu0
      %v2233 = vadd.f32 %v2076, %v2232
      %2234 = vdwg.mxu0
      %2235 = vmatprep.subr.mxu0 %v2162
      %2236 = vmatpush1.msra.mxu0 %v2159
      %2237 = vmatprep.subr.mxu0 0.0
      %2238 = vmatpush1.msra.mxu0 0.0
      %2239 = vmatprep.subr.mxu0 0.0
      %2240 = vmatpush1.msra.mxu0 0.0
      %2241 = vmatprep.subr.mxu0 0.0
      %2242 = vmatpush1.msra.mxu0 0.0
      %2243 = vmatprep.subr.mxu0 0.0
      %2244 = vmatpush1.msra.mxu0 0.0
      %2245 = vmatprep.subr.mxu0 0.0
      %2246 = vmatpush1.msra.mxu0 0.0
      %2247 = vmatprep.subr.mxu0 0.0
      %2248 = vmatpush1.msra.mxu0 0.0
      %2249 = vmatprep.subr.mxu0 0.0
      %2250 = vmatpush1.msra.mxu0 0.0
      %2251 = vmatprep.subr.mxu0 0.0
      %2252 = vmatpush1.msra.mxu0 0.0
      %2253 = vmatprep.subr.mxu0 0.0
      %2254 = vmatpush1.msra.mxu0 0.0
      %2255 = vmatprep.subr.mxu0 0.0
      %2256 = vmatpush1.msra.mxu0 0.0
      %2257 = vmatprep.subr.mxu0 0.0
      %2258 = vmatpush1.msra.mxu0 0.0
      %2259 = vmatprep.subr.mxu0 0.0
      %2260 = vmatpush1.msra.mxu0 0.0
      %2261 = vmatprep.subr.mxu0 0.0
      %2262 = vmatpush1.msra.mxu0 0.0
      %2263 = vmatprep.subr.mxu0 0.0
      %2264 = vmatpush1.msra.mxu0 0.0
      %2265 = vmatprep.subr.mxu0 0.0
      %2266 = vmatpush1.msra.mxu0 0.0
      %2267 = vmatprep.subr.mxu0 0.0
      %2268 = vmatpush1.msra.mxu0 0.0
      %2269 = vmatprep.subr.mxu0 0.0
      %2270 = vmatpush1.msra.mxu0 0.0
      %2271 = vmatprep.subr.mxu0 0.0
      %2272 = vmatpush1.msra.mxu0 0.0
      %2273 = vmatprep.subr.mxu0 0.0
      %2274 = vmatpush1.msra.mxu0 0.0
      %2275 = vmatprep.subr.mxu0 0.0
      %2276 = vmatpush1.msra.mxu0 0.0
      %2277 = vmatprep.subr.mxu0 0.0
      %2278 = vmatpush1.msra.mxu0 0.0
      %2279 = vmatprep.subr.mxu0 0.0
      %2280 = vmatpush1.msra.mxu0 0.0
      %2281 = vmatprep.subr.mxu0 0.0
      %2282 = vmatpush1.msra.mxu0 0.0
      %2283 = vmatprep.subr.mxu0 0.0
      %2284 = vmatpush1.msra.mxu0 0.0
      %2285 = vmatprep.subr.mxu0 0.0
      %2286 = vmatpush1.msra.mxu0 0.0
      %2287 = vmatprep.subr.mxu0 0.0
      %2288 = vmatpush1.msra.mxu0 0.0
      %2289 = vmatprep.subr.mxu0 0.0
      %2290 = vmatpush1.msra.mxu0 0.0
      %2291 = vmatprep.subr.mxu0 0.0
      %2292 = vmatpush1.msra.mxu0 0.0
      %2293 = vmatprep.subr.mxu0 0.0
      %2294 = vmatpush1.msra.mxu0 0.0
      %2295 = vmatprep.subr.mxu0 0.0
      %2296 = vmatpush1.msra.mxu0 0.0
      %2297 = vmatprep.subr.mxu0 0.0
      %2298 = vmatpush1.msra.mxu0 0.0
      %2299 = vmatprep.mubr.f32.mxu0 0.0
      %2300 = vmatmul.mubr.f32.gmra.mrb[0].mxu0 %v2150
      %v2301 = vpop.f32.mrb[0].mxu0
      %v2302 = vadd.f32 %v2145, %v2301
      %v2303 = vpop.f32.mrb[0].mxu0
      %v2304 = vadd.f32 %v2147, %v2303
      %2305 = vdwg.mxu0
      %v2306 = vld [vmem:[#allocation2] sm:$0xff]
      %v2307 = vld [vmem:[#allocation2 + $0x8] sm:$0xff]
      %v2308 = vld [vmem:[#allocation2 + $0x10] sm:$0xf]
      %vm2309 = vmand %vm1892, %vm1888
      %v2310 = vsel %vm2309, 1, 0
      %v2311 = vlaneseq
      %v2312 = vshrl.u32 %v2311, 7
      %v2313 = vsub.s32 0, %v2312
      %v2314 = vrot.slane %v2310, %v2313
      %v2315 = vlaneseq
      %v2316 = vshrl.u32 %v2315, 7
      %v2317 = vsub.s32 1, %v2316
      %v2318 = vrot.slane %v2310, %v2317
      %v2319 = vlaneseq
      %v2320 = vshrl.u32 %v2319, 7
      %v2321 = vsub.s32 2, %v2320
      %v2322 = vrot.slane %v2310, %v2321
      %v2323 = vlaneseq
      %v2324 = vshrl.u32 %v2323, 7
      %v2325 = vsub.s32 3, %v2324
      %v2326 = vrot.slane %v2310, %v2325
      %vm2327 = vcmp.eq.s32.totalorder %v2314, 1
      %vm2328 = vcmp.eq.s32.totalorder %v2318, 1
      %vm2329 = vcmp.eq.s32.totalorder %v2322, 1
      %vm2330 = vcmp.eq.s32.totalorder %v2326, 1
      %v2334 = vcombine.high %v2306, %v2306
      %v2335 = vcombine.high %v2307, %v2307
      %2336 = vrot.lane.b32.xlu0 %v2306, 71
      %v2337 = vpop.permute.xlu0 %2336
      %2338 = vrot.lane.b32.xlu0 %v2334, 71
      %v2339 = vpop.permute.xlu0 %2338
      %2340 = vrot.lane.b32.xlu0 %v2307, 71
      %v2341 = vpop.permute.xlu0 %2340
      %2342 = vrot.lane.b32.xlu0 %v2335, 71
      %v2343 = vpop.permute.xlu0 %2342
      %2344 = vrot.lane.b32.xlu0 %v2308, 71
      %v2345 = vpop.permute.xlu0 %2344
      %vm2346 = vcmask 580608
      %v2347 = vsel %vm2346, %v2337, %v2339
      %v2348 = vsel %vm2346, %v2339, %v2341
      %v2349 = vsel %vm2346, %v2341, %v2343
      %v2350 = vsel %vm2346, %v2343, %v2345
      %v2355 = vsel %vm2327, %v2347, 0.0
      %v2356 = vsel %vm2328, %v2348, 0.0
      %v2357 = vsel %vm2329, %v2349, 0.0
      %v2358 = vsel %vm2330, %v2350, 0.0
      %s2359 = scalar_lea.vmem %s5, 8
      %v2360 = vld [vmem:[%s2359] sm:$0xf]
      %v2362 = vsel %vm1991, %v2360, 0
      %v2365 = vsel %vm1830, %v2355, 0
      %v2368 = vsel %vm1830, %v2356, 0
      %v2371 = vsel %vm1830, %v2357, 0
      %v2374 = vsel %vm1830, %v2358, 0
      %2376 = vmatprep.subr.mxu0 %v2368
      %2377 = vmatpush1.msra.mxu0 %v2365
      %2378 = vmatprep.subr.mxu0 0.0
      %2379 = vmatpush1.msra.mxu0 0.0
      %2380 = vmatprep.subr.mxu0 0.0
      %2381 = vmatpush1.msra.mxu0 0.0
      %2382 = vmatprep.subr.mxu0 0.0
      %2383 = vmatpush1.msra.mxu0 0.0
      %2384 = vmatprep.subr.mxu0 0.0
      %2385 = vmatpush1.msra.mxu0 0.0
      %2386 = vmatprep.subr.mxu0 0.0
      %2387 = vmatpush1.msra.mxu0 0.0
      %2388 = vmatprep.subr.mxu0 0.0
      %2389 = vmatpush1.msra.mxu0 0.0
      %2390 = vmatprep.subr.mxu0 0.0
      %2391 = vmatpush1.msra.mxu0 0.0
      %2392 = vmatprep.subr.mxu0 0.0
      %2393 = vmatpush1.msra.mxu0 0.0
      %2394 = vmatprep.subr.mxu0 0.0
      %2395 = vmatpush1.msra.mxu0 0.0
      %2396 = vmatprep.subr.mxu0 0.0
      %2397 = vmatpush1.msra.mxu0 0.0
      %2398 = vmatprep.subr.mxu0 0.0
      %2399 = vmatpush1.msra.mxu0 0.0
      %2400 = vmatprep.subr.mxu0 0.0
      %2401 = vmatpush1.msra.mxu0 0.0
      %2402 = vmatprep.subr.mxu0 0.0
      %2403 = vmatpush1.msra.mxu0 0.0
      %2404 = vmatprep.subr.mxu0 0.0
      %2405 = vmatpush1.msra.mxu0 0.0
      %2406 = vmatprep.subr.mxu0 0.0
      %2407 = vmatpush1.msra.mxu0 0.0
      %2408 = vmatprep.subr.mxu0 0.0
      %2409 = vmatpush1.msra.mxu0 0.0
      %2410 = vmatprep.subr.mxu0 0.0
      %2411 = vmatpush1.msra.mxu0 0.0
      %2412 = vmatprep.subr.mxu0 0.0
      %2413 = vmatpush1.msra.mxu0 0.0
      %2414 = vmatprep.subr.mxu0 0.0
      %2415 = vmatpush1.msra.mxu0 0.0
      %2416 = vmatprep.subr.mxu0 0.0
      %2417 = vmatpush1.msra.mxu0 0.0
      %2418 = vmatprep.subr.mxu0 0.0
      %2419 = vmatpush1.msra.mxu0 0.0
      %2420 = vmatprep.subr.mxu0 0.0
      %2421 = vmatpush1.msra.mxu0 0.0
      %2422 = vmatprep.subr.mxu0 0.0
      %2423 = vmatpush1.msra.mxu0 0.0
      %2424 = vmatprep.subr.mxu0 0.0
      %2425 = vmatpush1.msra.mxu0 0.0
      %2426 = vmatprep.subr.mxu0 0.0
      %2427 = vmatpush1.msra.mxu0 0.0
      %2428 = vmatprep.subr.mxu0 0.0
      %2429 = vmatpush1.msra.mxu0 0.0
      %2430 = vmatprep.subr.mxu0 0.0
      %2431 = vmatpush1.msra.mxu0 0.0
      %2432 = vmatprep.subr.mxu0 0.0
      %2433 = vmatpush1.msra.mxu0 0.0
      %2434 = vmatprep.subr.mxu0 0.0
      %2435 = vmatpush1.msra.mxu0 0.0
      %2436 = vmatprep.subr.mxu0 0.0
      %2437 = vmatpush1.msra.mxu0 0.0
      %2438 = vmatprep.subr.mxu0 0.0
      %2439 = vmatpush1.msra.mxu0 0.0
      %2440 = vmatprep.mubr.f32.mxu0 0.0
      %2441 = vmatmul.mubr.f32.gmra.mrb[0].mxu0 %v2362
      %v2442 = vpop.f32.mrb[0].mxu0
      %v2443 = vadd.f32 0.0, %v2442
      %v2444 = vpop.f32.mrb[0].mxu0
      %v2445 = vadd.f32 0.0, %v2444
      %2446 = vdwg.mxu0
      %2447 = vmatprep.subr.mxu0 %v2374
      %2448 = vmatpush1.msra.mxu0 %v2371
      %2449 = vmatprep.subr.mxu0 0.0
      %2450 = vmatpush1.msra.mxu0 0.0
      %2451 = vmatprep.subr.mxu0 0.0
      %2452 = vmatpush1.msra.mxu0 0.0
      %2453 = vmatprep.subr.mxu0 0.0
      %2454 = vmatpush1.msra.mxu0 0.0
      %2455 = vmatprep.subr.mxu0 0.0
      %2456 = vmatpush1.msra.mxu0 0.0
      %2457 = vmatprep.subr.mxu0 0.0
      %2458 = vmatpush1.msra.mxu0 0.0
      %2459 = vmatprep.subr.mxu0 0.0
      %2460 = vmatpush1.msra.mxu0 0.0
      %2461 = vmatprep.subr.mxu0 0.0
      %2462 = vmatpush1.msra.mxu0 0.0
      %2463 = vmatprep.subr.mxu0 0.0
      %2464 = vmatpush1.msra.mxu0 0.0
      %2465 = vmatprep.subr.mxu0 0.0
      %2466 = vmatpush1.msra.mxu0 0.0
      %2467 = vmatprep.subr.mxu0 0.0
      %2468 = vmatpush1.msra.mxu0 0.0
      %2469 = vmatprep.subr.mxu0 0.0
      %2470 = vmatpush1.msra.mxu0 0.0
      %2471 = vmatprep.subr.mxu0 0.0
      %2472 = vmatpush1.msra.mxu0 0.0
      %2473 = vmatprep.subr.mxu0 0.0
      %2474 = vmatpush1.msra.mxu0 0.0
      %2475 = vmatprep.subr.mxu0 0.0
      %2476 = vmatpush1.msra.mxu0 0.0
      %2477 = vmatprep.subr.mxu0 0.0
      %2478 = vmatpush1.msra.mxu0 0.0
      %2479 = vmatprep.subr.mxu0 0.0
      %2480 = vmatpush1.msra.mxu0 0.0
      %2481 = vmatprep.subr.mxu0 0.0
      %2482 = vmatpush1.msra.mxu0 0.0
      %2483 = vmatprep.subr.mxu0 0.0
      %2484 = vmatpush1.msra.mxu0 0.0
      %2485 = vmatprep.subr.mxu0 0.0
      %2486 = vmatpush1.msra.mxu0 0.0
      %2487 = vmatprep.subr.mxu0 0.0
      %2488 = vmatpush1.msra.mxu0 0.0
      %2489 = vmatprep.subr.mxu0 0.0
      %2490 = vmatpush1.msra.mxu0 0.0
      %2491 = vmatprep.subr.mxu0 0.0
      %2492 = vmatpush1.msra.mxu0 0.0
      %2493 = vmatprep.subr.mxu0 0.0
      %2494 = vmatpush1.msra.mxu0 0.0
      %2495 = vmatprep.subr.mxu0 0.0
      %2496 = vmatpush1.msra.mxu0 0.0
      %2497 = vmatprep.subr.mxu0 0.0
      %2498 = vmatpush1.msra.mxu0 0.0
      %2499 = vmatprep.subr.mxu0 0.0
      %2500 = vmatpush1.msra.mxu0 0.0
      %2501 = vmatprep.subr.mxu0 0.0
      %2502 = vmatpush1.msra.mxu0 0.0
      %2503 = vmatprep.subr.mxu0 0.0
      %2504 = vmatpush1.msra.mxu0 0.0
      %2505 = vmatprep.subr.mxu0 0.0
      %2506 = vmatpush1.msra.mxu0 0.0
      %2507 = vmatprep.subr.mxu0 0.0
      %2508 = vmatpush1.msra.mxu0 0.0
      %2509 = vmatprep.subr.mxu0 0.0
      %2510 = vmatpush1.msra.mxu0 0.0
      %2511 = vmatprep.mubr.f32.mxu0 0.0
      %2512 = vmatmul.mubr.f32.gmra.mrb[0].mxu0 %v2362
      %v2513 = vpop.f32.mrb[0].mxu0
      %v2514 = vadd.f32 0.0, %v2513
      %v2515 = vpop.f32.mrb[0].mxu0
      %v2516 = vadd.f32 0.0, %v2515
      %2517 = vdwg.mxu0
      %v2518 = vadd.f32 %v2231, %v2443
      %v2519 = vadd.f32 %v2233, %v2445
      %v2520 = vadd.f32 %v2302, %v2514
      %v2521 = vadd.f32 %v2304, %v2516
      %v2522 = vld [vmem:[#allocation2] sm:$0xff]
      %v2523 = vld [vmem:[#allocation2 + $0x8] sm:$0xff]
      %v2524 = vld [vmem:[#allocation2 + $0x10] sm:$0xf]
      %vm2525 = vmand %vm1883, %vm1882
      %vm2526 = vmand %vm2525, %vm1887
      %v2527 = vsel %vm2526, 1, 0
      %v2528 = vlaneseq
      %v2529 = vshrl.u32 %v2528, 7
      %v2530 = vsub.s32 0, %v2529
      %v2531 = vrot.slane %v2527, %v2530
      %v2532 = vlaneseq
      %v2533 = vshrl.u32 %v2532, 7
      %v2534 = vsub.s32 1, %v2533
      %v2535 = vrot.slane %v2527, %v2534
      %v2536 = vlaneseq
      %v2537 = vshrl.u32 %v2536, 7
      %v2538 = vsub.s32 2, %v2537
      %v2539 = vrot.slane %v2527, %v2538
      %v2540 = vlaneseq
      %v2541 = vshrl.u32 %v2540, 7
      %v2542 = vsub.s32 3, %v2541
      %v2543 = vrot.slane %v2527, %v2542
      %vm2544 = vcmp.eq.s32.totalorder %v2531, 1
      %vm2545 = vcmp.eq.s32.totalorder %v2535, 1
      %vm2546 = vcmp.eq.s32.totalorder %v2539, 1
      %vm2547 = vcmp.eq.s32.totalorder %v2543, 1
      %v2551 = vcombine.high %v2522, %v2522
      %v2552 = vcombine.high %v2523, %v2523
      %2553 = vrot.lane.b32.xlu0 %v2522, 65
      %v2554 = vpop.permute.xlu0 %2553
      %2555 = vrot.lane.b32.xlu0 %v2551, 65
      %v2556 = vpop.permute.xlu0 %2555
      %2557 = vrot.lane.b32.xlu0 %v2523, 65
      %v2558 = vpop.permute.xlu0 %2557
      %2559 = vrot.lane.b32.xlu0 %v2552, 65
      %v2560 = vpop.permute.xlu0 %2559
      %2561 = vrot.lane.b32.xlu0 %v2524, 65
      %v2562 = vpop.permute.xlu0 %2561
      %vm2563 = vcmask 531456
      %v2564 = vsel %vm2563, %v2554, %v2556
      %v2565 = vsel %vm2563, %v2556, %v2558
      %v2566 = vsel %vm2563, %v2558, %v2560
      %v2567 = vsel %vm2563, %v2560, %v2562
      %v2572 = vsel %vm2544, %v2564, 0.0
      %v2573 = vsel %vm2545, %v2565, 0.0
      %v2574 = vsel %vm2546, %v2566, 0.0
      %v2575 = vsel %vm2547, %v2567, 0.0
      %s2576 = scalar_lea.vmem %s5, 12
      %v2577 = vld [vmem:[%s2576] sm:$0xf]
      %v2579 = vsel %vm1991, %v2577, 0
      %v2582 = vsel %vm1830, %v2572, 0
      %v2585 = vsel %vm1830, %v2573, 0
      %v2588 = vsel %vm1830, %v2574, 0
      %v2591 = vsel %vm1830, %v2575, 0
      %2593 = vmatprep.subr.mxu0 %v2585
      %2594 = vmatpush1.msra.mxu0 %v2582
      %2595 = vmatprep.subr.mxu0 0.0
      %2596 = vmatpush1.msra.mxu0 0.0
      %2597 = vmatprep.subr.mxu0 0.0
      %2598 = vmatpush1.msra.mxu0 0.0
      %2599 = vmatprep.subr.mxu0 0.0
      %2600 = vmatpush1.msra.mxu0 0.0
      %2601 = vmatprep.subr.mxu0 0.0
      %2602 = vmatpush1.msra.mxu0 0.0
      %2603 = vmatprep.subr.mxu0 0.0
      %2604 = vmatpush1.msra.mxu0 0.0
      %2605 = vmatprep.subr.mxu0 0.0
      %2606 = vmatpush1.msra.mxu0 0.0
      %2607 = vmatprep.subr.mxu0 0.0
      %2608 = vmatpush1.msra.mxu0 0.0
      %2609 = vmatprep.subr.mxu0 0.0
      %2610 = vmatpush1.msra.mxu0 0.0
      %2611 = vmatprep.subr.mxu0 0.0
      %2612 = vmatpush1.msra.mxu0 0.0
      %2613 = vmatprep.subr.mxu0 0.0
      %2614 = vmatpush1.msra.mxu0 0.0
      %2615 = vmatprep.subr.mxu0 0.0
      %2616 = vmatpush1.msra.mxu0 0.0
      %2617 = vmatprep.subr.mxu0 0.0
      %2618 = vmatpush1.msra.mxu0 0.0
      %2619 = vmatprep.subr.mxu0 0.0
      %2620 = vmatpush1.msra.mxu0 0.0
      %2621 = vmatprep.subr.mxu0 0.0
      %2622 = vmatpush1.msra.mxu0 0.0
      %2623 = vmatprep.subr.mxu0 0.0
      %2624 = vmatpush1.msra.mxu0 0.0
      %2625 = vmatprep.subr.mxu0 0.0
      %2626 = vmatpush1.msra.mxu0 0.0
      %2627 = vmatprep.subr.mxu0 0.0
      %2628 = vmatpush1.msra.mxu0 0.0
      %2629 = vmatprep.subr.mxu0 0.0
      %2630 = vmatpush1.msra.mxu0 0.0
      %2631 = vmatprep.subr.mxu0 0.0
      %2632 = vmatpush1.msra.mxu0 0.0
      %2633 = vmatprep.subr.mxu0 0.0
      %2634 = vmatpush1.msra.mxu0 0.0
      %2635 = vmatprep.subr.mxu0 0.0
      %2636 = vmatpush1.msra.mxu0 0.0
      %2637 = vmatprep.subr.mxu0 0.0
      %2638 = vmatpush1.msra.mxu0 0.0
      %2639 = vmatprep.subr.mxu0 0.0
      %2640 = vmatpush1.msra.mxu0 0.0
      %2641 = vmatprep.subr.mxu0 0.0
      %2642 = vmatpush1.msra.mxu0 0.0
      %2643 = vmatprep.subr.mxu0 0.0
      %2644 = vmatpush1.msra.mxu0 0.0
      %2645 = vmatprep.subr.mxu0 0.0
      %2646 = vmatpush1.msra.mxu0 0.0
      %2647 = vmatprep.subr.mxu0 0.0
      %2648 = vmatpush1.msra.mxu0 0.0
      %2649 = vmatprep.subr.mxu0 0.0
      %2650 = vmatpush1.msra.mxu0 0.0
      %2651 = vmatprep.subr.mxu0 0.0
      %2652 = vmatpush1.msra.mxu0 0.0
      %2653 = vmatprep.subr.mxu0 0.0
      %2654 = vmatpush1.msra.mxu0 0.0
      %2655 = vmatprep.subr.mxu0 0.0
      %2656 = vmatpush1.msra.mxu0 0.0
      %2657 = vmatprep.mubr.f32.mxu0 0.0
      %2658 = vmatmul.mubr.f32.gmra.mrb[0].mxu0 %v2579
      %v2659 = vpop.f32.mrb[0].mxu0
      %v2660 = vadd.f32 0.0, %v2659
      %v2661 = vpop.f32.mrb[0].mxu0
      %v2662 = vadd.f32 0.0, %v2661
      %2663 = vdwg.mxu0
      %2664 = vmatprep.subr.mxu0 %v2591
      %2665 = vmatpush1.msra.mxu0 %v2588
      %2666 = vmatprep.subr.mxu0 0.0
      %2667 = vmatpush1.msra.mxu0 0.0
      %2668 = vmatprep.subr.mxu0 0.0
      %2669 = vmatpush1.msra.mxu0 0.0
      %2670 = vmatprep.subr.mxu0 0.0
      %2671 = vmatpush1.msra.mxu0 0.0
      %2672 = vmatprep.subr.mxu0 0.0
      %2673 = vmatpush1.msra.mxu0 0.0
      %2674 = vmatprep.subr.mxu0 0.0
      %2675 = vmatpush1.msra.mxu0 0.0
      %2676 = vmatprep.subr.mxu0 0.0
      %2677 = vmatpush1.msra.mxu0 0.0
      %2678 = vmatprep.subr.mxu0 0.0
      %2679 = vmatpush1.msra.mxu0 0.0
      %2680 = vmatprep.subr.mxu0 0.0
      %2681 = vmatpush1.msra.mxu0 0.0
      %2682 = vmatprep.subr.mxu0 0.0
      %2683 = vmatpush1.msra.mxu0 0.0
      %2684 = vmatprep.subr.mxu0 0.0
      %2685 = vmatpush1.msra.mxu0 0.0
      %2686 = vmatprep.subr.mxu0 0.0
      %2687 = vmatpush1.msra.mxu0 0.0
      %2688 = vmatprep.subr.mxu0 0.0
      %2689 = vmatpush1.msra.mxu0 0.0
      %2690 = vmatprep.subr.mxu0 0.0
      %2691 = vmatpush1.msra.mxu0 0.0
      %2692 = vmatprep.subr.mxu0 0.0
      %2693 = vmatpush1.msra.mxu0 0.0
      %2694 = vmatprep.subr.mxu0 0.0
      %2695 = vmatpush1.msra.mxu0 0.0
      %2696 = vmatprep.subr.mxu0 0.0
      %2697 = vmatpush1.msra.mxu0 0.0
      %2698 = vmatprep.subr.mxu0 0.0
      %2699 = vmatpush1.msra.mxu0 0.0
      %2700 = vmatprep.subr.mxu0 0.0
      %2701 = vmatpush1.msra.mxu0 0.0
      %2702 = vmatprep.subr.mxu0 0.0
      %2703 = vmatpush1.msra.mxu0 0.0
      %2704 = vmatprep.subr.mxu0 0.0
      %2705 = vmatpush1.msra.mxu0 0.0
      %2706 = vmatprep.subr.mxu0 0.0
      %2707 = vmatpush1.msra.mxu0 0.0
      %2708 = vmatprep.subr.mxu0 0.0
      %2709 = vmatpush1.msra.mxu0 0.0
      %2710 = vmatprep.subr.mxu0 0.0
      %2711 = vmatpush1.msra.mxu0 0.0
      %2712 = vmatprep.subr.mxu0 0.0
      %2713 = vmatpush1.msra.mxu0 0.0
      %2714 = vmatprep.subr.mxu0 0.0
      %2715 = vmatpush1.msra.mxu0 0.0
      %2716 = vmatprep.subr.mxu0 0.0
      %2717 = vmatpush1.msra.mxu0 0.0
      %2718 = vmatprep.subr.mxu0 0.0
      %2719 = vmatpush1.msra.mxu0 0.0
      %2720 = vmatprep.subr.mxu0 0.0
      %2721 = vmatpush1.msra.mxu0 0.0
      %2722 = vmatprep.subr.mxu0 0.0
      %2723 = vmatpush1.msra.mxu0 0.0
      %2724 = vmatprep.subr.mxu0 0.0
      %2725 = vmatpush1.msra.mxu0 0.0
      %2726 = vmatprep.subr.mxu0 0.0
      %2727 = vmatpush1.msra.mxu0 0.0
      %2728 = vmatprep.mubr.f32.mxu0 0.0
      %2729 = vmatmul.mubr.f32.gmra.mrb[0].mxu0 %v2579
      %v2730 = vpop.f32.mrb[0].mxu0
      %v2731 = vadd.f32 0.0, %v2730
      %v2732 = vpop.f32.mrb[0].mxu0
      %v2733 = vadd.f32 0.0, %v2732
      %2734 = vdwg.mxu0
      %v2735 = vadd.f32 %v2518, %v2660
      %v2736 = vadd.f32 %v2519, %v2662
      %v2737 = vadd.f32 %v2520, %v2731
      %v2738 = vadd.f32 %v2521, %v2733
      %v2739 = vld [vmem:[#allocation2] sm:$0xff]
      %v2740 = vld [vmem:[#allocation2 + $0x8] sm:$0xff]
      %v2741 = vld [vmem:[#allocation2 + $0x10] sm:$0xf]
      %v2742 = vsel %vm2525, 1, 0
      %v2743 = vlaneseq
      %v2744 = vshrl.u32 %v2743, 7
      %v2745 = vsub.s32 0, %v2744
      %v2746 = vrot.slane %v2742, %v2745
      %v2747 = vlaneseq
      %v2748 = vshrl.u32 %v2747, 7
      %v2749 = vsub.s32 1, %v2748
      %v2750 = vrot.slane %v2742, %v2749
      %v2751 = vlaneseq
      %v2752 = vshrl.u32 %v2751, 7
      %v2753 = vsub.s32 2, %v2752
      %v2754 = vrot.slane %v2742, %v2753
      %v2755 = vlaneseq
      %v2756 = vshrl.u32 %v2755, 7
      %v2757 = vsub.s32 3, %v2756
      %v2758 = vrot.slane %v2742, %v2757
      %vm2759 = vcmp.eq.s32.totalorder %v2746, 1
      %vm2760 = vcmp.eq.s32.totalorder %v2750, 1
      %vm2761 = vcmp.eq.s32.totalorder %v2754, 1
      %vm2762 = vcmp.eq.s32.totalorder %v2758, 1
      %v2766 = vcombine.high %v2739, %v2739
      %v2767 = vcombine.high %v2740, %v2740
      %2768 = vrot.lane.b32.xlu0 %v2739, 64
      %v2769 = vpop.permute.xlu0 %2768
      %2770 = vrot.lane.b32.xlu0 %v2766, 64
      %v2771 = vpop.permute.xlu0 %2770
      %2772 = vrot.lane.b32.xlu0 %v2740, 64
      %v2773 = vpop.permute.xlu0 %2772
      %2774 = vrot.lane.b32.xlu0 %v2767, 64
      %v2775 = vpop.permute.xlu0 %2774
      %2776 = vrot.lane.b32.xlu0 %v2741, 64
      %v2777 = vpop.permute.xlu0 %2776
      %vm2778 = vcmask 523264
      %v2779 = vsel %vm2778, %v2769, %v2771
      %v2780 = vsel %vm2778, %v2771, %v2773
      %v2781 = vsel %vm2778, %v2773, %v2775
      %v2782 = vsel %vm2778, %v2775, %v2777
      %v2787 = vsel %vm2759, %v2779, 0.0
      %v2788 = vsel %vm2760, %v2780, 0.0
      %v2789 = vsel %vm2761, %v2781, 0.0
      %v2790 = vsel %vm2762, %v2782, 0.0
      %s2791 = scalar_lea.vmem %s5, 16
      %v2792 = vld [vmem:[%s2791] sm:$0xf]
      %v2794 = vsel %vm1991, %v2792, 0
      %v2797 = vsel %vm1830, %v2787, 0
      %v2800 = vsel %vm1830, %v2788, 0
      %v2803 = vsel %vm1830, %v2789, 0
      %v2806 = vsel %vm1830, %v2790, 0
      %2808 = vmatprep.subr.mxu0 %v2800
      %2809 = vmatpush1.msra.mxu0 %v2797
      %2810 = vmatprep.subr.mxu0 0.0
      %2811 = vmatpush1.msra.mxu0 0.0
      %2812 = vmatprep.subr.mxu0 0.0
      %2813 = vmatpush1.msra.mxu0 0.0
      %2814 = vmatprep.subr.mxu0 0.0
      %2815 = vmatpush1.msra.mxu0 0.0
      %2816 = vmatprep.subr.mxu0 0.0
      %2817 = vmatpush1.msra.mxu0 0.0
      %2818 = vmatprep.subr.mxu0 0.0
      %2819 = vmatpush1.msra.mxu0 0.0
      %2820 = vmatprep.subr.mxu0 0.0
      %2821 = vmatpush1.msra.mxu0 0.0
      %2822 = vmatprep.subr.mxu0 0.0
      %2823 = vmatpush1.msra.mxu0 0.0
      %2824 = vmatprep.subr.mxu0 0.0
      %2825 = vmatpush1.msra.mxu0 0.0
      %2826 = vmatprep.subr.mxu0 0.0
      %2827 = vmatpush1.msra.mxu0 0.0
      %2828 = vmatprep.subr.mxu0 0.0
      %2829 = vmatpush1.msra.mxu0 0.0
      %2830 = vmatprep.subr.mxu0 0.0
      %2831 = vmatpush1.msra.mxu0 0.0
      %2832 = vmatprep.subr.mxu0 0.0
      %2833 = vmatpush1.msra.mxu0 0.0
      %2834 = vmatprep.subr.mxu0 0.0
      %2835 = vmatpush1.msra.mxu0 0.0
      %2836 = vmatprep.subr.mxu0 0.0
      %2837 = vmatpush1.msra.mxu0 0.0
      %2838 = vmatprep.subr.mxu0 0.0
      %2839 = vmatpush1.msra.mxu0 0.0
      %2840 = vmatprep.subr.mxu0 0.0
      %2841 = vmatpush1.msra.mxu0 0.0
      %2842 = vmatprep.subr.mxu0 0.0
      %2843 = vmatpush1.msra.mxu0 0.0
      %2844 = vmatprep.subr.mxu0 0.0
      %2845 = vmatpush1.msra.mxu0 0.0
      %2846 = vmatprep.subr.mxu0 0.0
      %2847 = vmatpush1.msra.mxu0 0.0
      %2848 = vmatprep.subr.mxu0 0.0
      %2849 = vmatpush1.msra.mxu0 0.0
      %2850 = vmatprep.subr.mxu0 0.0
      %2851 = vmatpush1.msra.mxu0 0.0
      %2852 = vmatprep.subr.mxu0 0.0
      %2853 = vmatpush1.msra.mxu0 0.0
      %2854 = vmatprep.subr.mxu0 0.0
      %2855 = vmatpush1.msra.mxu0 0.0
      %2856 = vmatprep.subr.mxu0 0.0
      %2857 = vmatpush1.msra.mxu0 0.0
      %2858 = vmatprep.subr.mxu0 0.0
      %2859 = vmatpush1.msra.mxu0 0.0
      %2860 = vmatprep.subr.mxu0 0.0
      %2861 = vmatpush1.msra.mxu0 0.0
      %2862 = vmatprep.subr.mxu0 0.0
      %2863 = vmatpush1.msra.mxu0 0.0
      %2864 = vmatprep.subr.mxu0 0.0
      %2865 = vmatpush1.msra.mxu0 0.0
      %2866 = vmatprep.subr.mxu0 0.0
      %2867 = vmatpush1.msra.mxu0 0.0
      %2868 = vmatprep.subr.mxu0 0.0
      %2869 = vmatpush1.msra.mxu0 0.0
      %2870 = vmatprep.subr.mxu0 0.0
      %2871 = vmatpush1.msra.mxu0 0.0
      %2872 = vmatprep.mubr.f32.mxu0 0.0
      %2873 = vmatmul.mubr.f32.gmra.mrb[0].mxu0 %v2794
      %v2874 = vpop.f32.mrb[0].mxu0
      %v2875 = vadd.f32 0.0, %v2874
      %v2876 = vpop.f32.mrb[0].mxu0
      %v2877 = vadd.f32 0.0, %v2876
      %2878 = vdwg.mxu0
      %2879 = vmatprep.subr.mxu0 %v2806
      %2880 = vmatpush1.msra.mxu0 %v2803
      %2881 = vmatprep.subr.mxu0 0.0
      %2882 = vmatpush1.msra.mxu0 0.0
      %2883 = vmatprep.subr.mxu0 0.0
      %2884 = vmatpush1.msra.mxu0 0.0
      %2885 = vmatprep.subr.mxu0 0.0
      %2886 = vmatpush1.msra.mxu0 0.0
      %2887 = vmatprep.subr.mxu0 0.0
      %2888 = vmatpush1.msra.mxu0 0.0
      %2889 = vmatprep.subr.mxu0 0.0
      %2890 = vmatpush1.msra.mxu0 0.0
      %2891 = vmatprep.subr.mxu0 0.0
      %2892 = vmatpush1.msra.mxu0 0.0
      %2893 = vmatprep.subr.mxu0 0.0
      %2894 = vmatpush1.msra.mxu0 0.0
      %2895 = vmatprep.subr.mxu0 0.0
      %2896 = vmatpush1.msra.mxu0 0.0
      %2897 = vmatprep.subr.mxu0 0.0
      %2898 = vmatpush1.msra.mxu0 0.0
      %2899 = vmatprep.subr.mxu0 0.0
      %2900 = vmatpush1.msra.mxu0 0.0
      %2901 = vmatprep.subr.mxu0 0.0
      %2902 = vmatpush1.msra.mxu0 0.0
      %2903 = vmatprep.subr.mxu0 0.0
      %2904 = vmatpush1.msra.mxu0 0.0
      %2905 = vmatprep.subr.mxu0 0.0
      %2906 = vmatpush1.msra.mxu0 0.0
      %2907 = vmatprep.subr.mxu0 0.0
      %2908 = vmatpush1.msra.mxu0 0.0
      %2909 = vmatprep.subr.mxu0 0.0
      %2910 = vmatpush1.msra.mxu0 0.0
      %2911 = vmatprep.subr.mxu0 0.0
      %2912 = vmatpush1.msra.mxu0 0.0
      %2913 = vmatprep.subr.mxu0 0.0
      %2914 = vmatpush1.msra.mxu0 0.0
      %2915 = vmatprep.subr.mxu0 0.0
      %2916 = vmatpush1.msra.mxu0 0.0
      %2917 = vmatprep.subr.mxu0 0.0
      %2918 = vmatpush1.msra.mxu0 0.0
      %2919 = vmatprep.subr.mxu0 0.0
      %2920 = vmatpush1.msra.mxu0 0.0
      %2921 = vmatprep.subr.mxu0 0.0
      %2922 = vmatpush1.msra.mxu0 0.0
      %2923 = vmatprep.subr.mxu0 0.0
      %2924 = vmatpush1.msra.mxu0 0.0
      %2925 = vmatprep.subr.mxu0 0.0
      %2926 = vmatpush1.msra.mxu0 0.0
      %2927 = vmatprep.subr.mxu0 0.0
      %2928 = vmatpush1.msra.mxu0 0.0
      %2929 = vmatprep.subr.mxu0 0.0
      %2930 = vmatpush1.msra.mxu0 0.0
      %2931 = vmatprep.subr.mxu0 0.0
      %2932 = vmatpush1.msra.mxu0 0.0
      %2933 = vmatprep.subr.mxu0 0.0
      %2934 = vmatpush1.msra.mxu0 0.0
      %2935 = vmatprep.subr.mxu0 0.0
      %2936 = vmatpush1.msra.mxu0 0.0
      %2937 = vmatprep.subr.mxu0 0.0
      %2938 = vmatpush1.msra.mxu0 0.0
      %2939 = vmatprep.subr.mxu0 0.0
      %2940 = vmatpush1.msra.mxu0 0.0
      %2941 = vmatprep.subr.mxu0 0.0
      %2942 = vmatpush1.msra.mxu0 0.0
      %2943 = vmatprep.mubr.f32.mxu0 0.0
      %2944 = vmatmul.mubr.f32.gmra.mrb[0].mxu0 %v2794
      %v2945 = vpop.f32.mrb[0].mxu0
      %v2946 = vadd.f32 0.0, %v2945
      %v2947 = vpop.f32.mrb[0].mxu0
      %v2948 = vadd.f32 0.0, %v2947
      %2949 = vdwg.mxu0
      %v2950 = vadd.f32 %v2735, %v2875
      %v2951 = vadd.f32 %v2736, %v2877
      %v2952 = vadd.f32 %v2737, %v2946
      %v2953 = vadd.f32 %v2738, %v2948
      %v2954 = vld [vmem:[#allocation2] sm:$0xff]
      %v2955 = vld [vmem:[#allocation2 + $0x8] sm:$0xff]
      %v2956 = vld [vmem:[#allocation2 + $0x10] sm:$0xf]
      %vm2957 = vmand %vm2525, %vm1888
      %v2958 = vsel %vm2957, 1, 0
      %v2959 = vlaneseq
      %v2960 = vshrl.u32 %v2959, 7
      %v2961 = vsub.s32 0, %v2960
      %v2962 = vrot.slane %v2958, %v2961
      %v2963 = vlaneseq
      %v2964 = vshrl.u32 %v2963, 7
      %v2965 = vsub.s32 1, %v2964
      %v2966 = vrot.slane %v2958, %v2965
      %v2967 = vlaneseq
      %v2968 = vshrl.u32 %v2967, 7
      %v2969 = vsub.s32 2, %v2968
      %v2970 = vrot.slane %v2958, %v2969
      %v2971 = vlaneseq
      %v2972 = vshrl.u32 %v2971, 7
      %v2973 = vsub.s32 3, %v2972
      %v2974 = vrot.slane %v2958, %v2973
      %vm2975 = vcmp.eq.s32.totalorder %v2962, 1
      %vm2976 = vcmp.eq.s32.totalorder %v2966, 1
      %vm2977 = vcmp.eq.s32.totalorder %v2970, 1
      %vm2978 = vcmp.eq.s32.totalorder %v2974, 1
      %v2982 = vcombine.high %v2954, %v2954
      %v2983 = vcombine.high %v2955, %v2955
      %2984 = vrot.lane.b32.xlu0 %v2954, 63
      %v2985 = vpop.permute.xlu0 %2984
      %2986 = vrot.lane.b32.xlu0 %v2982, 63
      %v2987 = vpop.permute.xlu0 %2986
      %2988 = vrot.lane.b32.xlu0 %v2955, 63
      %v2989 = vpop.permute.xlu0 %2988
      %2990 = vrot.lane.b32.xlu0 %v2983, 63
      %v2991 = vpop.permute.xlu0 %2990
      %2992 = vrot.lane.b32.xlu0 %v2956, 63
      %v2993 = vpop.permute.xlu0 %2992
      %vm2994 = vcmask 515072
      %v2995 = vsel %vm2994, %v2985, %v2987
      %v2996 = vsel %vm2994, %v2987, %v2989
      %v2997 = vsel %vm2994, %v2989, %v2991
      %v2998 = vsel %vm2994, %v2991, %v2993
      %v3003 = vsel %vm2975, %v2995, 0.0
      %v3004 = vsel %vm2976, %v2996, 0.0
      %v3005 = vsel %vm2977, %v2997, 0.0
      %v3006 = vsel %vm2978, %v2998, 0.0
      %s3007 = scalar_lea.vmem %s5, 20
      %v3008 = vld [vmem:[%s3007] sm:$0xf]
      %v3010 = vsel %vm1991, %v3008, 0
      %v3013 = vsel %vm1830, %v3003, 0
      %v3016 = vsel %vm1830, %v3004, 0
      %v3019 = vsel %vm1830, %v3005, 0
      %v3022 = vsel %vm1830, %v3006, 0
      %3024 = vmatprep.subr.mxu0 %v3016
      %3025 = vmatpush1.msra.mxu0 %v3013
      %3026 = vmatprep.subr.mxu0 0.0
      %3027 = vmatpush1.msra.mxu0 0.0
      %3028 = vmatprep.subr.mxu0 0.0
      %3029 = vmatpush1.msra.mxu0 0.0
      %3030 = vmatprep.subr.mxu0 0.0
      %3031 = vmatpush1.msra.mxu0 0.0
      %3032 = vmatprep.subr.mxu0 0.0
      %3033 = vmatpush1.msra.mxu0 0.0
      %3034 = vmatprep.subr.mxu0 0.0
      %3035 = vmatpush1.msra.mxu0 0.0
      %3036 = vmatprep.subr.mxu0 0.0
      %3037 = vmatpush1.msra.mxu0 0.0
      %3038 = vmatprep.subr.mxu0 0.0
      %3039 = vmatpush1.msra.mxu0 0.0
      %3040 = vmatprep.subr.mxu0 0.0
      %3041 = vmatpush1.msra.mxu0 0.0
      %3042 = vmatprep.subr.mxu0 0.0
      %3043 = vmatpush1.msra.mxu0 0.0
      %3044 = vmatprep.subr.mxu0 0.0
      %3045 = vmatpush1.msra.mxu0 0.0
      %3046 = vmatprep.subr.mxu0 0.0
      %3047 = vmatpush1.msra.mxu0 0.0
      %3048 = vmatprep.subr.mxu0 0.0
      %3049 = vmatpush1.msra.mxu0 0.0
      %3050 = vmatprep.subr.mxu0 0.0
      %3051 = vmatpush1.msra.mxu0 0.0
      %3052 = vmatprep.subr.mxu0 0.0
      %3053 = vmatpush1.msra.mxu0 0.0
      %3054 = vmatprep.subr.mxu0 0.0
      %3055 = vmatpush1.msra.mxu0 0.0
      %3056 = vmatprep.subr.mxu0 0.0
      %3057 = vmatpush1.msra.mxu0 0.0
      %3058 = vmatprep.subr.mxu0 0.0
      %3059 = vmatpush1.msra.mxu0 0.0
      %3060 = vmatprep.subr.mxu0 0.0
      %3061 = vmatpush1.msra.mxu0 0.0
      %3062 = vmatprep.subr.mxu0 0.0
      %3063 = vmatpush1.msra.mxu0 0.0
      %3064 = vmatprep.subr.mxu0 0.0
      %3065 = vmatpush1.msra.mxu0 0.0
      %3066 = vmatprep.subr.mxu0 0.0
      %3067 = vmatpush1.msra.mxu0 0.0
      %3068 = vmatprep.subr.mxu0 0.0
      %3069 = vmatpush1.msra.mxu0 0.0
      %3070 = vmatprep.subr.mxu0 0.0
      %3071 = vmatpush1.msra.mxu0 0.0
      %3072 = vmatprep.subr.mxu0 0.0
      %3073 = vmatpush1.msra.mxu0 0.0
      %3074 = vmatprep.subr.mxu0 0.0
      %3075 = vmatpush1.msra.mxu0 0.0
      %3076 = vmatprep.subr.mxu0 0.0
      %3077 = vmatpush1.msra.mxu0 0.0
      %3078 = vmatprep.subr.mxu0 0.0
      %3079 = vmatpush1.msra.mxu0 0.0
      %3080 = vmatprep.subr.mxu0 0.0
      %3081 = vmatpush1.msra.mxu0 0.0
      %3082 = vmatprep.subr.mxu0 0.0
      %3083 = vmatpush1.msra.mxu0 0.0
      %3084 = vmatprep.subr.mxu0 0.0
      %3085 = vmatpush1.msra.mxu0 0.0
      %3086 = vmatprep.subr.mxu0 0.0
      %3087 = vmatpush1.msra.mxu0 0.0
      %3088 = vmatprep.mubr.f32.mxu0 0.0
      %3089 = vmatmul.mubr.f32.gmra.mrb[0].mxu0 %v3010
      %v3090 = vpop.f32.mrb[0].mxu0
      %v3091 = vadd.f32 0.0, %v3090
      %v3092 = vpop.f32.mrb[0].mxu0
      %v3093 = vadd.f32 0.0, %v3092
      %3094 = vdwg.mxu0
      %3095 = vmatprep.subr.mxu0 %v3022
      %3096 = vmatpush1.msra.mxu0 %v3019
      %3097 = vmatprep.subr.mxu0 0.0
      %3098 = vmatpush1.msra.mxu0 0.0
      %3099 = vmatprep.subr.mxu0 0.0
      %3100 = vmatpush1.msra.mxu0 0.0
      %3101 = vmatprep.subr.mxu0 0.0
      %3102 = vmatpush1.msra.mxu0 0.0
      %3103 = vmatprep.subr.mxu0 0.0
      %3104 = vmatpush1.msra.mxu0 0.0
      %3105 = vmatprep.subr.mxu0 0.0
      %3106 = vmatpush1.msra.mxu0 0.0
      %3107 = vmatprep.subr.mxu0 0.0
      %3108 = vmatpush1.msra.mxu0 0.0
      %3109 = vmatprep.subr.mxu0 0.0
      %3110 = vmatpush1.msra.mxu0 0.0
      %3111 = vmatprep.subr.mxu0 0.0
      %3112 = vmatpush1.msra.mxu0 0.0
      %3113 = vmatprep.subr.mxu0 0.0
      %3114 = vmatpush1.msra.mxu0 0.0
      %3115 = vmatprep.subr.mxu0 0.0
      %3116 = vmatpush1.msra.mxu0 0.0
      %3117 = vmatprep.subr.mxu0 0.0
      %3118 = vmatpush1.msra.mxu0 0.0
      %3119 = vmatprep.subr.mxu0 0.0
      %3120 = vmatpush1.msra.mxu0 0.0
      %3121 = vmatprep.subr.mxu0 0.0
      %3122 = vmatpush1.msra.mxu0 0.0
      %3123 = vmatprep.subr.mxu0 0.0
      %3124 = vmatpush1.msra.mxu0 0.0
      %3125 = vmatprep.subr.mxu0 0.0
      %3126 = vmatpush1.msra.mxu0 0.0
      %3127 = vmatprep.subr.mxu0 0.0
      %3128 = vmatpush1.msra.mxu0 0.0
      %3129 = vmatprep.subr.mxu0 0.0
      %3130 = vmatpush1.msra.mxu0 0.0
      %3131 = vmatprep.subr.mxu0 0.0
      %3132 = vmatpush1.msra.mxu0 0.0
      %3133 = vmatprep.subr.mxu0 0.0
      %3134 = vmatpush1.msra.mxu0 0.0
      %3135 = vmatprep.subr.mxu0 0.0
      %3136 = vmatpush1.msra.mxu0 0.0
      %3137 = vmatprep.subr.mxu0 0.0
      %3138 = vmatpush1.msra.mxu0 0.0
      %3139 = vmatprep.subr.mxu0 0.0
      %3140 = vmatpush1.msra.mxu0 0.0
      %3141 = vmatprep.subr.mxu0 0.0
      %3142 = vmatpush1.msra.mxu0 0.0
      %3143 = vmatprep.subr.mxu0 0.0
      %3144 = vmatpush1.msra.mxu0 0.0
      %3145 = vmatprep.subr.mxu0 0.0
      %3146 = vmatpush1.msra.mxu0 0.0
      %3147 = vmatprep.subr.mxu0 0.0
      %3148 = vmatpush1.msra.mxu0 0.0
      %3149 = vmatprep.subr.mxu0 0.0
      %3150 = vmatpush1.msra.mxu0 0.0
      %3151 = vmatprep.subr.mxu0 0.0
      %3152 = vmatpush1.msra.mxu0 0.0
      %3153 = vmatprep.subr.mxu0 0.0
      %3154 = vmatpush1.msra.mxu0 0.0
      %3155 = vmatprep.subr.mxu0 0.0
      %3156 = vmatpush1.msra.mxu0 0.0
      %3157 = vmatprep.subr.mxu0 0.0
      %3158 = vmatpush1.msra.mxu0 0.0
      %3159 = vmatprep.mubr.f32.mxu0 0.0
      %3160 = vmatmul.mubr.f32.gmra.mrb[0].mxu0 %v3010
      %v3161 = vpop.f32.mrb[0].mxu0
      %v3162 = vadd.f32 0.0, %v3161
      %v3163 = vpop.f32.mrb[0].mxu0
      %v3164 = vadd.f32 0.0, %v3163
      %3165 = vdwg.mxu0
      %v3166 = vadd.f32 %v2950, %v3091
      %v3167 = vadd.f32 %v2951, %v3093
      %v3168 = vadd.f32 %v2952, %v3162
      %v3169 = vadd.f32 %v2953, %v3164
      %v3170 = vld [vmem:[#allocation2] sm:$0xff]
      %v3171 = vld [vmem:[#allocation2 + $0x8] sm:$0xff]
      %v3172 = vld [vmem:[#allocation2 + $0x10] sm:$0xf]
      %vm3173 = vmand %vm1883, %vm1886
      %vm3174 = vmand %vm3173, %vm1887
      %v3175 = vsel %vm3174, 1, 0
      %v3176 = vlaneseq
      %v3177 = vshrl.u32 %v3176, 7
      %v3178 = vsub.s32 0, %v3177
      %v3179 = vrot.slane %v3175, %v3178
      %v3180 = vlaneseq
      %v3181 = vshrl.u32 %v3180, 7
      %v3182 = vsub.s32 1, %v3181
      %v3183 = vrot.slane %v3175, %v3182
      %v3184 = vlaneseq
      %v3185 = vshrl.u32 %v3184, 7
      %v3186 = vsub.s32 2, %v3185
      %v3187 = vrot.slane %v3175, %v3186
      %v3188 = vlaneseq
      %v3189 = vshrl.u32 %v3188, 7
      %v3190 = vsub.s32 3, %v3189
      %v3191 = vrot.slane %v3175, %v3190
      %vm3192 = vcmp.eq.s32.totalorder %v3179, 1
      %vm3193 = vcmp.eq.s32.totalorder %v3183, 1
      %vm3194 = vcmp.eq.s32.totalorder %v3187, 1
      %vm3195 = vcmp.eq.s32.totalorder %v3191, 1
      %v3199 = vcombine.high %v3170, %v3170
      %v3200 = vcombine.high %v3171, %v3171
      %3201 = vrot.lane.b32.xlu0 %v3170, 57
      %v3202 = vpop.permute.xlu0 %3201
      %3203 = vrot.lane.b32.xlu0 %v3199, 57
      %v3204 = vpop.permute.xlu0 %3203
      %3205 = vrot.lane.b32.xlu0 %v3171, 57
      %v3206 = vpop.permute.xlu0 %3205
      %3207 = vrot.lane.b32.xlu0 %v3200, 57
      %v3208 = vpop.permute.xlu0 %3207
      %3209 = vrot.lane.b32.xlu0 %v3172, 57
      %v3210 = vpop.permute.xlu0 %3209
      %vm3211 = vcmask 465920
      %v3212 = vsel %vm3211, %v3202, %v3204
      %v3213 = vsel %vm3211, %v3204, %v3206
      %v3214 = vsel %vm3211, %v3206, %v3208
      %v3215 = vsel %vm3211, %v3208, %v3210
      %v3220 = vsel %vm3192, %v3212, 0.0
      %v3221 = vsel %vm3193, %v3213, 0.0
      %v3222 = vsel %vm3194, %v3214, 0.0
      %v3223 = vsel %vm3195, %v3215, 0.0
      %s3224 = scalar_lea.vmem %s5, 24
      %v3225 = vld [vmem:[%s3224] sm:$0xf]
      %v3227 = vsel %vm1991, %v3225, 0
      %v3230 = vsel %vm1830, %v3220, 0
      %v3233 = vsel %vm1830, %v3221, 0
      %v3236 = vsel %vm1830, %v3222, 0
      %v3239 = vsel %vm1830, %v3223, 0
      %3241 = vmatprep.subr.mxu0 %v3233
      %3242 = vmatpush1.msra.mxu0 %v3230
      %3243 = vmatprep.subr.mxu0 0.0
      %3244 = vmatpush1.msra.mxu0 0.0
      %3245 = vmatprep.subr.mxu0 0.0
      %3246 = vmatpush1.msra.mxu0 0.0
      %3247 = vmatprep.subr.mxu0 0.0
      %3248 = vmatpush1.msra.mxu0 0.0
      %3249 = vmatprep.subr.mxu0 0.0
      %3250 = vmatpush1.msra.mxu0 0.0
      %3251 = vmatprep.subr.mxu0 0.0
      %3252 = vmatpush1.msra.mxu0 0.0
      %3253 = vmatprep.subr.mxu0 0.0
      %3254 = vmatpush1.msra.mxu0 0.0
      %3255 = vmatprep.subr.mxu0 0.0
      %3256 = vmatpush1.msra.mxu0 0.0
      %3257 = vmatprep.subr.mxu0 0.0
      %3258 = vmatpush1.msra.mxu0 0.0
      %3259 = vmatprep.subr.mxu0 0.0
      %3260 = vmatpush1.msra.mxu0 0.0
      %3261 = vmatprep.subr.mxu0 0.0
      %3262 = vmatpush1.msra.mxu0 0.0
      %3263 = vmatprep.subr.mxu0 0.0
      %3264 = vmatpush1.msra.mxu0 0.0
      %3265 = vmatprep.subr.mxu0 0.0
      %3266 = vmatpush1.msra.mxu0 0.0
      %3267 = vmatprep.subr.mxu0 0.0
      %3268 = vmatpush1.msra.mxu0 0.0
      %3269 = vmatprep.subr.mxu0 0.0
      %3270 = vmatpush1.msra.mxu0 0.0
      %3271 = vmatprep.subr.mxu0 0.0
      %3272 = vmatpush1.msra.mxu0 0.0
      %3273 = vmatprep.subr.mxu0 0.0
      %3274 = vmatpush1.msra.mxu0 0.0
      %3275 = vmatprep.subr.mxu0 0.0
      %3276 = vmatpush1.msra.mxu0 0.0
      %3277 = vmatprep.subr.mxu0 0.0
      %3278 = vmatpush1.msra.mxu0 0.0
      %3279 = vmatprep.subr.mxu0 0.0
      %3280 = vmatpush1.msra.mxu0 0.0
      %3281 = vmatprep.subr.mxu0 0.0
      %3282 = vmatpush1.msra.mxu0 0.0
      %3283 = vmatprep.subr.mxu0 0.0
      %3284 = vmatpush1.msra.mxu0 0.0
      %3285 = vmatprep.subr.mxu0 0.0
      %3286 = vmatpush1.msra.mxu0 0.0
      %3287 = vmatprep.subr.mxu0 0.0
      %3288 = vmatpush1.msra.mxu0 0.0
      %3289 = vmatprep.subr.mxu0 0.0
      %3290 = vmatpush1.msra.mxu0 0.0
      %3291 = vmatprep.subr.mxu0 0.0
      %3292 = vmatpush1.msra.mxu0 0.0
      %3293 = vmatprep.subr.mxu0 0.0
      %3294 = vmatpush1.msra.mxu0 0.0
      %3295 = vmatprep.subr.mxu0 0.0
      %3296 = vmatpush1.msra.mxu0 0.0
      %3297 = vmatprep.subr.mxu0 0.0
      %3298 = vmatpush1.msra.mxu0 0.0
      %3299 = vmatprep.subr.mxu0 0.0
      %3300 = vmatpush1.msra.mxu0 0.0
      %3301 = vmatprep.subr.mxu0 0.0
      %3302 = vmatpush1.msra.mxu0 0.0
      %3303 = vmatprep.subr.mxu0 0.0
      %3304 = vmatpush1.msra.mxu0 0.0
      %3305 = vmatprep.mubr.f32.mxu0 0.0
      %3306 = vmatmul.mubr.f32.gmra.mrb[0].mxu0 %v3227
      %v3307 = vpop.f32.mrb[0].mxu0
      %v3308 = vadd.f32 0.0, %v3307
      %v3309 = vpop.f32.mrb[0].mxu0
      %v3310 = vadd.f32 0.0, %v3309
      %3311 = vdwg.mxu0
      %3312 = vmatprep.subr.mxu0 %v3239
      %3313 = vmatpush1.msra.mxu0 %v3236
      %3314 = vmatprep.subr.mxu0 0.0
      %3315 = vmatpush1.msra.mxu0 0.0
      %3316 = vmatprep.subr.mxu0 0.0
      %3317 = vmatpush1.msra.mxu0 0.0
      %3318 = vmatprep.subr.mxu0 0.0
      %3319 = vmatpush1.msra.mxu0 0.0
      %3320 = vmatprep.subr.mxu0 0.0
      %3321 = vmatpush1.msra.mxu0 0.0
      %3322 = vmatprep.subr.mxu0 0.0
      %3323 = vmatpush1.msra.mxu0 0.0
      %3324 = vmatprep.subr.mxu0 0.0
      %3325 = vmatpush1.msra.mxu0 0.0
      %3326 = vmatprep.subr.mxu0 0.0
      %3327 = vmatpush1.msra.mxu0 0.0
      %3328 = vmatprep.subr.mxu0 0.0
      %3329 = vmatpush1.msra.mxu0 0.0
      %3330 = vmatprep.subr.mxu0 0.0
      %3331 = vmatpush1.msra.mxu0 0.0
      %3332 = vmatprep.subr.mxu0 0.0
      %3333 = vmatpush1.msra.mxu0 0.0
      %3334 = vmatprep.subr.mxu0 0.0
      %3335 = vmatpush1.msra.mxu0 0.0
      %3336 = vmatprep.subr.mxu0 0.0
      %3337 = vmatpush1.msra.mxu0 0.0
      %3338 = vmatprep.subr.mxu0 0.0
      %3339 = vmatpush1.msra.mxu0 0.0
      %3340 = vmatprep.subr.mxu0 0.0
      %3341 = vmatpush1.msra.mxu0 0.0
      %3342 = vmatprep.subr.mxu0 0.0
      %3343 = vmatpush1.msra.mxu0 0.0
      %3344 = vmatprep.subr.mxu0 0.0
      %3345 = vmatpush1.msra.mxu0 0.0
      %3346 = vmatprep.subr.mxu0 0.0
      %3347 = vmatpush1.msra.mxu0 0.0
      %3348 = vmatprep.subr.mxu0 0.0
      %3349 = vmatpush1.msra.mxu0 0.0
      %3350 = vmatprep.subr.mxu0 0.0
      %3351 = vmatpush1.msra.mxu0 0.0
      %3352 = vmatprep.subr.mxu0 0.0
      %3353 = vmatpush1.msra.mxu0 0.0
      %3354 = vmatprep.subr.mxu0 0.0
      %3355 = vmatpush1.msra.mxu0 0.0
      %3356 = vmatprep.subr.mxu0 0.0
      %3357 = vmatpush1.msra.mxu0 0.0
      %3358 = vmatprep.subr.mxu0 0.0
      %3359 = vmatpush1.msra.mxu0 0.0
      %3360 = vmatprep.subr.mxu0 0.0
      %3361 = vmatpush1.msra.mxu0 0.0
      %3362 = vmatprep.subr.mxu0 0.0
      %3363 = vmatpush1.msra.mxu0 0.0
      %3364 = vmatprep.subr.mxu0 0.0
      %3365 = vmatpush1.msra.mxu0 0.0
      %3366 = vmatprep.subr.mxu0 0.0
      %3367 = vmatpush1.msra.mxu0 0.0
      %3368 = vmatprep.subr.mxu0 0.0
      %3369 = vmatpush1.msra.mxu0 0.0
      %3370 = vmatprep.subr.mxu0 0.0
      %3371 = vmatpush1.msra.mxu0 0.0
      %3372 = vmatprep.subr.mxu0 0.0
      %3373 = vmatpush1.msra.mxu0 0.0
      %3374 = vmatprep.subr.mxu0 0.0
      %3375 = vmatpush1.msra.mxu0 0.0
      %3376 = vmatprep.mubr.f32.mxu0 0.0
      %3377 = vmatmul.mubr.f32.gmra.mrb[0].mxu0 %v3227
      %v3378 = vpop.f32.mrb[0].mxu0
      %v3379 = vadd.f32 0.0, %v3378
      %v3380 = vpop.f32.mrb[0].mxu0
      %v3381 = vadd.f32 0.0, %v3380
      %3382 = vdwg.mxu0
      %v3383 = vadd.f32 %v3166, %v3308
      %v3384 = vadd.f32 %v3167, %v3310
      %v3385 = vadd.f32 %v3168, %v3379
      %v3386 = vadd.f32 %v3169, %v3381
      %v3387 = vld [vmem:[#allocation2] sm:$0xff]
      %v3388 = vld [vmem:[#allocation2 + $0x8] sm:$0xff]
      %v3389 = vld [vmem:[#allocation2 + $0x10] sm:$0xf]
      %vm3390 = vmand %vm3173, %vm1882
      %v3391 = vsel %vm3390, 1, 0
      %v3392 = vlaneseq
      %v3393 = vshrl.u32 %v3392, 7
      %v3394 = vsub.s32 0, %v3393
      %v3395 = vrot.slane %v3391, %v3394
      %v3396 = vlaneseq
      %v3397 = vshrl.u32 %v3396, 7
      %v3398 = vsub.s32 1, %v3397
      %v3399 = vrot.slane %v3391, %v3398
      %v3400 = vlaneseq
      %v3401 = vshrl.u32 %v3400, 7
      %v3402 = vsub.s32 2, %v3401
      %v3403 = vrot.slane %v3391, %v3402
      %v3404 = vlaneseq
      %v3405 = vshrl.u32 %v3404, 7
      %v3406 = vsub.s32 3, %v3405
      %v3407 = vrot.slane %v3391, %v3406
      %vm3408 = vcmp.eq.s32.totalorder %v3395, 1
      %vm3409 = vcmp.eq.s32.totalorder %v3399, 1
      %vm3410 = vcmp.eq.s32.totalorder %v3403, 1
      %vm3411 = vcmp.eq.s32.totalorder %v3407, 1
      %v3415 = vcombine.high %v3387, %v3387
      %v3416 = vcombine.high %v3388, %v3388
      %3417 = vrot.lane.b32.xlu0 %v3387, 56
      %v3418 = vpop.permute.xlu0 %3417
      %3419 = vrot.lane.b32.xlu0 %v3415, 56
      %v3420 = vpop.permute.xlu0 %3419
      %3421 = vrot.lane.b32.xlu0 %v3388, 56
      %v3422 = vpop.permute.xlu0 %3421
      %3423 = vrot.lane.b32.xlu0 %v3416, 56
      %v3424 = vpop.permute.xlu0 %3423
      %3425 = vrot.lane.b32.xlu0 %v3389, 56
      %v3426 = vpop.permute.xlu0 %3425
      %vm3427 = vcmask 457728
      %v3428 = vsel %vm3427, %v3418, %v3420
      %v3429 = vsel %vm3427, %v3420, %v3422
      %v3430 = vsel %vm3427, %v3422, %v3424
      %v3431 = vsel %vm3427, %v3424, %v3426
      %v3436 = vsel %vm3408, %v3428, 0.0
      %v3437 = vsel %vm3409, %v3429, 0.0
      %v3438 = vsel %vm3410, %v3430, 0.0
      %v3439 = vsel %vm3411, %v3431, 0.0
      %s3440 = scalar_lea.vmem %s5, 28
      %v3441 = vld [vmem:[%s3440] sm:$0xf]
      %v3443 = vsel %vm1991, %v3441, 0
      %v3446 = vsel %vm1830, %v3436, 0
      %v3449 = vsel %vm1830, %v3437, 0
      %v3452 = vsel %vm1830, %v3438, 0
      %v3455 = vsel %vm1830, %v3439, 0
      %3457 = vmatprep.subr.mxu0 %v3449
      %3458 = vmatpush1.msra.mxu0 %v3446
      %3459 = vmatprep.subr.mxu0 0.0
      %3460 = vmatpush1.msra.mxu0 0.0
      %3461 = vmatprep.subr.mxu0 0.0
      %3462 = vmatpush1.msra.mxu0 0.0
      %3463 = vmatprep.subr.mxu0 0.0
      %3464 = vmatpush1.msra.mxu0 0.0
      %3465 = vmatprep.subr.mxu0 0.0
      %3466 = vmatpush1.msra.mxu0 0.0
      %3467 = vmatprep.subr.mxu0 0.0
      %3468 = vmatpush1.msra.mxu0 0.0
      %3469 = vmatprep.subr.mxu0 0.0
      %3470 = vmatpush1.msra.mxu0 0.0
      %3471 = vmatprep.subr.mxu0 0.0
      %3472 = vmatpush1.msra.mxu0 0.0
      %3473 = vmatprep.subr.mxu0 0.0
      %3474 = vmatpush1.msra.mxu0 0.0
      %3475 = vmatprep.subr.mxu0 0.0
      %3476 = vmatpush1.msra.mxu0 0.0
      %3477 = vmatprep.subr.mxu0 0.0
      %3478 = vmatpush1.msra.mxu0 0.0
      %3479 = vmatprep.subr.mxu0 0.0
      %3480 = vmatpush1.msra.mxu0 0.0
      %3481 = vmatprep.subr.mxu0 0.0
      %3482 = vmatpush1.msra.mxu0 0.0
      %3483 = vmatprep.subr.mxu0 0.0
      %3484 = vmatpush1.msra.mxu0 0.0
      %3485 = vmatprep.subr.mxu0 0.0
      %3486 = vmatpush1.msra.mxu0 0.0
      %3487 = vmatprep.subr.mxu0 0.0
      %3488 = vmatpush1.msra.mxu0 0.0
      %3489 = vmatprep.subr.mxu0 0.0
      %3490 = vmatpush1.msra.mxu0 0.0
      %3491 = vmatprep.subr.mxu0 0.0
      %3492 = vmatpush1.msra.mxu0 0.0
      %3493 = vmatprep.subr.mxu0 0.0
      %3494 = vmatpush1.msra.mxu0 0.0
      %3495 = vmatprep.subr.mxu0 0.0
      %3496 = vmatpush1.msra.mxu0 0.0
      %3497 = vmatprep.subr.mxu0 0.0
      %3498 = vmatpush1.msra.mxu0 0.0
      %3499 = vmatprep.subr.mxu0 0.0
      %3500 = vmatpush1.msra.mxu0 0.0
      %3501 = vmatprep.subr.mxu0 0.0
      %3502 = vmatpush1.msra.mxu0 0.0
      %3503 = vmatprep.subr.mxu0 0.0
      %3504 = vmatpush1.msra.mxu0 0.0
      %3505 = vmatprep.subr.mxu0 0.0
      %3506 = vmatpush1.msra.mxu0 0.0
      %3507 = vmatprep.subr.mxu0 0.0
      %3508 = vmatpush1.msra.mxu0 0.0
      %3509 = vmatprep.subr.mxu0 0.0
      %3510 = vmatpush1.msra.mxu0 0.0
      %3511 = vmatprep.subr.mxu0 0.0
      %3512 = vmatpush1.msra.mxu0 0.0
      %3513 = vmatprep.subr.mxu0 0.0
      %3514 = vmatpush1.msra.mxu0 0.0
      %3515 = vmatprep.subr.mxu0 0.0
      %3516 = vmatpush1.msra.mxu0 0.0
      %3517 = vmatprep.subr.mxu0 0.0
      %3518 = vmatpush1.msra.mxu0 0.0
      %3519 = vmatprep.subr.mxu0 0.0
      %3520 = vmatpush1.msra.mxu0 0.0
      %3521 = vmatprep.mubr.f32.mxu0 0.0
      %3522 = vmatmul.mubr.f32.gmra.mrb[0].mxu0 %v3443
      %v3523 = vpop.f32.mrb[0].mxu0
      %v3524 = vadd.f32 0.0, %v3523
      %v3525 = vpop.f32.mrb[0].mxu0
      %v3526 = vadd.f32 0.0, %v3525
      %3527 = vdwg.mxu0
      %3528 = vmatprep.subr.mxu0 %v3455
      %3529 = vmatpush1.msra.mxu0 %v3452
      %3530 = vmatprep.subr.mxu0 0.0
      %3531 = vmatpush1.msra.mxu0 0.0
      %3532 = vmatprep.subr.mxu0 0.0
      %3533 = vmatpush1.msra.mxu0 0.0
      %3534 = vmatprep.subr.mxu0 0.0
      %3535 = vmatpush1.msra.mxu0 0.0
      %3536 = vmatprep.subr.mxu0 0.0
      %3537 = vmatpush1.msra.mxu0 0.0
      %3538 = vmatprep.subr.mxu0 0.0
      %3539 = vmatpush1.msra.mxu0 0.0
      %3540 = vmatprep.subr.mxu0 0.0
      %3541 = vmatpush1.msra.mxu0 0.0
      %3542 = vmatprep.subr.mxu0 0.0
      %3543 = vmatpush1.msra.mxu0 0.0
      %3544 = vmatprep.subr.mxu0 0.0
      %3545 = vmatpush1.msra.mxu0 0.0
      %3546 = vmatprep.subr.mxu0 0.0
      %3547 = vmatpush1.msra.mxu0 0.0
      %3548 = vmatprep.subr.mxu0 0.0
      %3549 = vmatpush1.msra.mxu0 0.0
      %3550 = vmatprep.subr.mxu0 0.0
      %3551 = vmatpush1.msra.mxu0 0.0
      %3552 = vmatprep.subr.mxu0 0.0
      %3553 = vmatpush1.msra.mxu0 0.0
      %3554 = vmatprep.subr.mxu0 0.0
      %3555 = vmatpush1.msra.mxu0 0.0
      %3556 = vmatprep.subr.mxu0 0.0
      %3557 = vmatpush1.msra.mxu0 0.0
      %3558 = vmatprep.subr.mxu0 0.0
      %3559 = vmatpush1.msra.mxu0 0.0
      %3560 = vmatprep.subr.mxu0 0.0
      %3561 = vmatpush1.msra.mxu0 0.0
      %3562 = vmatprep.subr.mxu0 0.0
      %3563 = vmatpush1.msra.mxu0 0.0
      %3564 = vmatprep.subr.mxu0 0.0
      %3565 = vmatpush1.msra.mxu0 0.0
      %3566 = vmatprep.subr.mxu0 0.0
      %3567 = vmatpush1.msra.mxu0 0.0
      %3568 = vmatprep.subr.mxu0 0.0
      %3569 = vmatpush1.msra.mxu0 0.0
      %3570 = vmatprep.subr.mxu0 0.0
      %3571 = vmatpush1.msra.mxu0 0.0
      %3572 = vmatprep.subr.mxu0 0.0
      %3573 = vmatpush1.msra.mxu0 0.0
      %3574 = vmatprep.subr.mxu0 0.0
      %3575 = vmatpush1.msra.mxu0 0.0
      %3576 = vmatprep.subr.mxu0 0.0
      %3577 = vmatpush1.msra.mxu0 0.0
      %3578 = vmatprep.subr.mxu0 0.0
      %3579 = vmatpush1.msra.mxu0 0.0
      %3580 = vmatprep.subr.mxu0 0.0
      %3581 = vmatpush1.msra.mxu0 0.0
      %3582 = vmatprep.subr.mxu0 0.0
      %3583 = vmatpush1.msra.mxu0 0.0
      %3584 = vmatprep.subr.mxu0 0.0
      %3585 = vmatpush1.msra.mxu0 0.0
      %3586 = vmatprep.subr.mxu0 0.0
      %3587 = vmatpush1.msra.mxu0 0.0
      %3588 = vmatprep.subr.mxu0 0.0
      %3589 = vmatpush1.msra.mxu0 0.0
      %3590 = vmatprep.subr.mxu0 0.0
      %3591 = vmatpush1.msra.mxu0 0.0
      %3592 = vmatprep.mubr.f32.mxu0 0.0
      %3593 = vmatmul.mubr.f32.gmra.mrb[0].mxu0 %v3443
      %v3594 = vpop.f32.mrb[0].mxu0
      %v3595 = vadd.f32 0.0, %v3594
      %v3596 = vpop.f32.mrb[0].mxu0
      %v3597 = vadd.f32 0.0, %v3596
      %3598 = vdwg.mxu0
      %v3599 = vadd.f32 %v3383, %v3524
      %v3600 = vadd.f32 %v3384, %v3526
      %v3601 = vadd.f32 %v3385, %v3595
      %v3602 = vadd.f32 %v3386, %v3597
      %v3603 = vld [vmem:[#allocation2] sm:$0xff]
      %v3604 = vld [vmem:[#allocation2 + $0x8] sm:$0xff]
      %v3605 = vld [vmem:[#allocation2 + $0x10] sm:$0xf]
      %vm3606 = vmand %vm3173, %vm1888
      %v3607 = vsel %vm3606, 1, 0
      %v3608 = vlaneseq
      %v3609 = vshrl.u32 %v3608, 7
      %v3610 = vsub.s32 0, %v3609
      %v3611 = vrot.slane %v3607, %v3610
      %v3612 = vlaneseq
      %v3613 = vshrl.u32 %v3612, 7
      %v3614 = vsub.s32 1, %v3613
      %v3615 = vrot.slane %v3607, %v3614
      %v3616 = vlaneseq
      %v3617 = vshrl.u32 %v3616, 7
      %v3618 = vsub.s32 2, %v3617
      %v3619 = vrot.slane %v3607, %v3618
      %v3620 = vlaneseq
      %v3621 = vshrl.u32 %v3620, 7
      %v3622 = vsub.s32 3, %v3621
      %v3623 = vrot.slane %v3607, %v3622
      %vm3624 = vcmp.eq.s32.totalorder %v3611, 1
      %vm3625 = vcmp.eq.s32.totalorder %v3615, 1
      %vm3626 = vcmp.eq.s32.totalorder %v3619, 1
      %vm3627 = vcmp.eq.s32.totalorder %v3623, 1
      %v3631 = vcombine.high %v3603, %v3603
      %v3632 = vcombine.high %v3604, %v3604
      %3633 = vrot.lane.b32.xlu0 %v3603, 55
      %v3634 = vpop.permute.xlu0 %3633
      %3635 = vrot.lane.b32.xlu0 %v3631, 55
      %v3636 = vpop.permute.xlu0 %3635
      %3637 = vrot.lane.b32.xlu0 %v3604, 55
      %v3638 = vpop.permute.xlu0 %3637
      %3639 = vrot.lane.b32.xlu0 %v3632, 55
      %v3640 = vpop.permute.xlu0 %3639
      %3641 = vrot.lane.b32.xlu0 %v3605, 55
      %v3642 = vpop.permute.xlu0 %3641
      %vm3643 = vcmask 449536
      %v3644 = vsel %vm3643, %v3634, %v3636
      %v3645 = vsel %vm3643, %v3636, %v3638
      %v3646 = vsel %vm3643, %v3638, %v3640
      %v3647 = vsel %vm3643, %v3640, %v3642
      %v3652 = vsel %vm3624, %v3644, 0.0
      %v3653 = vsel %vm3625, %v3645, 0.0
      %v3654 = vsel %vm3626, %v3646, 0.0
      %v3655 = vsel %vm3627, %v3647, 0.0
      %s3656 = scalar_lea.vmem %s5, 32
      %v3657 = vld [vmem:[%s3656] sm:$0xf]
      %v3659 = vsel %vm1991, %v3657, 0
      %v3662 = vsel %vm1830, %v3652, 0
      %v3665 = vsel %vm1830, %v3653, 0
      %v3668 = vsel %vm1830, %v3654, 0
      %v3671 = vsel %vm1830, %v3655, 0
      %3673 = vmatprep.subr.mxu0 %v3665
      %3674 = vmatpush1.msra.mxu0 %v3662
      %3675 = vmatprep.subr.mxu0 0.0
      %3676 = vmatpush1.msra.mxu0 0.0
      %3677 = vmatprep.subr.mxu0 0.0
      %3678 = vmatpush1.msra.mxu0 0.0
      %3679 = vmatprep.subr.mxu0 0.0
      %3680 = vmatpush1.msra.mxu0 0.0
      %3681 = vmatprep.subr.mxu0 0.0
      %3682 = vmatpush1.msra.mxu0 0.0
      %3683 = vmatprep.subr.mxu0 0.0
      %3684 = vmatpush1.msra.mxu0 0.0
      %3685 = vmatprep.subr.mxu0 0.0
      %3686 = vmatpush1.msra.mxu0 0.0
      %3687 = vmatprep.subr.mxu0 0.0
      %3688 = vmatpush1.msra.mxu0 0.0
      %3689 = vmatprep.subr.mxu0 0.0
      %3690 = vmatpush1.msra.mxu0 0.0
      %3691 = vmatprep.subr.mxu0 0.0
      %3692 = vmatpush1.msra.mxu0 0.0
      %3693 = vmatprep.subr.mxu0 0.0
      %3694 = vmatpush1.msra.mxu0 0.0
      %3695 = vmatprep.subr.mxu0 0.0
      %3696 = vmatpush1.msra.mxu0 0.0
      %3697 = vmatprep.subr.mxu0 0.0
      %3698 = vmatpush1.msra.mxu0 0.0
      %3699 = vmatprep.subr.mxu0 0.0
      %3700 = vmatpush1.msra.mxu0 0.0
      %3701 = vmatprep.subr.mxu0 0.0
      %3702 = vmatpush1.msra.mxu0 0.0
      %3703 = vmatprep.subr.mxu0 0.0
      %3704 = vmatpush1.msra.mxu0 0.0
      %3705 = vmatprep.subr.mxu0 0.0
      %3706 = vmatpush1.msra.mxu0 0.0
      %3707 = vmatprep.subr.mxu0 0.0
      %3708 = vmatpush1.msra.mxu0 0.0
      %3709 = vmatprep.subr.mxu0 0.0
      %3710 = vmatpush1.msra.mxu0 0.0
      %3711 = vmatprep.subr.mxu0 0.0
      %3712 = vmatpush1.msra.mxu0 0.0
      %3713 = vmatprep.subr.mxu0 0.0
      %3714 = vmatpush1.msra.mxu0 0.0
      %3715 = vmatprep.subr.mxu0 0.0
      %3716 = vmatpush1.msra.mxu0 0.0
      %3717 = vmatprep.subr.mxu0 0.0
      %3718 = vmatpush1.msra.mxu0 0.0
      %3719 = vmatprep.subr.mxu0 0.0
      %3720 = vmatpush1.msra.mxu0 0.0
      %3721 = vmatprep.subr.mxu0 0.0
      %3722 = vmatpush1.msra.mxu0 0.0
      %3723 = vmatprep.subr.mxu0 0.0
      %3724 = vmatpush1.msra.mxu0 0.0
      %3725 = vmatprep.subr.mxu0 0.0
      %3726 = vmatpush1.msra.mxu0 0.0
      %3727 = vmatprep.subr.mxu0 0.0
      %3728 = vmatpush1.msra.mxu0 0.0
      %3729 = vmatprep.subr.mxu0 0.0
      %3730 = vmatpush1.msra.mxu0 0.0
      %3731 = vmatprep.subr.mxu0 0.0
      %3732 = vmatpush1.msra.mxu0 0.0
      %3733 = vmatprep.subr.mxu0 0.0
      %3734 = vmatpush1.msra.mxu0 0.0
      %3735 = vmatprep.subr.mxu0 0.0
      %3736 = vmatpush1.msra.mxu0 0.0
      %3737 = vmatprep.mubr.f32.mxu0 0.0
      %3738 = vmatmul.mubr.f32.gmra.mrb[0].mxu0 %v3659
      %v3739 = vpop.f32.mrb[0].mxu0
      %v3740 = vadd.f32 0.0, %v3739
      %v3741 = vpop.f32.mrb[0].mxu0
      %v3742 = vadd.f32 0.0, %v3741
      %3743 = vdwg.mxu0
      %3744 = vmatprep.subr.mxu0 %v3671
      %3745 = vmatpush1.msra.mxu0 %v3668
      %3746 = vmatprep.subr.mxu0 0.0
      %3747 = vmatpush1.msra.mxu0 0.0
      %3748 = vmatprep.subr.mxu0 0.0
      %3749 = vmatpush1.msra.mxu0 0.0
      %3750 = vmatprep.subr.mxu0 0.0
      %3751 = vmatpush1.msra.mxu0 0.0
      %3752 = vmatprep.subr.mxu0 0.0
      %3753 = vmatpush1.msra.mxu0 0.0
      %3754 = vmatprep.subr.mxu0 0.0
      %3755 = vmatpush1.msra.mxu0 0.0
      %3756 = vmatprep.subr.mxu0 0.0
      %3757 = vmatpush1.msra.mxu0 0.0
      %3758 = vmatprep.subr.mxu0 0.0
      %3759 = vmatpush1.msra.mxu0 0.0
      %3760 = vmatprep.subr.mxu0 0.0
      %3761 = vmatpush1.msra.mxu0 0.0
      %3762 = vmatprep.subr.mxu0 0.0
      %3763 = vmatpush1.msra.mxu0 0.0
      %3764 = vmatprep.subr.mxu0 0.0
      %3765 = vmatpush1.msra.mxu0 0.0
      %3766 = vmatprep.subr.mxu0 0.0
      %3767 = vmatpush1.msra.mxu0 0.0
      %3768 = vmatprep.subr.mxu0 0.0
      %3769 = vmatpush1.msra.mxu0 0.0
      %3770 = vmatprep.subr.mxu0 0.0
      %3771 = vmatpush1.msra.mxu0 0.0
      %3772 = vmatprep.subr.mxu0 0.0
      %3773 = vmatpush1.msra.mxu0 0.0
      %3774 = vmatprep.subr.mxu0 0.0
      %3775 = vmatpush1.msra.mxu0 0.0
      %3776 = vmatprep.subr.mxu0 0.0
      %3777 = vmatpush1.msra.mxu0 0.0
      %3778 = vmatprep.subr.mxu0 0.0
      %3779 = vmatpush1.msra.mxu0 0.0
      %3780 = vmatprep.subr.mxu0 0.0
      %3781 = vmatpush1.msra.mxu0 0.0
      %3782 = vmatprep.subr.mxu0 0.0
      %3783 = vmatpush1.msra.mxu0 0.0
      %3784 = vmatprep.subr.mxu0 0.0
      %3785 = vmatpush1.msra.mxu0 0.0
      %3786 = vmatprep.subr.mxu0 0.0
      %3787 = vmatpush1.msra.mxu0 0.0
      %3788 = vmatprep.subr.mxu0 0.0
      %3789 = vmatpush1.msra.mxu0 0.0
      %3790 = vmatprep.subr.mxu0 0.0
      %3791 = vmatpush1.msra.mxu0 0.0
      %3792 = vmatprep.subr.mxu0 0.0
      %3793 = vmatpush1.msra.mxu0 0.0
      %3794 = vmatprep.subr.mxu0 0.0
      %3795 = vmatpush1.msra.mxu0 0.0
      %3796 = vmatprep.subr.mxu0 0.0
      %3797 = vmatpush1.msra.mxu0 0.0
      %3798 = vmatprep.subr.mxu0 0.0
      %3799 = vmatpush1.msra.mxu0 0.0
      %3800 = vmatprep.subr.mxu0 0.0
      %3801 = vmatpush1.msra.mxu0 0.0
      %3802 = vmatprep.subr.mxu0 0.0
      %3803 = vmatpush1.msra.mxu0 0.0
      %3804 = vmatprep.subr.mxu0 0.0
      %3805 = vmatpush1.msra.mxu0 0.0
      %3806 = vmatprep.subr.mxu0 0.0
      %3807 = vmatpush1.msra.mxu0 0.0
      %3808 = vmatprep.mubr.f32.mxu0 0.0
      %3809 = vmatmul.mubr.f32.gmra.mrb[0].mxu0 %v3659
      %v3810 = vpop.f32.mrb[0].mxu0
      %v3811 = vadd.f32 0.0, %v3810
      %v3812 = vpop.f32.mrb[0].mxu0
      %v3813 = vadd.f32 0.0, %v3812
      %3814 = vdwg.mxu0
      %v3815 = vadd.f32 %v3599, %v3740
      %v3816 = vadd.f32 %v3600, %v3742
      %v3817 = vadd.f32 %v3601, %v3811
      %v3818 = vadd.f32 %v3602, %v3813
      %v3819 = vld [vmem:[#allocation2] sm:$0xff]
      %v3820 = vld [vmem:[#allocation2 + $0x8] sm:$0xff]
      %v3821 = vld [vmem:[#allocation2 + $0x10] sm:$0xf]
      %vm3822 = vmand %vm1882, %vm1885
      %vm3823 = vmand %vm3822, %vm1887
      %v3824 = vsel %vm3823, 1, 0
      %v3825 = vlaneseq
      %v3826 = vshrl.u32 %v3825, 7
      %v3827 = vsub.s32 0, %v3826
      %v3828 = vrot.slane %v3824, %v3827
      %v3829 = vlaneseq
      %v3830 = vshrl.u32 %v3829, 7
      %v3831 = vsub.s32 1, %v3830
      %v3832 = vrot.slane %v3824, %v3831
      %v3833 = vlaneseq
      %v3834 = vshrl.u32 %v3833, 7
      %v3835 = vsub.s32 2, %v3834
      %v3836 = vrot.slane %v3824, %v3835
      %v3837 = vlaneseq
      %v3838 = vshrl.u32 %v3837, 7
      %v3839 = vsub.s32 3, %v3838
      %v3840 = vrot.slane %v3824, %v3839
      %vm3841 = vcmp.eq.s32.totalorder %v3828, 1
      %vm3842 = vcmp.eq.s32.totalorder %v3832, 1
      %vm3843 = vcmp.eq.s32.totalorder %v3836, 1
      %vm3844 = vcmp.eq.s32.totalorder %v3840, 1
      %v3848 = vcombine.high %v3819, %v3819
      %v3849 = vcombine.high %v3820, %v3820
      %3850 = vrot.lane.b32.xlu0 %v3819, 9
      %v3851 = vpop.permute.xlu0 %3850
      %3852 = vrot.lane.b32.xlu0 %v3848, 9
      %v3853 = vpop.permute.xlu0 %3852
      %3854 = vrot.lane.b32.xlu0 %v3820, 9
      %v3855 = vpop.permute.xlu0 %3854
      %3856 = vrot.lane.b32.xlu0 %v3849, 9
      %v3857 = vpop.permute.xlu0 %3856
      %3858 = vrot.lane.b32.xlu0 %v3821, 9
      %v3859 = vpop.permute.xlu0 %3858
      %vm3860 = vcmask 72704
      %v3861 = vsel %vm3860, %v3851, %v3853
      %v3862 = vsel %vm3860, %v3853, %v3855
      %v3863 = vsel %vm3860, %v3855, %v3857
      %v3864 = vsel %vm3860, %v3857, %v3859
      %v3869 = vsel %vm3841, %v3861, 0.0
      %v3870 = vsel %vm3842, %v3862, 0.0
      %v3871 = vsel %vm3843, %v3863, 0.0
      %v3872 = vsel %vm3844, %v3864, 0.0
      %s3873 = scalar_lea.vmem %s5, 36
      %v3874 = vld [vmem:[%s3873] sm:$0xf]
      %v3876 = vsel %vm1991, %v3874, 0
      %v3879 = vsel %vm1830, %v3869, 0
      %v3882 = vsel %vm1830, %v3870, 0
      %v3885 = vsel %vm1830, %v3871, 0
      %v3888 = vsel %vm1830, %v3872, 0
      %3890 = vmatprep.subr.mxu0 %v3882
      %3891 = vmatpush1.msra.mxu0 %v3879
      %3892 = vmatprep.subr.mxu0 0.0
      %3893 = vmatpush1.msra.mxu0 0.0
      %3894 = vmatprep.subr.mxu0 0.0
      %3895 = vmatpush1.msra.mxu0 0.0
      %3896 = vmatprep.subr.mxu0 0.0
      %3897 = vmatpush1.msra.mxu0 0.0
      %3898 = vmatprep.subr.mxu0 0.0
      %3899 = vmatpush1.msra.mxu0 0.0
      %3900 = vmatprep.subr.mxu0 0.0
      %3901 = vmatpush1.msra.mxu0 0.0
      %3902 = vmatprep.subr.mxu0 0.0
      %3903 = vmatpush1.msra.mxu0 0.0
      %3904 = vmatprep.subr.mxu0 0.0
      %3905 = vmatpush1.msra.mxu0 0.0
      %3906 = vmatprep.subr.mxu0 0.0
      %3907 = vmatpush1.msra.mxu0 0.0
      %3908 = vmatprep.subr.mxu0 0.0
      %3909 = vmatpush1.msra.mxu0 0.0
      %3910 = vmatprep.subr.mxu0 0.0
      %3911 = vmatpush1.msra.mxu0 0.0
      %3912 = vmatprep.subr.mxu0 0.0
      %3913 = vmatpush1.msra.mxu0 0.0
      %3914 = vmatprep.subr.mxu0 0.0
      %3915 = vmatpush1.msra.mxu0 0.0
      %3916 = vmatprep.subr.mxu0 0.0
      %3917 = vmatpush1.msra.mxu0 0.0
      %3918 = vmatprep.subr.mxu0 0.0
      %3919 = vmatpush1.msra.mxu0 0.0
      %3920 = vmatprep.subr.mxu0 0.0
      %3921 = vmatpush1.msra.mxu0 0.0
      %3922 = vmatprep.subr.mxu0 0.0
      %3923 = vmatpush1.msra.mxu0 0.0
      %3924 = vmatprep.subr.mxu0 0.0
      %3925 = vmatpush1.msra.mxu0 0.0
      %3926 = vmatprep.subr.mxu0 0.0
      %3927 = vmatpush1.msra.mxu0 0.0
      %3928 = vmatprep.subr.mxu0 0.0
      %3929 = vmatpush1.msra.mxu0 0.0
      %3930 = vmatprep.subr.mxu0 0.0
      %3931 = vmatpush1.msra.mxu0 0.0
      %3932 = vmatprep.subr.mxu0 0.0
      %3933 = vmatpush1.msra.mxu0 0.0
      %3934 = vmatprep.subr.mxu0 0.0
      %3935 = vmatpush1.msra.mxu0 0.0
      %3936 = vmatprep.subr.mxu0 0.0
      %3937 = vmatpush1.msra.mxu0 0.0
      %3938 = vmatprep.subr.mxu0 0.0
      %3939 = vmatpush1.msra.mxu0 0.0
      %3940 = vmatprep.subr.mxu0 0.0
      %3941 = vmatpush1.msra.mxu0 0.0
      %3942 = vmatprep.subr.mxu0 0.0
      %3943 = vmatpush1.msra.mxu0 0.0
      %3944 = vmatprep.subr.mxu0 0.0
      %3945 = vmatpush1.msra.mxu0 0.0
      %3946 = vmatprep.subr.mxu0 0.0
      %3947 = vmatpush1.msra.mxu0 0.0
      %3948 = vmatprep.subr.mxu0 0.0
      %3949 = vmatpush1.msra.mxu0 0.0
      %3950 = vmatprep.subr.mxu0 0.0
      %3951 = vmatpush1.msra.mxu0 0.0
      %3952 = vmatprep.subr.mxu0 0.0
      %3953 = vmatpush1.msra.mxu0 0.0
      %3954 = vmatprep.mubr.f32.mxu0 0.0
      %3955 = vmatmul.mubr.f32.gmra.mrb[0].mxu0 %v3876
      %v3956 = vpop.f32.mrb[0].mxu0
      %v3957 = vadd.f32 0.0, %v3956
      %v3958 = vpop.f32.mrb[0].mxu0
      %v3959 = vadd.f32 0.0, %v3958
      %3960 = vdwg.mxu0
      %3961 = vmatprep.subr.mxu0 %v3888
      %3962 = vmatpush1.msra.mxu0 %v3885
      %3963 = vmatprep.subr.mxu0 0.0
      %3964 = vmatpush1.msra.mxu0 0.0
      %3965 = vmatprep.subr.mxu0 0.0
      %3966 = vmatpush1.msra.mxu0 0.0
      %3967 = vmatprep.subr.mxu0 0.0
      %3968 = vmatpush1.msra.mxu0 0.0
      %3969 = vmatprep.subr.mxu0 0.0
      %3970 = vmatpush1.msra.mxu0 0.0
      %3971 = vmatprep.subr.mxu0 0.0
      %3972 = vmatpush1.msra.mxu0 0.0
      %3973 = vmatprep.subr.mxu0 0.0
      %3974 = vmatpush1.msra.mxu0 0.0
      %3975 = vmatprep.subr.mxu0 0.0
      %3976 = vmatpush1.msra.mxu0 0.0
      %3977 = vmatprep.subr.mxu0 0.0
      %3978 = vmatpush1.msra.mxu0 0.0
      %3979 = vmatprep.subr.mxu0 0.0
      %3980 = vmatpush1.msra.mxu0 0.0
      %3981 = vmatprep.subr.mxu0 0.0
      %3982 = vmatpush1.msra.mxu0 0.0
      %3983 = vmatprep.subr.mxu0 0.0
      %3984 = vmatpush1.msra.mxu0 0.0
      %3985 = vmatprep.subr.mxu0 0.0
      %3986 = vmatpush1.msra.mxu0 0.0
      %3987 = vmatprep.subr.mxu0 0.0
      %3988 = vmatpush1.msra.mxu0 0.0
      %3989 = vmatprep.subr.mxu0 0.0
      %3990 = vmatpush1.msra.mxu0 0.0
      %3991 = vmatprep.subr.mxu0 0.0
      %3992 = vmatpush1.msra.mxu0 0.0
      %3993 = vmatprep.subr.mxu0 0.0
      %3994 = vmatpush1.msra.mxu0 0.0
      %3995 = vmatprep.subr.mxu0 0.0
      %3996 = vmatpush1.msra.mxu0 0.0
      %3997 = vmatprep.subr.mxu0 0.0
      %3998 = vmatpush1.msra.mxu0 0.0
      %3999 = vmatprep.subr.mxu0 0.0
      %4000 = vmatpush1.msra.mxu0 0.0
      %4001 = vmatprep.subr.mxu0 0.0
      %4002 = vmatpush1.msra.mxu0 0.0
      %4003 = vmatprep.subr.mxu0 0.0
      %4004 = vmatpush1.msra.mxu0 0.0
      %4005 = vmatprep.subr.mxu0 0.0
      %4006 = vmatpush1.msra.mxu0 0.0
      %4007 = vmatprep.subr.mxu0 0.0
      %4008 = vmatpush1.msra.mxu0 0.0
      %4009 = vmatprep.subr.mxu0 0.0
      %4010 = vmatpush1.msra.mxu0 0.0
      %4011 = vmatprep.subr.mxu0 0.0
      %4012 = vmatpush1.msra.mxu0 0.0
      %4013 = vmatprep.subr.mxu0 0.0
      %4014 = vmatpush1.msra.mxu0 0.0
      %4015 = vmatprep.subr.mxu0 0.0
      %4016 = vmatpush1.msra.mxu0 0.0
      %4017 = vmatprep.subr.mxu0 0.0
      %4018 = vmatpush1.msra.mxu0 0.0
      %4019 = vmatprep.subr.mxu0 0.0
      %4020 = vmatpush1.msra.mxu0 0.0
      %4021 = vmatprep.subr.mxu0 0.0
      %4022 = vmatpush1.msra.mxu0 0.0
      %4023 = vmatprep.subr.mxu0 0.0
      %4024 = vmatpush1.msra.mxu0 0.0
      %4025 = vmatprep.mubr.f32.mxu0 0.0
      %4026 = vmatmul.mubr.f32.gmra.mrb[0].mxu0 %v3876
      %v4027 = vpop.f32.mrb[0].mxu0
      %v4028 = vadd.f32 0.0, %v4027
      %v4029 = vpop.f32.mrb[0].mxu0
      %v4030 = vadd.f32 0.0, %v4029
      %4031 = vdwg.mxu0
      %v4032 = vadd.f32 %v3815, %v3957
      %v4033 = vadd.f32 %v3816, %v3959
      %v4034 = vadd.f32 %v3817, %v4028
      %v4035 = vadd.f32 %v3818, %v4030
      %v4036 = vld [vmem:[#allocation2] sm:$0xff]
      %v4037 = vld [vmem:[#allocation2 + $0x8] sm:$0xff]
      %v4038 = vld [vmem:[#allocation2 + $0x10] sm:$0xf]
      %v4039 = vsel %vm3822, 1, 0
      %v4040 = vlaneseq
      %v4041 = vshrl.u32 %v4040, 7
      %v4042 = vsub.s32 0, %v4041
      %v4043 = vrot.slane %v4039, %v4042
      %v4044 = vlaneseq
      %v4045 = vshrl.u32 %v4044, 7
      %v4046 = vsub.s32 1, %v4045
      %v4047 = vrot.slane %v4039, %v4046
      %v4048 = vlaneseq
      %v4049 = vshrl.u32 %v4048, 7
      %v4050 = vsub.s32 2, %v4049
      %v4051 = vrot.slane %v4039, %v4050
      %v4052 = vlaneseq
      %v4053 = vshrl.u32 %v4052, 7
      %v4054 = vsub.s32 3, %v4053
      %v4055 = vrot.slane %v4039, %v4054
      %vm4056 = vcmp.eq.s32.totalorder %v4043, 1
      %vm4057 = vcmp.eq.s32.totalorder %v4047, 1
      %vm4058 = vcmp.eq.s32.totalorder %v4051, 1
      %vm4059 = vcmp.eq.s32.totalorder %v4055, 1
      %v4063 = vcombine.high %v4036, %v4036
      %v4064 = vcombine.high %v4037, %v4037
      %4065 = vrot.lane.b32.xlu0 %v4036, 8
      %v4066 = vpop.permute.xlu0 %4065
      %4067 = vrot.lane.b32.xlu0 %v4063, 8
      %v4068 = vpop.permute.xlu0 %4067
      %4069 = vrot.lane.b32.xlu0 %v4037, 8
      %v4070 = vpop.permute.xlu0 %4069
      %4071 = vrot.lane.b32.xlu0 %v4064, 8
      %v4072 = vpop.permute.xlu0 %4071
      %4073 = vrot.lane.b32.xlu0 %v4038, 8
      %v4074 = vpop.permute.xlu0 %4073
      %v4075 = vsel %vm291, %v4066, %v4068
      %v4076 = vsel %vm291, %v4068, %v4070
      %v4077 = vsel %vm291, %v4070, %v4072
      %v4078 = vsel %vm291, %v4072, %v4074
      %v4083 = vsel %vm4056, %v4075, 0.0
      %v4084 = vsel %vm4057, %v4076, 0.0
      %v4085 = vsel %vm4058, %v4077, 0.0
      %v4086 = vsel %vm4059, %v4078, 0.0
      %s4087 = scalar_lea.vmem %s5, 40
      %v4088 = vld [vmem:[%s4087] sm:$0xf]
      %v4090 = vsel %vm1991, %v4088, 0
      %v4093 = vsel %vm1830, %v4083, 0
      %v4096 = vsel %vm1830, %v4084, 0
      %v4099 = vsel %vm1830, %v4085, 0
      %v4102 = vsel %vm1830, %v4086, 0
      %4104 = vmatprep.subr.mxu0 %v4096
      %4105 = vmatpush1.msra.mxu0 %v4093
      %4106 = vmatprep.subr.mxu0 0.0
      %4107 = vmatpush1.msra.mxu0 0.0
      %4108 = vmatprep.subr.mxu0 0.0
      %4109 = vmatpush1.msra.mxu0 0.0
      %4110 = vmatprep.subr.mxu0 0.0
      %4111 = vmatpush1.msra.mxu0 0.0
      %4112 = vmatprep.subr.mxu0 0.0
      %4113 = vmatpush1.msra.mxu0 0.0
      %4114 = vmatprep.subr.mxu0 0.0
      %4115 = vmatpush1.msra.mxu0 0.0
      %4116 = vmatprep.subr.mxu0 0.0
      %4117 = vmatpush1.msra.mxu0 0.0
      %4118 = vmatprep.subr.mxu0 0.0
      %4119 = vmatpush1.msra.mxu0 0.0
      %4120 = vmatprep.subr.mxu0 0.0
      %4121 = vmatpush1.msra.mxu0 0.0
      %4122 = vmatprep.subr.mxu0 0.0
      %4123 = vmatpush1.msra.mxu0 0.0
      %4124 = vmatprep.subr.mxu0 0.0
      %4125 = vmatpush1.msra.mxu0 0.0
      %4126 = vmatprep.subr.mxu0 0.0
      %4127 = vmatpush1.msra.mxu0 0.0
      %4128 = vmatprep.subr.mxu0 0.0
      %4129 = vmatpush1.msra.mxu0 0.0
      %4130 = vmatprep.subr.mxu0 0.0
      %4131 = vmatpush1.msra.mxu0 0.0
      %4132 = vmatprep.subr.mxu0 0.0
      %4133 = vmatpush1.msra.mxu0 0.0
      %4134 = vmatprep.subr.mxu0 0.0
      %4135 = vmatpush1.msra.mxu0 0.0
      %4136 = vmatprep.subr.mxu0 0.0
      %4137 = vmatpush1.msra.mxu0 0.0
      %4138 = vmatprep.subr.mxu0 0.0
      %4139 = vmatpush1.msra.mxu0 0.0
      %4140 = vmatprep.subr.mxu0 0.0
      %4141 = vmatpush1.msra.mxu0 0.0
      %4142 = vmatprep.subr.mxu0 0.0
      %4143 = vmatpush1.msra.mxu0 0.0
      %4144 = vmatprep.subr.mxu0 0.0
      %4145 = vmatpush1.msra.mxu0 0.0
      %4146 = vmatprep.subr.mxu0 0.0
      %4147 = vmatpush1.msra.mxu0 0.0
      %4148 = vmatprep.subr.mxu0 0.0
      %4149 = vmatpush1.msra.mxu0 0.0
      %4150 = vmatprep.subr.mxu0 0.0
      %4151 = vmatpush1.msra.mxu0 0.0
      %4152 = vmatprep.subr.mxu0 0.0
      %4153 = vmatpush1.msra.mxu0 0.0
      %4154 = vmatprep.subr.mxu0 0.0
      %4155 = vmatpush1.msra.mxu0 0.0
      %4156 = vmatprep.subr.mxu0 0.0
      %4157 = vmatpush1.msra.mxu0 0.0
      %4158 = vmatprep.subr.mxu0 0.0
      %4159 = vmatpush1.msra.mxu0 0.0
      %4160 = vmatprep.subr.mxu0 0.0
      %4161 = vmatpush1.msra.mxu0 0.0
      %4162 = vmatprep.subr.mxu0 0.0
      %4163 = vmatpush1.msra.mxu0 0.0
      %4164 = vmatprep.subr.mxu0 0.0
      %4165 = vmatpush1.msra.mxu0 0.0
      %4166 = vmatprep.subr.mxu0 0.0
      %4167 = vmatpush1.msra.mxu0 0.0
      %4168 = vmatprep.mubr.f32.mxu0 0.0
      %4169 = vmatmul.mubr.f32.gmra.mrb[0].mxu0 %v4090
      %v4170 = vpop.f32.mrb[0].mxu0
      %v4171 = vadd.f32 0.0, %v4170
      %v4172 = vpop.f32.mrb[0].mxu0
      %v4173 = vadd.f32 0.0, %v4172
      %4174 = vdwg.mxu0
      %4175 = vmatprep.subr.mxu0 %v4102
      %4176 = vmatpush1.msra.mxu0 %v4099
      %4177 = vmatprep.subr.mxu0 0.0
      %4178 = vmatpush1.msra.mxu0 0.0
      %4179 = vmatprep.subr.mxu0 0.0
      %4180 = vmatpush1.msra.mxu0 0.0
      %4181 = vmatprep.subr.mxu0 0.0
      %4182 = vmatpush1.msra.mxu0 0.0
      %4183 = vmatprep.subr.mxu0 0.0
      %4184 = vmatpush1.msra.mxu0 0.0
      %4185 = vmatprep.subr.mxu0 0.0
      %4186 = vmatpush1.msra.mxu0 0.0
      %4187 = vmatprep.subr.mxu0 0.0
      %4188 = vmatpush1.msra.mxu0 0.0
      %4189 = vmatprep.subr.mxu0 0.0
      %4190 = vmatpush1.msra.mxu0 0.0
      %4191 = vmatprep.subr.mxu0 0.0
      %4192 = vmatpush1.msra.mxu0 0.0
      %4193 = vmatprep.subr.mxu0 0.0
      %4194 = vmatpush1.msra.mxu0 0.0
      %4195 = vmatprep.subr.mxu0 0.0
      %4196 = vmatpush1.msra.mxu0 0.0
      %4197 = vmatprep.subr.mxu0 0.0
      %4198 = vmatpush1.msra.mxu0 0.0
      %4199 = vmatprep.subr.mxu0 0.0
      %4200 = vmatpush1.msra.mxu0 0.0
      %4201 = vmatprep.subr.mxu0 0.0
      %4202 = vmatpush1.msra.mxu0 0.0
      %4203 = vmatprep.subr.mxu0 0.0
      %4204 = vmatpush1.msra.mxu0 0.0
      %4205 = vmatprep.subr.mxu0 0.0
      %4206 = vmatpush1.msra.mxu0 0.0
      %4207 = vmatprep.subr.mxu0 0.0
      %4208 = vmatpush1.msra.mxu0 0.0
      %4209 = vmatprep.subr.mxu0 0.0
      %4210 = vmatpush1.msra.mxu0 0.0
      %4211 = vmatprep.subr.mxu0 0.0
      %4212 = vmatpush1.msra.mxu0 0.0
      %4213 = vmatprep.subr.mxu0 0.0
      %4214 = vmatpush1.msra.mxu0 0.0
      %4215 = vmatprep.subr.mxu0 0.0
      %4216 = vmatpush1.msra.mxu0 0.0
      %4217 = vmatprep.subr.mxu0 0.0
      %4218 = vmatpush1.msra.mxu0 0.0
      %4219 = vmatprep.subr.mxu0 0.0
      %4220 = vmatpush1.msra.mxu0 0.0
      %4221 = vmatprep.subr.mxu0 0.0
      %4222 = vmatpush1.msra.mxu0 0.0
      %4223 = vmatprep.subr.mxu0 0.0
      %4224 = vmatpush1.msra.mxu0 0.0
      %4225 = vmatprep.subr.mxu0 0.0
      %4226 = vmatpush1.msra.mxu0 0.0
      %4227 = vmatprep.subr.mxu0 0.0
      %4228 = vmatpush1.msra.mxu0 0.0
      %4229 = vmatprep.subr.mxu0 0.0
      %4230 = vmatpush1.msra.mxu0 0.0
      %4231 = vmatprep.subr.mxu0 0.0
      %4232 = vmatpush1.msra.mxu0 0.0
      %4233 = vmatprep.subr.mxu0 0.0
      %4234 = vmatpush1.msra.mxu0 0.0
      %4235 = vmatprep.subr.mxu0 0.0
      %4236 = vmatpush1.msra.mxu0 0.0
      %4237 = vmatprep.subr.mxu0 0.0
      %4238 = vmatpush1.msra.mxu0 0.0
      %4239 = vmatprep.mubr.f32.mxu0 0.0
      %4240 = vmatmul.mubr.f32.gmra.mrb[0].mxu0 %v4090
      %v4241 = vpop.f32.mrb[0].mxu0
      %v4242 = vadd.f32 0.0, %v4241
      %v4243 = vpop.f32.mrb[0].mxu0
      %v4244 = vadd.f32 0.0, %v4243
      %4245 = vdwg.mxu0
      %v4246 = vadd.f32 %v4032, %v4171
      %v4247 = vadd.f32 %v4033, %v4173
      %v4248 = vadd.f32 %v4034, %v4242
      %v4249 = vadd.f32 %v4035, %v4244
      %v4250 = vld [vmem:[#allocation2] sm:$0xff]
      %v4251 = vld [vmem:[#allocation2 + $0x8] sm:$0xff]
      %v4252 = vld [vmem:[#allocation2 + $0x10] sm:$0xf]
      %vm4253 = vmand %vm3822, %vm1888
      %v4254 = vsel %vm4253, 1, 0
      %v4255 = vlaneseq
      %v4256 = vshrl.u32 %v4255, 7
      %v4257 = vsub.s32 0, %v4256
      %v4258 = vrot.slane %v4254, %v4257
      %v4259 = vlaneseq
      %v4260 = vshrl.u32 %v4259, 7
      %v4261 = vsub.s32 1, %v4260
      %v4262 = vrot.slane %v4254, %v4261
      %v4263 = vlaneseq
      %v4264 = vshrl.u32 %v4263, 7
      %v4265 = vsub.s32 2, %v4264
      %v4266 = vrot.slane %v4254, %v4265
      %v4267 = vlaneseq
      %v4268 = vshrl.u32 %v4267, 7
      %v4269 = vsub.s32 3, %v4268
      %v4270 = vrot.slane %v4254, %v4269
      %vm4271 = vcmp.eq.s32.totalorder %v4258, 1
      %vm4272 = vcmp.eq.s32.totalorder %v4262, 1
      %vm4273 = vcmp.eq.s32.totalorder %v4266, 1
      %vm4274 = vcmp.eq.s32.totalorder %v4270, 1
      %v4278 = vcombine.high %v4250, %v4250
      %v4279 = vcombine.high %v4251, %v4251
      %4280 = vrot.lane.b32.xlu0 %v4250, 7
      %v4281 = vpop.permute.xlu0 %4280
      %4282 = vrot.lane.b32.xlu0 %v4278, 7
      %v4283 = vpop.permute.xlu0 %4282
      %4284 = vrot.lane.b32.xlu0 %v4251, 7
      %v4285 = vpop.permute.xlu0 %4284
      %4286 = vrot.lane.b32.xlu0 %v4279, 7
      %v4287 = vpop.permute.xlu0 %4286
      %4288 = vrot.lane.b32.xlu0 %v4252, 7
      %v4289 = vpop.permute.xlu0 %4288
      %vm4290 = vcmask 56320
      %v4291 = vsel %vm4290, %v4281, %v4283
      %v4292 = vsel %vm4290, %v4283, %v4285
      %v4293 = vsel %vm4290, %v4285, %v4287
      %v4294 = vsel %vm4290, %v4287, %v4289
      %v4299 = vsel %vm4271, %v4291, 0.0
      %v4300 = vsel %vm4272, %v4292, 0.0
      %v4301 = vsel %vm4273, %v4293, 0.0
      %v4302 = vsel %vm4274, %v4294, 0.0
      %s4303 = scalar_lea.vmem %s5, 44
      %v4304 = vld [vmem:[%s4303] sm:$0xf]
      %v4306 = vsel %vm1991, %v4304, 0
      %v4309 = vsel %vm1830, %v4299, 0
      %v4312 = vsel %vm1830, %v4300, 0
      %v4315 = vsel %vm1830, %v4301, 0
      %v4318 = vsel %vm1830, %v4302, 0
      %4320 = vmatprep.subr.mxu0 %v4312
      %4321 = vmatpush1.msra.mxu0 %v4309
      %4322 = vmatprep.subr.mxu0 0.0
      %4323 = vmatpush1.msra.mxu0 0.0
      %4324 = vmatprep.subr.mxu0 0.0
      %4325 = vmatpush1.msra.mxu0 0.0
      %4326 = vmatprep.subr.mxu0 0.0
      %4327 = vmatpush1.msra.mxu0 0.0
      %4328 = vmatprep.subr.mxu0 0.0
      %4329 = vmatpush1.msra.mxu0 0.0
      %4330 = vmatprep.subr.mxu0 0.0
      %4331 = vmatpush1.msra.mxu0 0.0
      %4332 = vmatprep.subr.mxu0 0.0
      %4333 = vmatpush1.msra.mxu0 0.0
      %4334 = vmatprep.subr.mxu0 0.0
      %4335 = vmatpush1.msra.mxu0 0.0
      %4336 = vmatprep.subr.mxu0 0.0
      %4337 = vmatpush1.msra.mxu0 0.0
      %4338 = vmatprep.subr.mxu0 0.0
      %4339 = vmatpush1.msra.mxu0 0.0
      %4340 = vmatprep.subr.mxu0 0.0
      %4341 = vmatpush1.msra.mxu0 0.0
      %4342 = vmatprep.subr.mxu0 0.0
      %4343 = vmatpush1.msra.mxu0 0.0
      %4344 = vmatprep.subr.mxu0 0.0
      %4345 = vmatpush1.msra.mxu0 0.0
      %4346 = vmatprep.subr.mxu0 0.0
      %4347 = vmatpush1.msra.mxu0 0.0
      %4348 = vmatprep.subr.mxu0 0.0
      %4349 = vmatpush1.msra.mxu0 0.0
      %4350 = vmatprep.subr.mxu0 0.0
      %4351 = vmatpush1.msra.mxu0 0.0
      %4352 = vmatprep.subr.mxu0 0.0
      %4353 = vmatpush1.msra.mxu0 0.0
      %4354 = vmatprep.subr.mxu0 0.0
      %4355 = vmatpush1.msra.mxu0 0.0
      %4356 = vmatprep.subr.mxu0 0.0
      %4357 = vmatpush1.msra.mxu0 0.0
      %4358 = vmatprep.subr.mxu0 0.0
      %4359 = vmatpush1.msra.mxu0 0.0
      %4360 = vmatprep.subr.mxu0 0.0
      %4361 = vmatpush1.msra.mxu0 0.0
      %4362 = vmatprep.subr.mxu0 0.0
      %4363 = vmatpush1.msra.mxu0 0.0
      %4364 = vmatprep.subr.mxu0 0.0
      %4365 = vmatpush1.msra.mxu0 0.0
      %4366 = vmatprep.subr.mxu0 0.0
      %4367 = vmatpush1.msra.mxu0 0.0
      %4368 = vmatprep.subr.mxu0 0.0
      %4369 = vmatpush1.msra.mxu0 0.0
      %4370 = vmatprep.subr.mxu0 0.0
      %4371 = vmatpush1.msra.mxu0 0.0
      %4372 = vmatprep.subr.mxu0 0.0
      %4373 = vmatpush1.msra.mxu0 0.0
      %4374 = vmatprep.subr.mxu0 0.0
      %4375 = vmatpush1.msra.mxu0 0.0
      %4376 = vmatprep.subr.mxu0 0.0
      %4377 = vmatpush1.msra.mxu0 0.0
      %4378 = vmatprep.subr.mxu0 0.0
      %4379 = vmatpush1.msra.mxu0 0.0
      %4380 = vmatprep.subr.mxu0 0.0
      %4381 = vmatpush1.msra.mxu0 0.0
      %4382 = vmatprep.subr.mxu0 0.0
      %4383 = vmatpush1.msra.mxu0 0.0
      %4384 = vmatprep.mubr.f32.mxu0 0.0
      %4385 = vmatmul.mubr.f32.gmra.mrb[0].mxu0 %v4306
      %v4386 = vpop.f32.mrb[0].mxu0
      %v4387 = vadd.f32 0.0, %v4386
      %v4388 = vpop.f32.mrb[0].mxu0
      %v4389 = vadd.f32 0.0, %v4388
      %4390 = vdwg.mxu0
      %4391 = vmatprep.subr.mxu0 %v4318
      %4392 = vmatpush1.msra.mxu0 %v4315
      %4393 = vmatprep.subr.mxu0 0.0
      %4394 = vmatpush1.msra.mxu0 0.0
      %4395 = vmatprep.subr.mxu0 0.0
      %4396 = vmatpush1.msra.mxu0 0.0
      %4397 = vmatprep.subr.mxu0 0.0
      %4398 = vmatpush1.msra.mxu0 0.0
      %4399 = vmatprep.subr.mxu0 0.0
      %4400 = vmatpush1.msra.mxu0 0.0
      %4401 = vmatprep.subr.mxu0 0.0
      %4402 = vmatpush1.msra.mxu0 0.0
      %4403 = vmatprep.subr.mxu0 0.0
      %4404 = vmatpush1.msra.mxu0 0.0
      %4405 = vmatprep.subr.mxu0 0.0
      %4406 = vmatpush1.msra.mxu0 0.0
      %4407 = vmatprep.subr.mxu0 0.0
      %4408 = vmatpush1.msra.mxu0 0.0
      %4409 = vmatprep.subr.mxu0 0.0
      %4410 = vmatpush1.msra.mxu0 0.0
      %4411 = vmatprep.subr.mxu0 0.0
      %4412 = vmatpush1.msra.mxu0 0.0
      %4413 = vmatprep.subr.mxu0 0.0
      %4414 = vmatpush1.msra.mxu0 0.0
      %4415 = vmatprep.subr.mxu0 0.0
      %4416 = vmatpush1.msra.mxu0 0.0
      %4417 = vmatprep.subr.mxu0 0.0
      %4418 = vmatpush1.msra.mxu0 0.0
      %4419 = vmatprep.subr.mxu0 0.0
      %4420 = vmatpush1.msra.mxu0 0.0
      %4421 = vmatprep.subr.mxu0 0.0
      %4422 = vmatpush1.msra.mxu0 0.0
      %4423 = vmatprep.subr.mxu0 0.0
      %4424 = vmatpush1.msra.mxu0 0.0
      %4425 = vmatprep.subr.mxu0 0.0
      %4426 = vmatpush1.msra.mxu0 0.0
      %4427 = vmatprep.subr.mxu0 0.0
      %4428 = vmatpush1.msra.mxu0 0.0
      %4429 = vmatprep.subr.mxu0 0.0
      %4430 = vmatpush1.msra.mxu0 0.0
      %4431 = vmatprep.subr.mxu0 0.0
      %4432 = vmatpush1.msra.mxu0 0.0
      %4433 = vmatprep.subr.mxu0 0.0
      %4434 = vmatpush1.msra.mxu0 0.0
      %4435 = vmatprep.subr.mxu0 0.0
      %4436 = vmatpush1.msra.mxu0 0.0
      %4437 = vmatprep.subr.mxu0 0.0
      %4438 = vmatpush1.msra.mxu0 0.0
      %4439 = vmatprep.subr.mxu0 0.0
      %4440 = vmatpush1.msra.mxu0 0.0
      %4441 = vmatprep.subr.mxu0 0.0
      %4442 = vmatpush1.msra.mxu0 0.0
      %4443 = vmatprep.subr.mxu0 0.0
      %4444 = vmatpush1.msra.mxu0 0.0
      %4445 = vmatprep.subr.mxu0 0.0
      %4446 = vmatpush1.msra.mxu0 0.0
      %4447 = vmatprep.subr.mxu0 0.0
      %4448 = vmatpush1.msra.mxu0 0.0
      %4449 = vmatprep.subr.mxu0 0.0
      %4450 = vmatpush1.msra.mxu0 0.0
      %4451 = vmatprep.subr.mxu0 0.0
      %4452 = vmatpush1.msra.mxu0 0.0
      %4453 = vmatprep.subr.mxu0 0.0
      %4454 = vmatpush1.msra.mxu0 0.0
      %4455 = vmatprep.mubr.f32.mxu0 0.0
      %4456 = vmatmul.mubr.f32.gmra.mrb[0].mxu0 %v4306
      %v4457 = vpop.f32.mrb[0].mxu0
      %v4458 = vadd.f32 0.0, %v4457
      %v4459 = vpop.f32.mrb[0].mxu0
      %v4460 = vadd.f32 0.0, %v4459
      %4461 = vdwg.mxu0
      %v4462 = vadd.f32 %v4246, %v4387
      %v4463 = vadd.f32 %v4247, %v4389
      %v4464 = vadd.f32 %v4248, %v4458
      %v4465 = vadd.f32 %v4249, %v4460
      %v4466 = vld [vmem:[#allocation2] sm:$0xff]
      %v4467 = vld [vmem:[#allocation2 + $0x8] sm:$0xff]
      %v4468 = vld [vmem:[#allocation2 + $0x10] sm:$0xf]
      %vm4469 = vmand %vm1882, %vm1887
      %v4470 = vsel %vm4469, 1, 0
      %v4471 = vlaneseq
      %v4472 = vshrl.u32 %v4471, 7
      %v4473 = vsub.s32 0, %v4472
      %v4474 = vrot.slane %v4470, %v4473
      %v4475 = vlaneseq
      %v4476 = vshrl.u32 %v4475, 7
      %v4477 = vsub.s32 1, %v4476
      %v4478 = vrot.slane %v4470, %v4477
      %v4479 = vlaneseq
      %v4480 = vshrl.u32 %v4479, 7
      %v4481 = vsub.s32 2, %v4480
      %v4482 = vrot.slane %v4470, %v4481
      %v4483 = vlaneseq
      %v4484 = vshrl.u32 %v4483, 7
      %v4485 = vsub.s32 3, %v4484
      %v4486 = vrot.slane %v4470, %v4485
      %vm4487 = vcmp.eq.s32.totalorder %v4474, 1
      %vm4488 = vcmp.eq.s32.totalorder %v4478, 1
      %vm4489 = vcmp.eq.s32.totalorder %v4482, 1
      %vm4490 = vcmp.eq.s32.totalorder %v4486, 1
      %v4494 = vcombine.high %v4466, %v4466
      %v4495 = vcombine.high %v4467, %v4467
      %4496 = vrot.lane.b32.xlu0 %v4466, 1
      %v4497 = vpop.permute.xlu0 %4496
      %4498 = vrot.lane.b32.xlu0 %v4494, 1
      %v4499 = vpop.permute.xlu0 %4498
      %4500 = vrot.lane.b32.xlu0 %v4467, 1
      %v4501 = vpop.permute.xlu0 %4500
      %4502 = vrot.lane.b32.xlu0 %v4495, 1
      %v4503 = vpop.permute.xlu0 %4502
      %4504 = vrot.lane.b32.xlu0 %v4468, 1
      %v4505 = vpop.permute.xlu0 %4504
      %vm4506 = vcmask 7168
      %v4507 = vsel %vm4506, %v4497, %v4499
      %v4508 = vsel %vm4506, %v4499, %v4501
      %v4509 = vsel %vm4506, %v4501, %v4503
      %v4510 = vsel %vm4506, %v4503, %v4505
      %v4515 = vsel %vm4487, %v4507, 0.0
      %v4516 = vsel %vm4488, %v4508, 0.0
      %v4517 = vsel %vm4489, %v4509, 0.0
      %v4518 = vsel %vm4490, %v4510, 0.0
      %s4519 = scalar_lea.vmem %s5, 48
      %v4520 = vld [vmem:[%s4519] sm:$0xf]
      %v4522 = vsel %vm1991, %v4520, 0
      %v4525 = vsel %vm1830, %v4515, 0
      %v4528 = vsel %vm1830, %v4516, 0
      %v4531 = vsel %vm1830, %v4517, 0
      %v4534 = vsel %vm1830, %v4518, 0
      %4536 = vmatprep.subr.mxu0 %v4528
      %4537 = vmatpush1.msra.mxu0 %v4525
      %4538 = vmatprep.subr.mxu0 0.0
      %4539 = vmatpush1.msra.mxu0 0.0
      %4540 = vmatprep.subr.mxu0 0.0
      %4541 = vmatpush1.msra.mxu0 0.0
      %4542 = vmatprep.subr.mxu0 0.0
      %4543 = vmatpush1.msra.mxu0 0.0
      %4544 = vmatprep.subr.mxu0 0.0
      %4545 = vmatpush1.msra.mxu0 0.0
      %4546 = vmatprep.subr.mxu0 0.0
      %4547 = vmatpush1.msra.mxu0 0.0
      %4548 = vmatprep.subr.mxu0 0.0
      %4549 = vmatpush1.msra.mxu0 0.0
      %4550 = vmatprep.subr.mxu0 0.0
      %4551 = vmatpush1.msra.mxu0 0.0
      %4552 = vmatprep.subr.mxu0 0.0
      %4553 = vmatpush1.msra.mxu0 0.0
      %4554 = vmatprep.subr.mxu0 0.0
      %4555 = vmatpush1.msra.mxu0 0.0
      %4556 = vmatprep.subr.mxu0 0.0
      %4557 = vmatpush1.msra.mxu0 0.0
      %4558 = vmatprep.subr.mxu0 0.0
      %4559 = vmatpush1.msra.mxu0 0.0
      %4560 = vmatprep.subr.mxu0 0.0
      %4561 = vmatpush1.msra.mxu0 0.0
      %4562 = vmatprep.subr.mxu0 0.0
      %4563 = vmatpush1.msra.mxu0 0.0
      %4564 = vmatprep.subr.mxu0 0.0
      %4565 = vmatpush1.msra.mxu0 0.0
      %4566 = vmatprep.subr.mxu0 0.0
      %4567 = vmatpush1.msra.mxu0 0.0
      %4568 = vmatprep.subr.mxu0 0.0
      %4569 = vmatpush1.msra.mxu0 0.0
      %4570 = vmatprep.subr.mxu0 0.0
      %4571 = vmatpush1.msra.mxu0 0.0
      %4572 = vmatprep.subr.mxu0 0.0
      %4573 = vmatpush1.msra.mxu0 0.0
      %4574 = vmatprep.subr.mxu0 0.0
      %4575 = vmatpush1.msra.mxu0 0.0
      %4576 = vmatprep.subr.mxu0 0.0
      %4577 = vmatpush1.msra.mxu0 0.0
      %4578 = vmatprep.subr.mxu0 0.0
      %4579 = vmatpush1.msra.mxu0 0.0
      %4580 = vmatprep.subr.mxu0 0.0
      %4581 = vmatpush1.msra.mxu0 0.0
      %4582 = vmatprep.subr.mxu0 0.0
      %4583 = vmatpush1.msra.mxu0 0.0
      %4584 = vmatprep.subr.mxu0 0.0
      %4585 = vmatpush1.msra.mxu0 0.0
      %4586 = vmatprep.subr.mxu0 0.0
      %4587 = vmatpush1.msra.mxu0 0.0
      %4588 = vmatprep.subr.mxu0 0.0
      %4589 = vmatpush1.msra.mxu0 0.0
      %4590 = vmatprep.subr.mxu0 0.0
      %4591 = vmatpush1.msra.mxu0 0.0
      %4592 = vmatprep.subr.mxu0 0.0
      %4593 = vmatpush1.msra.mxu0 0.0
      %4594 = vmatprep.subr.mxu0 0.0
      %4595 = vmatpush1.msra.mxu0 0.0
      %4596 = vmatprep.subr.mxu0 0.0
      %4597 = vmatpush1.msra.mxu0 0.0
      %4598 = vmatprep.subr.mxu0 0.0
      %4599 = vmatpush1.msra.mxu0 0.0
      %4600 = vmatprep.mubr.f32.mxu0 0.0
      %4601 = vmatmul.mubr.f32.gmra.mrb[0].mxu0 %v4522
      %v4602 = vpop.f32.mrb[0].mxu0
      %v4603 = vadd.f32 0.0, %v4602
      %v4604 = vpop.f32.mrb[0].mxu0
      %v4605 = vadd.f32 0.0, %v4604
      %4606 = vdwg.mxu0
      %4607 = vmatprep.subr.mxu0 %v4534
      %4608 = vmatpush1.msra.mxu0 %v4531
      %4609 = vmatprep.subr.mxu0 0.0
      %4610 = vmatpush1.msra.mxu0 0.0
      %4611 = vmatprep.subr.mxu0 0.0
      %4612 = vmatpush1.msra.mxu0 0.0
      %4613 = vmatprep.subr.mxu0 0.0
      %4614 = vmatpush1.msra.mxu0 0.0
      %4615 = vmatprep.subr.mxu0 0.0
      %4616 = vmatpush1.msra.mxu0 0.0
      %4617 = vmatprep.subr.mxu0 0.0
      %4618 = vmatpush1.msra.mxu0 0.0
      %4619 = vmatprep.subr.mxu0 0.0
      %4620 = vmatpush1.msra.mxu0 0.0
      %4621 = vmatprep.subr.mxu0 0.0
      %4622 = vmatpush1.msra.mxu0 0.0
      %4623 = vmatprep.subr.mxu0 0.0
      %4624 = vmatpush1.msra.mxu0 0.0
      %4625 = vmatprep.subr.mxu0 0.0
      %4626 = vmatpush1.msra.mxu0 0.0
      %4627 = vmatprep.subr.mxu0 0.0
      %4628 = vmatpush1.msra.mxu0 0.0
      %4629 = vmatprep.subr.mxu0 0.0
      %4630 = vmatpush1.msra.mxu0 0.0
      %4631 = vmatprep.subr.mxu0 0.0
      %4632 = vmatpush1.msra.mxu0 0.0
      %4633 = vmatprep.subr.mxu0 0.0
      %4634 = vmatpush1.msra.mxu0 0.0
      %4635 = vmatprep.subr.mxu0 0.0
      %4636 = vmatpush1.msra.mxu0 0.0
      %4637 = vmatprep.subr.mxu0 0.0
      %4638 = vmatpush1.msra.mxu0 0.0
      %4639 = vmatprep.subr.mxu0 0.0
      %4640 = vmatpush1.msra.mxu0 0.0
      %4641 = vmatprep.subr.mxu0 0.0
      %4642 = vmatpush1.msra.mxu0 0.0
      %4643 = vmatprep.subr.mxu0 0.0
      %4644 = vmatpush1.msra.mxu0 0.0
      %4645 = vmatprep.subr.mxu0 0.0
      %4646 = vmatpush1.msra.mxu0 0.0
      %4647 = vmatprep.subr.mxu0 0.0
      %4648 = vmatpush1.msra.mxu0 0.0
      %4649 = vmatprep.subr.mxu0 0.0
      %4650 = vmatpush1.msra.mxu0 0.0
      %4651 = vmatprep.subr.mxu0 0.0
      %4652 = vmatpush1.msra.mxu0 0.0
      %4653 = vmatprep.subr.mxu0 0.0
      %4654 = vmatpush1.msra.mxu0 0.0
      %4655 = vmatprep.subr.mxu0 0.0
      %4656 = vmatpush1.msra.mxu0 0.0
      %4657 = vmatprep.subr.mxu0 0.0
      %4658 = vmatpush1.msra.mxu0 0.0
      %4659 = vmatprep.subr.mxu0 0.0
      %4660 = vmatpush1.msra.mxu0 0.0
      %4661 = vmatprep.subr.mxu0 0.0
      %4662 = vmatpush1.msra.mxu0 0.0
      %4663 = vmatprep.subr.mxu0 0.0
      %4664 = vmatpush1.msra.mxu0 0.0
      %4665 = vmatprep.subr.mxu0 0.0
      %4666 = vmatpush1.msra.mxu0 0.0
      %4667 = vmatprep.subr.mxu0 0.0
      %4668 = vmatpush1.msra.mxu0 0.0
      %4669 = vmatprep.subr.mxu0 0.0
      %4670 = vmatpush1.msra.mxu0 0.0
      %4671 = vmatprep.mubr.f32.mxu0 0.0
      %4672 = vmatmul.mubr.f32.gmra.mrb[0].mxu0 %v4522
      %v4673 = vpop.f32.mrb[0].mxu0
      %v4674 = vadd.f32 0.0, %v4673
      %v4675 = vpop.f32.mrb[0].mxu0
      %v4676 = vadd.f32 0.0, %v4675
      %4677 = vdwg.mxu0
      %v4678 = vadd.f32 %v4462, %v4603
      %v4679 = vadd.f32 %v4463, %v4605
      %v4680 = vadd.f32 %v4464, %v4674
      %v4681 = vadd.f32 %v4465, %v4676
      %v4682 = vld [vmem:[#allocation2 + $0x4] sm:$0xff]
      %v4683 = vld [vmem:[#allocation2 + $0xc] sm:$0xff]
      %v4684 = vsel %vm1882, 1, 0
      %v4685 = vlaneseq
      %v4686 = vshrl.u32 %v4685, 7
      %v4687 = vsub.s32 0, %v4686
      %v4688 = vrot.slane %v4684, %v4687
      %v4689 = vlaneseq
      %v4690 = vshrl.u32 %v4689, 7
      %v4691 = vsub.s32 1, %v4690
      %v4692 = vrot.slane %v4684, %v4691
      %v4693 = vlaneseq
      %v4694 = vshrl.u32 %v4693, 7
      %v4695 = vsub.s32 2, %v4694
      %v4696 = vrot.slane %v4684, %v4695
      %v4697 = vlaneseq
      %v4698 = vshrl.u32 %v4697, 7
      %v4699 = vsub.s32 3, %v4698
      %v4700 = vrot.slane %v4684, %v4699
      %vm4701 = vcmp.eq.s32.totalorder %v4688, 1
      %vm4702 = vcmp.eq.s32.totalorder %v4692, 1
      %vm4703 = vcmp.eq.s32.totalorder %v4696, 1
      %vm4704 = vcmp.eq.s32.totalorder %v4700, 1
      %v4707 = vcombine.high %v4682, %v4682
      %v4708 = vcombine.high %v4683, %v4683
      %v4711 = vsel %vm4701, %v4682, 0.0
      %v4712 = vsel %vm4702, %v4707, 0.0
      %v4713 = vsel %vm4703, %v4683, 0.0
      %v4714 = vsel %vm4704, %v4708, 0.0
      %s4715 = scalar_lea.vmem %s5, 52
      %v4716 = vld [vmem:[%s4715] sm:$0xf]
      %v4718 = vsel %vm1991, %v4716, 0
      %v4721 = vsel %vm1830, %v4711, 0
      %v4724 = vsel %vm1830, %v4712, 0
      %v4727 = vsel %vm1830, %v4713, 0
      %v4730 = vsel %vm1830, %v4714, 0
      %4732 = vmatprep.subr.mxu0 %v4724
      %4733 = vmatpush1.msra.mxu0 %v4721
      %4734 = vmatprep.subr.mxu0 0.0
      %4735 = vmatpush1.msra.mxu0 0.0
      %4736 = vmatprep.subr.mxu0 0.0
      %4737 = vmatpush1.msra.mxu0 0.0
      %4738 = vmatprep.subr.mxu0 0.0
      %4739 = vmatpush1.msra.mxu0 0.0
      %4740 = vmatprep.subr.mxu0 0.0
      %4741 = vmatpush1.msra.mxu0 0.0
      %4742 = vmatprep.subr.mxu0 0.0
      %4743 = vmatpush1.msra.mxu0 0.0
      %4744 = vmatprep.subr.mxu0 0.0
      %4745 = vmatpush1.msra.mxu0 0.0
      %4746 = vmatprep.subr.mxu0 0.0
      %4747 = vmatpush1.msra.mxu0 0.0
      %4748 = vmatprep.subr.mxu0 0.0
      %4749 = vmatpush1.msra.mxu0 0.0
      %4750 = vmatprep.subr.mxu0 0.0
      %4751 = vmatpush1.msra.mxu0 0.0
      %4752 = vmatprep.subr.mxu0 0.0
      %4753 = vmatpush1.msra.mxu0 0.0
      %4754 = vmatprep.subr.mxu0 0.0
      %4755 = vmatpush1.msra.mxu0 0.0
      %4756 = vmatprep.subr.mxu0 0.0
      %4757 = vmatpush1.msra.mxu0 0.0
      %4758 = vmatprep.subr.mxu0 0.0
      %4759 = vmatpush1.msra.mxu0 0.0
      %4760 = vmatprep.subr.mxu0 0.0
      %4761 = vmatpush1.msra.mxu0 0.0
      %4762 = vmatprep.subr.mxu0 0.0
      %4763 = vmatpush1.msra.mxu0 0.0
      %4764 = vmatprep.subr.mxu0 0.0
      %4765 = vmatpush1.msra.mxu0 0.0
      %4766 = vmatprep.subr.mxu0 0.0
      %4767 = vmatpush1.msra.mxu0 0.0
      %4768 = vmatprep.subr.mxu0 0.0
      %4769 = vmatpush1.msra.mxu0 0.0
      %4770 = vmatprep.subr.mxu0 0.0
      %4771 = vmatpush1.msra.mxu0 0.0
      %4772 = vmatprep.subr.mxu0 0.0
      %4773 = vmatpush1.msra.mxu0 0.0
      %4774 = vmatprep.subr.mxu0 0.0
      %4775 = vmatpush1.msra.mxu0 0.0
      %4776 = vmatprep.subr.mxu0 0.0
      %4777 = vmatpush1.msra.mxu0 0.0
      %4778 = vmatprep.subr.mxu0 0.0
      %4779 = vmatpush1.msra.mxu0 0.0
      %4780 = vmatprep.subr.mxu0 0.0
      %4781 = vmatpush1.msra.mxu0 0.0
      %4782 = vmatprep.subr.mxu0 0.0
      %4783 = vmatpush1.msra.mxu0 0.0
      %4784 = vmatprep.subr.mxu0 0.0
      %4785 = vmatpush1.msra.mxu0 0.0
      %4786 = vmatprep.subr.mxu0 0.0
      %4787 = vmatpush1.msra.mxu0 0.0
      %4788 = vmatprep.subr.mxu0 0.0
      %4789 = vmatpush1.msra.mxu0 0.0
      %4790 = vmatprep.subr.mxu0 0.0
      %4791 = vmatpush1.msra.mxu0 0.0
      %4792 = vmatprep.subr.mxu0 0.0
      %4793 = vmatpush1.msra.mxu0 0.0
      %4794 = vmatprep.subr.mxu0 0.0
      %4795 = vmatpush1.msra.mxu0 0.0
      %4796 = vmatprep.mubr.f32.mxu0 0.0
      %4797 = vmatmul.mubr.f32.gmra.mrb[0].mxu0 %v4718
      %v4798 = vpop.f32.mrb[0].mxu0
      %v4799 = vadd.f32 0.0, %v4798
      %v4800 = vpop.f32.mrb[0].mxu0
      %v4801 = vadd.f32 0.0, %v4800
      %4802 = vdwg.mxu0
      %4803 = vmatprep.subr.mxu0 %v4730
      %4804 = vmatpush1.msra.mxu0 %v4727
      %4805 = vmatprep.subr.mxu0 0.0
      %4806 = vmatpush1.msra.mxu0 0.0
      %4807 = vmatprep.subr.mxu0 0.0
      %4808 = vmatpush1.msra.mxu0 0.0
      %4809 = vmatprep.subr.mxu0 0.0
      %4810 = vmatpush1.msra.mxu0 0.0
      %4811 = vmatprep.subr.mxu0 0.0
      %4812 = vmatpush1.msra.mxu0 0.0
      %4813 = vmatprep.subr.mxu0 0.0
      %4814 = vmatpush1.msra.mxu0 0.0
      %4815 = vmatprep.subr.mxu0 0.0
      %4816 = vmatpush1.msra.mxu0 0.0
      %4817 = vmatprep.subr.mxu0 0.0
      %4818 = vmatpush1.msra.mxu0 0.0
      %4819 = vmatprep.subr.mxu0 0.0
      %4820 = vmatpush1.msra.mxu0 0.0
      %4821 = vmatprep.subr.mxu0 0.0
      %4822 = vmatpush1.msra.mxu0 0.0
      %4823 = vmatprep.subr.mxu0 0.0
      %4824 = vmatpush1.msra.mxu0 0.0
      %4825 = vmatprep.subr.mxu0 0.0
      %4826 = vmatpush1.msra.mxu0 0.0
      %4827 = vmatprep.subr.mxu0 0.0
      %4828 = vmatpush1.msra.mxu0 0.0
      %4829 = vmatprep.subr.mxu0 0.0
      %4830 = vmatpush1.msra.mxu0 0.0
      %4831 = vmatprep.subr.mxu0 0.0
      %4832 = vmatpush1.msra.mxu0 0.0
      %4833 = vmatprep.subr.mxu0 0.0
      %4834 = vmatpush1.msra.mxu0 0.0
      %4835 = vmatprep.subr.mxu0 0.0
      %4836 = vmatpush1.msra.mxu0 0.0
      %4837 = vmatprep.subr.mxu0 0.0
      %4838 = vmatpush1.msra.mxu0 0.0
      %4839 = vmatprep.subr.mxu0 0.0
      %4840 = vmatpush1.msra.mxu0 0.0
      %4841 = vmatprep.subr.mxu0 0.0
      %4842 = vmatpush1.msra.mxu0 0.0
      %4843 = vmatprep.subr.mxu0 0.0
      %4844 = vmatpush1.msra.mxu0 0.0
      %4845 = vmatprep.subr.mxu0 0.0
      %4846 = vmatpush1.msra.mxu0 0.0
      %4847 = vmatprep.subr.mxu0 0.0
      %4848 = vmatpush1.msra.mxu0 0.0
      %4849 = vmatprep.subr.mxu0 0.0
      %4850 = vmatpush1.msra.mxu0 0.0
      %4851 = vmatprep.subr.mxu0 0.0
      %4852 = vmatpush1.msra.mxu0 0.0
      %4853 = vmatprep.subr.mxu0 0.0
      %4854 = vmatpush1.msra.mxu0 0.0
      %4855 = vmatprep.subr.mxu0 0.0
      %4856 = vmatpush1.msra.mxu0 0.0
      %4857 = vmatprep.subr.mxu0 0.0
      %4858 = vmatpush1.msra.mxu0 0.0
      %4859 = vmatprep.subr.mxu0 0.0
      %4860 = vmatpush1.msra.mxu0 0.0
      %4861 = vmatprep.subr.mxu0 0.0
      %4862 = vmatpush1.msra.mxu0 0.0
      %4863 = vmatprep.subr.mxu0 0.0
      %4864 = vmatpush1.msra.mxu0 0.0
      %4865 = vmatprep.subr.mxu0 0.0
      %4866 = vmatpush1.msra.mxu0 0.0
      %4867 = vmatprep.mubr.f32.mxu0 0.0
      %4868 = vmatmul.mubr.f32.gmra.mrb[0].mxu0 %v4718
      %v4869 = vpop.f32.mrb[0].mxu0
      %v4870 = vadd.f32 0.0, %v4869
      %v4871 = vpop.f32.mrb[0].mxu0
      %v4872 = vadd.f32 0.0, %v4871
      %4873 = vdwg.mxu0
      %v4874 = vadd.f32 %v4678, %v4799
      %v4875 = vadd.f32 %v4679, %v4801
      %v4876 = vadd.f32 %v4680, %v4870
      %v4877 = vadd.f32 %v4681, %v4872
      %v4878 = vld [vmem:[#allocation2 + $0x4] sm:$0xff]
      %v4879 = vld [vmem:[#allocation2 + $0xc] sm:$0xff]
      %v4880 = vld [vmem:[#allocation2 + $0x14] sm:$0xf]
      %vm4881 = vmand %vm1882, %vm1888
      %v4882 = vsel %vm4881, 1, 0
      %v4883 = vlaneseq
      %v4884 = vshrl.u32 %v4883, 7
      %v4885 = vsub.s32 0, %v4884
      %v4886 = vrot.slane %v4882, %v4885
      %v4887 = vlaneseq
      %v4888 = vshrl.u32 %v4887, 7
      %v4889 = vsub.s32 1, %v4888
      %v4890 = vrot.slane %v4882, %v4889
      %v4891 = vlaneseq
      %v4892 = vshrl.u32 %v4891, 7
      %v4893 = vsub.s32 2, %v4892
      %v4894 = vrot.slane %v4882, %v4893
      %v4895 = vlaneseq
      %v4896 = vshrl.u32 %v4895, 7
      %v4897 = vsub.s32 3, %v4896
      %v4898 = vrot.slane %v4882, %v4897
      %vm4899 = vcmp.eq.s32.totalorder %v4886, 1
      %vm4900 = vcmp.eq.s32.totalorder %v4890, 1
      %vm4901 = vcmp.eq.s32.totalorder %v4894, 1
      %vm4902 = vcmp.eq.s32.totalorder %v4898, 1
      %v4906 = vcombine.high %v4878, %v4878
      %v4907 = vcombine.high %v4879, %v4879
      %4908 = vrot.lane.b32.xlu0 %v4878, 127
      %v4909 = vpop.permute.xlu0 %4908
      %4910 = vrot.lane.b32.xlu0 %v4906, 127
      %v4911 = vpop.permute.xlu0 %4910
      %4912 = vrot.lane.b32.xlu0 %v4879, 127
      %v4913 = vpop.permute.xlu0 %4912
      %4914 = vrot.lane.b32.xlu0 %v4907, 127
      %v4915 = vpop.permute.xlu0 %4914
      %4916 = vrot.lane.b32.xlu0 %v4880, 127
      %v4917 = vpop.permute.xlu0 %4916
      %vm4918 = vcmask 1039360
      %v4919 = vsel %vm4918, %v4909, %v4911
      %v4920 = vsel %vm4918, %v4911, %v4913
      %v4921 = vsel %vm4918, %v4913, %v4915
      %v4922 = vsel %vm4918, %v4915, %v4917
      %v4927 = vsel %vm4899, %v4919, 0.0
      %v4928 = vsel %vm4900, %v4920, 0.0
      %v4929 = vsel %vm4901, %v4921, 0.0
      %v4930 = vsel %vm4902, %v4922, 0.0
      %s4931 = scalar_lea.vmem %s5, 56
      %v4932 = vld [vmem:[%s4931] sm:$0xf]
      %v4934 = vsel %vm1991, %v4932, 0
      %v4937 = vsel %vm1830, %v4927, 0
      %v4940 = vsel %vm1830, %v4928, 0
      %v4943 = vsel %vm1830, %v4929, 0
      %v4946 = vsel %vm1830, %v4930, 0
      %4948 = vmatprep.subr.mxu0 %v4940
      %4949 = vmatpush1.msra.mxu0 %v4937
      %4950 = vmatprep.subr.mxu0 0.0
      %4951 = vmatpush1.msra.mxu0 0.0
      %4952 = vmatprep.subr.mxu0 0.0
      %4953 = vmatpush1.msra.mxu0 0.0
      %4954 = vmatprep.subr.mxu0 0.0
      %4955 = vmatpush1.msra.mxu0 0.0
      %4956 = vmatprep.subr.mxu0 0.0
      %4957 = vmatpush1.msra.mxu0 0.0
      %4958 = vmatprep.subr.mxu0 0.0
      %4959 = vmatpush1.msra.mxu0 0.0
      %4960 = vmatprep.subr.mxu0 0.0
      %4961 = vmatpush1.msra.mxu0 0.0
      %4962 = vmatprep.subr.mxu0 0.0
      %4963 = vmatpush1.msra.mxu0 0.0
      %4964 = vmatprep.subr.mxu0 0.0
      %4965 = vmatpush1.msra.mxu0 0.0
      %4966 = vmatprep.subr.mxu0 0.0
      %4967 = vmatpush1.msra.mxu0 0.0
      %4968 = vmatprep.subr.mxu0 0.0
      %4969 = vmatpush1.msra.mxu0 0.0
      %4970 = vmatprep.subr.mxu0 0.0
      %4971 = vmatpush1.msra.mxu0 0.0
      %4972 = vmatprep.subr.mxu0 0.0
      %4973 = vmatpush1.msra.mxu0 0.0
      %4974 = vmatprep.subr.mxu0 0.0
      %4975 = vmatpush1.msra.mxu0 0.0
      %4976 = vmatprep.subr.mxu0 0.0
      %4977 = vmatpush1.msra.mxu0 0.0
      %4978 = vmatprep.subr.mxu0 0.0
      %4979 = vmatpush1.msra.mxu0 0.0
      %4980 = vmatprep.subr.mxu0 0.0
      %4981 = vmatpush1.msra.mxu0 0.0
      %4982 = vmatprep.subr.mxu0 0.0
      %4983 = vmatpush1.msra.mxu0 0.0
      %4984 = vmatprep.subr.mxu0 0.0
      %4985 = vmatpush1.msra.mxu0 0.0
      %4986 = vmatprep.subr.mxu0 0.0
      %4987 = vmatpush1.msra.mxu0 0.0
      %4988 = vmatprep.subr.mxu0 0.0
      %4989 = vmatpush1.msra.mxu0 0.0
      %4990 = vmatprep.subr.mxu0 0.0
      %4991 = vmatpush1.msra.mxu0 0.0
      %4992 = vmatprep.subr.mxu0 0.0
      %4993 = vmatpush1.msra.mxu0 0.0
      %4994 = vmatprep.subr.mxu0 0.0
      %4995 = vmatpush1.msra.mxu0 0.0
      %4996 = vmatprep.subr.mxu0 0.0
      %4997 = vmatpush1.msra.mxu0 0.0
      %4998 = vmatprep.subr.mxu0 0.0
      %4999 = vmatpush1.msra.mxu0 0.0
      %5000 = vmatprep.subr.mxu0 0.0
      %5001 = vmatpush1.msra.mxu0 0.0
      %5002 = vmatprep.subr.mxu0 0.0
      %5003 = vmatpush1.msra.mxu0 0.0
      %5004 = vmatprep.subr.mxu0 0.0
      %5005 = vmatpush1.msra.mxu0 0.0
      %5006 = vmatprep.subr.mxu0 0.0
      %5007 = vmatpush1.msra.mxu0 0.0
      %5008 = vmatprep.subr.mxu0 0.0
      %5009 = vmatpush1.msra.mxu0 0.0
      %5010 = vmatprep.subr.mxu0 0.0
      %5011 = vmatpush1.msra.mxu0 0.0
      %5012 = vmatprep.mubr.f32.mxu0 0.0
      %5013 = vmatmul.mubr.f32.gmra.mrb[0].mxu0 %v4934
      %v5014 = vpop.f32.mrb[0].mxu0
      %v5015 = vadd.f32 0.0, %v5014
      %v5016 = vpop.f32.mrb[0].mxu0
      %v5017 = vadd.f32 0.0, %v5016
      %5018 = vdwg.mxu0
      %5019 = vmatprep.subr.mxu0 %v4946
      %5020 = vmatpush1.msra.mxu0 %v4943
      %5021 = vmatprep.subr.mxu0 0.0
      %5022 = vmatpush1.msra.mxu0 0.0
      %5023 = vmatprep.subr.mxu0 0.0
      %5024 = vmatpush1.msra.mxu0 0.0
      %5025 = vmatprep.subr.mxu0 0.0
      %5026 = vmatpush1.msra.mxu0 0.0
      %5027 = vmatprep.subr.mxu0 0.0
      %5028 = vmatpush1.msra.mxu0 0.0
      %5029 = vmatprep.subr.mxu0 0.0
      %5030 = vmatpush1.msra.mxu0 0.0
      %5031 = vmatprep.subr.mxu0 0.0
      %5032 = vmatpush1.msra.mxu0 0.0
      %5033 = vmatprep.subr.mxu0 0.0
      %5034 = vmatpush1.msra.mxu0 0.0
      %5035 = vmatprep.subr.mxu0 0.0
      %5036 = vmatpush1.msra.mxu0 0.0
      %5037 = vmatprep.subr.mxu0 0.0
      %5038 = vmatpush1.msra.mxu0 0.0
      %5039 = vmatprep.subr.mxu0 0.0
      %5040 = vmatpush1.msra.mxu0 0.0
      %5041 = vmatprep.subr.mxu0 0.0
      %5042 = vmatpush1.msra.mxu0 0.0
      %5043 = vmatprep.subr.mxu0 0.0
      %5044 = vmatpush1.msra.mxu0 0.0
      %5045 = vmatprep.subr.mxu0 0.0
      %5046 = vmatpush1.msra.mxu0 0.0
      %5047 = vmatprep.subr.mxu0 0.0
      %5048 = vmatpush1.msra.mxu0 0.0
      %5049 = vmatprep.subr.mxu0 0.0
      %5050 = vmatpush1.msra.mxu0 0.0
      %5051 = vmatprep.subr.mxu0 0.0
      %5052 = vmatpush1.msra.mxu0 0.0
      %5053 = vmatprep.subr.mxu0 0.0
      %5054 = vmatpush1.msra.mxu0 0.0
      %5055 = vmatprep.subr.mxu0 0.0
      %5056 = vmatpush1.msra.mxu0 0.0
      %5057 = vmatprep.subr.mxu0 0.0
      %5058 = vmatpush1.msra.mxu0 0.0
      %5059 = vmatprep.subr.mxu0 0.0
      %5060 = vmatpush1.msra.mxu0 0.0
      %5061 = vmatprep.subr.mxu0 0.0
      %5062 = vmatpush1.msra.mxu0 0.0
      %5063 = vmatprep.subr.mxu0 0.0
      %5064 = vmatpush1.msra.mxu0 0.0
      %5065 = vmatprep.subr.mxu0 0.0
      %5066 = vmatpush1.msra.mxu0 0.0
      %5067 = vmatprep.subr.mxu0 0.0
      %5068 = vmatpush1.msra.mxu0 0.0
      %5069 = vmatprep.subr.mxu0 0.0
      %5070 = vmatpush1.msra.mxu0 0.0
      %5071 = vmatprep.subr.mxu0 0.0
      %5072 = vmatpush1.msra.mxu0 0.0
      %5073 = vmatprep.subr.mxu0 0.0
      %5074 = vmatpush1.msra.mxu0 0.0
      %5075 = vmatprep.subr.mxu0 0.0
      %5076 = vmatpush1.msra.mxu0 0.0
      %5077 = vmatprep.subr.mxu0 0.0
      %5078 = vmatpush1.msra.mxu0 0.0
      %5079 = vmatprep.subr.mxu0 0.0
      %5080 = vmatpush1.msra.mxu0 0.0
      %5081 = vmatprep.subr.mxu0 0.0
      %5082 = vmatpush1.msra.mxu0 0.0
      %5083 = vmatprep.mubr.f32.mxu0 0.0
      %5084 = vmatmul.mubr.f32.gmra.mrb[0].mxu0 %v4934
      %v5085 = vpop.f32.mrb[0].mxu0
      %v5086 = vadd.f32 0.0, %v5085
      %v5087 = vpop.f32.mrb[0].mxu0
      %v5088 = vadd.f32 0.0, %v5087
      %5089 = vdwg.mxu0
      %v5090 = vadd.f32 %v4874, %v5015
      %v5091 = vadd.f32 %v4875, %v5017
      %v5092 = vadd.f32 %v4876, %v5086
      %v5093 = vadd.f32 %v4877, %v5088
      %v5094 = vld [vmem:[#allocation2 + $0x4] sm:$0xff]
      %v5095 = vld [vmem:[#allocation2 + $0xc] sm:$0xff]
      %v5096 = vld [vmem:[#allocation2 + $0x14] sm:$0xf]
      %vm5097 = vmand %vm1882, %vm1886
      %vm5098 = vmand %vm5097, %vm1887
      %v5099 = vsel %vm5098, 1, 0
      %v5100 = vlaneseq
      %v5101 = vshrl.u32 %v5100, 7
      %v5102 = vsub.s32 0, %v5101
      %v5103 = vrot.slane %v5099, %v5102
      %v5104 = vlaneseq
      %v5105 = vshrl.u32 %v5104, 7
      %v5106 = vsub.s32 1, %v5105
      %v5107 = vrot.slane %v5099, %v5106
      %v5108 = vlaneseq
      %v5109 = vshrl.u32 %v5108, 7
      %v5110 = vsub.s32 2, %v5109
      %v5111 = vrot.slane %v5099, %v5110
      %v5112 = vlaneseq
      %v5113 = vshrl.u32 %v5112, 7
      %v5114 = vsub.s32 3, %v5113
      %v5115 = vrot.slane %v5099, %v5114
      %vm5116 = vcmp.eq.s32.totalorder %v5103, 1
      %vm5117 = vcmp.eq.s32.totalorder %v5107, 1
      %vm5118 = vcmp.eq.s32.totalorder %v5111, 1
      %vm5119 = vcmp.eq.s32.totalorder %v5115, 1
      %v5123 = vcombine.high %v5094, %v5094
      %v5124 = vcombine.high %v5095, %v5095
      %5125 = vrot.lane.b32.xlu0 %v5094, 121
      %v5126 = vpop.permute.xlu0 %5125
      %5127 = vrot.lane.b32.xlu0 %v5123, 121
      %v5128 = vpop.permute.xlu0 %5127
      %5129 = vrot.lane.b32.xlu0 %v5095, 121
      %v5130 = vpop.permute.xlu0 %5129
      %5131 = vrot.lane.b32.xlu0 %v5124, 121
      %v5132 = vpop.permute.xlu0 %5131
      %5133 = vrot.lane.b32.xlu0 %v5096, 121
      %v5134 = vpop.permute.xlu0 %5133
      %vm5135 = vcmask 990208
      %v5136 = vsel %vm5135, %v5126, %v5128
      %v5137 = vsel %vm5135, %v5128, %v5130
      %v5138 = vsel %vm5135, %v5130, %v5132
      %v5139 = vsel %vm5135, %v5132, %v5134
      %v5144 = vsel %vm5116, %v5136, 0.0
      %v5145 = vsel %vm5117, %v5137, 0.0
      %v5146 = vsel %vm5118, %v5138, 0.0
      %v5147 = vsel %vm5119, %v5139, 0.0
      %s5148 = scalar_lea.vmem %s5, 60
      %v5149 = vld [vmem:[%s5148] sm:$0xf]
      %v5151 = vsel %vm1991, %v5149, 0
      %v5154 = vsel %vm1830, %v5144, 0
      %v5157 = vsel %vm1830, %v5145, 0
      %v5160 = vsel %vm1830, %v5146, 0
      %v5163 = vsel %vm1830, %v5147, 0
      %5165 = vmatprep.subr.mxu0 %v5157
      %5166 = vmatpush1.msra.mxu0 %v5154
      %5167 = vmatprep.subr.mxu0 0.0
      %5168 = vmatpush1.msra.mxu0 0.0
      %5169 = vmatprep.subr.mxu0 0.0
      %5170 = vmatpush1.msra.mxu0 0.0
      %5171 = vmatprep.subr.mxu0 0.0
      %5172 = vmatpush1.msra.mxu0 0.0
      %5173 = vmatprep.subr.mxu0 0.0
      %5174 = vmatpush1.msra.mxu0 0.0
      %5175 = vmatprep.subr.mxu0 0.0
      %5176 = vmatpush1.msra.mxu0 0.0
      %5177 = vmatprep.subr.mxu0 0.0
      %5178 = vmatpush1.msra.mxu0 0.0
      %5179 = vmatprep.subr.mxu0 0.0
      %5180 = vmatpush1.msra.mxu0 0.0
      %5181 = vmatprep.subr.mxu0 0.0
      %5182 = vmatpush1.msra.mxu0 0.0
      %5183 = vmatprep.subr.mxu0 0.0
      %5184 = vmatpush1.msra.mxu0 0.0
      %5185 = vmatprep.subr.mxu0 0.0
      %5186 = vmatpush1.msra.mxu0 0.0
      %5187 = vmatprep.subr.mxu0 0.0
      %5188 = vmatpush1.msra.mxu0 0.0
      %5189 = vmatprep.subr.mxu0 0.0
      %5190 = vmatpush1.msra.mxu0 0.0
      %5191 = vmatprep.subr.mxu0 0.0
      %5192 = vmatpush1.msra.mxu0 0.0
      %5193 = vmatprep.subr.mxu0 0.0
      %5194 = vmatpush1.msra.mxu0 0.0
      %5195 = vmatprep.subr.mxu0 0.0
      %5196 = vmatpush1.msra.mxu0 0.0
      %5197 = vmatprep.subr.mxu0 0.0
      %5198 = vmatpush1.msra.mxu0 0.0
      %5199 = vmatprep.subr.mxu0 0.0
      %5200 = vmatpush1.msra.mxu0 0.0
      %5201 = vmatprep.subr.mxu0 0.0
      %5202 = vmatpush1.msra.mxu0 0.0
      %5203 = vmatprep.subr.mxu0 0.0
      %5204 = vmatpush1.msra.mxu0 0.0
      %5205 = vmatprep.subr.mxu0 0.0
      %5206 = vmatpush1.msra.mxu0 0.0
      %5207 = vmatprep.subr.mxu0 0.0
      %5208 = vmatpush1.msra.mxu0 0.0
      %5209 = vmatprep.subr.mxu0 0.0
      %5210 = vmatpush1.msra.mxu0 0.0
      %5211 = vmatprep.subr.mxu0 0.0
      %5212 = vmatpush1.msra.mxu0 0.0
      %5213 = vmatprep.subr.mxu0 0.0
      %5214 = vmatpush1.msra.mxu0 0.0
      %5215 = vmatprep.subr.mxu0 0.0
      %5216 = vmatpush1.msra.mxu0 0.0
      %5217 = vmatprep.subr.mxu0 0.0
      %5218 = vmatpush1.msra.mxu0 0.0
      %5219 = vmatprep.subr.mxu0 0.0
      %5220 = vmatpush1.msra.mxu0 0.0
      %5221 = vmatprep.subr.mxu0 0.0
      %5222 = vmatpush1.msra.mxu0 0.0
      %5223 = vmatprep.subr.mxu0 0.0
      %5224 = vmatpush1.msra.mxu0 0.0
      %5225 = vmatprep.subr.mxu0 0.0
      %5226 = vmatpush1.msra.mxu0 0.0
      %5227 = vmatprep.subr.mxu0 0.0
      %5228 = vmatpush1.msra.mxu0 0.0
      %5229 = vmatprep.mubr.f32.mxu0 0.0
      %5230 = vmatmul.mubr.f32.gmra.mrb[0].mxu0 %v5151
      %v5231 = vpop.f32.mrb[0].mxu0
      %v5232 = vadd.f32 0.0, %v5231
      %v5233 = vpop.f32.mrb[0].mxu0
      %v5234 = vadd.f32 0.0, %v5233
      %5235 = vdwg.mxu0
      %5236 = vmatprep.subr.mxu0 %v5163
      %5237 = vmatpush1.msra.mxu0 %v5160
      %5238 = vmatprep.subr.mxu0 0.0
      %5239 = vmatpush1.msra.mxu0 0.0
      %5240 = vmatprep.subr.mxu0 0.0
      %5241 = vmatpush1.msra.mxu0 0.0
      %5242 = vmatprep.subr.mxu0 0.0
      %5243 = vmatpush1.msra.mxu0 0.0
      %5244 = vmatprep.subr.mxu0 0.0
      %5245 = vmatpush1.msra.mxu0 0.0
      %5246 = vmatprep.subr.mxu0 0.0
      %5247 = vmatpush1.msra.mxu0 0.0
      %5248 = vmatprep.subr.mxu0 0.0
      %5249 = vmatpush1.msra.mxu0 0.0
      %5250 = vmatprep.subr.mxu0 0.0
      %5251 = vmatpush1.msra.mxu0 0.0
      %5252 = vmatprep.subr.mxu0 0.0
      %5253 = vmatpush1.msra.mxu0 0.0
      %5254 = vmatprep.subr.mxu0 0.0
      %5255 = vmatpush1.msra.mxu0 0.0
      %5256 = vmatprep.subr.mxu0 0.0
      %5257 = vmatpush1.msra.mxu0 0.0
      %5258 = vmatprep.subr.mxu0 0.0
      %5259 = vmatpush1.msra.mxu0 0.0
      %5260 = vmatprep.subr.mxu0 0.0
      %5261 = vmatpush1.msra.mxu0 0.0
      %5262 = vmatprep.subr.mxu0 0.0
      %5263 = vmatpush1.msra.mxu0 0.0
      %5264 = vmatprep.subr.mxu0 0.0
      %5265 = vmatpush1.msra.mxu0 0.0
      %5266 = vmatprep.subr.mxu0 0.0
      %5267 = vmatpush1.msra.mxu0 0.0
      %5268 = vmatprep.subr.mxu0 0.0
      %5269 = vmatpush1.msra.mxu0 0.0
      %5270 = vmatprep.subr.mxu0 0.0
      %5271 = vmatpush1.msra.mxu0 0.0
      %5272 = vmatprep.subr.mxu0 0.0
      %5273 = vmatpush1.msra.mxu0 0.0
      %5274 = vmatprep.subr.mxu0 0.0
      %5275 = vmatpush1.msra.mxu0 0.0
      %5276 = vmatprep.subr.mxu0 0.0
      %5277 = vmatpush1.msra.mxu0 0.0
      %5278 = vmatprep.subr.mxu0 0.0
      %5279 = vmatpush1.msra.mxu0 0.0
      %5280 = vmatprep.subr.mxu0 0.0
      %5281 = vmatpush1.msra.mxu0 0.0
      %5282 = vmatprep.subr.mxu0 0.0
      %5283 = vmatpush1.msra.mxu0 0.0
      %5284 = vmatprep.subr.mxu0 0.0
      %5285 = vmatpush1.msra.mxu0 0.0
      %5286 = vmatprep.subr.mxu0 0.0
      %5287 = vmatpush1.msra.mxu0 0.0
      %5288 = vmatprep.subr.mxu0 0.0
      %5289 = vmatpush1.msra.mxu0 0.0
      %5290 = vmatprep.subr.mxu0 0.0
      %5291 = vmatpush1.msra.mxu0 0.0
      %5292 = vmatprep.subr.mxu0 0.0
      %5293 = vmatpush1.msra.mxu0 0.0
      %5294 = vmatprep.subr.mxu0 0.0
      %5295 = vmatpush1.msra.mxu0 0.0
      %5296 = vmatprep.subr.mxu0 0.0
      %5297 = vmatpush1.msra.mxu0 0.0
      %5298 = vmatprep.subr.mxu0 0.0
      %5299 = vmatpush1.msra.mxu0 0.0
      %5300 = vmatprep.mubr.f32.mxu0 0.0
      %5301 = vmatmul.mubr.f32.gmra.mrb[0].mxu0 %v5151
      %v5302 = vpop.f32.mrb[0].mxu0
      %v5303 = vadd.f32 0.0, %v5302
      %v5304 = vpop.f32.mrb[0].mxu0
      %v5305 = vadd.f32 0.0, %v5304
      %5306 = vdwg.mxu0
      %v5307 = vadd.f32 %v5090, %v5232
      %v5308 = vadd.f32 %v5091, %v5234
      %v5309 = vadd.f32 %v5092, %v5303
      %v5310 = vadd.f32 %v5093, %v5305
      %v5311 = vld [vmem:[#allocation2 + $0x4] sm:$0xff]
      %v5312 = vld [vmem:[#allocation2 + $0xc] sm:$0xff]
      %v5313 = vld [vmem:[#allocation2 + $0x14] sm:$0xf]
      %v5314 = vsel %vm5097, 1, 0
      %v5315 = vlaneseq
      %v5316 = vshrl.u32 %v5315, 7
      %v5317 = vsub.s32 0, %v5316
      %v5318 = vrot.slane %v5314, %v5317
      %v5319 = vlaneseq
      %v5320 = vshrl.u32 %v5319, 7
      %v5321 = vsub.s32 1, %v5320
      %v5322 = vrot.slane %v5314, %v5321
      %v5323 = vlaneseq
      %v5324 = vshrl.u32 %v5323, 7
      %v5325 = vsub.s32 2, %v5324
      %v5326 = vrot.slane %v5314, %v5325
      %v5327 = vlaneseq
      %v5328 = vshrl.u32 %v5327, 7
      %v5329 = vsub.s32 3, %v5328
      %v5330 = vrot.slane %v5314, %v5329
      %vm5331 = vcmp.eq.s32.totalorder %v5318, 1
      %vm5332 = vcmp.eq.s32.totalorder %v5322, 1
      %vm5333 = vcmp.eq.s32.totalorder %v5326, 1
      %vm5334 = vcmp.eq.s32.totalorder %v5330, 1
      %v5338 = vcombine.high %v5311, %v5311
      %v5339 = vcombine.high %v5312, %v5312
      %5340 = vrot.lane.b32.xlu0 %v5311, 120
      %v5341 = vpop.permute.xlu0 %5340
      %5342 = vrot.lane.b32.xlu0 %v5338, 120
      %v5343 = vpop.permute.xlu0 %5342
      %5344 = vrot.lane.b32.xlu0 %v5312, 120
      %v5345 = vpop.permute.xlu0 %5344
      %5346 = vrot.lane.b32.xlu0 %v5339, 120
      %v5347 = vpop.permute.xlu0 %5346
      %5348 = vrot.lane.b32.xlu0 %v5313, 120
      %v5349 = vpop.permute.xlu0 %5348
      %vm5350 = vcmask 982016
      %v5351 = vsel %vm5350, %v5341, %v5343
      %v5352 = vsel %vm5350, %v5343, %v5345
      %v5353 = vsel %vm5350, %v5345, %v5347
      %v5354 = vsel %vm5350, %v5347, %v5349
      %v5359 = vsel %vm5331, %v5351, 0.0
      %v5360 = vsel %vm5332, %v5352, 0.0
      %v5361 = vsel %vm5333, %v5353, 0.0
      %v5362 = vsel %vm5334, %v5354, 0.0
      %s5363 = scalar_lea.vmem %s5, 64
      %v5364 = vld [vmem:[%s5363] sm:$0xf]
      %v5366 = vsel %vm1991, %v5364, 0
      %v5369 = vsel %vm1830, %v5359, 0
      %v5372 = vsel %vm1830, %v5360, 0
      %v5375 = vsel %vm1830, %v5361, 0
      %v5378 = vsel %vm1830, %v5362, 0
      %5380 = vmatprep.subr.mxu0 %v5372
      %5381 = vmatpush1.msra.mxu0 %v5369
      %5382 = vmatprep.subr.mxu0 0.0
      %5383 = vmatpush1.msra.mxu0 0.0
      %5384 = vmatprep.subr.mxu0 0.0
      %5385 = vmatpush1.msra.mxu0 0.0
      %5386 = vmatprep.subr.mxu0 0.0
      %5387 = vmatpush1.msra.mxu0 0.0
      %5388 = vmatprep.subr.mxu0 0.0
      %5389 = vmatpush1.msra.mxu0 0.0
      %5390 = vmatprep.subr.mxu0 0.0
      %5391 = vmatpush1.msra.mxu0 0.0
      %5392 = vmatprep.subr.mxu0 0.0
      %5393 = vmatpush1.msra.mxu0 0.0
      %5394 = vmatprep.subr.mxu0 0.0
      %5395 = vmatpush1.msra.mxu0 0.0
      %5396 = vmatprep.subr.mxu0 0.0
      %5397 = vmatpush1.msra.mxu0 0.0
      %5398 = vmatprep.subr.mxu0 0.0
      %5399 = vmatpush1.msra.mxu0 0.0
      %5400 = vmatprep.subr.mxu0 0.0
      %5401 = vmatpush1.msra.mxu0 0.0
      %5402 = vmatprep.subr.mxu0 0.0
      %5403 = vmatpush1.msra.mxu0 0.0
      %5404 = vmatprep.subr.mxu0 0.0
      %5405 = vmatpush1.msra.mxu0 0.0
      %5406 = vmatprep.subr.mxu0 0.0
      %5407 = vmatpush1.msra.mxu0 0.0
      %5408 = vmatprep.subr.mxu0 0.0
      %5409 = vmatpush1.msra.mxu0 0.0
      %5410 = vmatprep.subr.mxu0 0.0
      %5411 = vmatpush1.msra.mxu0 0.0
      %5412 = vmatprep.subr.mxu0 0.0
      %5413 = vmatpush1.msra.mxu0 0.0
      %5414 = vmatprep.subr.mxu0 0.0
      %5415 = vmatpush1.msra.mxu0 0.0
      %5416 = vmatprep.subr.mxu0 0.0
      %5417 = vmatpush1.msra.mxu0 0.0
      %5418 = vmatprep.subr.mxu0 0.0
      %5419 = vmatpush1.msra.mxu0 0.0
      %5420 = vmatprep.subr.mxu0 0.0
      %5421 = vmatpush1.msra.mxu0 0.0
      %5422 = vmatprep.subr.mxu0 0.0
      %5423 = vmatpush1.msra.mxu0 0.0
      %5424 = vmatprep.subr.mxu0 0.0
      %5425 = vmatpush1.msra.mxu0 0.0
      %5426 = vmatprep.subr.mxu0 0.0
      %5427 = vmatpush1.msra.mxu0 0.0
      %5428 = vmatprep.subr.mxu0 0.0
      %5429 = vmatpush1.msra.mxu0 0.0
      %5430 = vmatprep.subr.mxu0 0.0
      %5431 = vmatpush1.msra.mxu0 0.0
      %5432 = vmatprep.subr.mxu0 0.0
      %5433 = vmatpush1.msra.mxu0 0.0
      %5434 = vmatprep.subr.mxu0 0.0
      %5435 = vmatpush1.msra.mxu0 0.0
      %5436 = vmatprep.subr.mxu0 0.0
      %5437 = vmatpush1.msra.mxu0 0.0
      %5438 = vmatprep.subr.mxu0 0.0
      %5439 = vmatpush1.msra.mxu0 0.0
      %5440 = vmatprep.subr.mxu0 0.0
      %5441 = vmatpush1.msra.mxu0 0.0
      %5442 = vmatprep.subr.mxu0 0.0
      %5443 = vmatpush1.msra.mxu0 0.0
      %5444 = vmatprep.mubr.f32.mxu0 0.0
      %5445 = vmatmul.mubr.f32.gmra.mrb[0].mxu0 %v5366
      %v5446 = vpop.f32.mrb[0].mxu0
      %v5447 = vadd.f32 0.0, %v5446
      %v5448 = vpop.f32.mrb[0].mxu0
      %v5449 = vadd.f32 0.0, %v5448
      %5450 = vdwg.mxu0
      %5451 = vmatprep.subr.mxu0 %v5378
      %5452 = vmatpush1.msra.mxu0 %v5375
      %5453 = vmatprep.subr.mxu0 0.0
      %5454 = vmatpush1.msra.mxu0 0.0
      %5455 = vmatprep.subr.mxu0 0.0
      %5456 = vmatpush1.msra.mxu0 0.0
      %5457 = vmatprep.subr.mxu0 0.0
      %5458 = vmatpush1.msra.mxu0 0.0
      %5459 = vmatprep.subr.mxu0 0.0
      %5460 = vmatpush1.msra.mxu0 0.0
      %5461 = vmatprep.subr.mxu0 0.0
      %5462 = vmatpush1.msra.mxu0 0.0
      %5463 = vmatprep.subr.mxu0 0.0
      %5464 = vmatpush1.msra.mxu0 0.0
      %5465 = vmatprep.subr.mxu0 0.0
      %5466 = vmatpush1.msra.mxu0 0.0
      %5467 = vmatprep.subr.mxu0 0.0
      %5468 = vmatpush1.msra.mxu0 0.0
      %5469 = vmatprep.subr.mxu0 0.0
      %5470 = vmatpush1.msra.mxu0 0.0
      %5471 = vmatprep.subr.mxu0 0.0
      %5472 = vmatpush1.msra.mxu0 0.0
      %5473 = vmatprep.subr.mxu0 0.0
      %5474 = vmatpush1.msra.mxu0 0.0
      %5475 = vmatprep.subr.mxu0 0.0
      %5476 = vmatpush1.msra.mxu0 0.0
      %5477 = vmatprep.subr.mxu0 0.0
      %5478 = vmatpush1.msra.mxu0 0.0
      %5479 = vmatprep.subr.mxu0 0.0
      %5480 = vmatpush1.msra.mxu0 0.0
      %5481 = vmatprep.subr.mxu0 0.0
      %5482 = vmatpush1.msra.mxu0 0.0
      %5483 = vmatprep.subr.mxu0 0.0
      %5484 = vmatpush1.msra.mxu0 0.0
      %5485 = vmatprep.subr.mxu0 0.0
      %5486 = vmatpush1.msra.mxu0 0.0
      %5487 = vmatprep.subr.mxu0 0.0
      %5488 = vmatpush1.msra.mxu0 0.0
      %5489 = vmatprep.subr.mxu0 0.0
      %5490 = vmatpush1.msra.mxu0 0.0
      %5491 = vmatprep.subr.mxu0 0.0
      %5492 = vmatpush1.msra.mxu0 0.0
      %5493 = vmatprep.subr.mxu0 0.0
      %5494 = vmatpush1.msra.mxu0 0.0
      %5495 = vmatprep.subr.mxu0 0.0
      %5496 = vmatpush1.msra.mxu0 0.0
      %5497 = vmatprep.subr.mxu0 0.0
      %5498 = vmatpush1.msra.mxu0 0.0
      %5499 = vmatprep.subr.mxu0 0.0
      %5500 = vmatpush1.msra.mxu0 0.0
      %5501 = vmatprep.subr.mxu0 0.0
      %5502 = vmatpush1.msra.mxu0 0.0
      %5503 = vmatprep.subr.mxu0 0.0
      %5504 = vmatpush1.msra.mxu0 0.0
      %5505 = vmatprep.subr.mxu0 0.0
      %5506 = vmatpush1.msra.mxu0 0.0
      %5507 = vmatprep.subr.mxu0 0.0
      %5508 = vmatpush1.msra.mxu0 0.0
      %5509 = vmatprep.subr.mxu0 0.0
      %5510 = vmatpush1.msra.mxu0 0.0
      %5511 = vmatprep.subr.mxu0 0.0
      %5512 = vmatpush1.msra.mxu0 0.0
      %5513 = vmatprep.subr.mxu0 0.0
      %5514 = vmatpush1.msra.mxu0 0.0
      %5515 = vmatprep.mubr.f32.mxu0 0.0
      %5516 = vmatmul.mubr.f32.gmra.mrb[0].mxu0 %v5366
      %v5517 = vpop.f32.mrb[0].mxu0
      %v5518 = vadd.f32 0.0, %v5517
      %v5519 = vpop.f32.mrb[0].mxu0
      %v5520 = vadd.f32 0.0, %v5519
      %5521 = vdwg.mxu0
      %v5522 = vadd.f32 %v5307, %v5447
      %v5523 = vadd.f32 %v5308, %v5449
      %v5524 = vadd.f32 %v5309, %v5518
      %v5525 = vadd.f32 %v5310, %v5520
      %v5526 = vld [vmem:[#allocation2 + $0x4] sm:$0xff]
      %v5527 = vld [vmem:[#allocation2 + $0xc] sm:$0xff]
      %v5528 = vld [vmem:[#allocation2 + $0x14] sm:$0xf]
      %vm5529 = vmand %vm5097, %vm1888
      %v5530 = vsel %vm5529, 1, 0
      %v5531 = vlaneseq
      %v5532 = vshrl.u32 %v5531, 7
      %v5533 = vsub.s32 0, %v5532
      %v5534 = vrot.slane %v5530, %v5533
      %v5535 = vlaneseq
      %v5536 = vshrl.u32 %v5535, 7
      %v5537 = vsub.s32 1, %v5536
      %v5538 = vrot.slane %v5530, %v5537
      %v5539 = vlaneseq
      %v5540 = vshrl.u32 %v5539, 7
      %v5541 = vsub.s32 2, %v5540
      %v5542 = vrot.slane %v5530, %v5541
      %v5543 = vlaneseq
      %v5544 = vshrl.u32 %v5543, 7
      %v5545 = vsub.s32 3, %v5544
      %v5546 = vrot.slane %v5530, %v5545
      %vm5547 = vcmp.eq.s32.totalorder %v5534, 1
      %vm5548 = vcmp.eq.s32.totalorder %v5538, 1
      %vm5549 = vcmp.eq.s32.totalorder %v5542, 1
      %vm5550 = vcmp.eq.s32.totalorder %v5546, 1
      %v5554 = vcombine.high %v5526, %v5526
      %v5555 = vcombine.high %v5527, %v5527
      %5556 = vrot.lane.b32.xlu0 %v5526, 119
      %v5557 = vpop.permute.xlu0 %5556
      %5558 = vrot.lane.b32.xlu0 %v5554, 119
      %v5559 = vpop.permute.xlu0 %5558
      %5560 = vrot.lane.b32.xlu0 %v5527, 119
      %v5561 = vpop.permute.xlu0 %5560
      %5562 = vrot.lane.b32.xlu0 %v5555, 119
      %v5563 = vpop.permute.xlu0 %5562
      %5564 = vrot.lane.b32.xlu0 %v5528, 119
      %v5565 = vpop.permute.xlu0 %5564
      %vm5566 = vcmask 973824
      %v5567 = vsel %vm5566, %v5557, %v5559
      %v5568 = vsel %vm5566, %v5559, %v5561
      %v5569 = vsel %vm5566, %v5561, %v5563
      %v5570 = vsel %vm5566, %v5563, %v5565
      %v5575 = vsel %vm5547, %v5567, 0.0
      %v5576 = vsel %vm5548, %v5568, 0.0
      %v5577 = vsel %vm5549, %v5569, 0.0
      %v5578 = vsel %vm5550, %v5570, 0.0
      %s5579 = scalar_lea.vmem %s5, 68
      %v5580 = vld [vmem:[%s5579] sm:$0xf]
      %v5582 = vsel %vm1991, %v5580, 0
      %v5585 = vsel %vm1830, %v5575, 0
      %v5588 = vsel %vm1830, %v5576, 0
      %v5591 = vsel %vm1830, %v5577, 0
      %v5594 = vsel %vm1830, %v5578, 0
      %5596 = vmatprep.subr.mxu0 %v5588
      %5597 = vmatpush1.msra.mxu0 %v5585
      %5598 = vmatprep.subr.mxu0 0.0
      %5599 = vmatpush1.msra.mxu0 0.0
      %5600 = vmatprep.subr.mxu0 0.0
      %5601 = vmatpush1.msra.mxu0 0.0
      %5602 = vmatprep.subr.mxu0 0.0
      %5603 = vmatpush1.msra.mxu0 0.0
      %5604 = vmatprep.subr.mxu0 0.0
      %5605 = vmatpush1.msra.mxu0 0.0
      %5606 = vmatprep.subr.mxu0 0.0
      %5607 = vmatpush1.msra.mxu0 0.0
      %5608 = vmatprep.subr.mxu0 0.0
      %5609 = vmatpush1.msra.mxu0 0.0
      %5610 = vmatprep.subr.mxu0 0.0
      %5611 = vmatpush1.msra.mxu0 0.0
      %5612 = vmatprep.subr.mxu0 0.0
      %5613 = vmatpush1.msra.mxu0 0.0
      %5614 = vmatprep.subr.mxu0 0.0
      %5615 = vmatpush1.msra.mxu0 0.0
      %5616 = vmatprep.subr.mxu0 0.0
      %5617 = vmatpush1.msra.mxu0 0.0
      %5618 = vmatprep.subr.mxu0 0.0
      %5619 = vmatpush1.msra.mxu0 0.0
      %5620 = vmatprep.subr.mxu0 0.0
      %5621 = vmatpush1.msra.mxu0 0.0
      %5622 = vmatprep.subr.mxu0 0.0
      %5623 = vmatpush1.msra.mxu0 0.0
      %5624 = vmatprep.subr.mxu0 0.0
      %5625 = vmatpush1.msra.mxu0 0.0
      %5626 = vmatprep.subr.mxu0 0.0
      %5627 = vmatpush1.msra.mxu0 0.0
      %5628 = vmatprep.subr.mxu0 0.0
      %5629 = vmatpush1.msra.mxu0 0.0
      %5630 = vmatprep.subr.mxu0 0.0
      %5631 = vmatpush1.msra.mxu0 0.0
      %5632 = vmatprep.subr.mxu0 0.0
      %5633 = vmatpush1.msra.mxu0 0.0
      %5634 = vmatprep.subr.mxu0 0.0
      %5635 = vmatpush1.msra.mxu0 0.0
      %5636 = vmatprep.subr.mxu0 0.0
      %5637 = vmatpush1.msra.mxu0 0.0
      %5638 = vmatprep.subr.mxu0 0.0
      %5639 = vmatpush1.msra.mxu0 0.0
      %5640 = vmatprep.subr.mxu0 0.0
      %5641 = vmatpush1.msra.mxu0 0.0
      %5642 = vmatprep.subr.mxu0 0.0
      %5643 = vmatpush1.msra.mxu0 0.0
      %5644 = vmatprep.subr.mxu0 0.0
      %5645 = vmatpush1.msra.mxu0 0.0
      %5646 = vmatprep.subr.mxu0 0.0
      %5647 = vmatpush1.msra.mxu0 0.0
      %5648 = vmatprep.subr.mxu0 0.0
      %5649 = vmatpush1.msra.mxu0 0.0
      %5650 = vmatprep.subr.mxu0 0.0
      %5651 = vmatpush1.msra.mxu0 0.0
      %5652 = vmatprep.subr.mxu0 0.0
      %5653 = vmatpush1.msra.mxu0 0.0
      %5654 = vmatprep.subr.mxu0 0.0
      %5655 = vmatpush1.msra.mxu0 0.0
      %5656 = vmatprep.subr.mxu0 0.0
      %5657 = vmatpush1.msra.mxu0 0.0
      %5658 = vmatprep.subr.mxu0 0.0
      %5659 = vmatpush1.msra.mxu0 0.0
      %5660 = vmatprep.mubr.f32.mxu0 0.0
      %5661 = vmatmul.mubr.f32.gmra.mrb[0].mxu0 %v5582
      %v5662 = vpop.f32.mrb[0].mxu0
      %v5663 = vadd.f32 0.0, %v5662
      %v5664 = vpop.f32.mrb[0].mxu0
      %v5665 = vadd.f32 0.0, %v5664
      %5666 = vdwg.mxu0
      %5667 = vmatprep.subr.mxu0 %v5594
      %5668 = vmatpush1.msra.mxu0 %v5591
      %5669 = vmatprep.subr.mxu0 0.0
      %5670 = vmatpush1.msra.mxu0 0.0
      %5671 = vmatprep.subr.mxu0 0.0
      %5672 = vmatpush1.msra.mxu0 0.0
      %5673 = vmatprep.subr.mxu0 0.0
      %5674 = vmatpush1.msra.mxu0 0.0
      %5675 = vmatprep.subr.mxu0 0.0
      %5676 = vmatpush1.msra.mxu0 0.0
      %5677 = vmatprep.subr.mxu0 0.0
      %5678 = vmatpush1.msra.mxu0 0.0
      %5679 = vmatprep.subr.mxu0 0.0
      %5680 = vmatpush1.msra.mxu0 0.0
      %5681 = vmatprep.subr.mxu0 0.0
      %5682 = vmatpush1.msra.mxu0 0.0
      %5683 = vmatprep.subr.mxu0 0.0
      %5684 = vmatpush1.msra.mxu0 0.0
      %5685 = vmatprep.subr.mxu0 0.0
      %5686 = vmatpush1.msra.mxu0 0.0
      %5687 = vmatprep.subr.mxu0 0.0
      %5688 = vmatpush1.msra.mxu0 0.0
      %5689 = vmatprep.subr.mxu0 0.0
      %5690 = vmatpush1.msra.mxu0 0.0
      %5691 = vmatprep.subr.mxu0 0.0
      %5692 = vmatpush1.msra.mxu0 0.0
      %5693 = vmatprep.subr.mxu0 0.0
      %5694 = vmatpush1.msra.mxu0 0.0
      %5695 = vmatprep.subr.mxu0 0.0
      %5696 = vmatpush1.msra.mxu0 0.0
      %5697 = vmatprep.subr.mxu0 0.0
      %5698 = vmatpush1.msra.mxu0 0.0
      %5699 = vmatprep.subr.mxu0 0.0
      %5700 = vmatpush1.msra.mxu0 0.0
      %5701 = vmatprep.subr.mxu0 0.0
      %5702 = vmatpush1.msra.mxu0 0.0
      %5703 = vmatprep.subr.mxu0 0.0
      %5704 = vmatpush1.msra.mxu0 0.0
      %5705 = vmatprep.subr.mxu0 0.0
      %5706 = vmatpush1.msra.mxu0 0.0
      %5707 = vmatprep.subr.mxu0 0.0
      %5708 = vmatpush1.msra.mxu0 0.0
      %5709 = vmatprep.subr.mxu0 0.0
      %5710 = vmatpush1.msra.mxu0 0.0
      %5711 = vmatprep.subr.mxu0 0.0
      %5712 = vmatpush1.msra.mxu0 0.0
      %5713 = vmatprep.subr.mxu0 0.0
      %5714 = vmatpush1.msra.mxu0 0.0
      %5715 = vmatprep.subr.mxu0 0.0
      %5716 = vmatpush1.msra.mxu0 0.0
      %5717 = vmatprep.subr.mxu0 0.0
      %5718 = vmatpush1.msra.mxu0 0.0
      %5719 = vmatprep.subr.mxu0 0.0
      %5720 = vmatpush1.msra.mxu0 0.0
      %5721 = vmatprep.subr.mxu0 0.0
      %5722 = vmatpush1.msra.mxu0 0.0
      %5723 = vmatprep.subr.mxu0 0.0
      %5724 = vmatpush1.msra.mxu0 0.0
      %5725 = vmatprep.subr.mxu0 0.0
      %5726 = vmatpush1.msra.mxu0 0.0
      %5727 = vmatprep.subr.mxu0 0.0
      %5728 = vmatpush1.msra.mxu0 0.0
      %5729 = vmatprep.subr.mxu0 0.0
      %5730 = vmatpush1.msra.mxu0 0.0
      %5731 = vmatprep.mubr.f32.mxu0 0.0
      %5732 = vmatmul.mubr.f32.gmra.mrb[0].mxu0 %v5582
      %v5733 = vpop.f32.mrb[0].mxu0
      %v5734 = vadd.f32 0.0, %v5733
      %v5735 = vpop.f32.mrb[0].mxu0
      %v5736 = vadd.f32 0.0, %v5735
      %5737 = vdwg.mxu0
      %v5738 = vadd.f32 %v5522, %v5663
      %v5739 = vadd.f32 %v5523, %v5665
      %v5740 = vadd.f32 %v5524, %v5734
      %v5741 = vadd.f32 %v5525, %v5736
      %v5742 = vld [vmem:[#allocation2 + $0x4] sm:$0xff]
      %v5743 = vld [vmem:[#allocation2 + $0xc] sm:$0xff]
      %v5744 = vld [vmem:[#allocation2 + $0x14] sm:$0xf]
      %vm5745 = vmand %vm1884, %vm1885
      %vm5746 = vmand %vm5745, %vm1887
      %v5747 = vsel %vm5746, 1, 0
      %v5748 = vlaneseq
      %v5749 = vshrl.u32 %v5748, 7
      %v5750 = vsub.s32 0, %v5749
      %v5751 = vrot.slane %v5747, %v5750
      %v5752 = vlaneseq
      %v5753 = vshrl.u32 %v5752, 7
      %v5754 = vsub.s32 1, %v5753
      %v5755 = vrot.slane %v5747, %v5754
      %v5756 = vlaneseq
      %v5757 = vshrl.u32 %v5756, 7
      %v5758 = vsub.s32 2, %v5757
      %v5759 = vrot.slane %v5747, %v5758
      %v5760 = vlaneseq
      %v5761 = vshrl.u32 %v5760, 7
      %v5762 = vsub.s32 3, %v5761
      %v5763 = vrot.slane %v5747, %v5762
      %vm5764 = vcmp.eq.s32.totalorder %v5751, 1
      %vm5765 = vcmp.eq.s32.totalorder %v5755, 1
      %vm5766 = vcmp.eq.s32.totalorder %v5759, 1
      %vm5767 = vcmp.eq.s32.totalorder %v5763, 1
      %v5771 = vcombine.high %v5742, %v5742
      %v5772 = vcombine.high %v5743, %v5743
      %5773 = vrot.lane.b32.xlu0 %v5742, 73
      %v5774 = vpop.permute.xlu0 %5773
      %5775 = vrot.lane.b32.xlu0 %v5771, 73
      %v5776 = vpop.permute.xlu0 %5775
      %5777 = vrot.lane.b32.xlu0 %v5743, 73
      %v5778 = vpop.permute.xlu0 %5777
      %5779 = vrot.lane.b32.xlu0 %v5772, 73
      %v5780 = vpop.permute.xlu0 %5779
      %5781 = vrot.lane.b32.xlu0 %v5744, 73
      %v5782 = vpop.permute.xlu0 %5781
      %v5783 = vsel %vm1930, %v5774, %v5776
      %v5784 = vsel %vm1930, %v5776, %v5778
      %v5785 = vsel %vm1930, %v5778, %v5780
      %v5786 = vsel %vm1930, %v5780, %v5782
      %v5791 = vsel %vm5764, %v5783, 0.0
      %v5792 = vsel %vm5765, %v5784, 0.0
      %v5793 = vsel %vm5766, %v5785, 0.0
      %v5794 = vsel %vm5767, %v5786, 0.0
      %s5795 = scalar_lea.vmem %s5, 72
      %v5796 = vld [vmem:[%s5795] sm:$0xf]
      %v5798 = vsel %vm1991, %v5796, 0
      %v5801 = vsel %vm1830, %v5791, 0
      %v5804 = vsel %vm1830, %v5792, 0
      %v5807 = vsel %vm1830, %v5793, 0
      %v5810 = vsel %vm1830, %v5794, 0
      %5812 = vmatprep.subr.mxu0 %v5804
      %5813 = vmatpush1.msra.mxu0 %v5801
      %5814 = vmatprep.subr.mxu0 0.0
      %5815 = vmatpush1.msra.mxu0 0.0
      %5816 = vmatprep.subr.mxu0 0.0
      %5817 = vmatpush1.msra.mxu0 0.0
      %5818 = vmatprep.subr.mxu0 0.0
      %5819 = vmatpush1.msra.mxu0 0.0
      %5820 = vmatprep.subr.mxu0 0.0
      %5821 = vmatpush1.msra.mxu0 0.0
      %5822 = vmatprep.subr.mxu0 0.0
      %5823 = vmatpush1.msra.mxu0 0.0
      %5824 = vmatprep.subr.mxu0 0.0
      %5825 = vmatpush1.msra.mxu0 0.0
      %5826 = vmatprep.subr.mxu0 0.0
      %5827 = vmatpush1.msra.mxu0 0.0
      %5828 = vmatprep.subr.mxu0 0.0
      %5829 = vmatpush1.msra.mxu0 0.0
      %5830 = vmatprep.subr.mxu0 0.0
      %5831 = vmatpush1.msra.mxu0 0.0
      %5832 = vmatprep.subr.mxu0 0.0
      %5833 = vmatpush1.msra.mxu0 0.0
      %5834 = vmatprep.subr.mxu0 0.0
      %5835 = vmatpush1.msra.mxu0 0.0
      %5836 = vmatprep.subr.mxu0 0.0
      %5837 = vmatpush1.msra.mxu0 0.0
      %5838 = vmatprep.subr.mxu0 0.0
      %5839 = vmatpush1.msra.mxu0 0.0
      %5840 = vmatprep.subr.mxu0 0.0
      %5841 = vmatpush1.msra.mxu0 0.0
      %5842 = vmatprep.subr.mxu0 0.0
      %5843 = vmatpush1.msra.mxu0 0.0
      %5844 = vmatprep.subr.mxu0 0.0
      %5845 = vmatpush1.msra.mxu0 0.0
      %5846 = vmatprep.subr.mxu0 0.0
      %5847 = vmatpush1.msra.mxu0 0.0
      %5848 = vmatprep.subr.mxu0 0.0
      %5849 = vmatpush1.msra.mxu0 0.0
      %5850 = vmatprep.subr.mxu0 0.0
      %5851 = vmatpush1.msra.mxu0 0.0
      %5852 = vmatprep.subr.mxu0 0.0
      %5853 = vmatpush1.msra.mxu0 0.0
      %5854 = vmatprep.subr.mxu0 0.0
      %5855 = vmatpush1.msra.mxu0 0.0
      %5856 = vmatprep.subr.mxu0 0.0
      %5857 = vmatpush1.msra.mxu0 0.0
      %5858 = vmatprep.subr.mxu0 0.0
      %5859 = vmatpush1.msra.mxu0 0.0
      %5860 = vmatprep.subr.mxu0 0.0
      %5861 = vmatpush1.msra.mxu0 0.0
      %5862 = vmatprep.subr.mxu0 0.0
      %5863 = vmatpush1.msra.mxu0 0.0
      %5864 = vmatprep.subr.mxu0 0.0
      %5865 = vmatpush1.msra.mxu0 0.0
      %5866 = vmatprep.subr.mxu0 0.0
      %5867 = vmatpush1.msra.mxu0 0.0
      %5868 = vmatprep.subr.mxu0 0.0
      %5869 = vmatpush1.msra.mxu0 0.0
      %5870 = vmatprep.subr.mxu0 0.0
      %5871 = vmatpush1.msra.mxu0 0.0
      %5872 = vmatprep.subr.mxu0 0.0
      %5873 = vmatpush1.msra.mxu0 0.0
      %5874 = vmatprep.subr.mxu0 0.0
      %5875 = vmatpush1.msra.mxu0 0.0
      %5876 = vmatprep.mubr.f32.mxu0 0.0
      %5877 = vmatmul.mubr.f32.gmra.mrb[0].mxu0 %v5798
      %v5878 = vpop.f32.mrb[0].mxu0
      %v5879 = vadd.f32 0.0, %v5878
      %v5880 = vpop.f32.mrb[0].mxu0
      %v5881 = vadd.f32 0.0, %v5880
      %5882 = vdwg.mxu0
      %5883 = vmatprep.subr.mxu0 %v5810
      %5884 = vmatpush1.msra.mxu0 %v5807
      %5885 = vmatprep.subr.mxu0 0.0
      %5886 = vmatpush1.msra.mxu0 0.0
      %5887 = vmatprep.subr.mxu0 0.0
      %5888 = vmatpush1.msra.mxu0 0.0
      %5889 = vmatprep.subr.mxu0 0.0
      %5890 = vmatpush1.msra.mxu0 0.0
      %5891 = vmatprep.subr.mxu0 0.0
      %5892 = vmatpush1.msra.mxu0 0.0
      %5893 = vmatprep.subr.mxu0 0.0
      %5894 = vmatpush1.msra.mxu0 0.0
      %5895 = vmatprep.subr.mxu0 0.0
      %5896 = vmatpush1.msra.mxu0 0.0
      %5897 = vmatprep.subr.mxu0 0.0
      %5898 = vmatpush1.msra.mxu0 0.0
      %5899 = vmatprep.subr.mxu0 0.0
      %5900 = vmatpush1.msra.mxu0 0.0
      %5901 = vmatprep.subr.mxu0 0.0
      %5902 = vmatpush1.msra.mxu0 0.0
      %5903 = vmatprep.subr.mxu0 0.0
      %5904 = vmatpush1.msra.mxu0 0.0
      %5905 = vmatprep.subr.mxu0 0.0
      %5906 = vmatpush1.msra.mxu0 0.0
      %5907 = vmatprep.subr.mxu0 0.0
      %5908 = vmatpush1.msra.mxu0 0.0
      %5909 = vmatprep.subr.mxu0 0.0
      %5910 = vmatpush1.msra.mxu0 0.0
      %5911 = vmatprep.subr.mxu0 0.0
      %5912 = vmatpush1.msra.mxu0 0.0
      %5913 = vmatprep.subr.mxu0 0.0
      %5914 = vmatpush1.msra.mxu0 0.0
      %5915 = vmatprep.subr.mxu0 0.0
      %5916 = vmatpush1.msra.mxu0 0.0
      %5917 = vmatprep.subr.mxu0 0.0
      %5918 = vmatpush1.msra.mxu0 0.0
      %5919 = vmatprep.subr.mxu0 0.0
      %5920 = vmatpush1.msra.mxu0 0.0
      %5921 = vmatprep.subr.mxu0 0.0
      %5922 = vmatpush1.msra.mxu0 0.0
      %5923 = vmatprep.subr.mxu0 0.0
      %5924 = vmatpush1.msra.mxu0 0.0
      %5925 = vmatprep.subr.mxu0 0.0
      %5926 = vmatpush1.msra.mxu0 0.0
      %5927 = vmatprep.subr.mxu0 0.0
      %5928 = vmatpush1.msra.mxu0 0.0
      %5929 = vmatprep.subr.mxu0 0.0
      %5930 = vmatpush1.msra.mxu0 0.0
      %5931 = vmatprep.subr.mxu0 0.0
      %5932 = vmatpush1.msra.mxu0 0.0
      %5933 = vmatprep.subr.mxu0 0.0
      %5934 = vmatpush1.msra.mxu0 0.0
      %5935 = vmatprep.subr.mxu0 0.0
      %5936 = vmatpush1.msra.mxu0 0.0
      %5937 = vmatprep.subr.mxu0 0.0
      %5938 = vmatpush1.msra.mxu0 0.0
      %5939 = vmatprep.subr.mxu0 0.0
      %5940 = vmatpush1.msra.mxu0 0.0
      %5941 = vmatprep.subr.mxu0 0.0
      %5942 = vmatpush1.msra.mxu0 0.0
      %5943 = vmatprep.subr.mxu0 0.0
      %5944 = vmatpush1.msra.mxu0 0.0
      %5945 = vmatprep.subr.mxu0 0.0
      %5946 = vmatpush1.msra.mxu0 0.0
      %5947 = vmatprep.mubr.f32.mxu0 0.0
      %5948 = vmatmul.mubr.f32.gmra.mrb[0].mxu0 %v5798
      %v5949 = vpop.f32.mrb[0].mxu0
      %v5950 = vadd.f32 0.0, %v5949
      %v5951 = vpop.f32.mrb[0].mxu0
      %v5952 = vadd.f32 0.0, %v5951
      %5953 = vdwg.mxu0
      %v5954 = vadd.f32 %v5738, %v5879
      %v5955 = vadd.f32 %v5739, %v5881
      %v5956 = vadd.f32 %v5740, %v5950
      %v5957 = vadd.f32 %v5741, %v5952
      %v5958 = vld [vmem:[#allocation2 + $0x4] sm:$0xff]
      %v5959 = vld [vmem:[#allocation2 + $0xc] sm:$0xff]
      %v5960 = vld [vmem:[#allocation2 + $0x14] sm:$0xf]
      %vm5961 = vmand %vm5745, %vm1882
      %v5962 = vsel %vm5961, 1, 0
      %v5963 = vlaneseq
      %v5964 = vshrl.u32 %v5963, 7
      %v5965 = vsub.s32 0, %v5964
      %v5966 = vrot.slane %v5962, %v5965
      %v5967 = vlaneseq
      %v5968 = vshrl.u32 %v5967, 7
      %v5969 = vsub.s32 1, %v5968
      %v5970 = vrot.slane %v5962, %v5969
      %v5971 = vlaneseq
      %v5972 = vshrl.u32 %v5971, 7
      %v5973 = vsub.s32 2, %v5972
      %v5974 = vrot.slane %v5962, %v5973
      %v5975 = vlaneseq
      %v5976 = vshrl.u32 %v5975, 7
      %v5977 = vsub.s32 3, %v5976
      %v5978 = vrot.slane %v5962, %v5977
      %vm5979 = vcmp.eq.s32.totalorder %v5966, 1
      %vm5980 = vcmp.eq.s32.totalorder %v5970, 1
      %vm5981 = vcmp.eq.s32.totalorder %v5974, 1
      %vm5982 = vcmp.eq.s32.totalorder %v5978, 1
      %v5986 = vcombine.high %v5958, %v5958
      %v5987 = vcombine.high %v5959, %v5959
      %5988 = vrot.lane.b32.xlu0 %v5958, 72
      %v5989 = vpop.permute.xlu0 %5988
      %5990 = vrot.lane.b32.xlu0 %v5986, 72
      %v5991 = vpop.permute.xlu0 %5990
      %5992 = vrot.lane.b32.xlu0 %v5959, 72
      %v5993 = vpop.permute.xlu0 %5992
      %5994 = vrot.lane.b32.xlu0 %v5987, 72
      %v5995 = vpop.permute.xlu0 %5994
      %5996 = vrot.lane.b32.xlu0 %v5960, 72
      %v5997 = vpop.permute.xlu0 %5996
      %v5998 = vsel %vm1976, %v5989, %v5991
      %v5999 = vsel %vm1976, %v5991, %v5993
      %v6000 = vsel %vm1976, %v5993, %v5995
      %v6001 = vsel %vm1976, %v5995, %v5997
      %v6006 = vsel %vm5979, %v5998, 0.0
      %v6007 = vsel %vm5980, %v5999, 0.0
      %v6008 = vsel %vm5981, %v6000, 0.0
      %v6009 = vsel %vm5982, %v6001, 0.0
      %s6010 = scalar_lea.vmem %s5, 76
      %v6011 = vld [vmem:[%s6010] sm:$0xf]
      %v6013 = vsel %vm1991, %v6011, 0
      %v6016 = vsel %vm1830, %v6006, 0
      %v6019 = vsel %vm1830, %v6007, 0
      %v6022 = vsel %vm1830, %v6008, 0
      %v6025 = vsel %vm1830, %v6009, 0
      %6027 = vmatprep.subr.mxu0 %v6019
      %6028 = vmatpush1.msra.mxu0 %v6016
      %6029 = vmatprep.subr.mxu0 0.0
      %6030 = vmatpush1.msra.mxu0 0.0
      %6031 = vmatprep.subr.mxu0 0.0
      %6032 = vmatpush1.msra.mxu0 0.0
      %6033 = vmatprep.subr.mxu0 0.0
      %6034 = vmatpush1.msra.mxu0 0.0
      %6035 = vmatprep.subr.mxu0 0.0
      %6036 = vmatpush1.msra.mxu0 0.0
      %6037 = vmatprep.subr.mxu0 0.0
      %6038 = vmatpush1.msra.mxu0 0.0
      %6039 = vmatprep.subr.mxu0 0.0
      %6040 = vmatpush1.msra.mxu0 0.0
      %6041 = vmatprep.subr.mxu0 0.0
      %6042 = vmatpush1.msra.mxu0 0.0
      %6043 = vmatprep.subr.mxu0 0.0
      %6044 = vmatpush1.msra.mxu0 0.0
      %6045 = vmatprep.subr.mxu0 0.0
      %6046 = vmatpush1.msra.mxu0 0.0
      %6047 = vmatprep.subr.mxu0 0.0
      %6048 = vmatpush1.msra.mxu0 0.0
      %6049 = vmatprep.subr.mxu0 0.0
      %6050 = vmatpush1.msra.mxu0 0.0
      %6051 = vmatprep.subr.mxu0 0.0
      %6052 = vmatpush1.msra.mxu0 0.0
      %6053 = vmatprep.subr.mxu0 0.0
      %6054 = vmatpush1.msra.mxu0 0.0
      %6055 = vmatprep.subr.mxu0 0.0
      %6056 = vmatpush1.msra.mxu0 0.0
      %6057 = vmatprep.subr.mxu0 0.0
      %6058 = vmatpush1.msra.mxu0 0.0
      %6059 = vmatprep.subr.mxu0 0.0
      %6060 = vmatpush1.msra.mxu0 0.0
      %6061 = vmatprep.subr.mxu0 0.0
      %6062 = vmatpush1.msra.mxu0 0.0
      %6063 = vmatprep.subr.mxu0 0.0
      %6064 = vmatpush1.msra.mxu0 0.0
      %6065 = vmatprep.subr.mxu0 0.0
      %6066 = vmatpush1.msra.mxu0 0.0
      %6067 = vmatprep.subr.mxu0 0.0
      %6068 = vmatpush1.msra.mxu0 0.0
      %6069 = vmatprep.subr.mxu0 0.0
      %6070 = vmatpush1.msra.mxu0 0.0
      %6071 = vmatprep.subr.mxu0 0.0
      %6072 = vmatpush1.msra.mxu0 0.0
      %6073 = vmatprep.subr.mxu0 0.0
      %6074 = vmatpush1.msra.mxu0 0.0
      %6075 = vmatprep.subr.mxu0 0.0
      %6076 = vmatpush1.msra.mxu0 0.0
      %6077 = vmatprep.subr.mxu0 0.0
      %6078 = vmatpush1.msra.mxu0 0.0
      %6079 = vmatprep.subr.mxu0 0.0
      %6080 = vmatpush1.msra.mxu0 0.0
      %6081 = vmatprep.subr.mxu0 0.0
      %6082 = vmatpush1.msra.mxu0 0.0
      %6083 = vmatprep.subr.mxu0 0.0
      %6084 = vmatpush1.msra.mxu0 0.0
      %6085 = vmatprep.subr.mxu0 0.0
      %6086 = vmatpush1.msra.mxu0 0.0
      %6087 = vmatprep.subr.mxu0 0.0
      %6088 = vmatpush1.msra.mxu0 0.0
      %6089 = vmatprep.subr.mxu0 0.0
      %6090 = vmatpush1.msra.mxu0 0.0
      %6091 = vmatprep.mubr.f32.mxu0 0.0
      %6092 = vmatmul.mubr.f32.gmra.mrb[0].mxu0 %v6013
      %v6093 = vpop.f32.mrb[0].mxu0
      %v6094 = vadd.f32 0.0, %v6093
      %v6095 = vpop.f32.mrb[0].mxu0
      %v6096 = vadd.f32 0.0, %v6095
      %6097 = vdwg.mxu0
      %6098 = vmatprep.subr.mxu0 %v6025
      %6099 = vmatpush1.msra.mxu0 %v6022
      %6100 = vmatprep.subr.mxu0 0.0
      %6101 = vmatpush1.msra.mxu0 0.0
      %6102 = vmatprep.subr.mxu0 0.0
      %6103 = vmatpush1.msra.mxu0 0.0
      %6104 = vmatprep.subr.mxu0 0.0
      %6105 = vmatpush1.msra.mxu0 0.0
      %6106 = vmatprep.subr.mxu0 0.0
      %6107 = vmatpush1.msra.mxu0 0.0
      %6108 = vmatprep.subr.mxu0 0.0
      %6109 = vmatpush1.msra.mxu0 0.0
      %6110 = vmatprep.subr.mxu0 0.0
      %6111 = vmatpush1.msra.mxu0 0.0
      %6112 = vmatprep.subr.mxu0 0.0
      %6113 = vmatpush1.msra.mxu0 0.0
      %6114 = vmatprep.subr.mxu0 0.0
      %6115 = vmatpush1.msra.mxu0 0.0
      %6116 = vmatprep.subr.mxu0 0.0
      %6117 = vmatpush1.msra.mxu0 0.0
      %6118 = vmatprep.subr.mxu0 0.0
      %6119 = vmatpush1.msra.mxu0 0.0
      %6120 = vmatprep.subr.mxu0 0.0
      %6121 = vmatpush1.msra.mxu0 0.0
      %6122 = vmatprep.subr.mxu0 0.0
      %6123 = vmatpush1.msra.mxu0 0.0
      %6124 = vmatprep.subr.mxu0 0.0
      %6125 = vmatpush1.msra.mxu0 0.0
      %6126 = vmatprep.subr.mxu0 0.0
      %6127 = vmatpush1.msra.mxu0 0.0
      %6128 = vmatprep.subr.mxu0 0.0
      %6129 = vmatpush1.msra.mxu0 0.0
      %6130 = vmatprep.subr.mxu0 0.0
      %6131 = vmatpush1.msra.mxu0 0.0
      %6132 = vmatprep.subr.mxu0 0.0
      %6133 = vmatpush1.msra.mxu0 0.0
      %6134 = vmatprep.subr.mxu0 0.0
      %6135 = vmatpush1.msra.mxu0 0.0
      %6136 = vmatprep.subr.mxu0 0.0
      %6137 = vmatpush1.msra.mxu0 0.0
      %6138 = vmatprep.subr.mxu0 0.0
      %6139 = vmatpush1.msra.mxu0 0.0
      %6140 = vmatprep.subr.mxu0 0.0
      %6141 = vmatpush1.msra.mxu0 0.0
      %6142 = vmatprep.subr.mxu0 0.0
      %6143 = vmatpush1.msra.mxu0 0.0
      %6144 = vmatprep.subr.mxu0 0.0
      %6145 = vmatpush1.msra.mxu0 0.0
      %6146 = vmatprep.subr.mxu0 0.0
      %6147 = vmatpush1.msra.mxu0 0.0
      %6148 = vmatprep.subr.mxu0 0.0
      %6149 = vmatpush1.msra.mxu0 0.0
      %6150 = vmatprep.subr.mxu0 0.0
      %6151 = vmatpush1.msra.mxu0 0.0
      %6152 = vmatprep.subr.mxu0 0.0
      %6153 = vmatpush1.msra.mxu0 0.0
      %6154 = vmatprep.subr.mxu0 0.0
      %6155 = vmatpush1.msra.mxu0 0.0
      %6156 = vmatprep.subr.mxu0 0.0
      %6157 = vmatpush1.msra.mxu0 0.0
      %6158 = vmatprep.subr.mxu0 0.0
      %6159 = vmatpush1.msra.mxu0 0.0
      %6160 = vmatprep.subr.mxu0 0.0
      %6161 = vmatpush1.msra.mxu0 0.0
      %6162 = vmatprep.mubr.f32.mxu0 0.0
      %6163 = vmatmul.mubr.f32.gmra.mrb[0].mxu0 %v6013
      %v6164 = vpop.f32.mrb[0].mxu0
      %v6165 = vadd.f32 0.0, %v6164
      %v6166 = vpop.f32.mrb[0].mxu0
      %v6167 = vadd.f32 0.0, %v6166
      %6168 = vdwg.mxu0
      %v6169 = vadd.f32 %v5954, %v6094
      %v6170 = vadd.f32 %v5955, %v6096
      %v6171 = vadd.f32 %v5956, %v6165
      %v6172 = vadd.f32 %v5957, %v6167
      %v6173 = vld [vmem:[#allocation2 + $0x4] sm:$0xff]
      %v6174 = vld [vmem:[#allocation2 + $0xc] sm:$0xff]
      %v6175 = vld [vmem:[#allocation2 + $0x14] sm:$0xf]
      %vm6176 = vmand %vm5745, %vm1888
      %v6177 = vsel %vm6176, 1, 0
      %v6178 = vlaneseq
      %v6179 = vshrl.u32 %v6178, 7
      %v6180 = vsub.s32 0, %v6179
      %v6181 = vrot.slane %v6177, %v6180
      %v6182 = vlaneseq
      %v6183 = vshrl.u32 %v6182, 7
      %v6184 = vsub.s32 1, %v6183
      %v6185 = vrot.slane %v6177, %v6184
      %v6186 = vlaneseq
      %v6187 = vshrl.u32 %v6186, 7
      %v6188 = vsub.s32 2, %v6187
      %v6189 = vrot.slane %v6177, %v6188
      %v6190 = vlaneseq
      %v6191 = vshrl.u32 %v6190, 7
      %v6192 = vsub.s32 3, %v6191
      %v6193 = vrot.slane %v6177, %v6192
      %vm6194 = vcmp.eq.s32.totalorder %v6181, 1
      %vm6195 = vcmp.eq.s32.totalorder %v6185, 1
      %vm6196 = vcmp.eq.s32.totalorder %v6189, 1
      %vm6197 = vcmp.eq.s32.totalorder %v6193, 1
      %v6201 = vcombine.high %v6173, %v6173
      %v6202 = vcombine.high %v6174, %v6174
      %6203 = vrot.lane.b32.xlu0 %v6173, 71
      %v6204 = vpop.permute.xlu0 %6203
      %6205 = vrot.lane.b32.xlu0 %v6201, 71
      %v6206 = vpop.permute.xlu0 %6205
      %6207 = vrot.lane.b32.xlu0 %v6174, 71
      %v6208 = vpop.permute.xlu0 %6207
      %6209 = vrot.lane.b32.xlu0 %v6202, 71
      %v6210 = vpop.permute.xlu0 %6209
      %6211 = vrot.lane.b32.xlu0 %v6175, 71
      %v6212 = vpop.permute.xlu0 %6211
      %v6213 = vsel %vm2346, %v6204, %v6206
      %v6214 = vsel %vm2346, %v6206, %v6208
      %v6215 = vsel %vm2346, %v6208, %v6210
      %v6216 = vsel %vm2346, %v6210, %v6212
      %v6221 = vsel %vm6194, %v6213, 0.0
      %v6222 = vsel %vm6195, %v6214, 0.0
      %v6223 = vsel %vm6196, %v6215, 0.0
      %v6224 = vsel %vm6197, %v6216, 0.0
      %s6225 = scalar_lea.vmem %s5, 80
      %v6226 = vld [vmem:[%s6225] sm:$0xf]
      %v6228 = vsel %vm1991, %v6226, 0
      %v6231 = vsel %vm1830, %v6221, 0
      %v6234 = vsel %vm1830, %v6222, 0
      %v6237 = vsel %vm1830, %v6223, 0
      %v6240 = vsel %vm1830, %v6224, 0
      %6242 = vmatprep.subr.mxu0 %v6234
      %6243 = vmatpush1.msra.mxu0 %v6231
      %6244 = vmatprep.subr.mxu0 0.0
      %6245 = vmatpush1.msra.mxu0 0.0
      %6246 = vmatprep.subr.mxu0 0.0
      %6247 = vmatpush1.msra.mxu0 0.0
      %6248 = vmatprep.subr.mxu0 0.0
      %6249 = vmatpush1.msra.mxu0 0.0
      %6250 = vmatprep.subr.mxu0 0.0
      %6251 = vmatpush1.msra.mxu0 0.0
      %6252 = vmatprep.subr.mxu0 0.0
      %6253 = vmatpush1.msra.mxu0 0.0
      %6254 = vmatprep.subr.mxu0 0.0
      %6255 = vmatpush1.msra.mxu0 0.0
      %6256 = vmatprep.subr.mxu0 0.0
      %6257 = vmatpush1.msra.mxu0 0.0
      %6258 = vmatprep.subr.mxu0 0.0
      %6259 = vmatpush1.msra.mxu0 0.0
      %6260 = vmatprep.subr.mxu0 0.0
      %6261 = vmatpush1.msra.mxu0 0.0
      %6262 = vmatprep.subr.mxu0 0.0
      %6263 = vmatpush1.msra.mxu0 0.0
      %6264 = vmatprep.subr.mxu0 0.0
      %6265 = vmatpush1.msra.mxu0 0.0
      %6266 = vmatprep.subr.mxu0 0.0
      %6267 = vmatpush1.msra.mxu0 0.0
      %6268 = vmatprep.subr.mxu0 0.0
      %6269 = vmatpush1.msra.mxu0 0.0
      %6270 = vmatprep.subr.mxu0 0.0
      %6271 = vmatpush1.msra.mxu0 0.0
      %6272 = vmatprep.subr.mxu0 0.0
      %6273 = vmatpush1.msra.mxu0 0.0
      %6274 = vmatprep.subr.mxu0 0.0
      %6275 = vmatpush1.msra.mxu0 0.0
      %6276 = vmatprep.subr.mxu0 0.0
      %6277 = vmatpush1.msra.mxu0 0.0
      %6278 = vmatprep.subr.mxu0 0.0
      %6279 = vmatpush1.msra.mxu0 0.0
      %6280 = vmatprep.subr.mxu0 0.0
      %6281 = vmatpush1.msra.mxu0 0.0
      %6282 = vmatprep.subr.mxu0 0.0
      %6283 = vmatpush1.msra.mxu0 0.0
      %6284 = vmatprep.subr.mxu0 0.0
      %6285 = vmatpush1.msra.mxu0 0.0
      %6286 = vmatprep.subr.mxu0 0.0
      %6287 = vmatpush1.msra.mxu0 0.0
      %6288 = vmatprep.subr.mxu0 0.0
      %6289 = vmatpush1.msra.mxu0 0.0
      %6290 = vmatprep.subr.mxu0 0.0
      %6291 = vmatpush1.msra.mxu0 0.0
      %6292 = vmatprep.subr.mxu0 0.0
      %6293 = vmatpush1.msra.mxu0 0.0
      %6294 = vmatprep.subr.mxu0 0.0
      %6295 = vmatpush1.msra.mxu0 0.0
      %6296 = vmatprep.subr.mxu0 0.0
      %6297 = vmatpush1.msra.mxu0 0.0
      %6298 = vmatprep.subr.mxu0 0.0
      %6299 = vmatpush1.msra.mxu0 0.0
      %6300 = vmatprep.subr.mxu0 0.0
      %6301 = vmatpush1.msra.mxu0 0.0
      %6302 = vmatprep.subr.mxu0 0.0
      %6303 = vmatpush1.msra.mxu0 0.0
      %6304 = vmatprep.subr.mxu0 0.0
      %6305 = vmatpush1.msra.mxu0 0.0
      %6306 = vmatprep.mubr.f32.mxu0 0.0
      %6307 = vmatmul.mubr.f32.gmra.mrb[0].mxu0 %v6228
      %v6308 = vpop.f32.mrb[0].mxu0
      %v6309 = vadd.f32 0.0, %v6308
      %v6310 = vpop.f32.mrb[0].mxu0
      %v6311 = vadd.f32 0.0, %v6310
      %6312 = vdwg.mxu0
      %6313 = vmatprep.subr.mxu0 %v6240
      %6314 = vmatpush1.msra.mxu0 %v6237
      %6315 = vmatprep.subr.mxu0 0.0
      %6316 = vmatpush1.msra.mxu0 0.0
      %6317 = vmatprep.subr.mxu0 0.0
      %6318 = vmatpush1.msra.mxu0 0.0
      %6319 = vmatprep.subr.mxu0 0.0
      %6320 = vmatpush1.msra.mxu0 0.0
      %6321 = vmatprep.subr.mxu0 0.0
      %6322 = vmatpush1.msra.mxu0 0.0
      %6323 = vmatprep.subr.mxu0 0.0
      %6324 = vmatpush1.msra.mxu0 0.0
      %6325 = vmatprep.subr.mxu0 0.0
      %6326 = vmatpush1.msra.mxu0 0.0
      %6327 = vmatprep.subr.mxu0 0.0
      %6328 = vmatpush1.msra.mxu0 0.0
      %6329 = vmatprep.subr.mxu0 0.0
      %6330 = vmatpush1.msra.mxu0 0.0
      %6331 = vmatprep.subr.mxu0 0.0
      %6332 = vmatpush1.msra.mxu0 0.0
      %6333 = vmatprep.subr.mxu0 0.0
      %6334 = vmatpush1.msra.mxu0 0.0
      %6335 = vmatprep.subr.mxu0 0.0
      %6336 = vmatpush1.msra.mxu0 0.0
      %6337 = vmatprep.subr.mxu0 0.0
      %6338 = vmatpush1.msra.mxu0 0.0
      %6339 = vmatprep.subr.mxu0 0.0
      %6340 = vmatpush1.msra.mxu0 0.0
      %6341 = vmatprep.subr.mxu0 0.0
      %6342 = vmatpush1.msra.mxu0 0.0
      %6343 = vmatprep.subr.mxu0 0.0
      %6344 = vmatpush1.msra.mxu0 0.0
      %6345 = vmatprep.subr.mxu0 0.0
      %6346 = vmatpush1.msra.mxu0 0.0
      %6347 = vmatprep.subr.mxu0 0.0
      %6348 = vmatpush1.msra.mxu0 0.0
      %6349 = vmatprep.subr.mxu0 0.0
      %6350 = vmatpush1.msra.mxu0 0.0
      %6351 = vmatprep.subr.mxu0 0.0
      %6352 = vmatpush1.msra.mxu0 0.0
      %6353 = vmatprep.subr.mxu0 0.0
      %6354 = vmatpush1.msra.mxu0 0.0
      %6355 = vmatprep.subr.mxu0 0.0
      %6356 = vmatpush1.msra.mxu0 0.0
      %6357 = vmatprep.subr.mxu0 0.0
      %6358 = vmatpush1.msra.mxu0 0.0
      %6359 = vmatprep.subr.mxu0 0.0
      %6360 = vmatpush1.msra.mxu0 0.0
      %6361 = vmatprep.subr.mxu0 0.0
      %6362 = vmatpush1.msra.mxu0 0.0
      %6363 = vmatprep.subr.mxu0 0.0
      %6364 = vmatpush1.msra.mxu0 0.0
      %6365 = vmatprep.subr.mxu0 0.0
      %6366 = vmatpush1.msra.mxu0 0.0
      %6367 = vmatprep.subr.mxu0 0.0
      %6368 = vmatpush1.msra.mxu0 0.0
      %6369 = vmatprep.subr.mxu0 0.0
      %6370 = vmatpush1.msra.mxu0 0.0
      %6371 = vmatprep.subr.mxu0 0.0
      %6372 = vmatpush1.msra.mxu0 0.0
      %6373 = vmatprep.subr.mxu0 0.0
      %6374 = vmatpush1.msra.mxu0 0.0
      %6375 = vmatprep.subr.mxu0 0.0
      %6376 = vmatpush1.msra.mxu0 0.0
      %6377 = vmatprep.mubr.f32.mxu0 0.0
      %6378 = vmatmul.mubr.f32.gmra.mrb[0].mxu0 %v6228
      %v6379 = vpop.f32.mrb[0].mxu0
      %v6380 = vadd.f32 0.0, %v6379
      %v6381 = vpop.f32.mrb[0].mxu0
      %v6382 = vadd.f32 0.0, %v6381
      %6383 = vdwg.mxu0
      %v6384 = vadd.f32 %v6169, %v6309
      %v6385 = vadd.f32 %v6170, %v6311
      %v6386 = vadd.f32 %v6171, %v6380
      %v6387 = vadd.f32 %v6172, %v6382
      %v6388 = vld [vmem:[#allocation2 + $0x4] sm:$0xff]
      %v6389 = vld [vmem:[#allocation2 + $0xc] sm:$0xff]
      %v6390 = vld [vmem:[#allocation2 + $0x14] sm:$0xf]
      %vm6391 = vmand %vm1884, %vm1882
      %vm6392 = vmand %vm6391, %vm1887
      %v6393 = vsel %vm6392, 1, 0
      %v6394 = vlaneseq
      %v6395 = vshrl.u32 %v6394, 7
      %v6396 = vsub.s32 0, %v6395
      %v6397 = vrot.slane %v6393, %v6396
      %v6398 = vlaneseq
      %v6399 = vshrl.u32 %v6398, 7
      %v6400 = vsub.s32 1, %v6399
      %v6401 = vrot.slane %v6393, %v6400
      %v6402 = vlaneseq
      %v6403 = vshrl.u32 %v6402, 7
      %v6404 = vsub.s32 2, %v6403
      %v6405 = vrot.slane %v6393, %v6404
      %v6406 = vlaneseq
      %v6407 = vshrl.u32 %v6406, 7
      %v6408 = vsub.s32 3, %v6407
      %v6409 = vrot.slane %v6393, %v6408
      %vm6410 = vcmp.eq.s32.totalorder %v6397, 1
      %vm6411 = vcmp.eq.s32.totalorder %v6401, 1
      %vm6412 = vcmp.eq.s32.totalorder %v6405, 1
      %vm6413 = vcmp.eq.s32.totalorder %v6409, 1
      %v6417 = vcombine.high %v6388, %v6388
      %v6418 = vcombine.high %v6389, %v6389
      %6419 = vrot.lane.b32.xlu0 %v6388, 65
      %v6420 = vpop.permute.xlu0 %6419
      %6421 = vrot.lane.b32.xlu0 %v6417, 65
      %v6422 = vpop.permute.xlu0 %6421
      %6423 = vrot.lane.b32.xlu0 %v6389, 65
      %v6424 = vpop.permute.xlu0 %6423
      %6425 = vrot.lane.b32.xlu0 %v6418, 65
      %v6426 = vpop.permute.xlu0 %6425
      %6427 = vrot.lane.b32.xlu0 %v6390, 65
      %v6428 = vpop.permute.xlu0 %6427
      %v6429 = vsel %vm2563, %v6420, %v6422
      %v6430 = vsel %vm2563, %v6422, %v6424
      %v6431 = vsel %vm2563, %v6424, %v6426
      %v6432 = vsel %vm2563, %v6426, %v6428
      %v6437 = vsel %vm6410, %v6429, 0.0
      %v6438 = vsel %vm6411, %v6430, 0.0
      %v6439 = vsel %vm6412, %v6431, 0.0
      %v6440 = vsel %vm6413, %v6432, 0.0
      %s6441 = scalar_lea.vmem %s5, 84
      %v6442 = vld [vmem:[%s6441] sm:$0xf]
      %v6444 = vsel %vm1991, %v6442, 0
      %v6447 = vsel %vm1830, %v6437, 0
      %v6450 = vsel %vm1830, %v6438, 0
      %v6453 = vsel %vm1830, %v6439, 0
      %v6456 = vsel %vm1830, %v6440, 0
      %6458 = vmatprep.subr.mxu0 %v6450
      %6459 = vmatpush1.msra.mxu0 %v6447
      %6460 = vmatprep.subr.mxu0 0.0
      %6461 = vmatpush1.msra.mxu0 0.0
      %6462 = vmatprep.subr.mxu0 0.0
      %6463 = vmatpush1.msra.mxu0 0.0
      %6464 = vmatprep.subr.mxu0 0.0
      %6465 = vmatpush1.msra.mxu0 0.0
      %6466 = vmatprep.subr.mxu0 0.0
      %6467 = vmatpush1.msra.mxu0 0.0
      %6468 = vmatprep.subr.mxu0 0.0
      %6469 = vmatpush1.msra.mxu0 0.0
      %6470 = vmatprep.subr.mxu0 0.0
      %6471 = vmatpush1.msra.mxu0 0.0
      %6472 = vmatprep.subr.mxu0 0.0
      %6473 = vmatpush1.msra.mxu0 0.0
      %6474 = vmatprep.subr.mxu0 0.0
      %6475 = vmatpush1.msra.mxu0 0.0
      %6476 = vmatprep.subr.mxu0 0.0
      %6477 = vmatpush1.msra.mxu0 0.0
      %6478 = vmatprep.subr.mxu0 0.0
      %6479 = vmatpush1.msra.mxu0 0.0
      %6480 = vmatprep.subr.mxu0 0.0
      %6481 = vmatpush1.msra.mxu0 0.0
      %6482 = vmatprep.subr.mxu0 0.0
      %6483 = vmatpush1.msra.mxu0 0.0
      %6484 = vmatprep.subr.mxu0 0.0
      %6485 = vmatpush1.msra.mxu0 0.0
      %6486 = vmatprep.subr.mxu0 0.0
      %6487 = vmatpush1.msra.mxu0 0.0
      %6488 = vmatprep.subr.mxu0 0.0
      %6489 = vmatpush1.msra.mxu0 0.0
      %6490 = vmatprep.subr.mxu0 0.0
      %6491 = vmatpush1.msra.mxu0 0.0
      %6492 = vmatprep.subr.mxu0 0.0
      %6493 = vmatpush1.msra.mxu0 0.0
      %6494 = vmatprep.subr.mxu0 0.0
      %6495 = vmatpush1.msra.mxu0 0.0
      %6496 = vmatprep.subr.mxu0 0.0
      %6497 = vmatpush1.msra.mxu0 0.0
      %6498 = vmatprep.subr.mxu0 0.0
      %6499 = vmatpush1.msra.mxu0 0.0
      %6500 = vmatprep.subr.mxu0 0.0
      %6501 = vmatpush1.msra.mxu0 0.0
      %6502 = vmatprep.subr.mxu0 0.0
      %6503 = vmatpush1.msra.mxu0 0.0
      %6504 = vmatprep.subr.mxu0 0.0
      %6505 = vmatpush1.msra.mxu0 0.0
      %6506 = vmatprep.subr.mxu0 0.0
      %6507 = vmatpush1.msra.mxu0 0.0
      %6508 = vmatprep.subr.mxu0 0.0
      %6509 = vmatpush1.msra.mxu0 0.0
      %6510 = vmatprep.subr.mxu0 0.0
      %6511 = vmatpush1.msra.mxu0 0.0
      %6512 = vmatprep.subr.mxu0 0.0
      %6513 = vmatpush1.msra.mxu0 0.0
      %6514 = vmatprep.subr.mxu0 0.0
      %6515 = vmatpush1.msra.mxu0 0.0
      %6516 = vmatprep.subr.mxu0 0.0
      %6517 = vmatpush1.msra.mxu0 0.0
      %6518 = vmatprep.subr.mxu0 0.0
      %6519 = vmatpush1.msra.mxu0 0.0
      %6520 = vmatprep.subr.mxu0 0.0
      %6521 = vmatpush1.msra.mxu0 0.0
      %6522 = vmatprep.mubr.f32.mxu0 0.0
      %6523 = vmatmul.mubr.f32.gmra.mrb[0].mxu0 %v6444
      %v6524 = vpop.f32.mrb[0].mxu0
      %v6525 = vadd.f32 0.0, %v6524
      %v6526 = vpop.f32.mrb[0].mxu0
      %v6527 = vadd.f32 0.0, %v6526
      %6528 = vdwg.mxu0
      %6529 = vmatprep.subr.mxu0 %v6456
      %6530 = vmatpush1.msra.mxu0 %v6453
      %6531 = vmatprep.subr.mxu0 0.0
      %6532 = vmatpush1.msra.mxu0 0.0
      %6533 = vmatprep.subr.mxu0 0.0
      %6534 = vmatpush1.msra.mxu0 0.0
      %6535 = vmatprep.subr.mxu0 0.0
      %6536 = vmatpush1.msra.mxu0 0.0
      %6537 = vmatprep.subr.mxu0 0.0
      %6538 = vmatpush1.msra.mxu0 0.0
      %6539 = vmatprep.subr.mxu0 0.0
      %6540 = vmatpush1.msra.mxu0 0.0
      %6541 = vmatprep.subr.mxu0 0.0
      %6542 = vmatpush1.msra.mxu0 0.0
      %6543 = vmatprep.subr.mxu0 0.0
      %6544 = vmatpush1.msra.mxu0 0.0
      %6545 = vmatprep.subr.mxu0 0.0
      %6546 = vmatpush1.msra.mxu0 0.0
      %6547 = vmatprep.subr.mxu0 0.0
      %6548 = vmatpush1.msra.mxu0 0.0
      %6549 = vmatprep.subr.mxu0 0.0
      %6550 = vmatpush1.msra.mxu0 0.0
      %6551 = vmatprep.subr.mxu0 0.0
      %6552 = vmatpush1.msra.mxu0 0.0
      %6553 = vmatprep.subr.mxu0 0.0
      %6554 = vmatpush1.msra.mxu0 0.0
      %6555 = vmatprep.subr.mxu0 0.0
      %6556 = vmatpush1.msra.mxu0 0.0
      %6557 = vmatprep.subr.mxu0 0.0
      %6558 = vmatpush1.msra.mxu0 0.0
      %6559 = vmatprep.subr.mxu0 0.0
      %6560 = vmatpush1.msra.mxu0 0.0
      %6561 = vmatprep.subr.mxu0 0.0
      %6562 = vmatpush1.msra.mxu0 0.0
      %6563 = vmatprep.subr.mxu0 0.0
      %6564 = vmatpush1.msra.mxu0 0.0
      %6565 = vmatprep.subr.mxu0 0.0
      %6566 = vmatpush1.msra.mxu0 0.0
      %6567 = vmatprep.subr.mxu0 0.0
      %6568 = vmatpush1.msra.mxu0 0.0
      %6569 = vmatprep.subr.mxu0 0.0
      %6570 = vmatpush1.msra.mxu0 0.0
      %6571 = vmatprep.subr.mxu0 0.0
      %6572 = vmatpush1.msra.mxu0 0.0
      %6573 = vmatprep.subr.mxu0 0.0
      %6574 = vmatpush1.msra.mxu0 0.0
      %6575 = vmatprep.subr.mxu0 0.0
      %6576 = vmatpush1.msra.mxu0 0.0
      %6577 = vmatprep.subr.mxu0 0.0
      %6578 = vmatpush1.msra.mxu0 0.0
      %6579 = vmatprep.subr.mxu0 0.0
      %6580 = vmatpush1.msra.mxu0 0.0
      %6581 = vmatprep.subr.mxu0 0.0
      %6582 = vmatpush1.msra.mxu0 0.0
      %6583 = vmatprep.subr.mxu0 0.0
      %6584 = vmatpush1.msra.mxu0 0.0
      %6585 = vmatprep.subr.mxu0 0.0
      %6586 = vmatpush1.msra.mxu0 0.0
      %6587 = vmatprep.subr.mxu0 0.0
      %6588 = vmatpush1.msra.mxu0 0.0
      %6589 = vmatprep.subr.mxu0 0.0
      %6590 = vmatpush1.msra.mxu0 0.0
      %6591 = vmatprep.subr.mxu0 0.0
      %6592 = vmatpush1.msra.mxu0 0.0
      %6593 = vmatprep.mubr.f32.mxu0 0.0
      %6594 = vmatmul.mubr.f32.gmra.mrb[0].mxu0 %v6444
      %v6595 = vpop.f32.mrb[0].mxu0
      %v6596 = vadd.f32 0.0, %v6595
      %v6597 = vpop.f32.mrb[0].mxu0
      %v6598 = vadd.f32 0.0, %v6597
      %6599 = vdwg.mxu0
      %v6600 = vadd.f32 %v6384, %v6525
      %v6601 = vadd.f32 %v6385, %v6527
      %v6602 = vadd.f32 %v6386, %v6596
      %v6603 = vadd.f32 %v6387, %v6598
      %v6604 = vld [vmem:[#allocation2 + $0x4] sm:$0xff]
      %v6605 = vld [vmem:[#allocation2 + $0xc] sm:$0xff]
      %v6606 = vld [vmem:[#allocation2 + $0x14] sm:$0xf]
      %v6607 = vsel %vm6391, 1, 0
      %v6608 = vlaneseq
      %v6609 = vshrl.u32 %v6608, 7
      %v6610 = vsub.s32 0, %v6609
      %v6611 = vrot.slane %v6607, %v6610
      %v6612 = vlaneseq
      %v6613 = vshrl.u32 %v6612, 7
      %v6614 = vsub.s32 1, %v6613
      %v6615 = vrot.slane %v6607, %v6614
      %v6616 = vlaneseq
      %v6617 = vshrl.u32 %v6616, 7
      %v6618 = vsub.s32 2, %v6617
      %v6619 = vrot.slane %v6607, %v6618
      %v6620 = vlaneseq
      %v6621 = vshrl.u32 %v6620, 7
      %v6622 = vsub.s32 3, %v6621
      %v6623 = vrot.slane %v6607, %v6622
      %vm6624 = vcmp.eq.s32.totalorder %v6611, 1
      %vm6625 = vcmp.eq.s32.totalorder %v6615, 1
      %vm6626 = vcmp.eq.s32.totalorder %v6619, 1
      %vm6627 = vcmp.eq.s32.totalorder %v6623, 1
      %v6631 = vcombine.high %v6604, %v6604
      %v6632 = vcombine.high %v6605, %v6605
      %6633 = vrot.lane.b32.xlu0 %v6604, 64
      %v6634 = vpop.permute.xlu0 %6633
      %6635 = vrot.lane.b32.xlu0 %v6631, 64
      %v6636 = vpop.permute.xlu0 %6635
      %6637 = vrot.lane.b32.xlu0 %v6605, 64
      %v6638 = vpop.permute.xlu0 %6637
      %6639 = vrot.lane.b32.xlu0 %v6632, 64
      %v6640 = vpop.permute.xlu0 %6639
      %6641 = vrot.lane.b32.xlu0 %v6606, 64
      %v6642 = vpop.permute.xlu0 %6641
      %v6643 = vsel %vm2778, %v6634, %v6636
      %v6644 = vsel %vm2778, %v6636, %v6638
      %v6645 = vsel %vm2778, %v6638, %v6640
      %v6646 = vsel %vm2778, %v6640, %v6642
      %v6651 = vsel %vm6624, %v6643, 0.0
      %v6652 = vsel %vm6625, %v6644, 0.0
      %v6653 = vsel %vm6626, %v6645, 0.0
      %v6654 = vsel %vm6627, %v6646, 0.0
      %s6655 = scalar_lea.vmem %s5, 88
      %v6656 = vld [vmem:[%s6655] sm:$0xf]
      %v6658 = vsel %vm1991, %v6656, 0
      %v6661 = vsel %vm1830, %v6651, 0
      %v6664 = vsel %vm1830, %v6652, 0
      %v6667 = vsel %vm1830, %v6653, 0
      %v6670 = vsel %vm1830, %v6654, 0
      %6672 = vmatprep.subr.mxu0 %v6664
      %6673 = vmatpush1.msra.mxu0 %v6661
      %6674 = vmatprep.subr.mxu0 0.0
      %6675 = vmatpush1.msra.mxu0 0.0
      %6676 = vmatprep.subr.mxu0 0.0
      %6677 = vmatpush1.msra.mxu0 0.0
      %6678 = vmatprep.subr.mxu0 0.0
      %6679 = vmatpush1.msra.mxu0 0.0
      %6680 = vmatprep.subr.mxu0 0.0
      %6681 = vmatpush1.msra.mxu0 0.0
      %6682 = vmatprep.subr.mxu0 0.0
      %6683 = vmatpush1.msra.mxu0 0.0
      %6684 = vmatprep.subr.mxu0 0.0
      %6685 = vmatpush1.msra.mxu0 0.0
      %6686 = vmatprep.subr.mxu0 0.0
      %6687 = vmatpush1.msra.mxu0 0.0
      %6688 = vmatprep.subr.mxu0 0.0
      %6689 = vmatpush1.msra.mxu0 0.0
      %6690 = vmatprep.subr.mxu0 0.0
      %6691 = vmatpush1.msra.mxu0 0.0
      %6692 = vmatprep.subr.mxu0 0.0
      %6693 = vmatpush1.msra.mxu0 0.0
      %6694 = vmatprep.subr.mxu0 0.0
      %6695 = vmatpush1.msra.mxu0 0.0
      %6696 = vmatprep.subr.mxu0 0.0
      %6697 = vmatpush1.msra.mxu0 0.0
      %6698 = vmatprep.subr.mxu0 0.0
      %6699 = vmatpush1.msra.mxu0 0.0
      %6700 = vmatprep.subr.mxu0 0.0
      %6701 = vmatpush1.msra.mxu0 0.0
      %6702 = vmatprep.subr.mxu0 0.0
      %6703 = vmatpush1.msra.mxu0 0.0
      %6704 = vmatprep.subr.mxu0 0.0
      %6705 = vmatpush1.msra.mxu0 0.0
      %6706 = vmatprep.subr.mxu0 0.0
      %6707 = vmatpush1.msra.mxu0 0.0
      %6708 = vmatprep.subr.mxu0 0.0
      %6709 = vmatpush1.msra.mxu0 0.0
      %6710 = vmatprep.subr.mxu0 0.0
      %6711 = vmatpush1.msra.mxu0 0.0
      %6712 = vmatprep.subr.mxu0 0.0
      %6713 = vmatpush1.msra.mxu0 0.0
      %6714 = vmatprep.subr.mxu0 0.0
      %6715 = vmatpush1.msra.mxu0 0.0
      %6716 = vmatprep.subr.mxu0 0.0
      %6717 = vmatpush1.msra.mxu0 0.0
      %6718 = vmatprep.subr.mxu0 0.0
      %6719 = vmatpush1.msra.mxu0 0.0
      %6720 = vmatprep.subr.mxu0 0.0
      %6721 = vmatpush1.msra.mxu0 0.0
      %6722 = vmatprep.subr.mxu0 0.0
      %6723 = vmatpush1.msra.mxu0 0.0
      %6724 = vmatprep.subr.mxu0 0.0
      %6725 = vmatpush1.msra.mxu0 0.0
      %6726 = vmatprep.subr.mxu0 0.0
      %6727 = vmatpush1.msra.mxu0 0.0
      %6728 = vmatprep.subr.mxu0 0.0
      %6729 = vmatpush1.msra.mxu0 0.0
      %6730 = vmatprep.subr.mxu0 0.0
      %6731 = vmatpush1.msra.mxu0 0.0
      %6732 = vmatprep.subr.mxu0 0.0
      %6733 = vmatpush1.msra.mxu0 0.0
      %6734 = vmatprep.subr.mxu0 0.0
      %6735 = vmatpush1.msra.mxu0 0.0
      %6736 = vmatprep.mubr.f32.mxu0 0.0
      %6737 = vmatmul.mubr.f32.gmra.mrb[0].mxu0 %v6658
      %v6738 = vpop.f32.mrb[0].mxu0
      %v6739 = vadd.f32 0.0, %v6738
      %v6740 = vpop.f32.mrb[0].mxu0
      %v6741 = vadd.f32 0.0, %v6740
      %6742 = vdwg.mxu0
      %6743 = vmatprep.subr.mxu0 %v6670
      %6744 = vmatpush1.msra.mxu0 %v6667
      %6745 = vmatprep.subr.mxu0 0.0
      %6746 = vmatpush1.msra.mxu0 0.0
      %6747 = vmatprep.subr.mxu0 0.0
      %6748 = vmatpush1.msra.mxu0 0.0
      %6749 = vmatprep.subr.mxu0 0.0
      %6750 = vmatpush1.msra.mxu0 0.0
      %6751 = vmatprep.subr.mxu0 0.0
      %6752 = vmatpush1.msra.mxu0 0.0
      %6753 = vmatprep.subr.mxu0 0.0
      %6754 = vmatpush1.msra.mxu0 0.0
      %6755 = vmatprep.subr.mxu0 0.0
      %6756 = vmatpush1.msra.mxu0 0.0
      %6757 = vmatprep.subr.mxu0 0.0
      %6758 = vmatpush1.msra.mxu0 0.0
      %6759 = vmatprep.subr.mxu0 0.0
      %6760 = vmatpush1.msra.mxu0 0.0
      %6761 = vmatprep.subr.mxu0 0.0
      %6762 = vmatpush1.msra.mxu0 0.0
      %6763 = vmatprep.subr.mxu0 0.0
      %6764 = vmatpush1.msra.mxu0 0.0
      %6765 = vmatprep.subr.mxu0 0.0
      %6766 = vmatpush1.msra.mxu0 0.0
      %6767 = vmatprep.subr.mxu0 0.0
      %6768 = vmatpush1.msra.mxu0 0.0
      %6769 = vmatprep.subr.mxu0 0.0
      %6770 = vmatpush1.msra.mxu0 0.0
      %6771 = vmatprep.subr.mxu0 0.0
      %6772 = vmatpush1.msra.mxu0 0.0
      %6773 = vmatprep.subr.mxu0 0.0
      %6774 = vmatpush1.msra.mxu0 0.0
      %6775 = vmatprep.subr.mxu0 0.0
      %6776 = vmatpush1.msra.mxu0 0.0
      %6777 = vmatprep.subr.mxu0 0.0
      %6778 = vmatpush1.msra.mxu0 0.0
      %6779 = vmatprep.subr.mxu0 0.0
      %6780 = vmatpush1.msra.mxu0 0.0
      %6781 = vmatprep.subr.mxu0 0.0
      %6782 = vmatpush1.msra.mxu0 0.0
      %6783 = vmatprep.subr.mxu0 0.0
      %6784 = vmatpush1.msra.mxu0 0.0
      %6785 = vmatprep.subr.mxu0 0.0
      %6786 = vmatpush1.msra.mxu0 0.0
      %6787 = vmatprep.subr.mxu0 0.0
      %6788 = vmatpush1.msra.mxu0 0.0
      %6789 = vmatprep.subr.mxu0 0.0
      %6790 = vmatpush1.msra.mxu0 0.0
      %6791 = vmatprep.subr.mxu0 0.0
      %6792 = vmatpush1.msra.mxu0 0.0
      %6793 = vmatprep.subr.mxu0 0.0
      %6794 = vmatpush1.msra.mxu0 0.0
      %6795 = vmatprep.subr.mxu0 0.0
      %6796 = vmatpush1.msra.mxu0 0.0
      %6797 = vmatprep.subr.mxu0 0.0
      %6798 = vmatpush1.msra.mxu0 0.0
      %6799 = vmatprep.subr.mxu0 0.0
      %6800 = vmatpush1.msra.mxu0 0.0
      %6801 = vmatprep.subr.mxu0 0.0
      %6802 = vmatpush1.msra.mxu0 0.0
      %6803 = vmatprep.subr.mxu0 0.0
      %6804 = vmatpush1.msra.mxu0 0.0
      %6805 = vmatprep.subr.mxu0 0.0
      %6806 = vmatpush1.msra.mxu0 0.0
      %6807 = vmatprep.mubr.f32.mxu0 0.0
      %6808 = vmatmul.mubr.f32.gmra.mrb[0].mxu0 %v6658
      %v6809 = vpop.f32.mrb[0].mxu0
      %v6810 = vadd.f32 0.0, %v6809
      %v6811 = vpop.f32.mrb[0].mxu0
      %v6812 = vadd.f32 0.0, %v6811
      %6813 = vdwg.mxu0
      %v6814 = vadd.f32 %v6600, %v6739
      %v6815 = vadd.f32 %v6601, %v6741
      %v6816 = vadd.f32 %v6602, %v6810
      %v6817 = vadd.f32 %v6603, %v6812
      %v6818 = vld [vmem:[#allocation2 + $0x4] sm:$0xff]
      %v6819 = vld [vmem:[#allocation2 + $0xc] sm:$0xff]
      %v6820 = vld [vmem:[#allocation2 + $0x14] sm:$0xf]
      %vm6821 = vmand %vm6391, %vm1888
      %v6822 = vsel %vm6821, 1, 0
      %v6823 = vlaneseq
      %v6824 = vshrl.u32 %v6823, 7
      %v6825 = vsub.s32 0, %v6824
      %v6826 = vrot.slane %v6822, %v6825
      %v6827 = vlaneseq
      %v6828 = vshrl.u32 %v6827, 7
      %v6829 = vsub.s32 1, %v6828
      %v6830 = vrot.slane %v6822, %v6829
      %v6831 = vlaneseq
      %v6832 = vshrl.u32 %v6831, 7
      %v6833 = vsub.s32 2, %v6832
      %v6834 = vrot.slane %v6822, %v6833
      %v6835 = vlaneseq
      %v6836 = vshrl.u32 %v6835, 7
      %v6837 = vsub.s32 3, %v6836
      %v6838 = vrot.slane %v6822, %v6837
      %vm6839 = vcmp.eq.s32.totalorder %v6826, 1
      %vm6840 = vcmp.eq.s32.totalorder %v6830, 1
      %vm6841 = vcmp.eq.s32.totalorder %v6834, 1
      %vm6842 = vcmp.eq.s32.totalorder %v6838, 1
      %v6846 = vcombine.high %v6818, %v6818
      %v6847 = vcombine.high %v6819, %v6819
      %6848 = vrot.lane.b32.xlu0 %v6818, 63
      %v6849 = vpop.permute.xlu0 %6848
      %6850 = vrot.lane.b32.xlu0 %v6846, 63
      %v6851 = vpop.permute.xlu0 %6850
      %6852 = vrot.lane.b32.xlu0 %v6819, 63
      %v6853 = vpop.permute.xlu0 %6852
      %6854 = vrot.lane.b32.xlu0 %v6847, 63
      %v6855 = vpop.permute.xlu0 %6854
      %6856 = vrot.lane.b32.xlu0 %v6820, 63
      %v6857 = vpop.permute.xlu0 %6856
      %v6858 = vsel %vm2994, %v6849, %v6851
      %v6859 = vsel %vm2994, %v6851, %v6853
      %v6860 = vsel %vm2994, %v6853, %v6855
      %v6861 = vsel %vm2994, %v6855, %v6857
      %v6866 = vsel %vm6839, %v6858, 0.0
      %v6867 = vsel %vm6840, %v6859, 0.0
      %v6868 = vsel %vm6841, %v6860, 0.0
      %v6869 = vsel %vm6842, %v6861, 0.0
      %s6870 = scalar_lea.vmem %s5, 92
      %v6871 = vld [vmem:[%s6870] sm:$0xf]
      %v6873 = vsel %vm1991, %v6871, 0
      %v6876 = vsel %vm1830, %v6866, 0
      %v6879 = vsel %vm1830, %v6867, 0
      %v6882 = vsel %vm1830, %v6868, 0
      %v6885 = vsel %vm1830, %v6869, 0
      %6887 = vmatprep.subr.mxu0 %v6879
      %6888 = vmatpush1.msra.mxu0 %v6876
      %6889 = vmatprep.subr.mxu0 0.0
      %6890 = vmatpush1.msra.mxu0 0.0
      %6891 = vmatprep.subr.mxu0 0.0
      %6892 = vmatpush1.msra.mxu0 0.0
      %6893 = vmatprep.subr.mxu0 0.0
      %6894 = vmatpush1.msra.mxu0 0.0
      %6895 = vmatprep.subr.mxu0 0.0
      %6896 = vmatpush1.msra.mxu0 0.0
      %6897 = vmatprep.subr.mxu0 0.0
      %6898 = vmatpush1.msra.mxu0 0.0
      %6899 = vmatprep.subr.mxu0 0.0
      %6900 = vmatpush1.msra.mxu0 0.0
      %6901 = vmatprep.subr.mxu0 0.0
      %6902 = vmatpush1.msra.mxu0 0.0
      %6903 = vmatprep.subr.mxu0 0.0
      %6904 = vmatpush1.msra.mxu0 0.0
      %6905 = vmatprep.subr.mxu0 0.0
      %6906 = vmatpush1.msra.mxu0 0.0
      %6907 = vmatprep.subr.mxu0 0.0
      %6908 = vmatpush1.msra.mxu0 0.0
      %6909 = vmatprep.subr.mxu0 0.0
      %6910 = vmatpush1.msra.mxu0 0.0
      %6911 = vmatprep.subr.mxu0 0.0
      %6912 = vmatpush1.msra.mxu0 0.0
      %6913 = vmatprep.subr.mxu0 0.0
      %6914 = vmatpush1.msra.mxu0 0.0
      %6915 = vmatprep.subr.mxu0 0.0
      %6916 = vmatpush1.msra.mxu0 0.0
      %6917 = vmatprep.subr.mxu0 0.0
      %6918 = vmatpush1.msra.mxu0 0.0
      %6919 = vmatprep.subr.mxu0 0.0
      %6920 = vmatpush1.msra.mxu0 0.0
      %6921 = vmatprep.subr.mxu0 0.0
      %6922 = vmatpush1.msra.mxu0 0.0
      %6923 = vmatprep.subr.mxu0 0.0
      %6924 = vmatpush1.msra.mxu0 0.0
      %6925 = vmatprep.subr.mxu0 0.0
      %6926 = vmatpush1.msra.mxu0 0.0
      %6927 = vmatprep.subr.mxu0 0.0
      %6928 = vmatpush1.msra.mxu0 0.0
      %6929 = vmatprep.subr.mxu0 0.0
      %6930 = vmatpush1.msra.mxu0 0.0
      %6931 = vmatprep.subr.mxu0 0.0
      %6932 = vmatpush1.msra.mxu0 0.0
      %6933 = vmatprep.subr.mxu0 0.0
      %6934 = vmatpush1.msra.mxu0 0.0
      %6935 = vmatprep.subr.mxu0 0.0
      %6936 = vmatpush1.msra.mxu0 0.0
      %6937 = vmatprep.subr.mxu0 0.0
      %6938 = vmatpush1.msra.mxu0 0.0
      %6939 = vmatprep.subr.mxu0 0.0
      %6940 = vmatpush1.msra.mxu0 0.0
      %6941 = vmatprep.subr.mxu0 0.0
      %6942 = vmatpush1.msra.mxu0 0.0
      %6943 = vmatprep.subr.mxu0 0.0
      %6944 = vmatpush1.msra.mxu0 0.0
      %6945 = vmatprep.subr.mxu0 0.0
      %6946 = vmatpush1.msra.mxu0 0.0
      %6947 = vmatprep.subr.mxu0 0.0
      %6948 = vmatpush1.msra.mxu0 0.0
      %6949 = vmatprep.subr.mxu0 0.0
      %6950 = vmatpush1.msra.mxu0 0.0
      %6951 = vmatprep.mubr.f32.mxu0 0.0
      %6952 = vmatmul.mubr.f32.gmra.mrb[0].mxu0 %v6873
      %v6953 = vpop.f32.mrb[0].mxu0
      %v6954 = vadd.f32 0.0, %v6953
      %v6955 = vpop.f32.mrb[0].mxu0
      %v6956 = vadd.f32 0.0, %v6955
      %6957 = vdwg.mxu0
      %6958 = vmatprep.subr.mxu0 %v6885
      %6959 = vmatpush1.msra.mxu0 %v6882
      %6960 = vmatprep.subr.mxu0 0.0
      %6961 = vmatpush1.msra.mxu0 0.0
      %6962 = vmatprep.subr.mxu0 0.0
      %6963 = vmatpush1.msra.mxu0 0.0
      %6964 = vmatprep.subr.mxu0 0.0
      %6965 = vmatpush1.msra.mxu0 0.0
      %6966 = vmatprep.subr.mxu0 0.0
      %6967 = vmatpush1.msra.mxu0 0.0
      %6968 = vmatprep.subr.mxu0 0.0
      %6969 = vmatpush1.msra.mxu0 0.0
      %6970 = vmatprep.subr.mxu0 0.0
      %6971 = vmatpush1.msra.mxu0 0.0
      %6972 = vmatprep.subr.mxu0 0.0
      %6973 = vmatpush1.msra.mxu0 0.0
      %6974 = vmatprep.subr.mxu0 0.0
      %6975 = vmatpush1.msra.mxu0 0.0
      %6976 = vmatprep.subr.mxu0 0.0
      %6977 = vmatpush1.msra.mxu0 0.0
      %6978 = vmatprep.subr.mxu0 0.0
      %6979 = vmatpush1.msra.mxu0 0.0
      %6980 = vmatprep.subr.mxu0 0.0
      %6981 = vmatpush1.msra.mxu0 0.0
      %6982 = vmatprep.subr.mxu0 0.0
      %6983 = vmatpush1.msra.mxu0 0.0
      %6984 = vmatprep.subr.mxu0 0.0
      %6985 = vmatpush1.msra.mxu0 0.0
      %6986 = vmatprep.subr.mxu0 0.0
      %6987 = vmatpush1.msra.mxu0 0.0
      %6988 = vmatprep.subr.mxu0 0.0
      %6989 = vmatpush1.msra.mxu0 0.0
      %6990 = vmatprep.subr.mxu0 0.0
      %6991 = vmatpush1.msra.mxu0 0.0
      %6992 = vmatprep.subr.mxu0 0.0
      %6993 = vmatpush1.msra.mxu0 0.0
      %6994 = vmatprep.subr.mxu0 0.0
      %6995 = vmatpush1.msra.mxu0 0.0
      %6996 = vmatprep.subr.mxu0 0.0
      %6997 = vmatpush1.msra.mxu0 0.0
      %6998 = vmatprep.subr.mxu0 0.0
      %6999 = vmatpush1.msra.mxu0 0.0
      %7000 = vmatprep.subr.mxu0 0.0
      %7001 = vmatpush1.msra.mxu0 0.0
      %7002 = vmatprep.subr.mxu0 0.0
      %7003 = vmatpush1.msra.mxu0 0.0
      %7004 = vmatprep.subr.mxu0 0.0
      %7005 = vmatpush1.msra.mxu0 0.0
      %7006 = vmatprep.subr.mxu0 0.0
      %7007 = vmatpush1.msra.mxu0 0.0
      %7008 = vmatprep.subr.mxu0 0.0
      %7009 = vmatpush1.msra.mxu0 0.0
      %7010 = vmatprep.subr.mxu0 0.0
      %7011 = vmatpush1.msra.mxu0 0.0
      %7012 = vmatprep.subr.mxu0 0.0
      %7013 = vmatpush1.msra.mxu0 0.0
      %7014 = vmatprep.subr.mxu0 0.0
      %7015 = vmatpush1.msra.mxu0 0.0
      %7016 = vmatprep.subr.mxu0 0.0
      %7017 = vmatpush1.msra.mxu0 0.0
      %7018 = vmatprep.subr.mxu0 0.0
      %7019 = vmatpush1.msra.mxu0 0.0
      %7020 = vmatprep.subr.mxu0 0.0
      %7021 = vmatpush1.msra.mxu0 0.0
      %7022 = vmatprep.mubr.f32.mxu0 0.0
      %7023 = vmatmul.mubr.f32.gmra.mrb[0].mxu0 %v6873
      %v7024 = vpop.f32.mrb[0].mxu0
      %v7025 = vadd.f32 0.0, %v7024
      %v7026 = vpop.f32.mrb[0].mxu0
      %v7027 = vadd.f32 0.0, %v7026
      %7028 = vdwg.mxu0
      %v7029 = vadd.f32 %v6814, %v6954
      %v7030 = vadd.f32 %v6815, %v6956
      %v7031 = vadd.f32 %v6816, %v7025
      %v7032 = vadd.f32 %v6817, %v7027
      %v7033 = vld [vmem:[#allocation2 + $0x4] sm:$0xff]
      %v7034 = vld [vmem:[#allocation2 + $0xc] sm:$0xff]
      %v7035 = vld [vmem:[#allocation2 + $0x14] sm:$0xf]
      %vm7036 = vmand %vm1884, %vm1886
      %vm7037 = vmand %vm7036, %vm1887
      %v7038 = vsel %vm7037, 1, 0
      %v7039 = vlaneseq
      %v7040 = vshrl.u32 %v7039, 7
      %v7041 = vsub.s32 0, %v7040
      %v7042 = vrot.slane %v7038, %v7041
      %v7043 = vlaneseq
      %v7044 = vshrl.u32 %v7043, 7
      %v7045 = vsub.s32 1, %v7044
      %v7046 = vrot.slane %v7038, %v7045
      %v7047 = vlaneseq
      %v7048 = vshrl.u32 %v7047, 7
      %v7049 = vsub.s32 2, %v7048
      %v7050 = vrot.slane %v7038, %v7049
      %v7051 = vlaneseq
      %v7052 = vshrl.u32 %v7051, 7
      %v7053 = vsub.s32 3, %v7052
      %v7054 = vrot.slane %v7038, %v7053
      %vm7055 = vcmp.eq.s32.totalorder %v7042, 1
      %vm7056 = vcmp.eq.s32.totalorder %v7046, 1
      %vm7057 = vcmp.eq.s32.totalorder %v7050, 1
      %vm7058 = vcmp.eq.s32.totalorder %v7054, 1
      %v7062 = vcombine.high %v7033, %v7033
      %v7063 = vcombine.high %v7034, %v7034
      %7064 = vrot.lane.b32.xlu0 %v7033, 57
      %v7065 = vpop.permute.xlu0 %7064
      %7066 = vrot.lane.b32.xlu0 %v7062, 57
      %v7067 = vpop.permute.xlu0 %7066
      %7068 = vrot.lane.b32.xlu0 %v7034, 57
      %v7069 = vpop.permute.xlu0 %7068
      %7070 = vrot.lane.b32.xlu0 %v7063, 57
      %v7071 = vpop.permute.xlu0 %7070
      %7072 = vrot.lane.b32.xlu0 %v7035, 57
      %v7073 = vpop.permute.xlu0 %7072
      %v7074 = vsel %vm3211, %v7065, %v7067
      %v7075 = vsel %vm3211, %v7067, %v7069
      %v7076 = vsel %vm3211, %v7069, %v7071
      %v7077 = vsel %vm3211, %v7071, %v7073
      %v7082 = vsel %vm7055, %v7074, 0.0
      %v7083 = vsel %vm7056, %v7075, 0.0
      %v7084 = vsel %vm7057, %v7076, 0.0
      %v7085 = vsel %vm7058, %v7077, 0.0
      %s7086 = scalar_lea.vmem %s5, 96
      %v7087 = vld [vmem:[%s7086] sm:$0xf]
      %v7089 = vsel %vm1991, %v7087, 0
      %v7092 = vsel %vm1830, %v7082, 0
      %v7095 = vsel %vm1830, %v7083, 0
      %v7098 = vsel %vm1830, %v7084, 0
      %v7101 = vsel %vm1830, %v7085, 0
      %7103 = vmatprep.subr.mxu0 %v7095
      %7104 = vmatpush1.msra.mxu0 %v7092
      %7105 = vmatprep.subr.mxu0 0.0
      %7106 = vmatpush1.msra.mxu0 0.0
      %7107 = vmatprep.subr.mxu0 0.0
      %7108 = vmatpush1.msra.mxu0 0.0
      %7109 = vmatprep.subr.mxu0 0.0
      %7110 = vmatpush1.msra.mxu0 0.0
      %7111 = vmatprep.subr.mxu0 0.0
      %7112 = vmatpush1.msra.mxu0 0.0
      %7113 = vmatprep.subr.mxu0 0.0
      %7114 = vmatpush1.msra.mxu0 0.0
      %7115 = vmatprep.subr.mxu0 0.0
      %7116 = vmatpush1.msra.mxu0 0.0
      %7117 = vmatprep.subr.mxu0 0.0
      %7118 = vmatpush1.msra.mxu0 0.0
      %7119 = vmatprep.subr.mxu0 0.0
      %7120 = vmatpush1.msra.mxu0 0.0
      %7121 = vmatprep.subr.mxu0 0.0
      %7122 = vmatpush1.msra.mxu0 0.0
      %7123 = vmatprep.subr.mxu0 0.0
      %7124 = vmatpush1.msra.mxu0 0.0
      %7125 = vmatprep.subr.mxu0 0.0
      %7126 = vmatpush1.msra.mxu0 0.0
      %7127 = vmatprep.subr.mxu0 0.0
      %7128 = vmatpush1.msra.mxu0 0.0
      %7129 = vmatprep.subr.mxu0 0.0
      %7130 = vmatpush1.msra.mxu0 0.0
      %7131 = vmatprep.subr.mxu0 0.0
      %7132 = vmatpush1.msra.mxu0 0.0
      %7133 = vmatprep.subr.mxu0 0.0
      %7134 = vmatpush1.msra.mxu0 0.0
      %7135 = vmatprep.subr.mxu0 0.0
      %7136 = vmatpush1.msra.mxu0 0.0
      %7137 = vmatprep.subr.mxu0 0.0
      %7138 = vmatpush1.msra.mxu0 0.0
      %7139 = vmatprep.subr.mxu0 0.0
      %7140 = vmatpush1.msra.mxu0 0.0
      %7141 = vmatprep.subr.mxu0 0.0
      %7142 = vmatpush1.msra.mxu0 0.0
      %7143 = vmatprep.subr.mxu0 0.0
      %7144 = vmatpush1.msra.mxu0 0.0
      %7145 = vmatprep.subr.mxu0 0.0
      %7146 = vmatpush1.msra.mxu0 0.0
      %7147 = vmatprep.subr.mxu0 0.0
      %7148 = vmatpush1.msra.mxu0 0.0
      %7149 = vmatprep.subr.mxu0 0.0
      %7150 = vmatpush1.msra.mxu0 0.0
      %7151 = vmatprep.subr.mxu0 0.0
      %7152 = vmatpush1.msra.mxu0 0.0
      %7153 = vmatprep.subr.mxu0 0.0
      %7154 = vmatpush1.msra.mxu0 0.0
      %7155 = vmatprep.subr.mxu0 0.0
      %7156 = vmatpush1.msra.mxu0 0.0
      %7157 = vmatprep.subr.mxu0 0.0
      %7158 = vmatpush1.msra.mxu0 0.0
      %7159 = vmatprep.subr.mxu0 0.0
      %7160 = vmatpush1.msra.mxu0 0.0
      %7161 = vmatprep.subr.mxu0 0.0
      %7162 = vmatpush1.msra.mxu0 0.0
      %7163 = vmatprep.subr.mxu0 0.0
      %7164 = vmatpush1.msra.mxu0 0.0
      %7165 = vmatprep.subr.mxu0 0.0
      %7166 = vmatpush1.msra.mxu0 0.0
      %7167 = vmatprep.mubr.f32.mxu0 0.0
      %7168 = vmatmul.mubr.f32.gmra.mrb[0].mxu0 %v7089
      %v7169 = vpop.f32.mrb[0].mxu0
      %v7170 = vadd.f32 0.0, %v7169
      %v7171 = vpop.f32.mrb[0].mxu0
      %v7172 = vadd.f32 0.0, %v7171
      %7173 = vdwg.mxu0
      %7174 = vmatprep.subr.mxu0 %v7101
      %7175 = vmatpush1.msra.mxu0 %v7098
      %7176 = vmatprep.subr.mxu0 0.0
      %7177 = vmatpush1.msra.mxu0 0.0
      %7178 = vmatprep.subr.mxu0 0.0
      %7179 = vmatpush1.msra.mxu0 0.0
      %7180 = vmatprep.subr.mxu0 0.0
      %7181 = vmatpush1.msra.mxu0 0.0
      %7182 = vmatprep.subr.mxu0 0.0
      %7183 = vmatpush1.msra.mxu0 0.0
      %7184 = vmatprep.subr.mxu0 0.0
      %7185 = vmatpush1.msra.mxu0 0.0
      %7186 = vmatprep.subr.mxu0 0.0
      %7187 = vmatpush1.msra.mxu0 0.0
      %7188 = vmatprep.subr.mxu0 0.0
      %7189 = vmatpush1.msra.mxu0 0.0
      %7190 = vmatprep.subr.mxu0 0.0
      %7191 = vmatpush1.msra.mxu0 0.0
      %7192 = vmatprep.subr.mxu0 0.0
      %7193 = vmatpush1.msra.mxu0 0.0
      %7194 = vmatprep.subr.mxu0 0.0
      %7195 = vmatpush1.msra.mxu0 0.0
      %7196 = vmatprep.subr.mxu0 0.0
      %7197 = vmatpush1.msra.mxu0 0.0
      %7198 = vmatprep.subr.mxu0 0.0
      %7199 = vmatpush1.msra.mxu0 0.0
      %7200 = vmatprep.subr.mxu0 0.0
      %7201 = vmatpush1.msra.mxu0 0.0
      %7202 = vmatprep.subr.mxu0 0.0
      %7203 = vmatpush1.msra.mxu0 0.0
      %7204 = vmatprep.subr.mxu0 0.0
      %7205 = vmatpush1.msra.mxu0 0.0
      %7206 = vmatprep.subr.mxu0 0.0
      %7207 = vmatpush1.msra.mxu0 0.0
      %7208 = vmatprep.subr.mxu0 0.0
      %7209 = vmatpush1.msra.mxu0 0.0
      %7210 = vmatprep.subr.mxu0 0.0
      %7211 = vmatpush1.msra.mxu0 0.0
      %7212 = vmatprep.subr.mxu0 0.0
      %7213 = vmatpush1.msra.mxu0 0.0
      %7214 = vmatprep.subr.mxu0 0.0
      %7215 = vmatpush1.msra.mxu0 0.0
      %7216 = vmatprep.subr.mxu0 0.0
      %7217 = vmatpush1.msra.mxu0 0.0
      %7218 = vmatprep.subr.mxu0 0.0
      %7219 = vmatpush1.msra.mxu0 0.0
      %7220 = vmatprep.subr.mxu0 0.0
      %7221 = vmatpush1.msra.mxu0 0.0
      %7222 = vmatprep.subr.mxu0 0.0
      %7223 = vmatpush1.msra.mxu0 0.0
      %7224 = vmatprep.subr.mxu0 0.0
      %7225 = vmatpush1.msra.mxu0 0.0
      %7226 = vmatprep.subr.mxu0 0.0
      %7227 = vmatpush1.msra.mxu0 0.0
      %7228 = vmatprep.subr.mxu0 0.0
      %7229 = vmatpush1.msra.mxu0 0.0
      %7230 = vmatprep.subr.mxu0 0.0
      %7231 = vmatpush1.msra.mxu0 0.0
      %7232 = vmatprep.subr.mxu0 0.0
      %7233 = vmatpush1.msra.mxu0 0.0
      %7234 = vmatprep.subr.mxu0 0.0
      %7235 = vmatpush1.msra.mxu0 0.0
      %7236 = vmatprep.subr.mxu0 0.0
      %7237 = vmatpush1.msra.mxu0 0.0
      %7238 = vmatprep.mubr.f32.mxu0 0.0
      %7239 = vmatmul.mubr.f32.gmra.mrb[0].mxu0 %v7089
      %v7240 = vpop.f32.mrb[0].mxu0
      %v7241 = vadd.f32 0.0, %v7240
      %v7242 = vpop.f32.mrb[0].mxu0
      %v7243 = vadd.f32 0.0, %v7242
      %7244 = vdwg.mxu0
      %v7245 = vadd.f32 %v7029, %v7170
      %v7246 = vadd.f32 %v7030, %v7172
      %v7247 = vadd.f32 %v7031, %v7241
      %v7248 = vadd.f32 %v7032, %v7243
      %v7249 = vld [vmem:[#allocation2 + $0x4] sm:$0xff]
      %v7250 = vld [vmem:[#allocation2 + $0xc] sm:$0xff]
      %v7251 = vld [vmem:[#allocation2 + $0x14] sm:$0xf]
      %vm7252 = vmand %vm7036, %vm1882
      %v7253 = vsel %vm7252, 1, 0
      %v7254 = vlaneseq
      %v7255 = vshrl.u32 %v7254, 7
      %v7256 = vsub.s32 0, %v7255
      %v7257 = vrot.slane %v7253, %v7256
      %v7258 = vlaneseq
      %v7259 = vshrl.u32 %v7258, 7
      %v7260 = vsub.s32 1, %v7259
      %v7261 = vrot.slane %v7253, %v7260
      %v7262 = vlaneseq
      %v7263 = vshrl.u32 %v7262, 7
      %v7264 = vsub.s32 2, %v7263
      %v7265 = vrot.slane %v7253, %v7264
      %v7266 = vlaneseq
      %v7267 = vshrl.u32 %v7266, 7
      %v7268 = vsub.s32 3, %v7267
      %v7269 = vrot.slane %v7253, %v7268
      %vm7270 = vcmp.eq.s32.totalorder %v7257, 1
      %vm7271 = vcmp.eq.s32.totalorder %v7261, 1
      %vm7272 = vcmp.eq.s32.totalorder %v7265, 1
      %vm7273 = vcmp.eq.s32.totalorder %v7269, 1
      %v7277 = vcombine.high %v7249, %v7249
      %v7278 = vcombine.high %v7250, %v7250
      %7279 = vrot.lane.b32.xlu0 %v7249, 56
      %v7280 = vpop.permute.xlu0 %7279
      %7281 = vrot.lane.b32.xlu0 %v7277, 56
      %v7282 = vpop.permute.xlu0 %7281
      %7283 = vrot.lane.b32.xlu0 %v7250, 56
      %v7284 = vpop.permute.xlu0 %7283
      %7285 = vrot.lane.b32.xlu0 %v7278, 56
      %v7286 = vpop.permute.xlu0 %7285
      %7287 = vrot.lane.b32.xlu0 %v7251, 56
      %v7288 = vpop.permute.xlu0 %7287
      %v7289 = vsel %vm3427, %v7280, %v7282
      %v7290 = vsel %vm3427, %v7282, %v7284
      %v7291 = vsel %vm3427, %v7284, %v7286
      %v7292 = vsel %vm3427, %v7286, %v7288
      %v7297 = vsel %vm7270, %v7289, 0.0
      %v7298 = vsel %vm7271, %v7290, 0.0
      %v7299 = vsel %vm7272, %v7291, 0.0
      %v7300 = vsel %vm7273, %v7292, 0.0
      %s7301 = scalar_lea.vmem %s5, 100
      %v7302 = vld [vmem:[%s7301] sm:$0xf]
      %v7304 = vsel %vm1991, %v7302, 0
      %v7307 = vsel %vm1830, %v7297, 0
      %v7310 = vsel %vm1830, %v7298, 0
      %v7313 = vsel %vm1830, %v7299, 0
      %v7316 = vsel %vm1830, %v7300, 0
      %7318 = vmatprep.subr.mxu0 %v7310
      %7319 = vmatpush1.msra.mxu0 %v7307
      %7320 = vmatprep.subr.mxu0 0.0
      %7321 = vmatpush1.msra.mxu0 0.0
      %7322 = vmatprep.subr.mxu0 0.0
      %7323 = vmatpush1.msra.mxu0 0.0
      %7324 = vmatprep.subr.mxu0 0.0
      %7325 = vmatpush1.msra.mxu0 0.0
      %7326 = vmatprep.subr.mxu0 0.0
      %7327 = vmatpush1.msra.mxu0 0.0
      %7328 = vmatprep.subr.mxu0 0.0
      %7329 = vmatpush1.msra.mxu0 0.0
      %7330 = vmatprep.subr.mxu0 0.0
      %7331 = vmatpush1.msra.mxu0 0.0
      %7332 = vmatprep.subr.mxu0 0.0
      %7333 = vmatpush1.msra.mxu0 0.0
      %7334 = vmatprep.subr.mxu0 0.0
      %7335 = vmatpush1.msra.mxu0 0.0
      %7336 = vmatprep.subr.mxu0 0.0
      %7337 = vmatpush1.msra.mxu0 0.0
      %7338 = vmatprep.subr.mxu0 0.0
      %7339 = vmatpush1.msra.mxu0 0.0
      %7340 = vmatprep.subr.mxu0 0.0
      %7341 = vmatpush1.msra.mxu0 0.0
      %7342 = vmatprep.subr.mxu0 0.0
      %7343 = vmatpush1.msra.mxu0 0.0
      %7344 = vmatprep.subr.mxu0 0.0
      %7345 = vmatpush1.msra.mxu0 0.0
      %7346 = vmatprep.subr.mxu0 0.0
      %7347 = vmatpush1.msra.mxu0 0.0
      %7348 = vmatprep.subr.mxu0 0.0
      %7349 = vmatpush1.msra.mxu0 0.0
      %7350 = vmatprep.subr.mxu0 0.0
      %7351 = vmatpush1.msra.mxu0 0.0
      %7352 = vmatprep.subr.mxu0 0.0
      %7353 = vmatpush1.msra.mxu0 0.0
      %7354 = vmatprep.subr.mxu0 0.0
      %7355 = vmatpush1.msra.mxu0 0.0
      %7356 = vmatprep.subr.mxu0 0.0
      %7357 = vmatpush1.msra.mxu0 0.0
      %7358 = vmatprep.subr.mxu0 0.0
      %7359 = vmatpush1.msra.mxu0 0.0
      %7360 = vmatprep.subr.mxu0 0.0
      %7361 = vmatpush1.msra.mxu0 0.0
      %7362 = vmatprep.subr.mxu0 0.0
      %7363 = vmatpush1.msra.mxu0 0.0
      %7364 = vmatprep.subr.mxu0 0.0
      %7365 = vmatpush1.msra.mxu0 0.0
      %7366 = vmatprep.subr.mxu0 0.0
      %7367 = vmatpush1.msra.mxu0 0.0
      %7368 = vmatprep.subr.mxu0 0.0
      %7369 = vmatpush1.msra.mxu0 0.0
      %7370 = vmatprep.subr.mxu0 0.0
      %7371 = vmatpush1.msra.mxu0 0.0
      %7372 = vmatprep.subr.mxu0 0.0
      %7373 = vmatpush1.msra.mxu0 0.0
      %7374 = vmatprep.subr.mxu0 0.0
      %7375 = vmatpush1.msra.mxu0 0.0
      %7376 = vmatprep.subr.mxu0 0.0
      %7377 = vmatpush1.msra.mxu0 0.0
      %7378 = vmatprep.subr.mxu0 0.0
      %7379 = vmatpush1.msra.mxu0 0.0
      %7380 = vmatprep.subr.mxu0 0.0
      %7381 = vmatpush1.msra.mxu0 0.0
      %7382 = vmatprep.mubr.f32.mxu0 0.0
      %7383 = vmatmul.mubr.f32.gmra.mrb[0].mxu0 %v7304
      %v7384 = vpop.f32.mrb[0].mxu0
      %v7385 = vadd.f32 0.0, %v7384
      %v7386 = vpop.f32.mrb[0].mxu0
      %v7387 = vadd.f32 0.0, %v7386
      %7388 = vdwg.mxu0
      %7389 = vmatprep.subr.mxu0 %v7316
      %7390 = vmatpush1.msra.mxu0 %v7313
      %7391 = vmatprep.subr.mxu0 0.0
      %7392 = vmatpush1.msra.mxu0 0.0
      %7393 = vmatprep.subr.mxu0 0.0
      %7394 = vmatpush1.msra.mxu0 0.0
      %7395 = vmatprep.subr.mxu0 0.0
      %7396 = vmatpush1.msra.mxu0 0.0
      %7397 = vmatprep.subr.mxu0 0.0
      %7398 = vmatpush1.msra.mxu0 0.0
      %7399 = vmatprep.subr.mxu0 0.0
      %7400 = vmatpush1.msra.mxu0 0.0
      %7401 = vmatprep.subr.mxu0 0.0
      %7402 = vmatpush1.msra.mxu0 0.0
      %7403 = vmatprep.subr.mxu0 0.0
      %7404 = vmatpush1.msra.mxu0 0.0
      %7405 = vmatprep.subr.mxu0 0.0
      %7406 = vmatpush1.msra.mxu0 0.0
      %7407 = vmatprep.subr.mxu0 0.0
      %7408 = vmatpush1.msra.mxu0 0.0
      %7409 = vmatprep.subr.mxu0 0.0
      %7410 = vmatpush1.msra.mxu0 0.0
      %7411 = vmatprep.subr.mxu0 0.0
      %7412 = vmatpush1.msra.mxu0 0.0
      %7413 = vmatprep.subr.mxu0 0.0
      %7414 = vmatpush1.msra.mxu0 0.0
      %7415 = vmatprep.subr.mxu0 0.0
      %7416 = vmatpush1.msra.mxu0 0.0
      %7417 = vmatprep.subr.mxu0 0.0
      %7418 = vmatpush1.msra.mxu0 0.0
      %7419 = vmatprep.subr.mxu0 0.0
      %7420 = vmatpush1.msra.mxu0 0.0
      %7421 = vmatprep.subr.mxu0 0.0
      %7422 = vmatpush1.msra.mxu0 0.0
      %7423 = vmatprep.subr.mxu0 0.0
      %7424 = vmatpush1.msra.mxu0 0.0
      %7425 = vmatprep.subr.mxu0 0.0
      %7426 = vmatpush1.msra.mxu0 0.0
      %7427 = vmatprep.subr.mxu0 0.0
      %7428 = vmatpush1.msra.mxu0 0.0
      %7429 = vmatprep.subr.mxu0 0.0
      %7430 = vmatpush1.msra.mxu0 0.0
      %7431 = vmatprep.subr.mxu0 0.0
      %7432 = vmatpush1.msra.mxu0 0.0
      %7433 = vmatprep.subr.mxu0 0.0
      %7434 = vmatpush1.msra.mxu0 0.0
      %7435 = vmatprep.subr.mxu0 0.0
      %7436 = vmatpush1.msra.mxu0 0.0
      %7437 = vmatprep.subr.mxu0 0.0
      %7438 = vmatpush1.msra.mxu0 0.0
      %7439 = vmatprep.subr.mxu0 0.0
      %7440 = vmatpush1.msra.mxu0 0.0
      %7441 = vmatprep.subr.mxu0 0.0
      %7442 = vmatpush1.msra.mxu0 0.0
      %7443 = vmatprep.subr.mxu0 0.0
      %7444 = vmatpush1.msra.mxu0 0.0
      %7445 = vmatprep.subr.mxu0 0.0
      %7446 = vmatpush1.msra.mxu0 0.0
      %7447 = vmatprep.subr.mxu0 0.0
      %7448 = vmatpush1.msra.mxu0 0.0
      %7449 = vmatprep.subr.mxu0 0.0
      %7450 = vmatpush1.msra.mxu0 0.0
      %7451 = vmatprep.subr.mxu0 0.0
      %7452 = vmatpush1.msra.mxu0 0.0
      %7453 = vmatprep.mubr.f32.mxu0 0.0
      %7454 = vmatmul.mubr.f32.gmra.mrb[0].mxu0 %v7304
      %v7455 = vpop.f32.mrb[0].mxu0
      %v7456 = vadd.f32 0.0, %v7455
      %v7457 = vpop.f32.mrb[0].mxu0
      %v7458 = vadd.f32 0.0, %v7457
      %7459 = vdwg.mxu0
      %v7460 = vadd.f32 %v7245, %v7385
      %v7461 = vadd.f32 %v7246, %v7387
      %v7462 = vadd.f32 %v7247, %v7456
      %v7463 = vadd.f32 %v7248, %v7458
      %v7464 = vld [vmem:[#allocation2 + $0x4] sm:$0xff]
      %v7465 = vld [vmem:[#allocation2 + $0xc] sm:$0xff]
      %v7466 = vld [vmem:[#allocation2 + $0x14] sm:$0xf]
      %vm7467 = vmand %vm7036, %vm1888
      %v7468 = vsel %vm7467, 1, 0
      %v7469 = vlaneseq
      %v7470 = vshrl.u32 %v7469, 7
      %v7471 = vsub.s32 0, %v7470
      %v7472 = vrot.slane %v7468, %v7471
      %v7473 = vlaneseq
      %v7474 = vshrl.u32 %v7473, 7
      %v7475 = vsub.s32 1, %v7474
      %v7476 = vrot.slane %v7468, %v7475
      %v7477 = vlaneseq
      %v7478 = vshrl.u32 %v7477, 7
      %v7479 = vsub.s32 2, %v7478
      %v7480 = vrot.slane %v7468, %v7479
      %v7481 = vlaneseq
      %v7482 = vshrl.u32 %v7481, 7
      %v7483 = vsub.s32 3, %v7482
      %v7484 = vrot.slane %v7468, %v7483
      %vm7485 = vcmp.eq.s32.totalorder %v7472, 1
      %vm7486 = vcmp.eq.s32.totalorder %v7476, 1
      %vm7487 = vcmp.eq.s32.totalorder %v7480, 1
      %vm7488 = vcmp.eq.s32.totalorder %v7484, 1
      %v7492 = vcombine.high %v7464, %v7464
      %v7493 = vcombine.high %v7465, %v7465
      %7494 = vrot.lane.b32.xlu0 %v7464, 55
      %v7495 = vpop.permute.xlu0 %7494
      %7496 = vrot.lane.b32.xlu0 %v7492, 55
      %v7497 = vpop.permute.xlu0 %7496
      %7498 = vrot.lane.b32.xlu0 %v7465, 55
      %v7499 = vpop.permute.xlu0 %7498
      %7500 = vrot.lane.b32.xlu0 %v7493, 55
      %v7501 = vpop.permute.xlu0 %7500
      %7502 = vrot.lane.b32.xlu0 %v7466, 55
      %v7503 = vpop.permute.xlu0 %7502
      %v7504 = vsel %vm3643, %v7495, %v7497
      %v7505 = vsel %vm3643, %v7497, %v7499
      %v7506 = vsel %vm3643, %v7499, %v7501
      %v7507 = vsel %vm3643, %v7501, %v7503
      %v7512 = vsel %vm7485, %v7504, 0.0
      %v7513 = vsel %vm7486, %v7505, 0.0
      %v7514 = vsel %vm7487, %v7506, 0.0
      %v7515 = vsel %vm7488, %v7507, 0.0
      %s7516 = scalar_lea.vmem %s5, 104
      %v7517 = vld [vmem:[%s7516] sm:$0xf]
      %v7519 = vsel %vm1991, %v7517, 0
      %v7522 = vsel %vm1830, %v7512, 0
      %v7525 = vsel %vm1830, %v7513, 0
      %v7528 = vsel %vm1830, %v7514, 0
      %v7531 = vsel %vm1830, %v7515, 0
      %7533 = vmatprep.subr.mxu0 %v7525
      %7534 = vmatpush1.msra.mxu0 %v7522
      %7535 = vmatprep.subr.mxu0 0.0
      %7536 = vmatpush1.msra.mxu0 0.0
      %7537 = vmatprep.subr.mxu0 0.0
      %7538 = vmatpush1.msra.mxu0 0.0
      %7539 = vmatprep.subr.mxu0 0.0
      %7540 = vmatpush1.msra.mxu0 0.0
      %7541 = vmatprep.subr.mxu0 0.0
      %7542 = vmatpush1.msra.mxu0 0.0
      %7543 = vmatprep.subr.mxu0 0.0
      %7544 = vmatpush1.msra.mxu0 0.0
      %7545 = vmatprep.subr.mxu0 0.0
      %7546 = vmatpush1.msra.mxu0 0.0
      %7547 = vmatprep.subr.mxu0 0.0
      %7548 = vmatpush1.msra.mxu0 0.0
      %7549 = vmatprep.subr.mxu0 0.0
      %7550 = vmatpush1.msra.mxu0 0.0
      %7551 = vmatprep.subr.mxu0 0.0
      %7552 = vmatpush1.msra.mxu0 0.0
      %7553 = vmatprep.subr.mxu0 0.0
      %7554 = vmatpush1.msra.mxu0 0.0
      %7555 = vmatprep.subr.mxu0 0.0
      %7556 = vmatpush1.msra.mxu0 0.0
      %7557 = vmatprep.subr.mxu0 0.0
      %7558 = vmatpush1.msra.mxu0 0.0
      %7559 = vmatprep.subr.mxu0 0.0
      %7560 = vmatpush1.msra.mxu0 0.0
      %7561 = vmatprep.subr.mxu0 0.0
      %7562 = vmatpush1.msra.mxu0 0.0
      %7563 = vmatprep.subr.mxu0 0.0
      %7564 = vmatpush1.msra.mxu0 0.0
      %7565 = vmatprep.subr.mxu0 0.0
      %7566 = vmatpush1.msra.mxu0 0.0
      %7567 = vmatprep.subr.mxu0 0.0
      %7568 = vmatpush1.msra.mxu0 0.0
      %7569 = vmatprep.subr.mxu0 0.0
      %7570 = vmatpush1.msra.mxu0 0.0
      %7571 = vmatprep.subr.mxu0 0.0
      %7572 = vmatpush1.msra.mxu0 0.0
      %7573 = vmatprep.subr.mxu0 0.0
      %7574 = vmatpush1.msra.mxu0 0.0
      %7575 = vmatprep.subr.mxu0 0.0
      %7576 = vmatpush1.msra.mxu0 0.0
      %7577 = vmatprep.subr.mxu0 0.0
      %7578 = vmatpush1.msra.mxu0 0.0
      %7579 = vmatprep.subr.mxu0 0.0
      %7580 = vmatpush1.msra.mxu0 0.0
      %7581 = vmatprep.subr.mxu0 0.0
      %7582 = vmatpush1.msra.mxu0 0.0
      %7583 = vmatprep.subr.mxu0 0.0
      %7584 = vmatpush1.msra.mxu0 0.0
      %7585 = vmatprep.subr.mxu0 0.0
      %7586 = vmatpush1.msra.mxu0 0.0
      %7587 = vmatprep.subr.mxu0 0.0
      %7588 = vmatpush1.msra.mxu0 0.0
      %7589 = vmatprep.subr.mxu0 0.0
      %7590 = vmatpush1.msra.mxu0 0.0
      %7591 = vmatprep.subr.mxu0 0.0
      %7592 = vmatpush1.msra.mxu0 0.0
      %7593 = vmatprep.subr.mxu0 0.0
      %7594 = vmatpush1.msra.mxu0 0.0
      %7595 = vmatprep.subr.mxu0 0.0
      %7596 = vmatpush1.msra.mxu0 0.0
      %7597 = vmatprep.mubr.f32.mxu0 0.0
      %7598 = vmatmul.mubr.f32.gmra.mrb[0].mxu0 %v7519
      %v7599 = vpop.f32.mrb[0].mxu0
      %v7600 = vadd.f32 0.0, %v7599
      %v7601 = vpop.f32.mrb[0].mxu0
      %v7602 = vadd.f32 0.0, %v7601
      %7603 = vdwg.mxu0
      %7604 = vmatprep.subr.mxu0 %v7531
      %7605 = vmatpush1.msra.mxu0 %v7528
      %7606 = vmatprep.subr.mxu0 0.0
      %7607 = vmatpush1.msra.mxu0 0.0
      %7608 = vmatprep.subr.mxu0 0.0
      %7609 = vmatpush1.msra.mxu0 0.0
      %7610 = vmatprep.subr.mxu0 0.0
      %7611 = vmatpush1.msra.mxu0 0.0
      %7612 = vmatprep.subr.mxu0 0.0
      %7613 = vmatpush1.msra.mxu0 0.0
      %7614 = vmatprep.subr.mxu0 0.0
      %7615 = vmatpush1.msra.mxu0 0.0
      %7616 = vmatprep.subr.mxu0 0.0
      %7617 = vmatpush1.msra.mxu0 0.0
      %7618 = vmatprep.subr.mxu0 0.0
      %7619 = vmatpush1.msra.mxu0 0.0
      %7620 = vmatprep.subr.mxu0 0.0
      %7621 = vmatpush1.msra.mxu0 0.0
      %7622 = vmatprep.subr.mxu0 0.0
      %7623 = vmatpush1.msra.mxu0 0.0
      %7624 = vmatprep.subr.mxu0 0.0
      %7625 = vmatpush1.msra.mxu0 0.0
      %7626 = vmatprep.subr.mxu0 0.0
      %7627 = vmatpush1.msra.mxu0 0.0
      %7628 = vmatprep.subr.mxu0 0.0
      %7629 = vmatpush1.msra.mxu0 0.0
      %7630 = vmatprep.subr.mxu0 0.0
      %7631 = vmatpush1.msra.mxu0 0.0
      %7632 = vmatprep.subr.mxu0 0.0
      %7633 = vmatpush1.msra.mxu0 0.0
      %7634 = vmatprep.subr.mxu0 0.0
      %7635 = vmatpush1.msra.mxu0 0.0
      %7636 = vmatprep.subr.mxu0 0.0
      %7637 = vmatpush1.msra.mxu0 0.0
      %7638 = vmatprep.subr.mxu0 0.0
      %7639 = vmatpush1.msra.mxu0 0.0
      %7640 = vmatprep.subr.mxu0 0.0
      %7641 = vmatpush1.msra.mxu0 0.0
      %7642 = vmatprep.subr.mxu0 0.0
      %7643 = vmatpush1.msra.mxu0 0.0
      %7644 = vmatprep.subr.mxu0 0.0
      %7645 = vmatpush1.msra.mxu0 0.0
      %7646 = vmatprep.subr.mxu0 0.0
      %7647 = vmatpush1.msra.mxu0 0.0
      %7648 = vmatprep.subr.mxu0 0.0
      %7649 = vmatpush1.msra.mxu0 0.0
      %7650 = vmatprep.subr.mxu0 0.0
      %7651 = vmatpush1.msra.mxu0 0.0
      %7652 = vmatprep.subr.mxu0 0.0
      %7653 = vmatpush1.msra.mxu0 0.0
      %7654 = vmatprep.subr.mxu0 0.0
      %7655 = vmatpush1.msra.mxu0 0.0
      %7656 = vmatprep.subr.mxu0 0.0
      %7657 = vmatpush1.msra.mxu0 0.0
      %7658 = vmatprep.subr.mxu0 0.0
      %7659 = vmatpush1.msra.mxu0 0.0
      %7660 = vmatprep.subr.mxu0 0.0
      %7661 = vmatpush1.msra.mxu0 0.0
      %7662 = vmatprep.subr.mxu0 0.0
      %7663 = vmatpush1.msra.mxu0 0.0
      %7664 = vmatprep.subr.mxu0 0.0
      %7665 = vmatpush1.msra.mxu0 0.0
      %7666 = vmatprep.subr.mxu0 0.0
      %7667 = vmatpush1.msra.mxu0 0.0
      %7668 = vmatprep.mubr.f32.mxu0 0.0
      %7669 = vmatmul.mubr.f32.gmra.mrb[0].mxu0 %v7519
      %v7670 = vpop.f32.mrb[0].mxu0
      %v7671 = vadd.f32 0.0, %v7670
      %v7672 = vpop.f32.mrb[0].mxu0
      %v7673 = vadd.f32 0.0, %v7672
      %7674 = vdwg.mxu0
      %v7675 = vadd.f32 %v7460, %v7600
      %v7676 = vadd.f32 %v7461, %v7602
      %v7677 = vadd.f32 %v7462, %v7671
      %v7678 = vadd.f32 %v7463, %v7673
      %v7679 = vsel %vm1830, %v7675, 0.0
      %v7680 = vsel %vm1830, %v7676, 0.0
      %v7681 = vadd.f32 %v7679, %v7680
      %v7682 = vsel %vm1830, %v7677, 0.0
      %v7683 = vadd.f32 %v7681, %v7682
      %v7684 = vsel %vm1830, %v7678, 0.0
      %v7685 = vadd.f32 %v7683, %v7684
      %7686 = vadd.xlane.f32.xlu0 %v7685
      %v7687 = vpop.xlane.xlu0 %7686
      %v7688 = vmul.f32 %v7687, %v1840
      %v7689 = vsub.f32 %v7675, %v7688
      %v7690 = vsub.f32 %v7676, %v7688
      %v7691 = vsub.f32 %v7677, %v7688
      %v7692 = vsub.f32 %v7678, %v7688
      %v7693 = vmul.f32 %v7689, %v7689
      %v7694 = vmul.f32 %v7690, %v7690
      %v7695 = vmul.f32 %v7691, %v7691
      %v7696 = vmul.f32 %v7692, %v7692
      %v7697 = vsel %vm1830, %v7693, 0.0
      %v7698 = vsel %vm1830, %v7694, 0.0
      %v7699 = vadd.f32 %v7697, %v7698
      %v7700 = vsel %vm1830, %v7695, 0.0
      %v7701 = vadd.f32 %v7699, %v7700
      %v7702 = vsel %vm1830, %v7696, 0.0
      %v7703 = vadd.f32 %v7701, %v7702
      %7704 = vadd.xlane.f32.xlu0 %v7703
      %v7705 = vpop.xlane.xlu0 %7704
      %v7706 = vmul.f32 %v7705, %v1840
      %v7707 = vadd.f32 %v7706, 1e-05
      %v7708 = vrsqrt.pop %v7707
      %v7709 = vmul.f32 %v7689, %v7708
      %v7710 = vmul.f32 %v7690, %v7708
      %v7711 = vmul.f32 %v7691, %v7708
      %v7712 = vmul.f32 %v7692, %v7708
      %v7713 = vmax.f32 %v7709, 0.0
      %v7714 = vmax.f32 %v7710, 0.0
      %v7715 = vmax.f32 %v7711, 0.0
      %v7716 = vmax.f32 %v7712, 0.0
      %v7717 = vld [vmem:[%s6] sm:$0xff]
      %v7719 = vsel %vm1991, %v7717, 0
      %v7722 = vsel %vm1830, %v7713, 0
      %v7725 = vsel %vm1830, %v7714, 0
      %v7728 = vsel %vm1830, %v7715, 0
      %v7731 = vsel %vm1830, %v7716, 0
      %7733 = vmatprep.subr.mxu0 %v7725
      %7734 = vmatpush1.msra.mxu0 %v7722
      %7735 = vmatprep.subr.mxu0 0.0
      %7736 = vmatpush1.msra.mxu0 0.0
      %7737 = vmatprep.subr.mxu0 0.0
      %7738 = vmatpush1.msra.mxu0 0.0
      %7739 = vmatprep.subr.mxu0 0.0
      %7740 = vmatpush1.msra.mxu0 0.0
      %7741 = vmatprep.subr.mxu0 0.0
      %7742 = vmatpush1.msra.mxu0 0.0
      %7743 = vmatprep.subr.mxu0 0.0
      %7744 = vmatpush1.msra.mxu0 0.0
      %7745 = vmatprep.subr.mxu0 0.0
      %7746 = vmatpush1.msra.mxu0 0.0
      %7747 = vmatprep.subr.mxu0 0.0
      %7748 = vmatpush1.msra.mxu0 0.0
      %7749 = vmatprep.subr.mxu0 0.0
      %7750 = vmatpush1.msra.mxu0 0.0
      %7751 = vmatprep.subr.mxu0 0.0
      %7752 = vmatpush1.msra.mxu0 0.0
      %7753 = vmatprep.subr.mxu0 0.0
      %7754 = vmatpush1.msra.mxu0 0.0
      %7755 = vmatprep.subr.mxu0 0.0
      %7756 = vmatpush1.msra.mxu0 0.0
      %7757 = vmatprep.subr.mxu0 0.0
      %7758 = vmatpush1.msra.mxu0 0.0
      %7759 = vmatprep.subr.mxu0 0.0
      %7760 = vmatpush1.msra.mxu0 0.0
      %7761 = vmatprep.subr.mxu0 0.0
      %7762 = vmatpush1.msra.mxu0 0.0
      %7763 = vmatprep.subr.mxu0 0.0
      %7764 = vmatpush1.msra.mxu0 0.0
      %7765 = vmatprep.subr.mxu0 0.0
      %7766 = vmatpush1.msra.mxu0 0.0
      %7767 = vmatprep.subr.mxu0 0.0
      %7768 = vmatpush1.msra.mxu0 0.0
      %7769 = vmatprep.subr.mxu0 0.0
      %7770 = vmatpush1.msra.mxu0 0.0
      %7771 = vmatprep.subr.mxu0 0.0
      %7772 = vmatpush1.msra.mxu0 0.0
      %7773 = vmatprep.subr.mxu0 0.0
      %7774 = vmatpush1.msra.mxu0 0.0
      %7775 = vmatprep.subr.mxu0 0.0
      %7776 = vmatpush1.msra.mxu0 0.0
      %7777 = vmatprep.subr.mxu0 0.0
      %7778 = vmatpush1.msra.mxu0 0.0
      %7779 = vmatprep.subr.mxu0 0.0
      %7780 = vmatpush1.msra.mxu0 0.0
      %7781 = vmatprep.subr.mxu0 0.0
      %7782 = vmatpush1.msra.mxu0 0.0
      %7783 = vmatprep.subr.mxu0 0.0
      %7784 = vmatpush1.msra.mxu0 0.0
      %7785 = vmatprep.subr.mxu0 0.0
      %7786 = vmatpush1.msra.mxu0 0.0
      %7787 = vmatprep.subr.mxu0 0.0
      %7788 = vmatpush1.msra.mxu0 0.0
      %7789 = vmatprep.subr.mxu0 0.0
      %7790 = vmatpush1.msra.mxu0 0.0
      %7791 = vmatprep.subr.mxu0 0.0
      %7792 = vmatpush1.msra.mxu0 0.0
      %7793 = vmatprep.subr.mxu0 0.0
      %7794 = vmatpush1.msra.mxu0 0.0
      %7795 = vmatprep.subr.mxu0 0.0
      %7796 = vmatpush1.msra.mxu0 0.0
      %7797 = vmatprep.mubr.f32.mxu0 0.0
      %7798 = vmatmul.mubr.f32.gmra.mrb[0].mxu0 %v7719
      %v7799 = vpop.f32.mrb[0].mxu0
      %v7800 = vadd.f32 0.0, %v7799
      %v7801 = vpop.f32.mrb[0].mxu0
      %v7802 = vadd.f32 0.0, %v7801
      %7803 = vdwg.mxu0
      %7804 = vmatprep.subr.mxu0 %v7731
      %7805 = vmatpush1.msra.mxu0 %v7728
      %7806 = vmatprep.subr.mxu0 0.0
      %7807 = vmatpush1.msra.mxu0 0.0
      %7808 = vmatprep.subr.mxu0 0.0
      %7809 = vmatpush1.msra.mxu0 0.0
      %7810 = vmatprep.subr.mxu0 0.0
      %7811 = vmatpush1.msra.mxu0 0.0
      %7812 = vmatprep.subr.mxu0 0.0
      %7813 = vmatpush1.msra.mxu0 0.0
      %7814 = vmatprep.subr.mxu0 0.0
      %7815 = vmatpush1.msra.mxu0 0.0
      %7816 = vmatprep.subr.mxu0 0.0
      %7817 = vmatpush1.msra.mxu0 0.0
      %7818 = vmatprep.subr.mxu0 0.0
      %7819 = vmatpush1.msra.mxu0 0.0
      %7820 = vmatprep.subr.mxu0 0.0
      %7821 = vmatpush1.msra.mxu0 0.0
      %7822 = vmatprep.subr.mxu0 0.0
      %7823 = vmatpush1.msra.mxu0 0.0
      %7824 = vmatprep.subr.mxu0 0.0
      %7825 = vmatpush1.msra.mxu0 0.0
      %7826 = vmatprep.subr.mxu0 0.0
      %7827 = vmatpush1.msra.mxu0 0.0
      %7828 = vmatprep.subr.mxu0 0.0
      %7829 = vmatpush1.msra.mxu0 0.0
      %7830 = vmatprep.subr.mxu0 0.0
      %7831 = vmatpush1.msra.mxu0 0.0
      %7832 = vmatprep.subr.mxu0 0.0
      %7833 = vmatpush1.msra.mxu0 0.0
      %7834 = vmatprep.subr.mxu0 0.0
      %7835 = vmatpush1.msra.mxu0 0.0
      %7836 = vmatprep.subr.mxu0 0.0
      %7837 = vmatpush1.msra.mxu0 0.0
      %7838 = vmatprep.subr.mxu0 0.0
      %7839 = vmatpush1.msra.mxu0 0.0
      %7840 = vmatprep.subr.mxu0 0.0
      %7841 = vmatpush1.msra.mxu0 0.0
      %7842 = vmatprep.subr.mxu0 0.0
      %7843 = vmatpush1.msra.mxu0 0.0
      %7844 = vmatprep.subr.mxu0 0.0
      %7845 = vmatpush1.msra.mxu0 0.0
      %7846 = vmatprep.subr.mxu0 0.0
      %7847 = vmatpush1.msra.mxu0 0.0
      %7848 = vmatprep.subr.mxu0 0.0
      %7849 = vmatpush1.msra.mxu0 0.0
      %7850 = vmatprep.subr.mxu0 0.0
      %7851 = vmatpush1.msra.mxu0 0.0
      %7852 = vmatprep.subr.mxu0 0.0
      %7853 = vmatpush1.msra.mxu0 0.0
      %7854 = vmatprep.subr.mxu0 0.0
      %7855 = vmatpush1.msra.mxu0 0.0
      %7856 = vmatprep.subr.mxu0 0.0
      %7857 = vmatpush1.msra.mxu0 0.0
      %7858 = vmatprep.subr.mxu0 0.0
      %7859 = vmatpush1.msra.mxu0 0.0
      %7860 = vmatprep.subr.mxu0 0.0
      %7861 = vmatpush1.msra.mxu0 0.0
      %7862 = vmatprep.subr.mxu0 0.0
      %7863 = vmatpush1.msra.mxu0 0.0
      %7864 = vmatprep.subr.mxu0 0.0
      %7865 = vmatpush1.msra.mxu0 0.0
      %7866 = vmatprep.subr.mxu0 0.0
      %7867 = vmatpush1.msra.mxu0 0.0
      %7868 = vmatprep.mubr.f32.mxu0 0.0
      %7869 = vmatmul.mubr.f32.gmra.mrb[0].mxu0 %v7719
      %v7870 = vpop.f32.mrb[0].mxu0
      %v7871 = vadd.f32 0.0, %v7870
      %v7872 = vpop.f32.mrb[0].mxu0
      %v7873 = vadd.f32 0.0, %v7872
      %7874 = vdwg.mxu0
      %v7875 = vadd.f32 %v7800, %v7802
      %v7876 = vadd.f32 %v7875, %v7871
      %v7877 = vadd.f32 %v7876, %v7873
      %7878 = vadd.xlane.f32.xlu0 %v7877
      %v7879 = vpop.xlane.xlu0 %7878
      %v7880 = vmul.f32 %v7879, %v1840
      %v7881 = vsub.f32 %v7800, %v7880
      %v7882 = vsub.f32 %v7802, %v7880
      %v7883 = vsub.f32 %v7871, %v7880
      %v7884 = vsub.f32 %v7873, %v7880
      %v7885 = vmul.f32 %v7881, %v7881
      %v7886 = vmul.f32 %v7882, %v7882
      %v7887 = vmul.f32 %v7883, %v7883
      %v7888 = vmul.f32 %v7884, %v7884
      %v7889 = vadd.f32 %v7885, %v7886
      %v7890 = vadd.f32 %v7889, %v7887
      %v7891 = vadd.f32 %v7890, %v7888
      %7892 = vadd.xlane.f32.xlu0 %v7891
      %v7893 = vpop.xlane.xlu0 %7892
      %v7894 = vmul.f32 %v7893, %v1840
      %v7895 = vadd.f32 %v7894, 1e-05
      %v7896 = vrsqrt.pop %v7895
      %v7897 = vmul.f32 %v7881, %v7896
      %v7898 = vmul.f32 %v7882, %v7896
      %v7899 = vmul.f32 %v7883, %v7896
      %v7900 = vmul.f32 %v7884, %v7896
      %v7901 = vadd.f32 %v7897, %v1680
      %v7902 = vadd.f32 %v7898, %v1681
      %v7903 = vadd.f32 %v7899, %v1682
      %v7904 = vadd.f32 %v7900, %v1683
      %v7905 = vmax.f32 %v7901, 0.0
      %v7906 = vmax.f32 %v7902, 0.0
      %v7907 = vmax.f32 %v7903, 0.0
      %v7908 = vmax.f32 %v7904, 0.0
      %7909 = vst [vmem:[%s278] sm:$0xff] %v7905
      %7910 = vst [vmem:[%s278 + $0x8] sm:$0xff] %v7906
      %7911 = vst [vmem:[%s278 + $0x10] sm:$0xff] %v7907
      %7912 = vst [vmem:[%s278 + $0x18] sm:$0xff] %v7908
      %p7913 = scmp.lt.s32.totalorder %s18, 1
      %s7914 = scalar_select %p7913, %s18, 1
      %s7915 = smul.addr %s7914, 4
      %s7916 = smul.addr %s7915, 8
      %s7917 = scalar_lea.vmem %s7, %s7916
      // Predicated region
      $region49: #{residual_block_up_forward.1} parent=47 // pred_check
        %p7918 = pneg %p188
      $region50: #{residual_block_up_forward.1} parent=47 // pred_check_branch
        %7920 = sbr.rel (%p7918) target = $region52
      $region51: #{residual_block_up_forward.1} parent=47 // pred_region
        _
      $region52: #{residual_block_up_forward.1} parent=47 // pred_fallthru
        _
    $region48: #{residual_block_up_forward.1} parent=5 // pred_fallthru
      _
    %p7921 = scmp.le.s32.totalorder 2, %s13
    // Predicated region
    $region53: #{residual_block_up_forward.1} parent=5 // pred_check
      %p7922 = pneg %p7921
    $region54: #{residual_block_up_forward.1} parent=5 // pred_check_branch
      %7924 = sbr.rel (%p7922) target = $region56
    $region55: #{residual_block_up_forward.1} parent=5 // pred_region
      %s7925 = ssub.s32 %s13, 2
      // Predicated region
      $region57: #{residual_block_up_forward.1} parent=55 // pred_check
        %p7926 = pneg %p194
      $region58: #{residual_block_up_forward.1} parent=55 // pred_check_branch
        %7928 = sbr.rel (%p7926) target = $region60
      $region59: #{residual_block_up_forward.1} parent=55 // pred_region
        %p7929 = scmp.lt.s32.totalorder %s19, 1
        %s7930 = scalar_select %p7929, %s19, 1
        %s7931 = smul.addr %s7930, 4
        %s7932 = smul.addr %s7931, 8
        %s7933 = scalar_lea.vmem %s7, %s7932
      $region60: #{residual_block_up_forward.1} parent=55 // pred_fallthru
        _
    $region56: #{residual_block_up_forward.1} parent=5 // pred_fallthru
      _
  $region6: #{residual_block_up_forward.1} parent=0 // loop_footer
    %s17 = sadd.s32 1, %s13
  $region7: #{residual_block_up_forward.1} parent=0 // loop_footer_branch
    %12 = sbr.rel target = $region3
  $region8: #{residual_block_up_forward.1} parent=0 // loop_exit
    _

</llo_original>
